<compile_context>
chip_gen: v7x
topology: tpu7x:2x2x1
jax: 0.10.0
libtpu: 0.0.40
codegen_flags: <defaults>
</compile_context>

<pallas_src>
import functools

import jax
import jax.numpy as jnp
from jax.experimental import pallas as pl
from jax.experimental.pallas import tpu as pltpu

# Safe everywhere (v5e/v6e/v7x).  On v6e with large spatial tiles this can be
# raised toward ~100 MiB; on v7x keep headroom under the 64 MiB physical VMEM.
_VMEM_LIMIT_BYTES = 32 * 1024 * 1024


# ---------------------------------------------------------------------------
# In-kernel helpers
# ---------------------------------------------------------------------------
def _zero_halo(ref):
    """Zero only the 1-pixel halo of a (Hp, Wp, C) padded VMEM scratch buffer."""
    Hp, Wp, Cc = ref.shape
    zrow = jnp.zeros((1, Wp, Cc), ref.dtype)
    ref[pl.ds(0, 1), :, :] = zrow
    ref[pl.ds(Hp - 1, 1), :, :] = zrow
    zcol = jnp.zeros((Hp, 1, Cc), ref.dtype)
    ref[:, pl.ds(0, 1), :] = zcol
    ref[:, pl.ds(Wp - 1, 1), :] = zcol


def _conv3x3_relu(src_ref, get_tap_w, bias, Hs, Ws, cin, cout):
    """3x3 'same' conv + bias + ReLU from a zero-haloed padded bf16 scratch.

    src_ref: (Hs+2, Ws+2, cin) bf16 scratch ref with a zero 1-px halo.
    get_tap_w(t): returns the (cin, cout) bf16 tap weight for t = kh*3 + kw.
    bias: (1, cout) f32 (BN already folded into the weights).
    Returns the (Hs*Ws, cout) f32 activation.
    """
    HW = Hs * Ws
    acc = jnp.zeros((HW, cout), jnp.float32)
    # TODO(synk): fold the kw taps into the contraction dim (K = 3*cin) to raise
    # MXU utilization further.
    for kh in range(3):
        for kw in range(3):
            patch = src_ref[pl.ds(kh, Hs), pl.ds(kw, Ws), :]      # (Hs, Ws, cin)
            acc = acc + jnp.dot(patch.reshape(HW, cin),
                                get_tap_w(kh * 3 + kw),
                                preferred_element_type=jnp.float32)
    return jnp.maximum(acc + bias, 0.0)


# ---------------------------------------------------------------------------
# Fully fused kernel: upsample + CCA gate + gated skip + concat + conv stack.
# One grid step per batch element; everything stays in VMEM.
# ---------------------------------------------------------------------------
def _make_upblock_kernel(n_rest, Hs, Ws, H, W, C, Cout):
    inv_hw_skip = 1.0 / float(Hs * Ws)
    inv_hw_x = 1.0 / float(H * W)

    def kernel(skip_ref, x_ref, rep_ref, wx_ref, bx_ref, wg_ref, bg_ref,
               w1_ref, b1_ref, wr_ref, br_ref, out_ref,
               cat_ref, act_a_ref, act_b_ref):
        # Re-zero only the 1-px halo each step; interiors are fully rewritten.
        _zero_halo(cat_ref)
        if n_rest >= 1:
            _zero_halo(act_a_ref)
        if n_rest >= 2:
            _zero_halo(act_b_ref)

        skip = skip_ref[0].astype(jnp.float32)        # (Hs, Ws, C)
        x_lo = x_ref[0].astype(jnp.float32)           # (H,  W,  C)

        # ---- CCA channel gate: global avg pools + two linears + sigmoid -----
        # avg-pool of the nearest-upsampled x equals the avg-pool of x, so only
        # the low-res x is ever read.
        pooled_skip = (jnp.sum(jnp.sum(skip, axis=0), axis=0)
                       * inv_hw_skip)[None, :]                    # (1, C)
        pooled_up = (jnp.sum(jnp.sum(x_lo, axis=0), axis=0)
                     * inv_hw_x)[None, :]                         # (1, C)
        att_x = jnp.dot(pooled_skip, wx_ref[...],
                        preferred_element_type=jnp.float32) + bx_ref[...]
        att_g = jnp.dot(pooled_up, wg_ref[...],
                        preferred_element_type=jnp.float32) + bg_ref[...]
        att = jax.nn.sigmoid((att_x + att_g) * 0.5)               # (1, C)

        # ---- gated skip: relu(skip * att) ------------------------------------
        gated = jnp.maximum(skip * att[0][None, None, :], 0.0)    # (Hs, Ws, C)

        # ---- 2x nearest-neighbour upsample of x -------------------------------
        # Column replication via one batched matmul against a 0/1 matrix (exact),
        # row duplication via a layout-free leading-dim broadcast + reshape.
        x_bf = x_lo.astype(jnp.bfloat16)
        rep_b = jnp.broadcast_to(rep_ref[...][None, :, :], (H, Ws, W))
        up_cols = jnp.einsum('hvw,hwc->hvc', rep_b, x_bf,
                             preferred_element_type=jnp.float32)  # (H, Ws, C)
        up = jnp.broadcast_to(up_cols[:, None, :, :],
                              (H, 2, Ws, C)).reshape(Hs, Ws, C)

        # ---- concat([gated skip, up]) stored ONCE into the padded scratch -----
        cat = jnp.concatenate([gated, up], axis=-1)               # (Hs, Ws, 2C)
        cat_ref[pl.ds(1, Hs), pl.ds(1, Ws), :] = cat.astype(cat_ref.dtype)

        # ---- Conv3x3(+folded BN)+ReLU stack, fully resident in VMEM -----------
        y = _conv3x3_relu(cat_ref, lambda t: w1_ref[t], b1_ref[...],
                          Hs, Ws, 2 * C, Cout)
        if n_rest == 0:
            out_ref[0] = y.reshape(Hs, Ws, Cout).astype(out_ref.dtype)
            return

        acts = (act_a_ref, act_b_ref)
        acts[0][pl.ds(1, Hs), pl.ds(1, Ws), :] = (
            y.reshape(Hs, Ws, Cout).astype(act_a_ref.dtype))
        for i in range(n_rest):
            y = _conv3x3_relu(acts[i % 2], lambda t, i=i: wr_ref[i, t],
                              br_ref[i], Hs, Ws, Cout, Cout)
            if i == n_rest - 1:
                out_ref[0] = y.reshape(Hs, Ws, Cout).astype(out_ref.dtype)
            else:
                dst = acts[(i + 1) % 2]
                dst[pl.ds(1, Hs), pl.ds(1, Ws), :] = (
                    y.reshape(Hs, Ws, Cout).astype(dst.dtype))

    return kernel


def _upblock_pallas(skip_nhwc, x_nhwc, params, n_rest):
    B, Hs, Ws, C = skip_nhwc.shape
    _, H, W, _ = x_nhwc.shape
    assert Hs == 2 * H and Ws == 2 * W

    first = params["first"]
    cca = first["cca"]
    Cout = first["w"].shape[-1]

    if n_rest > 0:
        wr = params["rest"]["w"]            # (n_rest, 9, Cout, Cout) bf16
        br = params["rest"]["bias"]         # (n_rest, 1, Cout) f32
    else:                                   # dummies, never touched in-kernel
        wr = jnp.zeros((1, 9, Cout, Cout), jnp.bfloat16)
        br = jnp.zeros((1, 1, Cout), jnp.float32)

    # 0/1 column-replication matrix for the 2x nearest upsample (tiny constant,
    # built outside the kernel so no iota/where work lands on the VPU).
    rep = (jnp.arange(Ws)[:, None] // 2 ==
           jnp.arange(W)[None, :]).astype(jnp.bfloat16)           # (Ws, W)

    kernel = _make_upblock_kernel(n_rest, Hs, Ws, H, W, C, Cout)

    return pl.pallas_call(
        kernel,
        out_shape=jax.ShapeDtypeStruct((B, Hs, Ws, Cout), skip_nhwc.dtype),
        grid=(B,),
        in_specs=[
            pl.BlockSpec((1, Hs, Ws, C), lambda b: (b, 0, 0, 0)),   # skip
            pl.BlockSpec((1, H, W, C), lambda b: (b, 0, 0, 0)),     # low-res x
            pl.BlockSpec((Ws, W), lambda b: (0, 0)),                # rep matrix
            pl.BlockSpec((C, C), lambda b: (0, 0)),                 # CCA wx
            pl.BlockSpec((1, C), lambda b: (0, 0)),                 # CCA bx
            pl.BlockSpec((C, C), lambda b: (0, 0)),                 # CCA wg
            pl.BlockSpec((1, C), lambda b: (0, 0)),                 # CCA bg
            pl.BlockSpec((9, 2 * C, Cout), lambda b: (0, 0, 0)),    # conv1 w
            pl.BlockSpec((1, Cout), lambda b: (0, 0)),              # conv1 bias
            pl.BlockSpec(wr.shape, lambda b: (0, 0, 0, 0)),         # rest w
            pl.BlockSpec(br.shape, lambda b: (0, 0, 0)),            # rest bias
        ],
        out_specs=pl.BlockSpec((1, Hs, Ws, Cout), lambda b: (b, 0, 0, 0)),
        scratch_shapes=[
            pltpu.VMEM((Hs + 2, Ws + 2, 2 * C), jnp.bfloat16),  # padded concat
            pltpu.VMEM((Hs + 2, Ws + 2, Cout), jnp.bfloat16),   # ping act
            pltpu.VMEM((Hs + 2, Ws + 2, Cout), jnp.bfloat16),   # pong act
        ],
        compiler_params=pltpu.CompilerParams(
            dimension_semantics=("parallel",),
            vmem_limit_bytes=_VMEM_LIMIT_BYTES),
    )(skip_nhwc, x_nhwc, rep, cca["wx"], cca["bx"], cca["wg"], cca["bg"],
      first["w"], first["bias"], wr, br)


# ---------------------------------------------------------------------------
# Public wrappers
# ---------------------------------------------------------------------------
@functools.partial(jax.jit, static_argnames=("n_rest",))
def _up_block_attention_nhwc_impl(skip_nhwc, x_nhwc, params, *, n_rest):
    return _upblock_pallas(skip_nhwc, x_nhwc, params, n_rest)


def up_block_attention_nhwc(x_nhwc, skip_nhwc, params):
    """NHWC-native entry point (preferred: no NCHW<->NHWC transposes)."""
    n_rest = 0 if params["rest"] is None else int(params["rest"]["w"].shape[0])
    return _up_block_attention_nhwc_impl(skip_nhwc, x_nhwc, params, n_rest=n_rest)


@functools.partial(jax.jit, static_argnames=("n_rest",))
def _up_block_attention_nchw_impl(x_nchw, skip_nchw, params, *, n_rest):
    x_nhwc = jnp.transpose(x_nchw, (0, 2, 3, 1))
    skip_nhwc = jnp.transpose(skip_nchw, (0, 2, 3, 1))
    out = _upblock_pallas(skip_nhwc, x_nhwc, params, n_rest)
    return jnp.transpose(out, (0, 3, 1, 2))


def up_block_attention(x_nchw, skip_nchw, params):
    """Drop-in forward for PyTorch UpBlock_attention (NCHW in / NCHW out)."""
    n_rest = 0 if params["rest"] is None else int(params["rest"]["w"].shape[0])
    return _up_block_attention_nchw_impl(x_nchw, skip_nchw, params, n_rest=n_rest)


# ---------------------------------------------------------------------------
# Parameter construction (deterministic, synthetic).  BN (inference stats) is
# folded into the conv weights / bias in HWIO layout, then flattened to
# (9, Cin, Cout) tap-major and cast to bf16.
# ---------------------------------------------------------------------------
def init_params(key, in_channels, out_channels, nb_conv):
    assert in_channels % 2 == 0 and nb_conv >= 1
    c_half = in_channels // 2
    keys = jax.random.split(key, 4 + 2 * nb_conv)
    eps = 1e-5

    cca = {
        "wx": 0.1 * jax.random.normal(keys[0], (c_half, c_half), jnp.float32),
        "bx": 0.1 * jax.random.normal(keys[1], (1, c_half), jnp.float32),
        "wg": 0.1 * jax.random.normal(keys[2], (c_half, c_half), jnp.float32),
        "bg": 0.1 * jax.random.normal(keys[3], (1, c_half), jnp.float32),
    }

    def fold_bn(w_hwio, conv_bias):
        cout = w_hwio.shape[-1]
        gamma = jnp.ones((cout,), jnp.float32)
        beta = jnp.zeros((cout,), jnp.float32)
        mean = jnp.zeros((cout,), jnp.float32)
        var = jnp.ones((cout,), jnp.float32)
        scale = gamma / jnp.sqrt(var + eps)
        return w_hwio * scale[None, None, None, :], beta + (conv_bias - mean) * scale

    # First conv consumes concat([gated skip, up]) -> full 2*c_half input width.
    w1 = 0.1 * jax.random.normal(keys[4], (3, 3, in_channels, out_channels),
                                 jnp.float32)
    b1 = 0.05 * jax.random.normal(keys[5], (out_channels,), jnp.float32)
    w1, bias1 = fold_bn(w1, b1)
    first = {
        "cca": cca,
        "w": w1.reshape(9, in_channels, out_channels).astype(jnp.bfloat16),
        "bias": bias1.reshape(1, out_channels),
    }

    if nb_conv > 1:
        ws, bs = [], []
        for i in range(1, nb_conv):
            w = 0.1 * jax.random.normal(
                keys[4 + 2 * i], (3, 3, out_channels, out_channels), jnp.float32)
            b = 0.05 * jax.random.normal(keys[5 + 2 * i], (out_channels,),
                                         jnp.float32)
            w, bias = fold_bn(w, b)
            ws.append(w.reshape(9, out_channels, out_channels).astype(jnp.bfloat16))
            bs.append(bias.reshape(1, out_channels))
        rest = {"w": jnp.stack(ws), "bias": jnp.stack(bs)}
    else:
        rest = None
    return {"first": first, "rest": rest}


# ---------------------------------------------------------------------------
# Pure-JAX (XLA) reference of the PyTorch forward, with the same folded bf16
# weights but f32 activations throughout (kernel uses bf16 activations).
# ---------------------------------------------------------------------------
def _reference_up_block(x_nchw, skip_nchw, params):
    x = jnp.transpose(x_nchw, (0, 2, 3, 1)).astype(jnp.float32)
    skip = jnp.transpose(skip_nchw, (0, 2, 3, 1)).astype(jnp.float32)
    up = jnp.repeat(jnp.repeat(x, 2, axis=1), 2, axis=2)

    cca = params["first"]["cca"]
    pooled_skip = jnp.mean(skip, axis=(1, 2))
    pooled_up = jnp.mean(up, axis=(1, 2))
    att = jax.nn.sigmoid(
        ((pooled_skip @ cca["wx"] + cca["bx"]) +
         (pooled_up @ cca["wg"] + cca["bg"])) * 0.5)
    gated = jnp.maximum(skip * att[:, None, None, :], 0.0)
    feat = jnp.concatenate([gated, up], axis=-1)

    def conv_bn_relu(inp, w9, bias):
        cin, cout = w9.shape[-2], w9.shape[-1]
        w = w9.astype(jnp.float32).reshape(3, 3, cin, cout)
        y = jax.lax.conv_general_dilated(
            inp, w, window_strides=(1, 1), padding="SAME",
            dimension_numbers=("NHWC", "HWIO", "NHWC"))
        return jnp.maximum(y + bias.reshape(1, 1, 1, cout), 0.0)

    y = conv_bn_relu(feat, params["first"]["w"], params["first"]["bias"])
    if params["rest"] is not None:
        for i in range(params["rest"]["w"].shape[0]):
            y = conv_bn_relu(y, params["rest"]["w"][i], params["rest"]["bias"][i])
    return jnp.transpose(y, (0, 3, 1, 2))


if __name__ == "__main__":
    key = jax.random.PRNGKey(0)
    B = 2
    in_channels = 8          # concat channels; each branch has in_channels//2 = 4
    out_channels = 4
    nb_conv = 2
    c_half = in_channels // 2
    H, W = 8, 8              # low-res input; skip connection is (2H, 2W)

    kx, ks, kp = jax.random.split(key, 3)
    x = jax.random.normal(kx, (B, c_half, H, W), jnp.float32)
    skip_x = jax.random.normal(ks, (B, c_half, 2 * H, 2 * W), jnp.float32)
    params = init_params(kp, in_channels, out_channels, nb_conv)

    out = up_block_attention(x, skip_x, params)
    jax.block_until_ready(out)
    assert out.shape == (B, out_channels, 2 * H, 2 * W), out.shape

    ref = _reference_up_block(x, skip_x, params)
    max_err = float(jnp.max(jnp.abs(out - ref)))
    assert max_err < 1e-1, f"max abs error vs reference: {max_err}"
    print("KERNEL_OK")
</pallas_src>

<mosaic_0001>
module attributes {stable_mosaic.version = 11 : i64} {
  func.func @kernel(%arg0: i32, %arg1: memref<1x16x16x4xf32, #tpu.memory_space<vmem>>, %arg2: memref<1x8x8x4xf32, #tpu.memory_space<vmem>>, %arg3: memref<16x8xbf16, #tpu.memory_space<vmem>>, %arg4: memref<4x4xf32, #tpu.memory_space<vmem>>, %arg5: memref<1x4xf32, #tpu.memory_space<vmem>>, %arg6: memref<4x4xf32, #tpu.memory_space<vmem>>, %arg7: memref<1x4xf32, #tpu.memory_space<vmem>>, %arg8: memref<9x8x4xbf16, #tpu.memory_space<vmem>>, %arg9: memref<1x4xf32, #tpu.memory_space<vmem>>, %arg10: memref<1x9x4x4xbf16, #tpu.memory_space<vmem>>, %arg11: memref<1x1x4xf32, #tpu.memory_space<vmem>>, %arg12: memref<1x16x16x4xf32, #tpu.memory_space<vmem>>, %arg13: memref<18x18x8xbf16, #tpu.memory_space<vmem>>, %arg14: memref<18x18x4xbf16, #tpu.memory_space<vmem>>, %arg15: memref<18x18x4xbf16, #tpu.memory_space<vmem>>) attributes {dimension_semantics = [#tpu.dimension_semantics<parallel>], iteration_bounds = array<i64: 2>, scalar_prefetch = 0 : i64, scratch_operands = 3 : i64, tpu.core_type = #tpu.core_type<tc>, window_params = [{transform_indices = @transform_0, window_bounds = array<i64: 1, 16, 16, 4>}, {transform_indices = @transform_1, window_bounds = array<i64: 1, 8, 8, 4>}, {pipeline_mode = #tpu.pipeline_mode<synchronous>, transform_indices = @transform_2, window_bounds = array<i64: 16, 8>}, {pipeline_mode = #tpu.pipeline_mode<synchronous>, transform_indices = @transform_3, window_bounds = array<i64: 4, 4>}, {pipeline_mode = #tpu.pipeline_mode<synchronous>, transform_indices = @transform_4, window_bounds = array<i64: 1, 4>}, {pipeline_mode = #tpu.pipeline_mode<synchronous>, transform_indices = @transform_5, window_bounds = array<i64: 4, 4>}, {pipeline_mode = #tpu.pipeline_mode<synchronous>, transform_indices = @transform_6, window_bounds = array<i64: 1, 4>}, {pipeline_mode = #tpu.pipeline_mode<synchronous>, transform_indices = @transform_7, window_bounds = array<i64: 9, 8, 4>}, {pipeline_mode = #tpu.pipeline_mode<synchronous>, transform_indices = @transform_8, window_bounds = array<i64: 1, 4>}, {pipeline_mode = #tpu.pipeline_mode<synchronous>, transform_indices = @transform_9, window_bounds = array<i64: 1, 9, 4, 4>}, {pipeline_mode = #tpu.pipeline_mode<synchronous>, transform_indices = @transform_10, window_bounds = array<i64: 1, 1, 4>}, {transform_indices = @transform_11, window_bounds = array<i64: 1, 16, 16, 4>}]} {
    %cst = arith.constant 0.000000e+00 : bf16
    %0 = vector.broadcast %cst : bf16 to vector<1x18x8xbf16>
    %c0 = arith.constant 0 : index
    %c0_0 = arith.constant 0 : index
    %c0_1 = arith.constant 0 : index
    %1 = vector.load %arg13[%c0, %c0_0, %c0_1] : memref<18x18x8xbf16, #tpu.memory_space<vmem>>, vector<1x18x8xbf16>
    tpu.vector_store %arg13[%c0, %c0_0, %c0_1], %0 {strides = array<i32>} : memref<18x18x8xbf16, #tpu.memory_space<vmem>>, vector<1x18x8xbf16>,
    %c17 = arith.constant 17 : index
    %c0_2 = arith.constant 0 : index
    %c0_3 = arith.constant 0 : index
    %2 = vector.load %arg13[%c17, %c0_2, %c0_3] : memref<18x18x8xbf16, #tpu.memory_space<vmem>>, vector<1x18x8xbf16>
    tpu.vector_store %arg13[%c17, %c0_2, %c0_3], %0 {strides = array<i32>} : memref<18x18x8xbf16, #tpu.memory_space<vmem>>, vector<1x18x8xbf16>,
    %cst_4 = arith.constant 0.000000e+00 : bf16
    %3 = vector.broadcast %cst_4 : bf16 to vector<18x1x8xbf16>
    %c0_5 = arith.constant 0 : index
    %c0_6 = arith.constant 0 : index
    %c0_7 = arith.constant 0 : index
    %4 = vector.load %arg13[%c0_5, %c0_6, %c0_7] : memref<18x18x8xbf16, #tpu.memory_space<vmem>>, vector<18x1x8xbf16>
    tpu.vector_store %arg13[%c0_5, %c0_6, %c0_7], %3 {strides = array<i32>} : memref<18x18x8xbf16, #tpu.memory_space<vmem>>, vector<18x1x8xbf16>,
    %c0_8 = arith.constant 0 : index
    %c17_9 = arith.constant 17 : index
    %c0_10 = arith.constant 0 : index
    %5 = vector.load %arg13[%c0_8, %c17_9, %c0_10] : memref<18x18x8xbf16, #tpu.memory_space<vmem>>, vector<18x1x8xbf16>
    tpu.vector_store %arg13[%c0_8, %c17_9, %c0_10], %3 {strides = array<i32>} : memref<18x18x8xbf16, #tpu.memory_space<vmem>>, vector<18x1x8xbf16>,
    %cst_11 = arith.constant 0.000000e+00 : bf16
    %6 = vector.broadcast %cst_11 : bf16 to vector<1x18x4xbf16>
    %c0_12 = arith.constant 0 : index
    %c0_13 = arith.constant 0 : index
    %c0_14 = arith.constant 0 : index
    %7 = vector.load %arg14[%c0_12, %c0_13, %c0_14] : memref<18x18x4xbf16, #tpu.memory_space<vmem>>, vector<1x18x4xbf16>
    tpu.vector_store %arg14[%c0_12, %c0_13, %c0_14], %6 {strides = array<i32>} : memref<18x18x4xbf16, #tpu.memory_space<vmem>>, vector<1x18x4xbf16>,
    %c17_15 = arith.constant 17 : index
    %c0_16 = arith.constant 0 : index
    %c0_17 = arith.constant 0 : index
    %8 = vector.load %arg14[%c17_15, %c0_16, %c0_17] : memref<18x18x4xbf16, #tpu.memory_space<vmem>>, vector<1x18x4xbf16>
    tpu.vector_store %arg14[%c17_15, %c0_16, %c0_17], %6 {strides = array<i32>} : memref<18x18x4xbf16, #tpu.memory_space<vmem>>, vector<1x18x4xbf16>,
    %cst_18 = arith.constant 0.000000e+00 : bf16
    %9 = vector.broadcast %cst_18 : bf16 to vector<18x1x4xbf16>
    %c0_19 = arith.constant 0 : index
    %c0_20 = arith.constant 0 : index
    %c0_21 = arith.constant 0 : index
    %10 = vector.load %arg14[%c0_19, %c0_20, %c0_21] : memref<18x18x4xbf16, #tpu.memory_space<vmem>>, vector<18x1x4xbf16>
    tpu.vector_store %arg14[%c0_19, %c0_20, %c0_21], %9 {strides = array<i32>} : memref<18x18x4xbf16, #tpu.memory_space<vmem>>, vector<18x1x4xbf16>,
    %c0_22 = arith.constant 0 : index
    %c17_23 = arith.constant 17 : index
    %c0_24 = arith.constant 0 : index
    %11 = vector.load %arg14[%c0_22, %c17_23, %c0_24] : memref<18x18x4xbf16, #tpu.memory_space<vmem>>, vector<18x1x4xbf16>
    tpu.vector_store %arg14[%c0_22, %c17_23, %c0_24], %9 {strides = array<i32>} : memref<18x18x4xbf16, #tpu.memory_space<vmem>>, vector<18x1x4xbf16>,
    %c0_25 = arith.constant 0 : index
    %c0_26 = arith.constant 0 : index
    %c0_27 = arith.constant 0 : index
    %c0_28 = arith.constant 0 : index
    %12 = vector.load %arg1[%c0_25, %c0_26, %c0_27, %c0_28] : memref<1x16x16x4xf32, #tpu.memory_space<vmem>>, vector<1x16x16x4xf32>
    %13 = vector.shape_cast %12 : vector<1x16x16x4xf32> to vector<16x16x4xf32>
    %c0_29 = arith.constant 0 : index
    %c0_30 = arith.constant 0 : index
    %c0_31 = arith.constant 0 : index
    %c0_32 = arith.constant 0 : index
    %14 = vector.load %arg2[%c0_29, %c0_30, %c0_31, %c0_32] : memref<1x8x8x4xf32, #tpu.memory_space<vmem>>, vector<1x8x8x4xf32>
    %15 = vector.shape_cast %14 : vector<1x8x8x4xf32> to vector<8x8x4xf32>
    %cst_33 = arith.constant dense<0.000000e+00> : vector<16x4xf32>
    %16 = vector.multi_reduction <add>, %13, %cst_33 [0] : vector<16x16x4xf32> to vector<16x4xf32>
    %cst_34 = arith.constant dense<0.000000e+00> : vector<4xf32>
    %17 = vector.multi_reduction <add>, %16, %cst_34 [0] : vector<16x4xf32> to vector<4xf32>
    %cst_35 = arith.constant 3.906250e-03 : f32
    %18 = vector.broadcast %cst_35 : f32 to vector<4xf32>
    %19 = arith.mulf %17, %18 : vector<4xf32>
    %20 = vector.shape_cast %19 : vector<4xf32> to vector<1x4xf32>
    %cst_36 = arith.constant dense<0.000000e+00> : vector<8x4xf32>
    %21 = vector.multi_reduction <add>, %15, %cst_36 [0] : vector<8x8x4xf32> to vector<8x4xf32>
    %cst_37 = arith.constant dense<0.000000e+00> : vector<4xf32>
    %22 = vector.multi_reduction <add>, %21, %cst_37 [0] : vector<8x4xf32> to vector<4xf32>
    %cst_38 = arith.constant 1.562500e-02 : f32
    %23 = vector.broadcast %cst_38 : f32 to vector<4xf32>
    %24 = arith.mulf %22, %23 : vector<4xf32>
    %25 = vector.shape_cast %24 : vector<4xf32> to vector<1x4xf32>
    %c0_39 = arith.constant 0 : index
    %c0_40 = arith.constant 0 : index
    %26 = vector.load %arg4[%c0_39, %c0_40] : memref<4x4xf32, #tpu.memory_space<vmem>>, vector<4x4xf32>
    %cst_41 = arith.constant dense<0.000000e+00> : vector<1x4xf32>
    %27 = tpu.matmul %20, %26, %cst_41 {dimension_numbers = #tpu.dot_dimension_numbers<[1], [0], [0], [1], [0, 0, 1, 1], [], []>} : vector<1x4xf32>, vector<4x4xf32>, vector<1x4xf32> -> vector<1x4xf32>
    %c0_42 = arith.constant 0 : index
    %c0_43 = arith.constant 0 : index
    %28 = vector.load %arg5[%c0_42, %c0_43] : memref<1x4xf32, #tpu.memory_space<vmem>>, vector<1x4xf32>
    %29 = arith.addf %27, %28 : vector<1x4xf32>
    %c0_44 = arith.constant 0 : index
    %c0_45 = arith.constant 0 : index
    %30 = vector.load %arg6[%c0_44, %c0_45] : memref<4x4xf32, #tpu.memory_space<vmem>>, vector<4x4xf32>
    %cst_46 = arith.constant dense<0.000000e+00> : vector<1x4xf32>
    %31 = tpu.matmul %25, %30, %cst_46 {dimension_numbers = #tpu.dot_dimension_numbers<[1], [0], [0], [1], [0, 0, 1, 1], [], []>} : vector<1x4xf32>, vector<4x4xf32>, vector<1x4xf32> -> vector<1x4xf32>
    %c0_47 = arith.constant 0 : index
    %c0_48 = arith.constant 0 : index
    %32 = vector.load %arg7[%c0_47, %c0_48] : memref<1x4xf32, #tpu.memory_space<vmem>>, vector<1x4xf32>
    %33 = arith.addf %31, %32 : vector<1x4xf32>
    %34 = arith.addf %29, %33 : vector<1x4xf32>
    %cst_49 = arith.constant 5.000000e-01 : f32
    %35 = vector.broadcast %cst_49 : f32 to vector<1x4xf32>
    %36 = arith.mulf %34, %35 : vector<1x4xf32>
    %37 = arith.negf %36 : vector<1x4xf32>
    %38 = math.exp %37 : vector<1x4xf32>
    %cst_50 = arith.constant 1.000000e+00 : f32
    %39 = vector.broadcast %cst_50 : f32 to vector<1x4xf32>
    %40 = arith.addf %39, %38 : vector<1x4xf32>
    %41 = arith.divf %39, %40 : vector<1x4xf32>
    %42 = vector.shape_cast %41 : vector<1x4xf32> to vector<4xf32>
    %43 = vector.shape_cast %42 : vector<4xf32> to vector<1x1x4xf32>
    %44 = vector.broadcast %43 : vector<1x1x4xf32> to vector<16x16x4xf32>
    %45 = arith.mulf %13, %44 : vector<16x16x4xf32>
    %cst_51 = arith.constant 0.000000e+00 : f32
    %46 = vector.broadcast %cst_51 : f32 to vector<16x16x4xf32>
    %47 = arith.maximumf %45, %46 : vector<16x16x4xf32>
    %48 = arith.truncf %15 : vector<8x8x4xf32> to vector<8x8x4xbf16>
    %c0_52 = arith.constant 0 : index
    %c0_53 = arith.constant 0 : index
    %49 = vector.load %arg3[%c0_52, %c0_53] : memref<16x8xbf16, #tpu.memory_space<vmem>>, vector<16x8xbf16>
    %50 = vector.shape_cast %49 : vector<16x8xbf16> to vector<1x16x8xbf16>
    %51 = vector.shape_cast %50 : vector<1x16x8xbf16> to vector<1x16x8xbf16>
    %52 = vector.broadcast %51 : vector<1x16x8xbf16> to vector<8x16x8xbf16>
    "tpu.trace_start"() <{level = 10 : i32, message = "hvw,hwc->hvc"}> : () -> ()
    %cst_54 = arith.constant dense<0.000000e+00> : vector<8x16x4xf32>
    %53 = tpu.matmul %52, %48, %cst_54 {dimension_numbers = #tpu.dot_dimension_numbers<[2], [1], [1], [2], [0, 0, 0, 1, 1, 2], [0], [0]>} : vector<8x16x8xbf16>, vector<8x8x4xbf16>, vector<8x16x4xf32> -> vector<8x16x4xf32>
    "tpu.trace_stop"() : () -> ()
    %54 = vector.shape_cast %53 : vector<8x16x4xf32> to vector<8x1x16x4xf32>
    %55 = vector.shape_cast %54 : vector<8x1x16x4xf32> to vector<8x1x16x4xf32>
    %56 = vector.broadcast %55 : vector<8x1x16x4xf32> to vector<8x2x16x4xf32>
    %57 = vector.shape_cast %56 : vector<8x2x16x4xf32> to vector<16x16x4xf32>
    %58 = tpu.concatenate %47, %57 in 2 : vector<16x16x4xf32>, vector<16x16x4xf32> -> vector<16x16x8xf32>
    %59 = arith.truncf %58 : vector<16x16x8xf32> to vector<16x16x8xbf16>
    %c1 = arith.constant 1 : index
    %c1_55 = arith.constant 1 : index
    %c0_56 = arith.constant 0 : index
    %60 = vector.load %arg13[%c1, %c1_55, %c0_56] : memref<18x18x8xbf16, #tpu.memory_space<vmem>>, vector<16x16x8xbf16>
    tpu.vector_store %arg13[%c1, %c1_55, %c0_56], %59 {strides = array<i32>} : memref<18x18x8xbf16, #tpu.memory_space<vmem>>, vector<16x16x8xbf16>,
    %c0_57 = arith.constant 0 : index
    %c0_58 = arith.constant 0 : index
    %61 = vector.load %arg9[%c0_57, %c0_58] : memref<1x4xf32, #tpu.memory_space<vmem>>, vector<1x4xf32>
    %cst_59 = arith.constant 0.000000e+00 : f32
    %62 = vector.broadcast %cst_59 : f32 to vector<256x4xf32>
    %c0_60 = arith.constant 0 : index
    %c0_61 = arith.constant 0 : index
    %c0_62 = arith.constant 0 : index
    %63 = vector.load %arg13[%c0_60, %c0_61, %c0_62] : memref<18x18x8xbf16, #tpu.memory_space<vmem>>, vector<16x16x8xbf16>
    %64 = vector.shape_cast %63 : vector<16x16x8xbf16> to vector<256x8xbf16>
    %c0_63 = arith.constant 0 : index
    %c0_64 = arith.constant 0 : index
    %c0_65 = arith.constant 0 : index
    %65 = vector.load %arg8[%c0_63, %c0_64, %c0_65] : memref<9x8x4xbf16, #tpu.memory_space<vmem>>, vector<1x8x4xbf16>
    %66 = vector.shape_cast %65 : vector<1x8x4xbf16> to vector<8x4xbf16>
    %cst_66 = arith.constant dense<0.000000e+00> : vector<256x4xf32>
    %67 = tpu.matmul %64, %66, %cst_66 {dimension_numbers = #tpu.dot_dimension_numbers<[1], [0], [0], [1], [0, 0, 1, 1], [], []>} : vector<256x8xbf16>, vector<8x4xbf16>, vector<256x4xf32> -> vector<256x4xf32>
    %68 = arith.addf %62, %67 : vector<256x4xf32>
    %c0_67 = arith.constant 0 : index
    %c1_68 = arith.constant 1 : index
    %c0_69 = arith.constant 0 : index
    %69 = vector.load %arg13[%c0_67, %c1_68, %c0_69] : memref<18x18x8xbf16, #tpu.memory_space<vmem>>, vector<16x16x8xbf16>
    %70 = vector.shape_cast %69 : vector<16x16x8xbf16> to vector<256x8xbf16>
    %c1_70 = arith.constant 1 : index
    %c0_71 = arith.constant 0 : index
    %c0_72 = arith.constant 0 : index
    %71 = vector.load %arg8[%c1_70, %c0_71, %c0_72] : memref<9x8x4xbf16, #tpu.memory_space<vmem>>, vector<1x8x4xbf16>
    %72 = vector.shape_cast %71 : vector<1x8x4xbf16> to vector<8x4xbf16>
    %cst_73 = arith.constant dense<0.000000e+00> : vector<256x4xf32>
    %73 = tpu.matmul %70, %72, %cst_73 {dimension_numbers = #tpu.dot_dimension_numbers<[1], [0], [0], [1], [0, 0, 1, 1], [], []>} : vector<256x8xbf16>, vector<8x4xbf16>, vector<256x4xf32> -> vector<256x4xf32>
    %74 = arith.addf %68, %73 : vector<256x4xf32>
    %c0_74 = arith.constant 0 : index
    %c2 = arith.constant 2 : index
    %c0_75 = arith.constant 0 : index
    %75 = vector.load %arg13[%c0_74, %c2, %c0_75] : memref<18x18x8xbf16, #tpu.memory_space<vmem>>, vector<16x16x8xbf16>
    %76 = vector.shape_cast %75 : vector<16x16x8xbf16> to vector<256x8xbf16>
    %c2_76 = arith.constant 2 : index
    %c0_77 = arith.constant 0 : index
    %c0_78 = arith.constant 0 : index
    %77 = vector.load %arg8[%c2_76, %c0_77, %c0_78] : memref<9x8x4xbf16, #tpu.memory_space<vmem>>, vector<1x8x4xbf16>
    %78 = vector.shape_cast %77 : vector<1x8x4xbf16> to vector<8x4xbf16>
    %cst_79 = arith.constant dense<0.000000e+00> : vector<256x4xf32>
    %79 = tpu.matmul %76, %78, %cst_79 {dimension_numbers = #tpu.dot_dimension_numbers<[1], [0], [0], [1], [0, 0, 1, 1], [], []>} : vector<256x8xbf16>, vector<8x4xbf16>, vector<256x4xf32> -> vector<256x4xf32>
    %80 = arith.addf %74, %79 : vector<256x4xf32>
    %c1_80 = arith.constant 1 : index
    %c0_81 = arith.constant 0 : index
    %c0_82 = arith.constant 0 : index
    %81 = vector.load %arg13[%c1_80, %c0_81, %c0_82] : memref<18x18x8xbf16, #tpu.memory_space<vmem>>, vector<16x16x8xbf16>
    %82 = vector.shape_cast %81 : vector<16x16x8xbf16> to vector<256x8xbf16>
    %c3 = arith.constant 3 : index
    %c0_83 = arith.constant 0 : index
    %c0_84 = arith.constant 0 : index
    %83 = vector.load %arg8[%c3, %c0_83, %c0_84] : memref<9x8x4xbf16, #tpu.memory_space<vmem>>, vector<1x8x4xbf16>
    %84 = vector.shape_cast %83 : vector<1x8x4xbf16> to vector<8x4xbf16>
    %cst_85 = arith.constant dense<0.000000e+00> : vector<256x4xf32>
    %85 = tpu.matmul %82, %84, %cst_85 {dimension_numbers = #tpu.dot_dimension_numbers<[1], [0], [0], [1], [0, 0, 1, 1], [], []>} : vector<256x8xbf16>, vector<8x4xbf16>, vector<256x4xf32> -> vector<256x4xf32>
    %86 = arith.addf %80, %85 : vector<256x4xf32>
    %c1_86 = arith.constant 1 : index
    %c1_87 = arith.constant 1 : index
    %c0_88 = arith.constant 0 : index
    %87 = vector.load %arg13[%c1_86, %c1_87, %c0_88] : memref<18x18x8xbf16, #tpu.memory_space<vmem>>, vector<16x16x8xbf16>
    %88 = vector.shape_cast %87 : vector<16x16x8xbf16> to vector<256x8xbf16>
    %c4 = arith.constant 4 : index
    %c0_89 = arith.constant 0 : index
    %c0_90 = arith.constant 0 : index
    %89 = vector.load %arg8[%c4, %c0_89, %c0_90] : memref<9x8x4xbf16, #tpu.memory_space<vmem>>, vector<1x8x4xbf16>
    %90 = vector.shape_cast %89 : vector<1x8x4xbf16> to vector<8x4xbf16>
    %cst_91 = arith.constant dense<0.000000e+00> : vector<256x4xf32>
    %91 = tpu.matmul %88, %90, %cst_91 {dimension_numbers = #tpu.dot_dimension_numbers<[1], [0], [0], [1], [0, 0, 1, 1], [], []>} : vector<256x8xbf16>, vector<8x4xbf16>, vector<256x4xf32> -> vector<256x4xf32>
    %92 = arith.addf %86, %91 : vector<256x4xf32>
    %c1_92 = arith.constant 1 : index
    %c2_93 = arith.constant 2 : index
    %c0_94 = arith.constant 0 : index
    %93 = vector.load %arg13[%c1_92, %c2_93, %c0_94] : memref<18x18x8xbf16, #tpu.memory_space<vmem>>, vector<16x16x8xbf16>
    %94 = vector.shape_cast %93 : vector<16x16x8xbf16> to vector<256x8xbf16>
    %c5 = arith.constant 5 : index
    %c0_95 = arith.constant 0 : index
    %c0_96 = arith.constant 0 : index
    %95 = vector.load %arg8[%c5, %c0_95, %c0_96] : memref<9x8x4xbf16, #tpu.memory_space<vmem>>, vector<1x8x4xbf16>
    %96 = vector.shape_cast %95 : vector<1x8x4xbf16> to vector<8x4xbf16>
    %cst_97 = arith.constant dense<0.000000e+00> : vector<256x4xf32>
    %97 = tpu.matmul %94, %96, %cst_97 {dimension_numbers = #tpu.dot_dimension_numbers<[1], [0], [0], [1], [0, 0, 1, 1], [], []>} : vector<256x8xbf16>, vector<8x4xbf16>, vector<256x4xf32> -> vector<256x4xf32>
    %98 = arith.addf %92, %97 : vector<256x4xf32>
    %c2_98 = arith.constant 2 : index
    %c0_99 = arith.constant 0 : index
    %c0_100 = arith.constant 0 : index
    %99 = vector.load %arg13[%c2_98, %c0_99, %c0_100] : memref<18x18x8xbf16, #tpu.memory_space<vmem>>, vector<16x16x8xbf16>
    %100 = vector.shape_cast %99 : vector<16x16x8xbf16> to vector<256x8xbf16>
    %c6 = arith.constant 6 : index
    %c0_101 = arith.constant 0 : index
    %c0_102 = arith.constant 0 : index
    %101 = vector.load %arg8[%c6, %c0_101, %c0_102] : memref<9x8x4xbf16, #tpu.memory_space<vmem>>, vector<1x8x4xbf16>
    %102 = vector.shape_cast %101 : vector<1x8x4xbf16> to vector<8x4xbf16>
    %cst_103 = arith.constant dense<0.000000e+00> : vector<256x4xf32>
    %103 = tpu.matmul %100, %102, %cst_103 {dimension_numbers = #tpu.dot_dimension_numbers<[1], [0], [0], [1], [0, 0, 1, 1], [], []>} : vector<256x8xbf16>, vector<8x4xbf16>, vector<256x4xf32> -> vector<256x4xf32>
    %104 = arith.addf %98, %103 : vector<256x4xf32>
    %c2_104 = arith.constant 2 : index
    %c1_105 = arith.constant 1 : index
    %c0_106 = arith.constant 0 : index
    %105 = vector.load %arg13[%c2_104, %c1_105, %c0_106] : memref<18x18x8xbf16, #tpu.memory_space<vmem>>, vector<16x16x8xbf16>
    %106 = vector.shape_cast %105 : vector<16x16x8xbf16> to vector<256x8xbf16>
    %c7 = arith.constant 7 : index
    %c0_107 = arith.constant 0 : index
    %c0_108 = arith.constant 0 : index
    %107 = vector.load %arg8[%c7, %c0_107, %c0_108] : memref<9x8x4xbf16, #tpu.memory_space<vmem>>, vector<1x8x4xbf16>
    %108 = vector.shape_cast %107 : vector<1x8x4xbf16> to vector<8x4xbf16>
    %cst_109 = arith.constant dense<0.000000e+00> : vector<256x4xf32>
    %109 = tpu.matmul %106, %108, %cst_109 {dimension_numbers = #tpu.dot_dimension_numbers<[1], [0], [0], [1], [0, 0, 1, 1], [], []>} : vector<256x8xbf16>, vector<8x4xbf16>, vector<256x4xf32> -> vector<256x4xf32>
    %110 = arith.addf %104, %109 : vector<256x4xf32>
    %c2_110 = arith.constant 2 : index
    %c2_111 = arith.constant 2 : index
    %c0_112 = arith.constant 0 : index
    %111 = vector.load %arg13[%c2_110, %c2_111, %c0_112] : memref<18x18x8xbf16, #tpu.memory_space<vmem>>, vector<16x16x8xbf16>
    %112 = vector.shape_cast %111 : vector<16x16x8xbf16> to vector<256x8xbf16>
    %c8 = arith.constant 8 : index
    %c0_113 = arith.constant 0 : index
    %c0_114 = arith.constant 0 : index
    %113 = vector.load %arg8[%c8, %c0_113, %c0_114] : memref<9x8x4xbf16, #tpu.memory_space<vmem>>, vector<1x8x4xbf16>
    %114 = vector.shape_cast %113 : vector<1x8x4xbf16> to vector<8x4xbf16>
    %cst_115 = arith.constant dense<0.000000e+00> : vector<256x4xf32>
    %115 = tpu.matmul %112, %114, %cst_115 {dimension_numbers = #tpu.dot_dimension_numbers<[1], [0], [0], [1], [0, 0, 1, 1], [], []>} : vector<256x8xbf16>, vector<8x4xbf16>, vector<256x4xf32> -> vector<256x4xf32>
    %116 = arith.addf %110, %115 : vector<256x4xf32>
    %117 = vector.broadcast %61 : vector<1x4xf32> to vector<256x4xf32>
    %118 = arith.addf %116, %117 : vector<256x4xf32>
    %cst_116 = arith.constant 0.000000e+00 : f32
    %119 = vector.broadcast %cst_116 : f32 to vector<256x4xf32>
    %120 = arith.maximumf %118, %119 : vector<256x4xf32>
    %121 = vector.shape_cast %120 : vector<256x4xf32> to vector<16x16x4xf32>
    %122 = arith.truncf %121 : vector<16x16x4xf32> to vector<16x16x4xbf16>
    %c1_117 = arith.constant 1 : index
    %c1_118 = arith.constant 1 : index
    %c0_119 = arith.constant 0 : index
    %123 = vector.load %arg14[%c1_117, %c1_118, %c0_119] : memref<18x18x4xbf16, #tpu.memory_space<vmem>>, vector<16x16x4xbf16>
    tpu.vector_store %arg14[%c1_117, %c1_118, %c0_119], %122 {strides = array<i32>} : memref<18x18x4xbf16, #tpu.memory_space<vmem>>, vector<16x16x4xbf16>,
    %c0_120 = arith.constant 0 : index
    %c0_121 = arith.constant 0 : index
    %c0_122 = arith.constant 0 : index
    %124 = vector.load %arg11[%c0_120, %c0_121, %c0_122] : memref<1x1x4xf32, #tpu.memory_space<vmem>>, vector<1x1x4xf32>
    %125 = vector.shape_cast %124 : vector<1x1x4xf32> to vector<1x4xf32>
    %cst_123 = arith.constant 0.000000e+00 : f32
    %126 = vector.broadcast %cst_123 : f32 to vector<256x4xf32>
    %c0_124 = arith.constant 0 : index
    %c0_125 = arith.constant 0 : index
    %c0_126 = arith.constant 0 : index
    %127 = vector.load %arg14[%c0_124, %c0_125, %c0_126] : memref<18x18x4xbf16, #tpu.memory_space<vmem>>, vector<16x16x4xbf16>
    %128 = vector.shape_cast %127 : vector<16x16x4xbf16> to vector<256x4xbf16>
    %c0_127 = arith.constant 0 : index
    %c0_128 = arith.constant 0 : index
    %c0_129 = arith.constant 0 : index
    %c0_130 = arith.constant 0 : index
    %129 = vector.load %arg10[%c0_127, %c0_128, %c0_129, %c0_130] : memref<1x9x4x4xbf16, #tpu.memory_space<vmem>>, vector<1x1x4x4xbf16>
    %130 = vector.shape_cast %129 : vector<1x1x4x4xbf16> to vector<4x4xbf16>
    %cst_131 = arith.constant dense<0.000000e+00> : vector<256x4xf32>
    %131 = tpu.matmul %128, %130, %cst_131 {dimension_numbers = #tpu.dot_dimension_numbers<[1], [0], [0], [1], [0, 0, 1, 1], [], []>} : vector<256x4xbf16>, vector<4x4xbf16>, vector<256x4xf32> -> vector<256x4xf32>
    %132 = arith.addf %126, %131 : vector<256x4xf32>
    %c0_132 = arith.constant 0 : index
    %c1_133 = arith.constant 1 : index
    %c0_134 = arith.constant 0 : index
    %133 = vector.load %arg14[%c0_132, %c1_133, %c0_134] : memref<18x18x4xbf16, #tpu.memory_space<vmem>>, vector<16x16x4xbf16>
    %134 = vector.shape_cast %133 : vector<16x16x4xbf16> to vector<256x4xbf16>
    %c0_135 = arith.constant 0 : index
    %c1_136 = arith.constant 1 : index
    %c0_137 = arith.constant 0 : index
    %c0_138 = arith.constant 0 : index
    %135 = vector.load %arg10[%c0_135, %c1_136, %c0_137, %c0_138] : memref<1x9x4x4xbf16, #tpu.memory_space<vmem>>, vector<1x1x4x4xbf16>
    %136 = vector.shape_cast %135 : vector<1x1x4x4xbf16> to vector<4x4xbf16>
    %cst_139 = arith.constant dense<0.000000e+00> : vector<256x4xf32>
    %137 = tpu.matmul %134, %136, %cst_139 {dimension_numbers = #tpu.dot_dimension_numbers<[1], [0], [0], [1], [0, 0, 1, 1], [], []>} : vector<256x4xbf16>, vector<4x4xbf16>, vector<256x4xf32> -> vector<256x4xf32>
    %138 = arith.addf %132, %137 : vector<256x4xf32>
    %c0_140 = arith.constant 0 : index
    %c2_141 = arith.constant 2 : index
    %c0_142 = arith.constant 0 : index
    %139 = vector.load %arg14[%c0_140, %c2_141, %c0_142] : memref<18x18x4xbf16, #tpu.memory_space<vmem>>, vector<16x16x4xbf16>
    %140 = vector.shape_cast %139 : vector<16x16x4xbf16> to vector<256x4xbf16>
    %c0_143 = arith.constant 0 : index
    %c2_144 = arith.constant 2 : index
    %c0_145 = arith.constant 0 : index
    %c0_146 = arith.constant 0 : index
    %141 = vector.load %arg10[%c0_143, %c2_144, %c0_145, %c0_146] : memref<1x9x4x4xbf16, #tpu.memory_space<vmem>>, vector<1x1x4x4xbf16>
    %142 = vector.shape_cast %141 : vector<1x1x4x4xbf16> to vector<4x4xbf16>
    %cst_147 = arith.constant dense<0.000000e+00> : vector<256x4xf32>
    %143 = tpu.matmul %140, %142, %cst_147 {dimension_numbers = #tpu.dot_dimension_numbers<[1], [0], [0], [1], [0, 0, 1, 1], [], []>} : vector<256x4xbf16>, vector<4x4xbf16>, vector<256x4xf32> -> vector<256x4xf32>
    %144 = arith.addf %138, %143 : vector<256x4xf32>
    %c1_148 = arith.constant 1 : index
    %c0_149 = arith.constant 0 : index
    %c0_150 = arith.constant 0 : index
    %145 = vector.load %arg14[%c1_148, %c0_149, %c0_150] : memref<18x18x4xbf16, #tpu.memory_space<vmem>>, vector<16x16x4xbf16>
    %146 = vector.shape_cast %145 : vector<16x16x4xbf16> to vector<256x4xbf16>
    %c0_151 = arith.constant 0 : index
    %c3_152 = arith.constant 3 : index
    %c0_153 = arith.constant 0 : index
    %c0_154 = arith.constant 0 : index
    %147 = vector.load %arg10[%c0_151, %c3_152, %c0_153, %c0_154] : memref<1x9x4x4xbf16, #tpu.memory_space<vmem>>, vector<1x1x4x4xbf16>
    %148 = vector.shape_cast %147 : vector<1x1x4x4xbf16> to vector<4x4xbf16>
    %cst_155 = arith.constant dense<0.000000e+00> : vector<256x4xf32>
    %149 = tpu.matmul %146, %148, %cst_155 {dimension_numbers = #tpu.dot_dimension_numbers<[1], [0], [0], [1], [0, 0, 1, 1], [], []>} : vector<256x4xbf16>, vector<4x4xbf16>, vector<256x4xf32> -> vector<256x4xf32>
    %150 = arith.addf %144, %149 : vector<256x4xf32>
    %c1_156 = arith.constant 1 : index
    %c1_157 = arith.constant 1 : index
    %c0_158 = arith.constant 0 : index
    %151 = vector.load %arg14[%c1_156, %c1_157, %c0_158] : memref<18x18x4xbf16, #tpu.memory_space<vmem>>, vector<16x16x4xbf16>
    %152 = vector.shape_cast %151 : vector<16x16x4xbf16> to vector<256x4xbf16>
    %c0_159 = arith.constant 0 : index
    %c4_160 = arith.constant 4 : index
    %c0_161 = arith.constant 0 : index
    %c0_162 = arith.constant 0 : index
    %153 = vector.load %arg10[%c0_159, %c4_160, %c0_161, %c0_162] : memref<1x9x4x4xbf16, #tpu.memory_space<vmem>>, vector<1x1x4x4xbf16>
    %154 = vector.shape_cast %153 : vector<1x1x4x4xbf16> to vector<4x4xbf16>
    %cst_163 = arith.constant dense<0.000000e+00> : vector<256x4xf32>
    %155 = tpu.matmul %152, %154, %cst_163 {dimension_numbers = #tpu.dot_dimension_numbers<[1], [0], [0], [1], [0, 0, 1, 1], [], []>} : vector<256x4xbf16>, vector<4x4xbf16>, vector<256x4xf32> -> vector<256x4xf32>
    %156 = arith.addf %150, %155 : vector<256x4xf32>
    %c1_164 = arith.constant 1 : index
    %c2_165 = arith.constant 2 : index
    %c0_166 = arith.constant 0 : index
    %157 = vector.load %arg14[%c1_164, %c2_165, %c0_166] : memref<18x18x4xbf16, #tpu.memory_space<vmem>>, vector<16x16x4xbf16>
    %158 = vector.shape_cast %157 : vector<16x16x4xbf16> to vector<256x4xbf16>
    %c0_167 = arith.constant 0 : index
    %c5_168 = arith.constant 5 : index
    %c0_169 = arith.constant 0 : index
    %c0_170 = arith.constant 0 : index
    %159 = vector.load %arg10[%c0_167, %c5_168, %c0_169, %c0_170] : memref<1x9x4x4xbf16, #tpu.memory_space<vmem>>, vector<1x1x4x4xbf16>
    %160 = vector.shape_cast %159 : vector<1x1x4x4xbf16> to vector<4x4xbf16>
    %cst_171 = arith.constant dense<0.000000e+00> : vector<256x4xf32>
    %161 = tpu.matmul %158, %160, %cst_171 {dimension_numbers = #tpu.dot_dimension_numbers<[1], [0], [0], [1], [0, 0, 1, 1], [], []>} : vector<256x4xbf16>, vector<4x4xbf16>, vector<256x4xf32> -> vector<256x4xf32>
    %162 = arith.addf %156, %161 : vector<256x4xf32>
    %c2_172 = arith.constant 2 : index
    %c0_173 = arith.constant 0 : index
    %c0_174 = arith.constant 0 : index
    %163 = vector.load %arg14[%c2_172, %c0_173, %c0_174] : memref<18x18x4xbf16, #tpu.memory_space<vmem>>, vector<16x16x4xbf16>
    %164 = vector.shape_cast %163 : vector<16x16x4xbf16> to vector<256x4xbf16>
    %c0_175 = arith.constant 0 : index
    %c6_176 = arith.constant 6 : index
    %c0_177 = arith.constant 0 : index
    %c0_178 = arith.constant 0 : index
    %165 = vector.load %arg10[%c0_175, %c6_176, %c0_177, %c0_178] : memref<1x9x4x4xbf16, #tpu.memory_space<vmem>>, vector<1x1x4x4xbf16>
    %166 = vector.shape_cast %165 : vector<1x1x4x4xbf16> to vector<4x4xbf16>
    %cst_179 = arith.constant dense<0.000000e+00> : vector<256x4xf32>
    %167 = tpu.matmul %164, %166, %cst_179 {dimension_numbers = #tpu.dot_dimension_numbers<[1], [0], [0], [1], [0, 0, 1, 1], [], []>} : vector<256x4xbf16>, vector<4x4xbf16>, vector<256x4xf32> -> vector<256x4xf32>
    %168 = arith.addf %162, %167 : vector<256x4xf32>
    %c2_180 = arith.constant 2 : index
    %c1_181 = arith.constant 1 : index
    %c0_182 = arith.constant 0 : index
    %169 = vector.load %arg14[%c2_180, %c1_181, %c0_182] : memref<18x18x4xbf16, #tpu.memory_space<vmem>>, vector<16x16x4xbf16>
    %170 = vector.shape_cast %169 : vector<16x16x4xbf16> to vector<256x4xbf16>
    %c0_183 = arith.constant 0 : index
    %c7_184 = arith.constant 7 : index
    %c0_185 = arith.constant 0 : index
    %c0_186 = arith.constant 0 : index
    %171 = vector.load %arg10[%c0_183, %c7_184, %c0_185, %c0_186] : memref<1x9x4x4xbf16, #tpu.memory_space<vmem>>, vector<1x1x4x4xbf16>
    %172 = vector.shape_cast %171 : vector<1x1x4x4xbf16> to vector<4x4xbf16>
    %cst_187 = arith.constant dense<0.000000e+00> : vector<256x4xf32>
    %173 = tpu.matmul %170, %172, %cst_187 {dimension_numbers = #tpu.dot_dimension_numbers<[1], [0], [0], [1], [0, 0, 1, 1], [], []>} : vector<256x4xbf16>, vector<4x4xbf16>, vector<256x4xf32> -> vector<256x4xf32>
    %174 = arith.addf %168, %173 : vector<256x4xf32>
    %c2_188 = arith.constant 2 : index
    %c2_189 = arith.constant 2 : index
    %c0_190 = arith.constant 0 : index
    %175 = vector.load %arg14[%c2_188, %c2_189, %c0_190] : memref<18x18x4xbf16, #tpu.memory_space<vmem>>, vector<16x16x4xbf16>
    %176 = vector.shape_cast %175 : vector<16x16x4xbf16> to vector<256x4xbf16>
    %c0_191 = arith.constant 0 : index
    %c8_192 = arith.constant 8 : index
    %c0_193 = arith.constant 0 : index
    %c0_194 = arith.constant 0 : index
    %177 = vector.load %arg10[%c0_191, %c8_192, %c0_193, %c0_194] : memref<1x9x4x4xbf16, #tpu.memory_space<vmem>>, vector<1x1x4x4xbf16>
    %178 = vector.shape_cast %177 : vector<1x1x4x4xbf16> to vector<4x4xbf16>
    %cst_195 = arith.constant dense<0.000000e+00> : vector<256x4xf32>
    %179 = tpu.matmul %176, %178, %cst_195 {dimension_numbers = #tpu.dot_dimension_numbers<[1], [0], [0], [1], [0, 0, 1, 1], [], []>} : vector<256x4xbf16>, vector<4x4xbf16>, vector<256x4xf32> -> vector<256x4xf32>
    %180 = arith.addf %174, %179 : vector<256x4xf32>
    %181 = vector.broadcast %125 : vector<1x4xf32> to vector<256x4xf32>
    %182 = arith.addf %180, %181 : vector<256x4xf32>
    %cst_196 = arith.constant 0.000000e+00 : f32
    %183 = vector.broadcast %cst_196 : f32 to vector<256x4xf32>
    %184 = arith.maximumf %182, %183 : vector<256x4xf32>
    %185 = vector.shape_cast %184 : vector<256x4xf32> to vector<16x16x4xf32>
    %c0_197 = arith.constant 0 : index
    %c0_198 = arith.constant 0 : index
    %c0_199 = arith.constant 0 : index
    %c0_200 = arith.constant 0 : index
    %186 = vector.load %arg12[%c0_197, %c0_198, %c0_199, %c0_200] : memref<1x16x16x4xf32, #tpu.memory_space<vmem>>, vector<1x16x16x4xf32>
    %187 = vector.shape_cast %186 : vector<1x16x16x4xf32> to vector<16x16x4xf32>
    %188 = vector.shape_cast %185 : vector<16x16x4xf32> to vector<1x16x16x4xf32>
    tpu.vector_store %arg12[%c0_197, %c0_198, %c0_199, %c0_200], %188 {strides = array<i32>} : memref<1x16x16x4xf32, #tpu.memory_space<vmem>>, vector<1x16x16x4xf32>,
    return
  }
  func.func @transform_0(%arg0: i32) -> (i32, i32, i32, i32) {
    %c0_i32 = arith.constant 0 : i32
    %c0_i32_0 = arith.constant 0 : i32
    %c0_i32_1 = arith.constant 0 : i32
    %c0_i32_2 = arith.constant 0 : i32
    return %arg0, %c0_i32, %c0_i32_0, %c0_i32_1 : i32, i32, i32, i32
  }
  func.func @transform_1(%arg0: i32) -> (i32, i32, i32, i32) {
    %c0_i32 = arith.constant 0 : i32
    %c0_i32_0 = arith.constant 0 : i32
    %c0_i32_1 = arith.constant 0 : i32
    %c0_i32_2 = arith.constant 0 : i32
    return %arg0, %c0_i32, %c0_i32_0, %c0_i32_1 : i32, i32, i32, i32
  }
  func.func @transform_2(%arg0: i32) -> (i32, i32) {
    %c0_i32 = arith.constant 0 : i32
    %c0_i32_0 = arith.constant 0 : i32
    %c0_i32_1 = arith.constant 0 : i32
    return %c0_i32, %c0_i32_0 : i32, i32
  }
  func.func @transform_3(%arg0: i32) -> (i32, i32) {
    %c0_i32 = arith.constant 0 : i32
    %c0_i32_0 = arith.constant 0 : i32
    %c0_i32_1 = arith.constant 0 : i32
    return %c0_i32, %c0_i32_0 : i32, i32
  }
  func.func @transform_4(%arg0: i32) -> (i32, i32) {
    %c0_i32 = arith.constant 0 : i32
    %c0_i32_0 = arith.constant 0 : i32
    %c0_i32_1 = arith.constant 0 : i32
    return %c0_i32, %c0_i32_0 : i32, i32
  }
  func.func @transform_5(%arg0: i32) -> (i32, i32) {
    %c0_i32 = arith.constant 0 : i32
    %c0_i32_0 = arith.constant 0 : i32
    %c0_i32_1 = arith.constant 0 : i32
    return %c0_i32, %c0_i32_0 : i32, i32
  }
  func.func @transform_6(%arg0: i32) -> (i32, i32) {
    %c0_i32 = arith.constant 0 : i32
    %c0_i32_0 = arith.constant 0 : i32
    %c0_i32_1 = arith.constant 0 : i32
    return %c0_i32, %c0_i32_0 : i32, i32
  }
  func.func @transform_7(%arg0: i32) -> (i32, i32, i32) {
    %c0_i32 = arith.constant 0 : i32
    %c0_i32_0 = arith.constant 0 : i32
    %c0_i32_1 = arith.constant 0 : i32
    %c0_i32_2 = arith.constant 0 : i32
    return %c0_i32, %c0_i32_0, %c0_i32_1 : i32, i32, i32
  }
  func.func @transform_8(%arg0: i32) -> (i32, i32) {
    %c0_i32 = arith.constant 0 : i32
    %c0_i32_0 = arith.constant 0 : i32
    %c0_i32_1 = arith.constant 0 : i32
    return %c0_i32, %c0_i32_0 : i32, i32
  }
  func.func @transform_9(%arg0: i32) -> (i32, i32, i32, i32) {
    %c0_i32 = arith.constant 0 : i32
    %c0_i32_0 = arith.constant 0 : i32
    %c0_i32_1 = arith.constant 0 : i32
    %c0_i32_2 = arith.constant 0 : i32
    %c0_i32_3 = arith.constant 0 : i32
    return %c0_i32, %c0_i32_0, %c0_i32_1, %c0_i32_2 : i32, i32, i32, i32
  }
  func.func @transform_10(%arg0: i32) -> (i32, i32, i32) {
    %c0_i32 = arith.constant 0 : i32
    %c0_i32_0 = arith.constant 0 : i32
    %c0_i32_1 = arith.constant 0 : i32
    %c0_i32_2 = arith.constant 0 : i32
    return %c0_i32, %c0_i32_0, %c0_i32_1 : i32, i32, i32
  }
  func.func @transform_11(%arg0: i32) -> (i32, i32, i32, i32) {
    %c0_i32 = arith.constant 0 : i32
    %c0_i32_0 = arith.constant 0 : i32
    %c0_i32_1 = arith.constant 0 : i32
    %c0_i32_2 = arith.constant 0 : i32
    return %arg0, %c0_i32, %c0_i32_0, %c0_i32_1 : i32, i32, i32, i32
  }
}

</mosaic_0001>

<llo_original>
// kernel: _up_block_attention_nchw_impl.1
$region0: #{_up_block_attention_nchw_impl.1}
  #allocation0 [shape = 'u32[]', space=smem, size = 0x4, offset = 0x4, fixed_abs, tag = 'smem constant byte address 0x4 - core index']
  #allocation1 [shape = 'u32[144,128]{1,0:T(1,128)}', space=vmem, size = 0x12000, scoped, tag = 'internal scratch']
  #allocation2 [shape = 'bf16[18,18,8]{2,1,0:T(8,128)(2,1)}', space=vmem, size = 0x1b000, scoped, tag = 'scratch operand']
  #allocation3 [shape = 'bf16[18,18,4]{2,1,0:T(8,128)(2,1)}', space=vmem, size = 0x1b000, scoped, tag = 'scratch operand']
  #allocation4 [shape = 'bf16[18,18,4]{2,1,0:T(8,128)(2,1)}', space=vmem, size = 0x1b000, scoped, tag = 'scratch operand']
  %s0 = inlined_call_operand.vmem [shape: f32[2,16,16,4], index: 0, kind: input, shape index: {}]
  %s1 = inlined_call_operand.vmem [shape: f32[2,8,8,4], index: 1, kind: input, shape index: {}]
  %s2 = inlined_call_operand.vmem [shape: bf16[16,8], index: 2, kind: input, shape index: {}]
  %s3 = inlined_call_operand.vmem [shape: f32[4,4], index: 3, kind: input, shape index: {}]
  %s4 = inlined_call_operand.vmem [shape: f32[1,4], index: 4, kind: input, shape index: {}]
  %s5 = inlined_call_operand.vmem [shape: f32[4,4], index: 5, kind: input, shape index: {}]
  %s6 = inlined_call_operand.vmem [shape: f32[1,4], index: 6, kind: input, shape index: {}]
  %s7 = inlined_call_operand.vmem [shape: bf16[9,8,4], index: 7, kind: input, shape index: {}]
  %s8 = inlined_call_operand.vmem [shape: f32[1,4], index: 8, kind: input, shape index: {}]
  %s9 = inlined_call_operand.vmem [shape: bf16[1,9,4,4], index: 9, kind: input, shape index: {}]
  %s10 = inlined_call_operand.vmem [shape: f32[1,1,4], index: 10, kind: input, shape index: {}]
  %s11 = inlined_call_operand.vmem [shape: f32[2,16,16,4], index: 11, kind: output, shape index: {}]
  %s12 = sld [smem:[#allocation0]]
  $region77: #{_up_block_attention_nchw_impl.1} parent=0
    _
  %s14 = ssub.s32 1, %s12
  %s15 = scalar_select 0, %s14, %s12
  loop: start=0, step=1, limit=4
  $region2: #{_up_block_attention_nchw_impl.1} parent=0 // loop_pre_header
    _
  $region3: #{_up_block_attention_nchw_impl.1} parent=0 // loop_header
    %s17 = sphi 0, %s21
    %p18 = scmp.ge.s32.totalorder %s17, 4
    %s27 = sphi 0, %s29
    %s30 = sphi 0, %s27
    %s31 = sphi 0, %s30
    %s47 = sphi 0, %s31
    %s53 = sphi 0, %s55
    %s56 = sphi 0, %s53
    %s57 = sphi 0, %s56
    %s73 = sphi 0, %s57
    %s77 = sphi 0, %s77
    %s79 = sphi 0, %s77
    %s80 = sphi 0, %s79
    %s94 = sphi 0, %s80
    %s98 = sphi 0, %s98
    %s100 = sphi 0, %s98
    %s101 = sphi 0, %s100
    %s115 = sphi 0, %s101
    %s119 = sphi 0, %s119
    %s121 = sphi 0, %s119
    %s122 = sphi 0, %s121
    %s136 = sphi 0, %s122
    %s140 = sphi 0, %s140
    %s142 = sphi 0, %s140
    %s143 = sphi 0, %s142
    %s157 = sphi 0, %s143
    %s161 = sphi 0, %s161
    %s163 = sphi 0, %s161
    %s164 = sphi 0, %s163
    %s178 = sphi 0, %s164
    %s182 = sphi 0, %s182
    %s184 = sphi 0, %s182
    %s185 = sphi 0, %s184
    %s199 = sphi 0, %s185
    %s203 = sphi 0, %s203
    %s205 = sphi 0, %s203
    %s206 = sphi 0, %s205
    %s220 = sphi 0, %s206
    %s224 = sphi 0, %s224
    %s226 = sphi 0, %s224
    %s227 = sphi 0, %s226
    %s241 = sphi 0, %s227
    %s245 = sphi 0, %s245
    %s247 = sphi 0, %s245
    %s248 = sphi 0, %s247
    %s262 = sphi 0, %s248
    %s268 = sphi 0, %s270
    %s271 = sphi 0, %s268
    %s272 = sphi 0, %s271
    %s288 = sphi 0, %s272
  $region4: #{_up_block_attention_nchw_impl.1} parent=0 // loop_header_branch
    %20 = sbr.rel (%p18) target = $region8
  $region5: #{_up_block_attention_nchw_impl.1} parent=0 // loop_body
    %s22 = ssub.s32 %s17, 1
    %s23 = ssub.s32 %s17, 2
    %s24 = sadd.s32 %s17, 1
    %s25 = ssub.s32 %s17, %s24
    %p26 = scmp.eq.s32.totalorder %s25, 0
    %s28 = sadd.s32 %s27, 1
    %s29 = scalar_select %p26, %s27, %s28
    %p32 = pneg %p26
    %p33 = scmp.eq.s32.totalorder %s17, 1
    %p34 = por %p32, %p33
    %p35 = scmp.ne.s32.totalorder %s27, %s30
    %p36 = scmp.eq.s32.totalorder %s17, 0
    %p37 = por %p35, %p36
    %p38 = scmp.ne.s32.totalorder %s27, %s30
    %p39 = scmp.eq.s32.totalorder %s22, 1
    %p40 = por %p38, %p39
    %p41 = scmp.ne.s32.totalorder %s30, %s31
    %p42 = scmp.eq.s32.totalorder %s22, 0
    %p43 = por %p41, %p42
    %p44 = scmp.ne.s32.totalorder %s30, %s31
    %p45 = scmp.eq.s32.totalorder %s23, 1
    %p46 = por %p44, %p45
    %p48 = scmp.ne.s32.totalorder %s31, %s47
    %p49 = scmp.eq.s32.totalorder %s23, 0
    %p50 = por %p48, %p49
    %s51 = ssub.s32 %s17, %s24
    %p52 = scmp.eq.s32.totalorder %s51, 0
    %s54 = sadd.s32 %s53, 1
    %s55 = scalar_select %p52, %s53, %s54
    %p58 = pneg %p52
    %p59 = scmp.eq.s32.totalorder %s17, 1
    %p60 = por %p58, %p59
    %p61 = scmp.ne.s32.totalorder %s53, %s56
    %p62 = scmp.eq.s32.totalorder %s17, 0
    %p63 = por %p61, %p62
    %p64 = scmp.ne.s32.totalorder %s53, %s56
    %p65 = scmp.eq.s32.totalorder %s22, 1
    %p66 = por %p64, %p65
    %p67 = scmp.ne.s32.totalorder %s56, %s57
    %p68 = scmp.eq.s32.totalorder %s22, 0
    %p69 = por %p67, %p68
    %p70 = scmp.ne.s32.totalorder %s56, %s57
    %p71 = scmp.eq.s32.totalorder %s23, 1
    %p72 = por %p70, %p71
    %p74 = scmp.ne.s32.totalorder %s57, %s73
    %p75 = scmp.eq.s32.totalorder %s23, 0
    %p76 = por %p74, %p75
    %s78 = sadd.s32 %s77, 1
    %p81 = scmp.eq.s32.totalorder %s17, 1
    %p82 = scmp.ne.s32.totalorder %s77, %s79
    %p83 = scmp.eq.s32.totalorder %s17, 0
    %p84 = por %p82, %p83
    %p85 = scmp.ne.s32.totalorder %s77, %s79
    %p86 = scmp.eq.s32.totalorder %s22, 1
    %p87 = por %p85, %p86
    %p88 = scmp.ne.s32.totalorder %s79, %s80
    %p89 = scmp.eq.s32.totalorder %s22, 0
    %p90 = por %p88, %p89
    %p91 = scmp.ne.s32.totalorder %s79, %s80
    %p92 = scmp.eq.s32.totalorder %s23, 1
    %p93 = por %p91, %p92
    %p95 = scmp.ne.s32.totalorder %s80, %s94
    %p96 = scmp.eq.s32.totalorder %s23, 0
    %p97 = por %p95, %p96
    %s99 = sadd.s32 %s98, 1
    %p102 = scmp.eq.s32.totalorder %s17, 1
    %p103 = scmp.ne.s32.totalorder %s98, %s100
    %p104 = scmp.eq.s32.totalorder %s17, 0
    %p105 = por %p103, %p104
    %p106 = scmp.ne.s32.totalorder %s98, %s100
    %p107 = scmp.eq.s32.totalorder %s22, 1
    %p108 = por %p106, %p107
    %p109 = scmp.ne.s32.totalorder %s100, %s101
    %p110 = scmp.eq.s32.totalorder %s22, 0
    %p111 = por %p109, %p110
    %p112 = scmp.ne.s32.totalorder %s100, %s101
    %p113 = scmp.eq.s32.totalorder %s23, 1
    %p114 = por %p112, %p113
    %p116 = scmp.ne.s32.totalorder %s101, %s115
    %p117 = scmp.eq.s32.totalorder %s23, 0
    %p118 = por %p116, %p117
    %s120 = sadd.s32 %s119, 1
    %p123 = scmp.eq.s32.totalorder %s17, 1
    %p124 = scmp.ne.s32.totalorder %s119, %s121
    %p125 = scmp.eq.s32.totalorder %s17, 0
    %p126 = por %p124, %p125
    %p127 = scmp.ne.s32.totalorder %s119, %s121
    %p128 = scmp.eq.s32.totalorder %s22, 1
    %p129 = por %p127, %p128
    %p130 = scmp.ne.s32.totalorder %s121, %s122
    %p131 = scmp.eq.s32.totalorder %s22, 0
    %p132 = por %p130, %p131
    %p133 = scmp.ne.s32.totalorder %s121, %s122
    %p134 = scmp.eq.s32.totalorder %s23, 1
    %p135 = por %p133, %p134
    %p137 = scmp.ne.s32.totalorder %s122, %s136
    %p138 = scmp.eq.s32.totalorder %s23, 0
    %p139 = por %p137, %p138
    %s141 = sadd.s32 %s140, 1
    %p144 = scmp.eq.s32.totalorder %s17, 1
    %p145 = scmp.ne.s32.totalorder %s140, %s142
    %p146 = scmp.eq.s32.totalorder %s17, 0
    %p147 = por %p145, %p146
    %p148 = scmp.ne.s32.totalorder %s140, %s142
    %p149 = scmp.eq.s32.totalorder %s22, 1
    %p150 = por %p148, %p149
    %p151 = scmp.ne.s32.totalorder %s142, %s143
    %p152 = scmp.eq.s32.totalorder %s22, 0
    %p153 = por %p151, %p152
    %p154 = scmp.ne.s32.totalorder %s142, %s143
    %p155 = scmp.eq.s32.totalorder %s23, 1
    %p156 = por %p154, %p155
    %p158 = scmp.ne.s32.totalorder %s143, %s157
    %p159 = scmp.eq.s32.totalorder %s23, 0
    %p160 = por %p158, %p159
    %s162 = sadd.s32 %s161, 1
    %p165 = scmp.eq.s32.totalorder %s17, 1
    %p166 = scmp.ne.s32.totalorder %s161, %s163
    %p167 = scmp.eq.s32.totalorder %s17, 0
    %p168 = por %p166, %p167
    %p169 = scmp.ne.s32.totalorder %s161, %s163
    %p170 = scmp.eq.s32.totalorder %s22, 1
    %p171 = por %p169, %p170
    %p172 = scmp.ne.s32.totalorder %s163, %s164
    %p173 = scmp.eq.s32.totalorder %s22, 0
    %p174 = por %p172, %p173
    %p175 = scmp.ne.s32.totalorder %s163, %s164
    %p176 = scmp.eq.s32.totalorder %s23, 1
    %p177 = por %p175, %p176
    %p179 = scmp.ne.s32.totalorder %s164, %s178
    %p180 = scmp.eq.s32.totalorder %s23, 0
    %p181 = por %p179, %p180
    %s183 = sadd.s32 %s182, 1
    %p186 = scmp.eq.s32.totalorder %s17, 1
    %p187 = scmp.ne.s32.totalorder %s182, %s184
    %p188 = scmp.eq.s32.totalorder %s17, 0
    %p189 = por %p187, %p188
    %p190 = scmp.ne.s32.totalorder %s182, %s184
    %p191 = scmp.eq.s32.totalorder %s22, 1
    %p192 = por %p190, %p191
    %p193 = scmp.ne.s32.totalorder %s184, %s185
    %p194 = scmp.eq.s32.totalorder %s22, 0
    %p195 = por %p193, %p194
    %p196 = scmp.ne.s32.totalorder %s184, %s185
    %p197 = scmp.eq.s32.totalorder %s23, 1
    %p198 = por %p196, %p197
    %p200 = scmp.ne.s32.totalorder %s185, %s199
    %p201 = scmp.eq.s32.totalorder %s23, 0
    %p202 = por %p200, %p201
    %s204 = sadd.s32 %s203, 1
    %p207 = scmp.eq.s32.totalorder %s17, 1
    %p208 = scmp.ne.s32.totalorder %s203, %s205
    %p209 = scmp.eq.s32.totalorder %s17, 0
    %p210 = por %p208, %p209
    %p211 = scmp.ne.s32.totalorder %s203, %s205
    %p212 = scmp.eq.s32.totalorder %s22, 1
    %p213 = por %p211, %p212
    %p214 = scmp.ne.s32.totalorder %s205, %s206
    %p215 = scmp.eq.s32.totalorder %s22, 0
    %p216 = por %p214, %p215
    %p217 = scmp.ne.s32.totalorder %s205, %s206
    %p218 = scmp.eq.s32.totalorder %s23, 1
    %p219 = por %p217, %p218
    %p221 = scmp.ne.s32.totalorder %s206, %s220
    %p222 = scmp.eq.s32.totalorder %s23, 0
    %p223 = por %p221, %p222
    %s225 = sadd.s32 %s224, 1
    %p228 = scmp.eq.s32.totalorder %s17, 1
    %p229 = scmp.ne.s32.totalorder %s224, %s226
    %p230 = scmp.eq.s32.totalorder %s17, 0
    %p231 = por %p229, %p230
    %p232 = scmp.ne.s32.totalorder %s224, %s226
    %p233 = scmp.eq.s32.totalorder %s22, 1
    %p234 = por %p232, %p233
    %p235 = scmp.ne.s32.totalorder %s226, %s227
    %p236 = scmp.eq.s32.totalorder %s22, 0
    %p237 = por %p235, %p236
    %p238 = scmp.ne.s32.totalorder %s226, %s227
    %p239 = scmp.eq.s32.totalorder %s23, 1
    %p240 = por %p238, %p239
    %p242 = scmp.ne.s32.totalorder %s227, %s241
    %p243 = scmp.eq.s32.totalorder %s23, 0
    %p244 = por %p242, %p243
    %s246 = sadd.s32 %s245, 1
    %p249 = scmp.eq.s32.totalorder %s17, 1
    %p250 = scmp.ne.s32.totalorder %s245, %s247
    %p251 = scmp.eq.s32.totalorder %s17, 0
    %p252 = por %p250, %p251
    %p253 = scmp.ne.s32.totalorder %s245, %s247
    %p254 = scmp.eq.s32.totalorder %s22, 1
    %p255 = por %p253, %p254
    %p256 = scmp.ne.s32.totalorder %s247, %s248
    %p257 = scmp.eq.s32.totalorder %s22, 0
    %p258 = por %p256, %p257
    %p259 = scmp.ne.s32.totalorder %s247, %s248
    %p260 = scmp.eq.s32.totalorder %s23, 1
    %p261 = por %p259, %p260
    %p263 = scmp.ne.s32.totalorder %s248, %s262
    %p264 = scmp.eq.s32.totalorder %s23, 0
    %p265 = por %p263, %p264
    %s266 = ssub.s32 %s17, %s24
    %p267 = scmp.eq.s32.totalorder %s266, 0
    %s269 = sadd.s32 %s268, 1
    %s270 = scalar_select %p267, %s268, %s269
    %p273 = pneg %p267
    %p274 = scmp.eq.s32.totalorder %s17, 1
    %p275 = por %p273, %p274
    %p276 = scmp.ne.s32.totalorder %s268, %s271
    %p277 = scmp.eq.s32.totalorder %s17, 0
    %p278 = por %p276, %p277
    %p279 = scmp.ne.s32.totalorder %s268, %s271
    %p280 = scmp.eq.s32.totalorder %s22, 1
    %p281 = por %p279, %p280
    %p282 = scmp.ne.s32.totalorder %s271, %s272
    %p283 = scmp.eq.s32.totalorder %s22, 0
    %p284 = por %p282, %p283
    %p285 = scmp.ne.s32.totalorder %s271, %s272
    %p286 = scmp.eq.s32.totalorder %s23, 1
    %p287 = por %p285, %p286
    %p289 = scmp.ne.s32.totalorder %s272, %s288
    %p290 = scmp.eq.s32.totalorder %s23, 0
    %p291 = por %p289, %p290
    %p292 = scmp.le.s32.totalorder 1, %s17
    %p293 = scmp.lt.s32.totalorder %s17, 3
    %p294 = pnand %p292, %p293
    %p295 = pneg %p294
    // Predicated region
    $region9: #{_up_block_attention_nchw_impl.1} parent=5 // pred_check
      _
    $region10: #{_up_block_attention_nchw_impl.1} parent=5 // pred_check_branch
      %297 = sbr.rel (%p294) target = $region12
    $region11: #{_up_block_attention_nchw_impl.1} parent=5 // pred_region
      %s298 = ssub.s32 %s17, 1
      // Predicated region
      $region13: #{_up_block_attention_nchw_impl.1} parent=11 // pred_check
        %p299 = pneg %p90
      $region14: #{_up_block_attention_nchw_impl.1} parent=11 // pred_check_branch
        %301 = sbr.rel (%p299) target = $region16
      $region15: #{_up_block_attention_nchw_impl.1} parent=11 // pred_region
        _
      $region16: #{_up_block_attention_nchw_impl.1} parent=11 // pred_fallthru
        _
      // Predicated region
      $region17: #{_up_block_attention_nchw_impl.1} parent=11 // pred_check
        %p302 = pneg %p111
      $region18: #{_up_block_attention_nchw_impl.1} parent=11 // pred_check_branch
        %304 = sbr.rel (%p302) target = $region20
      $region19: #{_up_block_attention_nchw_impl.1} parent=11 // pred_region
        _
      $region20: #{_up_block_attention_nchw_impl.1} parent=11 // pred_fallthru
        _
      // Predicated region
      $region21: #{_up_block_attention_nchw_impl.1} parent=11 // pred_check
        %p305 = pneg %p132
      $region22: #{_up_block_attention_nchw_impl.1} parent=11 // pred_check_branch
        %307 = sbr.rel (%p305) target = $region24
      $region23: #{_up_block_attention_nchw_impl.1} parent=11 // pred_region
        _
      $region24: #{_up_block_attention_nchw_impl.1} parent=11 // pred_fallthru
        _
      // Predicated region
      $region25: #{_up_block_attention_nchw_impl.1} parent=11 // pred_check
        %p308 = pneg %p153
      $region26: #{_up_block_attention_nchw_impl.1} parent=11 // pred_check_branch
        %310 = sbr.rel (%p308) target = $region28
      $region27: #{_up_block_attention_nchw_impl.1} parent=11 // pred_region
        _
      $region28: #{_up_block_attention_nchw_impl.1} parent=11 // pred_fallthru
        _
      // Predicated region
      $region29: #{_up_block_attention_nchw_impl.1} parent=11 // pred_check
        %p311 = pneg %p174
      $region30: #{_up_block_attention_nchw_impl.1} parent=11 // pred_check_branch
        %313 = sbr.rel (%p311) target = $region32
      $region31: #{_up_block_attention_nchw_impl.1} parent=11 // pred_region
        _
      $region32: #{_up_block_attention_nchw_impl.1} parent=11 // pred_fallthru
        _
      // Predicated region
      $region33: #{_up_block_attention_nchw_impl.1} parent=11 // pred_check
        %p314 = pneg %p195
      $region34: #{_up_block_attention_nchw_impl.1} parent=11 // pred_check_branch
        %316 = sbr.rel (%p314) target = $region36
      $region35: #{_up_block_attention_nchw_impl.1} parent=11 // pred_region
        _
      $region36: #{_up_block_attention_nchw_impl.1} parent=11 // pred_fallthru
        _
      // Predicated region
      $region37: #{_up_block_attention_nchw_impl.1} parent=11 // pred_check
        %p317 = pneg %p216
      $region38: #{_up_block_attention_nchw_impl.1} parent=11 // pred_check_branch
        %319 = sbr.rel (%p317) target = $region40
      $region39: #{_up_block_attention_nchw_impl.1} parent=11 // pred_region
        _
      $region40: #{_up_block_attention_nchw_impl.1} parent=11 // pred_fallthru
        _
      // Predicated region
      $region41: #{_up_block_attention_nchw_impl.1} parent=11 // pred_check
        %p320 = pneg %p237
      $region42: #{_up_block_attention_nchw_impl.1} parent=11 // pred_check_branch
        %322 = sbr.rel (%p320) target = $region44
      $region43: #{_up_block_attention_nchw_impl.1} parent=11 // pred_region
        _
      $region44: #{_up_block_attention_nchw_impl.1} parent=11 // pred_fallthru
        _
      // Predicated region
      $region45: #{_up_block_attention_nchw_impl.1} parent=11 // pred_check
        %p323 = pneg %p258
      $region46: #{_up_block_attention_nchw_impl.1} parent=11 // pred_check_branch
        %325 = sbr.rel (%p323) target = $region48
      $region47: #{_up_block_attention_nchw_impl.1} parent=11 // pred_region
        _
      $region48: #{_up_block_attention_nchw_impl.1} parent=11 // pred_fallthru
        _
    $region12: #{_up_block_attention_nchw_impl.1} parent=5 // pred_fallthru
      _
    %p326 = scmp.lt.s32.totalorder %s17, 2
    // Predicated region
    $region49: #{_up_block_attention_nchw_impl.1} parent=5 // pred_check
      %p327 = pneg %p326
    $region50: #{_up_block_attention_nchw_impl.1} parent=5 // pred_check_branch
      %329 = sbr.rel (%p327) target = $region52
    $region51: #{_up_block_attention_nchw_impl.1} parent=5 // pred_region
      // Predicated region
      $region53: #{_up_block_attention_nchw_impl.1} parent=51 // pred_check
        %p330 = pneg %p37
      $region54: #{_up_block_attention_nchw_impl.1} parent=51 // pred_check_branch
        %332 = sbr.rel (%p330) target = $region56
      $region55: #{_up_block_attention_nchw_impl.1} parent=51 // pred_region
        %p333 = scmp.lt.s32.totalorder %s17, 1
        %s334 = scalar_select %p333, %s17, 1
        %s335 = smul.addr %s334, 32
        %s336 = smul.addr %s335, 8
        %s337 = scalar_lea.vmem %s0, %s336
      $region56: #{_up_block_attention_nchw_impl.1} parent=51 // pred_fallthru
        _
      // Predicated region
      $region57: #{_up_block_attention_nchw_impl.1} parent=51 // pred_check
        %p338 = pneg %p63
      $region58: #{_up_block_attention_nchw_impl.1} parent=51 // pred_check_branch
        %340 = sbr.rel (%p338) target = $region60
      $region59: #{_up_block_attention_nchw_impl.1} parent=51 // pred_region
        %p341 = scmp.lt.s32.totalorder %s17, 1
        %s342 = scalar_select %p341, %s17, 1
        %s343 = smul.addr %s342, 8
        %s344 = smul.addr %s343, 8
        %s345 = scalar_lea.vmem %s1, %s344
      $region60: #{_up_block_attention_nchw_impl.1} parent=51 // pred_fallthru
        _
    $region52: #{_up_block_attention_nchw_impl.1} parent=5 // pred_fallthru
      _
    %p346 = scmp.le.s32.totalorder 1, %s17
    %p347 = scmp.lt.s32.totalorder %s17, 3
    %p348 = pnand %p346, %p347
    %p349 = pneg %p348
    // Predicated region
    $region61: #{_up_block_attention_nchw_impl.1} parent=5 // pred_check
      _
    $region62: #{_up_block_attention_nchw_impl.1} parent=5 // pred_check_branch
      %351 = sbr.rel (%p348) target = $region64
    $region63: #{_up_block_attention_nchw_impl.1} parent=5 // pred_region
      %s352 = ssub.s32 %s17, 1
      %p353 = scmp.lt.s32.totalorder %s22, 1
      %s354 = scalar_select %p353, %s22, 1
      %s355 = smul.addr %s354, 32
      %s356 = smul.addr %s355, 8
      %s357 = scalar_lea.vmem %s0, %s356
      %p358 = pneg %p43
      %p359 = pneg %p40
      %p360 = scmp.lt.s32.totalorder %s22, 1
      %s361 = scalar_select %p360, %s22, 1
      %s362 = smul.addr %s361, 8
      %s363 = smul.addr %s362, 8
      %s364 = scalar_lea.vmem %s1, %s363
      %p365 = pneg %p69
      %p366 = pneg %p66
      %p367 = pneg %p90
      %p368 = pneg %p87
      %p369 = pneg %p111
      %p370 = pneg %p108
      %p371 = pneg %p132
      %p372 = pneg %p129
      %p373 = pneg %p153
      %p374 = pneg %p150
      %p375 = pneg %p174
      %p376 = pneg %p171
      %p377 = pneg %p195
      %p378 = pneg %p192
      %p379 = pneg %p216
      %p380 = pneg %p213
      %p381 = pneg %p237
      %p382 = pneg %p234
      %p383 = pneg %p258
      %p384 = pneg %p255
      %p385 = pneg %p284
      %p386 = pneg %p281
      %p387 = scmp.lt.s32.totalorder %s22, 1
      %s388 = scalar_select %p387, %s22, 1
      %s389 = smul.addr %s388, 32
      %s390 = smul.addr %s389, 8
      %s391 = scalar_lea.vmem %s11, %s390
      %p392 = scmp.lt.s32.totalorder %s22, 1
      %s393 = scalar_select %p392, %s22, 1
      %s394 = smul.addr %s393, 32
      %s395 = smul.addr %s394, 8
      %s396 = scalar_lea.vmem %s0, %s395
      %p397 = scmp.lt.s32.totalorder %s22, 1
      %s398 = scalar_select %p397, %s22, 1
      %s399 = smul.addr %s398, 8
      %s400 = smul.addr %s399, 8
      %s401 = scalar_lea.vmem %s1, %s400
      %p402 = scmp.lt.s32.totalorder %s22, 1
      %s403 = scalar_select %p402, %s22, 1
      %s404 = smul.addr %s403, 32
      %s405 = smul.addr %s404, 8
      %s406 = scalar_lea.vmem %s11, %s405
      %vm408 = vcmask 60416
      %409 = vst.msk [vmem:[#allocation2] sm:$0xf] %vm408, 0
      %410 = vst.msk [vmem:[#allocation2 + $0x4] sm:$0xf] %vm408, 0
      %vm411 = vcmask 57344
      %412 = vst.msk [vmem:[#allocation2 + $0x8] sm:$0x1] %vm411, 0
      %s413 = scalar_lea.vmem [#allocation2], 204
      %414 = vst.msk [vmem:[%s413] sm:$0xf] %vm408, 0
      %415 = vst.msk [vmem:[%s413 + $0x4] sm:$0xf] %vm408, 0
      %416 = vst.msk [vmem:[%s413 + $0x8] sm:$0x1] %vm411, 0
      %vm417 = vcmask 57344
      %vm418 = vsmask.f32 256
      %vm419 = vmand %vm417, %vm418
      %v420 = vld [vmem:[#allocation2] sm:$0x1]
      %v421 = vsel %vm419, 0, %v420
      %422 = vst [vmem:[#allocation2] sm:$0x1] %v421
      %v423 = vld [vmem:[#allocation2 + $0xc] sm:$0x1]
      %v424 = vsel %vm419, 0, %v423
      %425 = vst [vmem:[#allocation2 + $0xc] sm:$0x1] %v424
      %v426 = vld [vmem:[#allocation2 + $0x18] sm:$0x1]
      %v427 = vsel %vm419, 0, %v426
      %428 = vst [vmem:[#allocation2 + $0x18] sm:$0x1] %v427
      %v429 = vld [vmem:[#allocation2 + $0x24] sm:$0x1]
      %v430 = vsel %vm419, 0, %v429
      %431 = vst [vmem:[#allocation2 + $0x24] sm:$0x1] %v430
      %v432 = vld [vmem:[#allocation2 + $0x30] sm:$0x1]
      %v433 = vsel %vm419, 0, %v432
      %434 = vst [vmem:[#allocation2 + $0x30] sm:$0x1] %v433
      %v435 = vld [vmem:[#allocation2 + $0x3c] sm:$0x1]
      %v436 = vsel %vm419, 0, %v435
      %437 = vst [vmem:[#allocation2 + $0x3c] sm:$0x1] %v436
      %v438 = vld [vmem:[#allocation2 + $0x48] sm:$0x1]
      %v439 = vsel %vm419, 0, %v438
      %440 = vst [vmem:[#allocation2 + $0x48] sm:$0x1] %v439
      %v441 = vld [vmem:[#allocation2 + $0x54] sm:$0x1]
      %v442 = vsel %vm419, 0, %v441
      %443 = vst [vmem:[#allocation2 + $0x54] sm:$0x1] %v442
      %v444 = vld [vmem:[#allocation2 + $0x60] sm:$0x1]
      %v445 = vsel %vm419, 0, %v444
      %446 = vst [vmem:[#allocation2 + $0x60] sm:$0x1] %v445
      %v447 = vld [vmem:[#allocation2 + $0x6c] sm:$0x1]
      %v448 = vsel %vm419, 0, %v447
      %449 = vst [vmem:[#allocation2 + $0x6c] sm:$0x1] %v448
      %v450 = vld [vmem:[#allocation2 + $0x78] sm:$0x1]
      %v451 = vsel %vm419, 0, %v450
      %452 = vst [vmem:[#allocation2 + $0x78] sm:$0x1] %v451
      %v453 = vld [vmem:[#allocation2 + $0x84] sm:$0x1]
      %v454 = vsel %vm419, 0, %v453
      %455 = vst [vmem:[#allocation2 + $0x84] sm:$0x1] %v454
      %v456 = vld [vmem:[#allocation2 + $0x90] sm:$0x1]
      %v457 = vsel %vm419, 0, %v456
      %458 = vst [vmem:[#allocation2 + $0x90] sm:$0x1] %v457
      %v459 = vld [vmem:[#allocation2 + $0x9c] sm:$0x1]
      %v460 = vsel %vm419, 0, %v459
      %461 = vst [vmem:[#allocation2 + $0x9c] sm:$0x1] %v460
      %v462 = vld [vmem:[#allocation2 + $0xa8] sm:$0x1]
      %v463 = vsel %vm419, 0, %v462
      %464 = vst [vmem:[#allocation2 + $0xa8] sm:$0x1] %v463
      %v465 = vld [vmem:[#allocation2 + $0xb4] sm:$0x1]
      %v466 = vsel %vm419, 0, %v465
      %467 = vst [vmem:[#allocation2 + $0xb4] sm:$0x1] %v466
      %v468 = vld [vmem:[#allocation2 + $0xc0] sm:$0x1]
      %v469 = vsel %vm419, 0, %v468
      %470 = vst [vmem:[#allocation2 + $0xc0] sm:$0x1] %v469
      %v471 = vld [vmem:[#allocation2 + $0xcc] sm:$0x1]
      %v472 = vsel %vm419, 0, %v471
      %473 = vst [vmem:[#allocation2 + $0xcc] sm:$0x1] %v472
      %vm474 = vsmask.f32 7938
      %vm475 = vmand %vm417, %vm474
      %v476 = vld [vmem:[#allocation2 + $0x8] sm:$0x1]
      %v477 = vsel %vm475, 0, %v476
      %478 = vst [vmem:[#allocation2 + $0x8] sm:$0x1] %v477
      %v479 = vld [vmem:[#allocation2 + $0x14] sm:$0x1]
      %v480 = vsel %vm475, 0, %v479
      %481 = vst [vmem:[#allocation2 + $0x14] sm:$0x1] %v480
      %v482 = vld [vmem:[#allocation2 + $0x20] sm:$0x1]
      %v483 = vsel %vm475, 0, %v482
      %484 = vst [vmem:[#allocation2 + $0x20] sm:$0x1] %v483
      %v485 = vld [vmem:[#allocation2 + $0x2c] sm:$0x1]
      %v486 = vsel %vm475, 0, %v485
      %487 = vst [vmem:[#allocation2 + $0x2c] sm:$0x1] %v486
      %v488 = vld [vmem:[#allocation2 + $0x38] sm:$0x1]
      %v489 = vsel %vm475, 0, %v488
      %490 = vst [vmem:[#allocation2 + $0x38] sm:$0x1] %v489
      %v491 = vld [vmem:[#allocation2 + $0x44] sm:$0x1]
      %v492 = vsel %vm475, 0, %v491
      %493 = vst [vmem:[#allocation2 + $0x44] sm:$0x1] %v492
      %v494 = vld [vmem:[#allocation2 + $0x50] sm:$0x1]
      %v495 = vsel %vm475, 0, %v494
      %496 = vst [vmem:[#allocation2 + $0x50] sm:$0x1] %v495
      %v497 = vld [vmem:[#allocation2 + $0x5c] sm:$0x1]
      %v498 = vsel %vm475, 0, %v497
      %499 = vst [vmem:[#allocation2 + $0x5c] sm:$0x1] %v498
      %v500 = vld [vmem:[#allocation2 + $0x68] sm:$0x1]
      %v501 = vsel %vm475, 0, %v500
      %502 = vst [vmem:[#allocation2 + $0x68] sm:$0x1] %v501
      %v503 = vld [vmem:[#allocation2 + $0x74] sm:$0x1]
      %v504 = vsel %vm475, 0, %v503
      %505 = vst [vmem:[#allocation2 + $0x74] sm:$0x1] %v504
      %v506 = vld [vmem:[#allocation2 + $0x80] sm:$0x1]
      %v507 = vsel %vm475, 0, %v506
      %508 = vst [vmem:[#allocation2 + $0x80] sm:$0x1] %v507
      %v509 = vld [vmem:[#allocation2 + $0x8c] sm:$0x1]
      %v510 = vsel %vm475, 0, %v509
      %511 = vst [vmem:[#allocation2 + $0x8c] sm:$0x1] %v510
      %v512 = vld [vmem:[#allocation2 + $0x98] sm:$0x1]
      %v513 = vsel %vm475, 0, %v512
      %514 = vst [vmem:[#allocation2 + $0x98] sm:$0x1] %v513
      %v515 = vld [vmem:[#allocation2 + $0xa4] sm:$0x1]
      %v516 = vsel %vm475, 0, %v515
      %517 = vst [vmem:[#allocation2 + $0xa4] sm:$0x1] %v516
      %v518 = vld [vmem:[#allocation2 + $0xb0] sm:$0x1]
      %v519 = vsel %vm475, 0, %v518
      %520 = vst [vmem:[#allocation2 + $0xb0] sm:$0x1] %v519
      %v521 = vld [vmem:[#allocation2 + $0xbc] sm:$0x1]
      %v522 = vsel %vm475, 0, %v521
      %523 = vst [vmem:[#allocation2 + $0xbc] sm:$0x1] %v522
      %v524 = vld [vmem:[#allocation2 + $0xc8] sm:$0x1]
      %v525 = vsel %vm475, 0, %v524
      %526 = vst [vmem:[#allocation2 + $0xc8] sm:$0x1] %v525
      %v527 = vld [vmem:[#allocation2 + $0xd4] sm:$0x1]
      %v528 = vsel %vm475, 0, %v527
      %529 = vst [vmem:[#allocation2 + $0xd4] sm:$0x1] %v528
      %vm530 = vcmask 27648
      %531 = vst.msk [vmem:[#allocation3] sm:$0xf] %vm530, 0
      %532 = vst.msk [vmem:[#allocation3 + $0x4] sm:$0xf] %vm530, 0
      %vm533 = vcmask 24576
      %534 = vst.msk [vmem:[#allocation3 + $0x8] sm:$0x1] %vm533, 0
      %s535 = scalar_lea.vmem [#allocation3], 204
      %536 = vst.msk [vmem:[%s535] sm:$0xf] %vm530, 0
      %537 = vst.msk [vmem:[%s535 + $0x4] sm:$0xf] %vm530, 0
      %538 = vst.msk [vmem:[%s535 + $0x8] sm:$0x1] %vm533, 0
      %vm539 = vcmask 24576
      %vm540 = vmand %vm539, %vm418
      %v541 = vld [vmem:[#allocation3] sm:$0x1]
      %v542 = vsel %vm540, 0, %v541
      %543 = vst [vmem:[#allocation3] sm:$0x1] %v542
      %v544 = vld [vmem:[#allocation3 + $0xc] sm:$0x1]
      %v545 = vsel %vm540, 0, %v544
      %546 = vst [vmem:[#allocation3 + $0xc] sm:$0x1] %v545
      %v547 = vld [vmem:[#allocation3 + $0x18] sm:$0x1]
      %v548 = vsel %vm540, 0, %v547
      %549 = vst [vmem:[#allocation3 + $0x18] sm:$0x1] %v548
      %v550 = vld [vmem:[#allocation3 + $0x24] sm:$0x1]
      %v551 = vsel %vm540, 0, %v550
      %552 = vst [vmem:[#allocation3 + $0x24] sm:$0x1] %v551
      %v553 = vld [vmem:[#allocation3 + $0x30] sm:$0x1]
      %v554 = vsel %vm540, 0, %v553
      %555 = vst [vmem:[#allocation3 + $0x30] sm:$0x1] %v554
      %v556 = vld [vmem:[#allocation3 + $0x3c] sm:$0x1]
      %v557 = vsel %vm540, 0, %v556
      %558 = vst [vmem:[#allocation3 + $0x3c] sm:$0x1] %v557
      %v559 = vld [vmem:[#allocation3 + $0x48] sm:$0x1]
      %v560 = vsel %vm540, 0, %v559
      %561 = vst [vmem:[#allocation3 + $0x48] sm:$0x1] %v560
      %v562 = vld [vmem:[#allocation3 + $0x54] sm:$0x1]
      %v563 = vsel %vm540, 0, %v562
      %564 = vst [vmem:[#allocation3 + $0x54] sm:$0x1] %v563
      %v565 = vld [vmem:[#allocation3 + $0x60] sm:$0x1]
      %v566 = vsel %vm540, 0, %v565
      %567 = vst [vmem:[#allocation3 + $0x60] sm:$0x1] %v566
      %v568 = vld [vmem:[#allocation3 + $0x6c] sm:$0x1]
      %v569 = vsel %vm540, 0, %v568
      %570 = vst [vmem:[#allocation3 + $0x6c] sm:$0x1] %v569
      %v571 = vld [vmem:[#allocation3 + $0x78] sm:$0x1]
      %v572 = vsel %vm540, 0, %v571
      %573 = vst [vmem:[#allocation3 + $0x78] sm:$0x1] %v572
      %v574 = vld [vmem:[#allocation3 + $0x84] sm:$0x1]
      %v575 = vsel %vm540, 0, %v574
      %576 = vst [vmem:[#allocation3 + $0x84] sm:$0x1] %v575
      %v577 = vld [vmem:[#allocation3 + $0x90] sm:$0x1]
      %v578 = vsel %vm540, 0, %v577
      %579 = vst [vmem:[#allocation3 + $0x90] sm:$0x1] %v578
      %v580 = vld [vmem:[#allocation3 + $0x9c] sm:$0x1]
      %v581 = vsel %vm540, 0, %v580
      %582 = vst [vmem:[#allocation3 + $0x9c] sm:$0x1] %v581
      %v583 = vld [vmem:[#allocation3 + $0xa8] sm:$0x1]
      %v584 = vsel %vm540, 0, %v583
      %585 = vst [vmem:[#allocation3 + $0xa8] sm:$0x1] %v584
      %v586 = vld [vmem:[#allocation3 + $0xb4] sm:$0x1]
      %v587 = vsel %vm540, 0, %v586
      %588 = vst [vmem:[#allocation3 + $0xb4] sm:$0x1] %v587
      %v589 = vld [vmem:[#allocation3 + $0xc0] sm:$0x1]
      %v590 = vsel %vm540, 0, %v589
      %591 = vst [vmem:[#allocation3 + $0xc0] sm:$0x1] %v590
      %v592 = vld [vmem:[#allocation3 + $0xcc] sm:$0x1]
      %v593 = vsel %vm540, 0, %v592
      %594 = vst [vmem:[#allocation3 + $0xcc] sm:$0x1] %v593
      %vm595 = vmand %vm539, %vm474
      %v596 = vld [vmem:[#allocation3 + $0x8] sm:$0x1]
      %v597 = vsel %vm595, 0, %v596
      %598 = vst [vmem:[#allocation3 + $0x8] sm:$0x1] %v597
      %v599 = vld [vmem:[#allocation3 + $0x14] sm:$0x1]
      %v600 = vsel %vm595, 0, %v599
      %601 = vst [vmem:[#allocation3 + $0x14] sm:$0x1] %v600
      %v602 = vld [vmem:[#allocation3 + $0x20] sm:$0x1]
      %v603 = vsel %vm595, 0, %v602
      %604 = vst [vmem:[#allocation3 + $0x20] sm:$0x1] %v603
      %v605 = vld [vmem:[#allocation3 + $0x2c] sm:$0x1]
      %v606 = vsel %vm595, 0, %v605
      %607 = vst [vmem:[#allocation3 + $0x2c] sm:$0x1] %v606
      %v608 = vld [vmem:[#allocation3 + $0x38] sm:$0x1]
      %v609 = vsel %vm595, 0, %v608
      %610 = vst [vmem:[#allocation3 + $0x38] sm:$0x1] %v609
      %v611 = vld [vmem:[#allocation3 + $0x44] sm:$0x1]
      %v612 = vsel %vm595, 0, %v611
      %613 = vst [vmem:[#allocation3 + $0x44] sm:$0x1] %v612
      %v614 = vld [vmem:[#allocation3 + $0x50] sm:$0x1]
      %v615 = vsel %vm595, 0, %v614
      %616 = vst [vmem:[#allocation3 + $0x50] sm:$0x1] %v615
      %v617 = vld [vmem:[#allocation3 + $0x5c] sm:$0x1]
      %v618 = vsel %vm595, 0, %v617
      %619 = vst [vmem:[#allocation3 + $0x5c] sm:$0x1] %v618
      %v620 = vld [vmem:[#allocation3 + $0x68] sm:$0x1]
      %v621 = vsel %vm595, 0, %v620
      %622 = vst [vmem:[#allocation3 + $0x68] sm:$0x1] %v621
      %v623 = vld [vmem:[#allocation3 + $0x74] sm:$0x1]
      %v624 = vsel %vm595, 0, %v623
      %625 = vst [vmem:[#allocation3 + $0x74] sm:$0x1] %v624
      %v626 = vld [vmem:[#allocation3 + $0x80] sm:$0x1]
      %v627 = vsel %vm595, 0, %v626
      %628 = vst [vmem:[#allocation3 + $0x80] sm:$0x1] %v627
      %v629 = vld [vmem:[#allocation3 + $0x8c] sm:$0x1]
      %v630 = vsel %vm595, 0, %v629
      %631 = vst [vmem:[#allocation3 + $0x8c] sm:$0x1] %v630
      %v632 = vld [vmem:[#allocation3 + $0x98] sm:$0x1]
      %v633 = vsel %vm595, 0, %v632
      %634 = vst [vmem:[#allocation3 + $0x98] sm:$0x1] %v633
      %v635 = vld [vmem:[#allocation3 + $0xa4] sm:$0x1]
      %v636 = vsel %vm595, 0, %v635
      %637 = vst [vmem:[#allocation3 + $0xa4] sm:$0x1] %v636
      %v638 = vld [vmem:[#allocation3 + $0xb0] sm:$0x1]
      %v639 = vsel %vm595, 0, %v638
      %640 = vst [vmem:[#allocation3 + $0xb0] sm:$0x1] %v639
      %v641 = vld [vmem:[#allocation3 + $0xbc] sm:$0x1]
      %v642 = vsel %vm595, 0, %v641
      %643 = vst [vmem:[#allocation3 + $0xbc] sm:$0x1] %v642
      %v644 = vld [vmem:[#allocation3 + $0xc8] sm:$0x1]
      %v645 = vsel %vm595, 0, %v644
      %646 = vst [vmem:[#allocation3 + $0xc8] sm:$0x1] %v645
      %v647 = vld [vmem:[#allocation3 + $0xd4] sm:$0x1]
      %v648 = vsel %vm595, 0, %v647
      %649 = vst [vmem:[#allocation3 + $0xd4] sm:$0x1] %v648
      %v650 = vld [vmem:[%s396] sm:$0xff]
      %v651 = vld [vmem:[%s396 + $0x8] sm:$0xff]
      %v652 = vld [vmem:[%s396 + $0x10] sm:$0xff]
      %v653 = vld [vmem:[%s396 + $0x18] sm:$0xff]
      %v654 = vld [vmem:[%s396 + $0x20] sm:$0xff]
      %v655 = vld [vmem:[%s396 + $0x28] sm:$0xff]
      %v656 = vld [vmem:[%s396 + $0x30] sm:$0xff]
      %v657 = vld [vmem:[%s396 + $0x38] sm:$0xff]
      %v658 = vld [vmem:[%s396 + $0x40] sm:$0xff]
      %v659 = vld [vmem:[%s396 + $0x48] sm:$0xff]
      %v660 = vld [vmem:[%s396 + $0x50] sm:$0xff]
      %v661 = vld [vmem:[%s396 + $0x58] sm:$0xff]
      %v662 = vld [vmem:[%s396 + $0x60] sm:$0xff]
      %v663 = vld [vmem:[%s396 + $0x68] sm:$0xff]
      %v664 = vld [vmem:[%s396 + $0x70] sm:$0xff]
      %v665 = vld [vmem:[%s396 + $0x78] sm:$0xff]
      %v666 = vld [vmem:[%s396 + $0x80] sm:$0xff]
      %v667 = vld [vmem:[%s396 + $0x88] sm:$0xff]
      %v668 = vld [vmem:[%s396 + $0x90] sm:$0xff]
      %v669 = vld [vmem:[%s396 + $0x98] sm:$0xff]
      %v670 = vld [vmem:[%s396 + $0xa0] sm:$0xff]
      %v671 = vld [vmem:[%s396 + $0xa8] sm:$0xff]
      %v672 = vld [vmem:[%s396 + $0xb0] sm:$0xff]
      %v673 = vld [vmem:[%s396 + $0xb8] sm:$0xff]
      %v674 = vld [vmem:[%s396 + $0xc0] sm:$0xff]
      %v675 = vld [vmem:[%s396 + $0xc8] sm:$0xff]
      %v676 = vld [vmem:[%s396 + $0xd0] sm:$0xff]
      %v677 = vld [vmem:[%s396 + $0xd8] sm:$0xff]
      %v678 = vld [vmem:[%s396 + $0xe0] sm:$0xff]
      %v679 = vld [vmem:[%s396 + $0xe8] sm:$0xff]
      %v680 = vld [vmem:[%s396 + $0xf0] sm:$0xff]
      %v681 = vld [vmem:[%s396 + $0xf8] sm:$0xff]
      %v682 = vld [vmem:[%s401] sm:$0xff]
      %v683 = vld [vmem:[%s401 + $0x8] sm:$0xff]
      %v684 = vld [vmem:[%s401 + $0x10] sm:$0xff]
      %v685 = vld [vmem:[%s401 + $0x18] sm:$0xff]
      %v686 = vld [vmem:[%s401 + $0x20] sm:$0xff]
      %v687 = vld [vmem:[%s401 + $0x28] sm:$0xff]
      %v688 = vld [vmem:[%s401 + $0x30] sm:$0xff]
      %v689 = vld [vmem:[%s401 + $0x38] sm:$0xff]
      %vm690 = vcmask 31744
      %v691 = vsel %vm690, %v650, 0.0
      %v692 = vsel %vm690, %v652, 0.0
      %v693 = vadd.f32 %v691, %v692
      %v694 = vsel %vm690, %v654, 0.0
      %v695 = vadd.f32 %v693, %v694
      %v696 = vsel %vm690, %v656, 0.0
      %v697 = vadd.f32 %v695, %v696
      %v698 = vsel %vm690, %v658, 0.0
      %v699 = vadd.f32 %v697, %v698
      %v700 = vsel %vm690, %v660, 0.0
      %v701 = vadd.f32 %v699, %v700
      %v702 = vsel %vm690, %v662, 0.0
      %v703 = vadd.f32 %v701, %v702
      %v704 = vsel %vm690, %v664, 0.0
      %v705 = vadd.f32 %v703, %v704
      %v706 = vsel %vm690, %v666, 0.0
      %v707 = vadd.f32 %v705, %v706
      %v708 = vsel %vm690, %v668, 0.0
      %v709 = vadd.f32 %v707, %v708
      %v710 = vsel %vm690, %v670, 0.0
      %v711 = vadd.f32 %v709, %v710
      %v712 = vsel %vm690, %v672, 0.0
      %v713 = vadd.f32 %v711, %v712
      %v714 = vsel %vm690, %v674, 0.0
      %v715 = vadd.f32 %v713, %v714
      %v716 = vsel %vm690, %v676, 0.0
      %v717 = vadd.f32 %v715, %v716
      %v718 = vsel %vm690, %v678, 0.0
      %v719 = vadd.f32 %v717, %v718
      %v720 = vsel %vm690, %v680, 0.0
      %v721 = vadd.f32 %v719, %v720
      %v722 = vsel %vm690, %v651, 0.0
      %v723 = vsel %vm690, %v653, 0.0
      %v724 = vadd.f32 %v722, %v723
      %v725 = vsel %vm690, %v655, 0.0
      %v726 = vadd.f32 %v724, %v725
      %v727 = vsel %vm690, %v657, 0.0
      %v728 = vadd.f32 %v726, %v727
      %v729 = vsel %vm690, %v659, 0.0
      %v730 = vadd.f32 %v728, %v729
      %v731 = vsel %vm690, %v661, 0.0
      %v732 = vadd.f32 %v730, %v731
      %v733 = vsel %vm690, %v663, 0.0
      %v734 = vadd.f32 %v732, %v733
      %v735 = vsel %vm690, %v665, 0.0
      %v736 = vadd.f32 %v734, %v735
      %v737 = vsel %vm690, %v667, 0.0
      %v738 = vadd.f32 %v736, %v737
      %v739 = vsel %vm690, %v669, 0.0
      %v740 = vadd.f32 %v738, %v739
      %v741 = vsel %vm690, %v671, 0.0
      %v742 = vadd.f32 %v740, %v741
      %v743 = vsel %vm690, %v673, 0.0
      %v744 = vadd.f32 %v742, %v743
      %v745 = vsel %vm690, %v675, 0.0
      %v746 = vadd.f32 %v744, %v745
      %v747 = vsel %vm690, %v677, 0.0
      %v748 = vadd.f32 %v746, %v747
      %v749 = vsel %vm690, %v679, 0.0
      %v750 = vadd.f32 %v748, %v749
      %v751 = vsel %vm690, %v681, 0.0
      %v752 = vadd.f32 %v750, %v751
      %v753 = vsel %vm690, %v721, 0.0
      %v754 = vsel %vm690, %v752, 0.0
      %v755 = vadd.f32 %v753, %v754
      %v756 = vrot.slane %v755, 4
      %v757 = vadd.f32 %v755, %v756
      %v758 = vrot.slane %v757, 2
      %v759 = vadd.f32 %v757, %v758
      %v760 = vrot.slane %v759, 1
      %v761 = vadd.f32 %v759, %v760
      %v762 = vmul.f32 %v761, 0.00390625
      %v763 = vsel %vm690, %v682, 0.0
      %v764 = vsel %vm690, %v683, 0.0
      %v765 = vadd.f32 %v763, %v764
      %v766 = vsel %vm690, %v684, 0.0
      %v767 = vadd.f32 %v765, %v766
      %v768 = vsel %vm690, %v685, 0.0
      %v769 = vadd.f32 %v767, %v768
      %v770 = vsel %vm690, %v686, 0.0
      %v771 = vadd.f32 %v769, %v770
      %v772 = vsel %vm690, %v687, 0.0
      %v773 = vadd.f32 %v771, %v772
      %v774 = vsel %vm690, %v688, 0.0
      %v775 = vadd.f32 %v773, %v774
      %v776 = vsel %vm690, %v689, 0.0
      %v777 = vadd.f32 %v775, %v776
      %v778 = vsel %vm690, %v777, 0.0
      %v779 = vrot.slane %v778, 4
      %v780 = vadd.f32 %v778, %v779
      %v781 = vrot.slane %v780, 2
      %v782 = vadd.f32 %v780, %v781
      %v783 = vrot.slane %v782, 1
      %v784 = vadd.f32 %v782, %v783
      %v785 = vmul.f32 %v784, 0.015625
      %v786 = vld [vmem:[%s3] sm:$0xf]
      %v787 = vld [vmem:[%s4] sm:$0x1]
      %v789 = vsel %vm690, %v762, 0
      %vm791 = vcmask 1043456
      %v793 = vsel %vm791, %v786, 0
      %795 = vmatprep.subr.mxu0 0.0
      %796 = vmatpush1.msra.mxu0 %v793
      %797 = vmatprep.subr.mxu0 0.0
      %798 = vmatpush1.msra.mxu0 0.0
      %799 = vmatprep.subr.mxu0 0.0
      %800 = vmatpush1.msra.mxu0 0.0
      %801 = vmatprep.subr.mxu0 0.0
      %802 = vmatpush1.msra.mxu0 0.0
      %803 = vmatprep.subr.mxu0 0.0
      %804 = vmatpush1.msra.mxu0 0.0
      %805 = vmatprep.subr.mxu0 0.0
      %806 = vmatpush1.msra.mxu0 0.0
      %807 = vmatprep.subr.mxu0 0.0
      %808 = vmatpush1.msra.mxu0 0.0
      %809 = vmatprep.subr.mxu0 0.0
      %810 = vmatpush1.msra.mxu0 0.0
      %811 = vmatprep.subr.mxu0 0.0
      %812 = vmatpush1.msra.mxu0 0.0
      %813 = vmatprep.subr.mxu0 0.0
      %814 = vmatpush1.msra.mxu0 0.0
      %815 = vmatprep.subr.mxu0 0.0
      %816 = vmatpush1.msra.mxu0 0.0
      %817 = vmatprep.subr.mxu0 0.0
      %818 = vmatpush1.msra.mxu0 0.0
      %819 = vmatprep.subr.mxu0 0.0
      %820 = vmatpush1.msra.mxu0 0.0
      %821 = vmatprep.subr.mxu0 0.0
      %822 = vmatpush1.msra.mxu0 0.0
      %823 = vmatprep.subr.mxu0 0.0
      %824 = vmatpush1.msra.mxu0 0.0
      %825 = vmatprep.subr.mxu0 0.0
      %826 = vmatpush1.msra.mxu0 0.0
      %827 = vmatprep.subr.mxu0 0.0
      %828 = vmatpush1.msra.mxu0 0.0
      %829 = vmatprep.subr.mxu0 0.0
      %830 = vmatpush1.msra.mxu0 0.0
      %831 = vmatprep.subr.mxu0 0.0
      %832 = vmatpush1.msra.mxu0 0.0
      %833 = vmatprep.subr.mxu0 0.0
      %834 = vmatpush1.msra.mxu0 0.0
      %835 = vmatprep.subr.mxu0 0.0
      %836 = vmatpush1.msra.mxu0 0.0
      %837 = vmatprep.subr.mxu0 0.0
      %838 = vmatpush1.msra.mxu0 0.0
      %839 = vmatprep.subr.mxu0 0.0
      %840 = vmatpush1.msra.mxu0 0.0
      %841 = vmatprep.subr.mxu0 0.0
      %842 = vmatpush1.msra.mxu0 0.0
      %843 = vmatprep.subr.mxu0 0.0
      %844 = vmatpush1.msra.mxu0 0.0
      %845 = vmatprep.subr.mxu0 0.0
      %846 = vmatpush1.msra.mxu0 0.0
      %847 = vmatprep.subr.mxu0 0.0
      %848 = vmatpush1.msra.mxu0 0.0
      %849 = vmatprep.subr.mxu0 0.0
      %850 = vmatpush1.msra.mxu0 0.0
      %851 = vmatprep.subr.mxu0 0.0
      %852 = vmatpush1.msra.mxu0 0.0
      %853 = vmatprep.subr.mxu0 0.0
      %854 = vmatpush1.msra.mxu0 0.0
      %855 = vmatprep.subr.mxu0 0.0
      %856 = vmatpush1.msra.mxu0 0.0
      %857 = vmatprep.subr.mxu0 0.0
      %858 = vmatpush1.msra.mxu0 0.0
      %859 = vmatprep.mubr.f32.mxu0 0.0
      %860 = vmatmul.mubr.f32.gmra.mrb[0].mxu0 %v789
      %v861 = vpop.f32.mrb[0].mxu0
      %v862 = vadd.f32 %v787, %v861
      %v863 = vpop.f32.mrb[0].mxu0
      %864 = vdwg.mxu0
      %v865 = vld [vmem:[%s5] sm:$0xf]
      %v866 = vld [vmem:[%s6] sm:$0x1]
      %v868 = vsel %vm690, %v785, 0
      %v871 = vsel %vm791, %v865, 0
      %873 = vmatprep.subr.mxu0 0.0
      %874 = vmatpush1.msra.mxu0 %v871
      %875 = vmatprep.subr.mxu0 0.0
      %876 = vmatpush1.msra.mxu0 0.0
      %877 = vmatprep.subr.mxu0 0.0
      %878 = vmatpush1.msra.mxu0 0.0
      %879 = vmatprep.subr.mxu0 0.0
      %880 = vmatpush1.msra.mxu0 0.0
      %881 = vmatprep.subr.mxu0 0.0
      %882 = vmatpush1.msra.mxu0 0.0
      %883 = vmatprep.subr.mxu0 0.0
      %884 = vmatpush1.msra.mxu0 0.0
      %885 = vmatprep.subr.mxu0 0.0
      %886 = vmatpush1.msra.mxu0 0.0
      %887 = vmatprep.subr.mxu0 0.0
      %888 = vmatpush1.msra.mxu0 0.0
      %889 = vmatprep.subr.mxu0 0.0
      %890 = vmatpush1.msra.mxu0 0.0
      %891 = vmatprep.subr.mxu0 0.0
      %892 = vmatpush1.msra.mxu0 0.0
      %893 = vmatprep.subr.mxu0 0.0
      %894 = vmatpush1.msra.mxu0 0.0
      %895 = vmatprep.subr.mxu0 0.0
      %896 = vmatpush1.msra.mxu0 0.0
      %897 = vmatprep.subr.mxu0 0.0
      %898 = vmatpush1.msra.mxu0 0.0
      %899 = vmatprep.subr.mxu0 0.0
      %900 = vmatpush1.msra.mxu0 0.0
      %901 = vmatprep.subr.mxu0 0.0
      %902 = vmatpush1.msra.mxu0 0.0
      %903 = vmatprep.subr.mxu0 0.0
      %904 = vmatpush1.msra.mxu0 0.0
      %905 = vmatprep.subr.mxu0 0.0
      %906 = vmatpush1.msra.mxu0 0.0
      %907 = vmatprep.subr.mxu0 0.0
      %908 = vmatpush1.msra.mxu0 0.0
      %909 = vmatprep.subr.mxu0 0.0
      %910 = vmatpush1.msra.mxu0 0.0
      %911 = vmatprep.subr.mxu0 0.0
      %912 = vmatpush1.msra.mxu0 0.0
      %913 = vmatprep.subr.mxu0 0.0
      %914 = vmatpush1.msra.mxu0 0.0
      %915 = vmatprep.subr.mxu0 0.0
      %916 = vmatpush1.msra.mxu0 0.0
      %917 = vmatprep.subr.mxu0 0.0
      %918 = vmatpush1.msra.mxu0 0.0
      %919 = vmatprep.subr.mxu0 0.0
      %920 = vmatpush1.msra.mxu0 0.0
      %921 = vmatprep.subr.mxu0 0.0
      %922 = vmatpush1.msra.mxu0 0.0
      %923 = vmatprep.subr.mxu0 0.0
      %924 = vmatpush1.msra.mxu0 0.0
      %925 = vmatprep.subr.mxu0 0.0
      %926 = vmatpush1.msra.mxu0 0.0
      %927 = vmatprep.subr.mxu0 0.0
      %928 = vmatpush1.msra.mxu0 0.0
      %929 = vmatprep.subr.mxu0 0.0
      %930 = vmatpush1.msra.mxu0 0.0
      %931 = vmatprep.subr.mxu0 0.0
      %932 = vmatpush1.msra.mxu0 0.0
      %933 = vmatprep.subr.mxu0 0.0
      %934 = vmatpush1.msra.mxu0 0.0
      %935 = vmatprep.subr.mxu0 0.0
      %936 = vmatpush1.msra.mxu0 0.0
      %937 = vmatprep.mubr.f32.mxu0 0.0
      %938 = vmatmul.mubr.f32.gmra.mrb[0].mxu0 %v868
      %v939 = vpop.f32.mrb[0].mxu0
      %v940 = vadd.f32 %v866, %v939
      %v941 = vpop.f32.mrb[0].mxu0
      %942 = vdwg.mxu0
      %v943 = vadd.f32 %v862, %v940
      %v944 = vmul.f32 %v943, 0.5
      %v945 = vxor.u32 %v944, 2147483648
      %v946 = vmul.f32 %v945, 1.442695
      %v947 = vpow.pop %v946
      %v948 = vadd.f32 %v947, 1.0
      %v949 = vrcp.pop %v948
      %v950 = vmul.f32 1.0, %v949
      %v951 = vlaneseq
      %v952 = vshrl.u32 %v951, 7
      %v953 = vsub.s32 0, %v952
      %v954 = vrot.slane %v950, %v953
      %v955 = vmul.f32 %v650, %v954
      %v956 = vmul.f32 %v651, %v954
      %v957 = vmul.f32 %v652, %v954
      %v958 = vmul.f32 %v653, %v954
      %v959 = vmul.f32 %v654, %v954
      %v960 = vmul.f32 %v655, %v954
      %v961 = vmul.f32 %v656, %v954
      %v962 = vmul.f32 %v657, %v954
      %v963 = vmul.f32 %v658, %v954
      %v964 = vmul.f32 %v659, %v954
      %v965 = vmul.f32 %v660, %v954
      %v966 = vmul.f32 %v661, %v954
      %v967 = vmul.f32 %v662, %v954
      %v968 = vmul.f32 %v663, %v954
      %v969 = vmul.f32 %v664, %v954
      %v970 = vmul.f32 %v665, %v954
      %v971 = vmul.f32 %v666, %v954
      %v972 = vmul.f32 %v667, %v954
      %v973 = vmul.f32 %v668, %v954
      %v974 = vmul.f32 %v669, %v954
      %v975 = vmul.f32 %v670, %v954
      %v976 = vmul.f32 %v671, %v954
      %v977 = vmul.f32 %v672, %v954
      %v978 = vmul.f32 %v673, %v954
      %v979 = vmul.f32 %v674, %v954
      %v980 = vmul.f32 %v675, %v954
      %v981 = vmul.f32 %v676, %v954
      %v982 = vmul.f32 %v677, %v954
      %v983 = vmul.f32 %v678, %v954
      %v984 = vmul.f32 %v679, %v954
      %v985 = vmul.f32 %v680, %v954
      %v986 = vmul.f32 %v681, %v954
      %v987 = vmax.f32 %v955, 0.0
      %v988 = vmax.f32 %v956, 0.0
      %v989 = vmax.f32 %v957, 0.0
      %v990 = vmax.f32 %v958, 0.0
      %v991 = vmax.f32 %v959, 0.0
      %v992 = vmax.f32 %v960, 0.0
      %v993 = vmax.f32 %v961, 0.0
      %v994 = vmax.f32 %v962, 0.0
      %v995 = vmax.f32 %v963, 0.0
      %v996 = vmax.f32 %v964, 0.0
      %v997 = vmax.f32 %v965, 0.0
      %v998 = vmax.f32 %v966, 0.0
      %v999 = vmax.f32 %v967, 0.0
      %v1000 = vmax.f32 %v968, 0.0
      %v1001 = vmax.f32 %v969, 0.0
      %v1002 = vmax.f32 %v970, 0.0
      %v1003 = vmax.f32 %v971, 0.0
      %v1004 = vmax.f32 %v972, 0.0
      %v1005 = vmax.f32 %v973, 0.0
      %v1006 = vmax.f32 %v974, 0.0
      %v1007 = vmax.f32 %v975, 0.0
      %v1008 = vmax.f32 %v976, 0.0
      %v1009 = vmax.f32 %v977, 0.0
      %v1010 = vmax.f32 %v978, 0.0
      %v1011 = vmax.f32 %v979, 0.0
      %v1012 = vmax.f32 %v980, 0.0
      %v1013 = vmax.f32 %v981, 0.0
      %v1014 = vmax.f32 %v982, 0.0
      %v1015 = vmax.f32 %v983, 0.0
      %v1016 = vmax.f32 %v984, 0.0
      %v1017 = vmax.f32 %v985, 0.0
      %v1018 = vmax.f32 %v986, 0.0
      %v1019 = vpack.c.bf16 %v682, %v682
      %v1020 = vpack.c.bf16 %v683, %v683
      %v1021 = vpack.c.bf16 %v684, %v684
      %v1022 = vpack.c.bf16 %v685, %v685
      %v1023 = vpack.c.bf16 %v686, %v686
      %v1024 = vpack.c.bf16 %v687, %v687
      %v1025 = vpack.c.bf16 %v688, %v688
      %v1026 = vpack.c.bf16 %v689, %v689
      %v1027 = vld [vmem:[%s2] sm:$0xf]
      %v1028 = vld [vmem:[%s2 + $0x4] sm:$0xf]
      %v1031 = vunpack.c.l.b16 %v1027
      %v1032 = vunpack.c.l.b16 %v1028
      %v1033 = vpack.c.b16 %v1032, %v1031
      %vm1034 = vcmask 64512
      %v1036 = vsel %vm1034, %v1033, 0
      %v1039 = vsel %vm791, %v1019, 0
      %1041 = vmatprep.subr.bf16.mxu0 0
      %1042 = vmatpush1.bf16.msra.mxu0 %v1039
      %1043 = vmatprep.subr.bf16.mxu0 0
      %1044 = vmatpush1.bf16.msra.mxu0 0
      %1045 = vmatprep.subr.bf16.mxu0 0
      %1046 = vmatpush1.bf16.msra.mxu0 0
      %1047 = vmatprep.subr.bf16.mxu0 0
      %1048 = vmatpush1.bf16.msra.mxu0 0
      %1049 = vmatprep.subr.bf16.mxu0 0
      %1050 = vmatpush1.bf16.msra.mxu0 0
      %1051 = vmatprep.subr.bf16.mxu0 0
      %1052 = vmatpush1.bf16.msra.mxu0 0
      %1053 = vmatprep.subr.bf16.mxu0 0
      %1054 = vmatpush1.bf16.msra.mxu0 0
      %1055 = vmatprep.subr.bf16.mxu0 0
      %1056 = vmatpush1.bf16.msra.mxu0 0
      %1057 = vmatprep.subr.bf16.mxu0 0
      %1058 = vmatpush1.bf16.msra.mxu0 0
      %1059 = vmatprep.subr.bf16.mxu0 0
      %1060 = vmatpush1.bf16.msra.mxu0 0
      %1061 = vmatprep.subr.bf16.mxu0 0
      %1062 = vmatpush1.bf16.msra.mxu0 0
      %1063 = vmatprep.subr.bf16.mxu0 0
      %1064 = vmatpush1.bf16.msra.mxu0 0
      %1065 = vmatprep.subr.bf16.mxu0 0
      %1066 = vmatpush1.bf16.msra.mxu0 0
      %1067 = vmatprep.subr.bf16.mxu0 0
      %1068 = vmatpush1.bf16.msra.mxu0 0
      %1069 = vmatprep.subr.bf16.mxu0 0
      %1070 = vmatpush1.bf16.msra.mxu0 0
      %1071 = vmatprep.subr.bf16.mxu0 0
      %1072 = vmatpush1.bf16.msra.mxu0 0
      %1073 = vmatprep.mubr.bf16.mxu0 0
      %1074 = vmatmul.mubr.bf16.gmra.mrb[0].mxu0 %v1036
      %v1075 = vpop.f32.mrb[0].mxu0
      %v1076 = vadd.f32 0.0, %v1075
      %v1077 = vpop.f32.mrb[0].mxu0
      %v1078 = vpop.f32.mrb[0].mxu0
      %v1079 = vadd.f32 0.0, %v1078
      %v1080 = vpop.f32.mrb[0].mxu0
      %1081 = vdwg.mxu0
      %v1083 = vsel %vm791, %v1020, 0
      %1085 = vmatprep.subr.bf16.mxu0 0
      %1086 = vmatpush1.bf16.msra.mxu0 %v1083
      %1087 = vmatprep.subr.bf16.mxu0 0
      %1088 = vmatpush1.bf16.msra.mxu0 0
      %1089 = vmatprep.subr.bf16.mxu0 0
      %1090 = vmatpush1.bf16.msra.mxu0 0
      %1091 = vmatprep.subr.bf16.mxu0 0
      %1092 = vmatpush1.bf16.msra.mxu0 0
      %1093 = vmatprep.subr.bf16.mxu0 0
      %1094 = vmatpush1.bf16.msra.mxu0 0
      %1095 = vmatprep.subr.bf16.mxu0 0
      %1096 = vmatpush1.bf16.msra.mxu0 0
      %1097 = vmatprep.subr.bf16.mxu0 0
      %1098 = vmatpush1.bf16.msra.mxu0 0
      %1099 = vmatprep.subr.bf16.mxu0 0
      %1100 = vmatpush1.bf16.msra.mxu0 0
      %1101 = vmatprep.subr.bf16.mxu0 0
      %1102 = vmatpush1.bf16.msra.mxu0 0
      %1103 = vmatprep.subr.bf16.mxu0 0
      %1104 = vmatpush1.bf16.msra.mxu0 0
      %1105 = vmatprep.subr.bf16.mxu0 0
      %1106 = vmatpush1.bf16.msra.mxu0 0
      %1107 = vmatprep.subr.bf16.mxu0 0
      %1108 = vmatpush1.bf16.msra.mxu0 0
      %1109 = vmatprep.subr.bf16.mxu0 0
      %1110 = vmatpush1.bf16.msra.mxu0 0
      %1111 = vmatprep.subr.bf16.mxu0 0
      %1112 = vmatpush1.bf16.msra.mxu0 0
      %1113 = vmatprep.subr.bf16.mxu0 0
      %1114 = vmatpush1.bf16.msra.mxu0 0
      %1115 = vmatprep.subr.bf16.mxu0 0
      %1116 = vmatpush1.bf16.msra.mxu0 0
      %1117 = vmatprep.mubr.bf16.mxu0 0
      %1118 = vmatmul.mubr.bf16.gmra.mrb[0].mxu0 %v1036
      %v1119 = vpop.f32.mrb[0].mxu0
      %v1120 = vadd.f32 0.0, %v1119
      %v1121 = vpop.f32.mrb[0].mxu0
      %v1122 = vpop.f32.mrb[0].mxu0
      %v1123 = vadd.f32 0.0, %v1122
      %v1124 = vpop.f32.mrb[0].mxu0
      %1125 = vdwg.mxu0
      %v1127 = vsel %vm791, %v1021, 0
      %1129 = vmatprep.subr.bf16.mxu0 0
      %1130 = vmatpush1.bf16.msra.mxu0 %v1127
      %1131 = vmatprep.subr.bf16.mxu0 0
      %1132 = vmatpush1.bf16.msra.mxu0 0
      %1133 = vmatprep.subr.bf16.mxu0 0
      %1134 = vmatpush1.bf16.msra.mxu0 0
      %1135 = vmatprep.subr.bf16.mxu0 0
      %1136 = vmatpush1.bf16.msra.mxu0 0
      %1137 = vmatprep.subr.bf16.mxu0 0
      %1138 = vmatpush1.bf16.msra.mxu0 0
      %1139 = vmatprep.subr.bf16.mxu0 0
      %1140 = vmatpush1.bf16.msra.mxu0 0
      %1141 = vmatprep.subr.bf16.mxu0 0
      %1142 = vmatpush1.bf16.msra.mxu0 0
      %1143 = vmatprep.subr.bf16.mxu0 0
      %1144 = vmatpush1.bf16.msra.mxu0 0
      %1145 = vmatprep.subr.bf16.mxu0 0
      %1146 = vmatpush1.bf16.msra.mxu0 0
      %1147 = vmatprep.subr.bf16.mxu0 0
      %1148 = vmatpush1.bf16.msra.mxu0 0
      %1149 = vmatprep.subr.bf16.mxu0 0
      %1150 = vmatpush1.bf16.msra.mxu0 0
      %1151 = vmatprep.subr.bf16.mxu0 0
      %1152 = vmatpush1.bf16.msra.mxu0 0
      %1153 = vmatprep.subr.bf16.mxu0 0
      %1154 = vmatpush1.bf16.msra.mxu0 0
      %1155 = vmatprep.subr.bf16.mxu0 0
      %1156 = vmatpush1.bf16.msra.mxu0 0
      %1157 = vmatprep.subr.bf16.mxu0 0
      %1158 = vmatpush1.bf16.msra.mxu0 0
      %1159 = vmatprep.subr.bf16.mxu0 0
      %1160 = vmatpush1.bf16.msra.mxu0 0
      %1161 = vmatprep.mubr.bf16.mxu0 0
      %1162 = vmatmul.mubr.bf16.gmra.mrb[0].mxu0 %v1036
      %v1163 = vpop.f32.mrb[0].mxu0
      %v1164 = vadd.f32 0.0, %v1163
      %v1165 = vpop.f32.mrb[0].mxu0
      %v1166 = vpop.f32.mrb[0].mxu0
      %v1167 = vadd.f32 0.0, %v1166
      %v1168 = vpop.f32.mrb[0].mxu0
      %1169 = vdwg.mxu0
      %v1171 = vsel %vm791, %v1022, 0
      %1173 = vmatprep.subr.bf16.mxu0 0
      %1174 = vmatpush1.bf16.msra.mxu0 %v1171
      %1175 = vmatprep.subr.bf16.mxu0 0
      %1176 = vmatpush1.bf16.msra.mxu0 0
      %1177 = vmatprep.subr.bf16.mxu0 0
      %1178 = vmatpush1.bf16.msra.mxu0 0
      %1179 = vmatprep.subr.bf16.mxu0 0
      %1180 = vmatpush1.bf16.msra.mxu0 0
      %1181 = vmatprep.subr.bf16.mxu0 0
      %1182 = vmatpush1.bf16.msra.mxu0 0
      %1183 = vmatprep.subr.bf16.mxu0 0
      %1184 = vmatpush1.bf16.msra.mxu0 0
      %1185 = vmatprep.subr.bf16.mxu0 0
      %1186 = vmatpush1.bf16.msra.mxu0 0
      %1187 = vmatprep.subr.bf16.mxu0 0
      %1188 = vmatpush1.bf16.msra.mxu0 0
      %1189 = vmatprep.subr.bf16.mxu0 0
      %1190 = vmatpush1.bf16.msra.mxu0 0
      %1191 = vmatprep.subr.bf16.mxu0 0
      %1192 = vmatpush1.bf16.msra.mxu0 0
      %1193 = vmatprep.subr.bf16.mxu0 0
      %1194 = vmatpush1.bf16.msra.mxu0 0
      %1195 = vmatprep.subr.bf16.mxu0 0
      %1196 = vmatpush1.bf16.msra.mxu0 0
      %1197 = vmatprep.subr.bf16.mxu0 0
      %1198 = vmatpush1.bf16.msra.mxu0 0
      %1199 = vmatprep.subr.bf16.mxu0 0
      %1200 = vmatpush1.bf16.msra.mxu0 0
      %1201 = vmatprep.subr.bf16.mxu0 0
      %1202 = vmatpush1.bf16.msra.mxu0 0
      %1203 = vmatprep.subr.bf16.mxu0 0
      %1204 = vmatpush1.bf16.msra.mxu0 0
      %1205 = vmatprep.mubr.bf16.mxu0 0
      %1206 = vmatmul.mubr.bf16.gmra.mrb[0].mxu0 %v1036
      %v1207 = vpop.f32.mrb[0].mxu0
      %v1208 = vadd.f32 0.0, %v1207
      %v1209 = vpop.f32.mrb[0].mxu0
      %v1210 = vpop.f32.mrb[0].mxu0
      %v1211 = vadd.f32 0.0, %v1210
      %v1212 = vpop.f32.mrb[0].mxu0
      %1213 = vdwg.mxu0
      %v1215 = vsel %vm791, %v1023, 0
      %1217 = vmatprep.subr.bf16.mxu0 0
      %1218 = vmatpush1.bf16.msra.mxu0 %v1215
      %1219 = vmatprep.subr.bf16.mxu0 0
      %1220 = vmatpush1.bf16.msra.mxu0 0
      %1221 = vmatprep.subr.bf16.mxu0 0
      %1222 = vmatpush1.bf16.msra.mxu0 0
      %1223 = vmatprep.subr.bf16.mxu0 0
      %1224 = vmatpush1.bf16.msra.mxu0 0
      %1225 = vmatprep.subr.bf16.mxu0 0
      %1226 = vmatpush1.bf16.msra.mxu0 0
      %1227 = vmatprep.subr.bf16.mxu0 0
      %1228 = vmatpush1.bf16.msra.mxu0 0
      %1229 = vmatprep.subr.bf16.mxu0 0
      %1230 = vmatpush1.bf16.msra.mxu0 0
      %1231 = vmatprep.subr.bf16.mxu0 0
      %1232 = vmatpush1.bf16.msra.mxu0 0
      %1233 = vmatprep.subr.bf16.mxu0 0
      %1234 = vmatpush1.bf16.msra.mxu0 0
      %1235 = vmatprep.subr.bf16.mxu0 0
      %1236 = vmatpush1.bf16.msra.mxu0 0
      %1237 = vmatprep.subr.bf16.mxu0 0
      %1238 = vmatpush1.bf16.msra.mxu0 0
      %1239 = vmatprep.subr.bf16.mxu0 0
      %1240 = vmatpush1.bf16.msra.mxu0 0
      %1241 = vmatprep.subr.bf16.mxu0 0
      %1242 = vmatpush1.bf16.msra.mxu0 0
      %1243 = vmatprep.subr.bf16.mxu0 0
      %1244 = vmatpush1.bf16.msra.mxu0 0
      %1245 = vmatprep.subr.bf16.mxu0 0
      %1246 = vmatpush1.bf16.msra.mxu0 0
      %1247 = vmatprep.subr.bf16.mxu0 0
      %1248 = vmatpush1.bf16.msra.mxu0 0
      %1249 = vmatprep.mubr.bf16.mxu0 0
      %1250 = vmatmul.mubr.bf16.gmra.mrb[0].mxu0 %v1036
      %v1251 = vpop.f32.mrb[0].mxu0
      %v1252 = vadd.f32 0.0, %v1251
      %v1253 = vpop.f32.mrb[0].mxu0
      %v1254 = vpop.f32.mrb[0].mxu0
      %v1255 = vadd.f32 0.0, %v1254
      %v1256 = vpop.f32.mrb[0].mxu0
      %1257 = vdwg.mxu0
      %v1259 = vsel %vm791, %v1024, 0
      %1261 = vmatprep.subr.bf16.mxu0 0
      %1262 = vmatpush1.bf16.msra.mxu0 %v1259
      %1263 = vmatprep.subr.bf16.mxu0 0
      %1264 = vmatpush1.bf16.msra.mxu0 0
      %1265 = vmatprep.subr.bf16.mxu0 0
      %1266 = vmatpush1.bf16.msra.mxu0 0
      %1267 = vmatprep.subr.bf16.mxu0 0
      %1268 = vmatpush1.bf16.msra.mxu0 0
      %1269 = vmatprep.subr.bf16.mxu0 0
      %1270 = vmatpush1.bf16.msra.mxu0 0
      %1271 = vmatprep.subr.bf16.mxu0 0
      %1272 = vmatpush1.bf16.msra.mxu0 0
      %1273 = vmatprep.subr.bf16.mxu0 0
      %1274 = vmatpush1.bf16.msra.mxu0 0
      %1275 = vmatprep.subr.bf16.mxu0 0
      %1276 = vmatpush1.bf16.msra.mxu0 0
      %1277 = vmatprep.subr.bf16.mxu0 0
      %1278 = vmatpush1.bf16.msra.mxu0 0
      %1279 = vmatprep.subr.bf16.mxu0 0
      %1280 = vmatpush1.bf16.msra.mxu0 0
      %1281 = vmatprep.subr.bf16.mxu0 0
      %1282 = vmatpush1.bf16.msra.mxu0 0
      %1283 = vmatprep.subr.bf16.mxu0 0
      %1284 = vmatpush1.bf16.msra.mxu0 0
      %1285 = vmatprep.subr.bf16.mxu0 0
      %1286 = vmatpush1.bf16.msra.mxu0 0
      %1287 = vmatprep.subr.bf16.mxu0 0
      %1288 = vmatpush1.bf16.msra.mxu0 0
      %1289 = vmatprep.subr.bf16.mxu0 0
      %1290 = vmatpush1.bf16.msra.mxu0 0
      %1291 = vmatprep.subr.bf16.mxu0 0
      %1292 = vmatpush1.bf16.msra.mxu0 0
      %1293 = vmatprep.mubr.bf16.mxu0 0
      %1294 = vmatmul.mubr.bf16.gmra.mrb[0].mxu0 %v1036
      %v1295 = vpop.f32.mrb[0].mxu0
      %v1296 = vadd.f32 0.0, %v1295
      %v1297 = vpop.f32.mrb[0].mxu0
      %v1298 = vpop.f32.mrb[0].mxu0
      %v1299 = vadd.f32 0.0, %v1298
      %v1300 = vpop.f32.mrb[0].mxu0
      %1301 = vdwg.mxu0
      %v1303 = vsel %vm791, %v1025, 0
      %1305 = vmatprep.subr.bf16.mxu0 0
      %1306 = vmatpush1.bf16.msra.mxu0 %v1303
      %1307 = vmatprep.subr.bf16.mxu0 0
      %1308 = vmatpush1.bf16.msra.mxu0 0
      %1309 = vmatprep.subr.bf16.mxu0 0
      %1310 = vmatpush1.bf16.msra.mxu0 0
      %1311 = vmatprep.subr.bf16.mxu0 0
      %1312 = vmatpush1.bf16.msra.mxu0 0
      %1313 = vmatprep.subr.bf16.mxu0 0
      %1314 = vmatpush1.bf16.msra.mxu0 0
      %1315 = vmatprep.subr.bf16.mxu0 0
      %1316 = vmatpush1.bf16.msra.mxu0 0
      %1317 = vmatprep.subr.bf16.mxu0 0
      %1318 = vmatpush1.bf16.msra.mxu0 0
      %1319 = vmatprep.subr.bf16.mxu0 0
      %1320 = vmatpush1.bf16.msra.mxu0 0
      %1321 = vmatprep.subr.bf16.mxu0 0
      %1322 = vmatpush1.bf16.msra.mxu0 0
      %1323 = vmatprep.subr.bf16.mxu0 0
      %1324 = vmatpush1.bf16.msra.mxu0 0
      %1325 = vmatprep.subr.bf16.mxu0 0
      %1326 = vmatpush1.bf16.msra.mxu0 0
      %1327 = vmatprep.subr.bf16.mxu0 0
      %1328 = vmatpush1.bf16.msra.mxu0 0
      %1329 = vmatprep.subr.bf16.mxu0 0
      %1330 = vmatpush1.bf16.msra.mxu0 0
      %1331 = vmatprep.subr.bf16.mxu0 0
      %1332 = vmatpush1.bf16.msra.mxu0 0
      %1333 = vmatprep.subr.bf16.mxu0 0
      %1334 = vmatpush1.bf16.msra.mxu0 0
      %1335 = vmatprep.subr.bf16.mxu0 0
      %1336 = vmatpush1.bf16.msra.mxu0 0
      %1337 = vmatprep.mubr.bf16.mxu0 0
      %1338 = vmatmul.mubr.bf16.gmra.mrb[0].mxu0 %v1036
      %v1339 = vpop.f32.mrb[0].mxu0
      %v1340 = vadd.f32 0.0, %v1339
      %v1341 = vpop.f32.mrb[0].mxu0
      %v1342 = vpop.f32.mrb[0].mxu0
      %v1343 = vadd.f32 0.0, %v1342
      %v1344 = vpop.f32.mrb[0].mxu0
      %1345 = vdwg.mxu0
      %v1347 = vsel %vm791, %v1026, 0
      %1349 = vmatprep.subr.bf16.mxu0 0
      %1350 = vmatpush1.bf16.msra.mxu0 %v1347
      %1351 = vmatprep.subr.bf16.mxu0 0
      %1352 = vmatpush1.bf16.msra.mxu0 0
      %1353 = vmatprep.subr.bf16.mxu0 0
      %1354 = vmatpush1.bf16.msra.mxu0 0
      %1355 = vmatprep.subr.bf16.mxu0 0
      %1356 = vmatpush1.bf16.msra.mxu0 0
      %1357 = vmatprep.subr.bf16.mxu0 0
      %1358 = vmatpush1.bf16.msra.mxu0 0
      %1359 = vmatprep.subr.bf16.mxu0 0
      %1360 = vmatpush1.bf16.msra.mxu0 0
      %1361 = vmatprep.subr.bf16.mxu0 0
      %1362 = vmatpush1.bf16.msra.mxu0 0
      %1363 = vmatprep.subr.bf16.mxu0 0
      %1364 = vmatpush1.bf16.msra.mxu0 0
      %1365 = vmatprep.subr.bf16.mxu0 0
      %1366 = vmatpush1.bf16.msra.mxu0 0
      %1367 = vmatprep.subr.bf16.mxu0 0
      %1368 = vmatpush1.bf16.msra.mxu0 0
      %1369 = vmatprep.subr.bf16.mxu0 0
      %1370 = vmatpush1.bf16.msra.mxu0 0
      %1371 = vmatprep.subr.bf16.mxu0 0
      %1372 = vmatpush1.bf16.msra.mxu0 0
      %1373 = vmatprep.subr.bf16.mxu0 0
      %1374 = vmatpush1.bf16.msra.mxu0 0
      %1375 = vmatprep.subr.bf16.mxu0 0
      %1376 = vmatpush1.bf16.msra.mxu0 0
      %1377 = vmatprep.subr.bf16.mxu0 0
      %1378 = vmatpush1.bf16.msra.mxu0 0
      %1379 = vmatprep.subr.bf16.mxu0 0
      %1380 = vmatpush1.bf16.msra.mxu0 0
      %1381 = vmatprep.mubr.bf16.mxu0 0
      %1382 = vmatmul.mubr.bf16.gmra.mrb[0].mxu0 %v1036
      %v1383 = vpop.f32.mrb[0].mxu0
      %v1384 = vadd.f32 0.0, %v1383
      %v1385 = vpop.f32.mrb[0].mxu0
      %v1386 = vpop.f32.mrb[0].mxu0
      %v1387 = vadd.f32 0.0, %v1386
      %v1388 = vpop.f32.mrb[0].mxu0
      %1389 = vdwg.mxu0
      %1406 = vrot.lane.b32.xlu0 %v1076, 4
      %v1407 = vpop.permute.xlu0 %1406
      %1408 = vrot.lane.b32.xlu0 %v1079, 4
      %v1409 = vpop.permute.xlu0 %1408
      %1410 = vrot.lane.b32.xlu0 %v1120, 4
      %v1411 = vpop.permute.xlu0 %1410
      %1412 = vrot.lane.b32.xlu0 %v1123, 4
      %v1413 = vpop.permute.xlu0 %1412
      %1414 = vrot.lane.b32.xlu0 %v1164, 4
      %v1415 = vpop.permute.xlu0 %1414
      %1416 = vrot.lane.b32.xlu0 %v1167, 4
      %v1417 = vpop.permute.xlu0 %1416
      %1418 = vrot.lane.b32.xlu0 %v1208, 4
      %v1419 = vpop.permute.xlu0 %1418
      %1420 = vrot.lane.b32.xlu0 %v1211, 4
      %v1421 = vpop.permute.xlu0 %1420
      %1422 = vrot.lane.b32.xlu0 %v1252, 4
      %v1423 = vpop.permute.xlu0 %1422
      %1424 = vrot.lane.b32.xlu0 %v1255, 4
      %v1425 = vpop.permute.xlu0 %1424
      %1426 = vrot.lane.b32.xlu0 %v1296, 4
      %v1427 = vpop.permute.xlu0 %1426
      %1428 = vrot.lane.b32.xlu0 %v1299, 4
      %v1429 = vpop.permute.xlu0 %1428
      %1430 = vrot.lane.b32.xlu0 %v1340, 4
      %v1431 = vpop.permute.xlu0 %1430
      %1432 = vrot.lane.b32.xlu0 %v1343, 4
      %v1433 = vpop.permute.xlu0 %1432
      %1434 = vrot.lane.b32.xlu0 %v1384, 4
      %v1435 = vpop.permute.xlu0 %1434
      %1436 = vrot.lane.b32.xlu0 %v1387, 4
      %v1437 = vpop.permute.xlu0 %1436
      %v1454 = vsel %vm690, %v987, %v1407
      %v1455 = vsel %vm690, %v988, %v1409
      %v1456 = vsel %vm690, %v989, %v1407
      %v1457 = vsel %vm690, %v990, %v1409
      %v1458 = vsel %vm690, %v991, %v1411
      %v1459 = vsel %vm690, %v992, %v1413
      %v1460 = vsel %vm690, %v993, %v1411
      %v1461 = vsel %vm690, %v994, %v1413
      %v1462 = vsel %vm690, %v995, %v1415
      %v1463 = vsel %vm690, %v996, %v1417
      %v1464 = vsel %vm690, %v997, %v1415
      %v1465 = vsel %vm690, %v998, %v1417
      %v1466 = vsel %vm690, %v999, %v1419
      %v1467 = vsel %vm690, %v1000, %v1421
      %v1468 = vsel %vm690, %v1001, %v1419
      %v1469 = vsel %vm690, %v1002, %v1421
      %v1470 = vsel %vm690, %v1003, %v1423
      %v1471 = vsel %vm690, %v1004, %v1425
      %v1472 = vsel %vm690, %v1005, %v1423
      %v1473 = vsel %vm690, %v1006, %v1425
      %v1474 = vsel %vm690, %v1007, %v1427
      %v1475 = vsel %vm690, %v1008, %v1429
      %v1476 = vsel %vm690, %v1009, %v1427
      %v1477 = vsel %vm690, %v1010, %v1429
      %v1478 = vsel %vm690, %v1011, %v1431
      %v1479 = vsel %vm690, %v1012, %v1433
      %v1480 = vsel %vm690, %v1013, %v1431
      %v1481 = vsel %vm690, %v1014, %v1433
      %v1482 = vsel %vm690, %v1015, %v1435
      %v1483 = vsel %vm690, %v1016, %v1437
      %v1484 = vsel %vm690, %v1017, %v1435
      %v1485 = vsel %vm690, %v1018, %v1437
      %v1486 = vpack.c.bf16 %v1455, %v1454
      %v1487 = vpack.c.bf16 %v1457, %v1456
      %v1488 = vpack.c.bf16 %v1459, %v1458
      %v1489 = vpack.c.bf16 %v1461, %v1460
      %v1490 = vpack.c.bf16 %v1463, %v1462
      %v1491 = vpack.c.bf16 %v1465, %v1464
      %v1492 = vpack.c.bf16 %v1467, %v1466
      %v1493 = vpack.c.bf16 %v1469, %v1468
      %v1494 = vpack.c.bf16 %v1471, %v1470
      %v1495 = vpack.c.bf16 %v1473, %v1472
      %v1496 = vpack.c.bf16 %v1475, %v1474
      %v1497 = vpack.c.bf16 %v1477, %v1476
      %v1498 = vpack.c.bf16 %v1479, %v1478
      %v1499 = vpack.c.bf16 %v1481, %v1480
      %v1500 = vpack.c.bf16 %v1483, %v1482
      %v1501 = vpack.c.bf16 %v1485, %v1484
      %v1518 = vunpack.c.l.b16 %v1486
      %v1519 = vunpack.c.h.b16 %v1486
      %v1520 = vunpack.c.l.b16 %v1487
      %v1521 = vunpack.c.h.b16 %v1487
      %v1522 = vunpack.c.l.b16 %v1488
      %v1523 = vunpack.c.h.b16 %v1488
      %v1524 = vunpack.c.l.b16 %v1489
      %v1525 = vunpack.c.h.b16 %v1489
      %v1526 = vunpack.c.l.b16 %v1490
      %v1527 = vunpack.c.h.b16 %v1490
      %v1528 = vunpack.c.l.b16 %v1491
      %v1529 = vunpack.c.h.b16 %v1491
      %v1530 = vunpack.c.l.b16 %v1492
      %v1531 = vunpack.c.h.b16 %v1492
      %v1532 = vunpack.c.l.b16 %v1493
      %v1533 = vunpack.c.h.b16 %v1493
      %v1534 = vunpack.c.l.b16 %v1494
      %v1535 = vunpack.c.h.b16 %v1494
      %v1536 = vunpack.c.l.b16 %v1495
      %v1537 = vunpack.c.h.b16 %v1495
      %v1538 = vunpack.c.l.b16 %v1496
      %v1539 = vunpack.c.h.b16 %v1496
      %v1540 = vunpack.c.l.b16 %v1497
      %v1541 = vunpack.c.h.b16 %v1497
      %v1542 = vunpack.c.l.b16 %v1498
      %v1543 = vunpack.c.h.b16 %v1498
      %v1544 = vunpack.c.l.b16 %v1499
      %v1545 = vunpack.c.h.b16 %v1499
      %v1546 = vunpack.c.l.b16 %v1500
      %v1547 = vunpack.c.h.b16 %v1500
      %v1548 = vunpack.c.l.b16 %v1501
      %v1549 = vunpack.c.h.b16 %v1501
      %v1550 = vpack.c.b16 %v1518, %v1518
      %v1551 = vpack.c.b16 %v1519, %v1519
      %v1552 = vpack.c.b16 %v1520, %v1520
      %v1553 = vpack.c.b16 %v1521, %v1521
      %v1554 = vpack.c.b16 %v1522, %v1522
      %v1555 = vpack.c.b16 %v1523, %v1523
      %v1556 = vpack.c.b16 %v1524, %v1524
      %v1557 = vpack.c.b16 %v1525, %v1525
      %v1558 = vpack.c.b16 %v1526, %v1526
      %v1559 = vpack.c.b16 %v1527, %v1527
      %v1560 = vpack.c.b16 %v1528, %v1528
      %v1561 = vpack.c.b16 %v1529, %v1529
      %v1562 = vpack.c.b16 %v1530, %v1530
      %v1563 = vpack.c.b16 %v1531, %v1531
      %v1564 = vpack.c.b16 %v1532, %v1532
      %v1565 = vpack.c.b16 %v1533, %v1533
      %v1566 = vpack.c.b16 %v1534, %v1534
      %v1567 = vpack.c.b16 %v1535, %v1535
      %v1568 = vpack.c.b16 %v1536, %v1536
      %v1569 = vpack.c.b16 %v1537, %v1537
      %v1570 = vpack.c.b16 %v1538, %v1538
      %v1571 = vpack.c.b16 %v1539, %v1539
      %v1572 = vpack.c.b16 %v1540, %v1540
      %v1573 = vpack.c.b16 %v1541, %v1541
      %v1574 = vpack.c.b16 %v1542, %v1542
      %v1575 = vpack.c.b16 %v1543, %v1543
      %v1576 = vpack.c.b16 %v1544, %v1544
      %v1577 = vpack.c.b16 %v1545, %v1545
      %v1578 = vpack.c.b16 %v1546, %v1546
      %v1579 = vpack.c.b16 %v1547, %v1547
      %v1580 = vpack.c.b16 %v1548, %v1548
      %v1581 = vpack.c.b16 %v1549, %v1549
      %vm1582 = vsmask.f32 4368
      %vm1583 = vmor %vm418, %vm1582
      %v1585 = vshrl.u32 %v1550, 16
      %v1587 = vrot.slane %v1585, 7
      %v1588 = vshll.u32 %v1550, 16
      %v1590 = vor.u32 %v1587, %v1588
      %v1591 = vrot.slane %v1587, 4
      %v1593 = vshrl.u32 %v1551, 16
      %v1595 = vrot.slane %v1593, 7
      %v1596 = vshll.u32 %v1551, 16
      %v1598 = vor.u32 %v1595, %v1596
      %v1599 = vsel %vm1583, %v1591, %v1598
      %v1600 = vrot.slane %v1595, 4
      %v1602 = vshrl.u32 %v1552, 16
      %v1604 = vrot.slane %v1602, 7
      %v1605 = vshll.u32 %v1552, 16
      %v1607 = vor.u32 %v1604, %v1605
      %v1608 = vrot.slane %v1604, 4
      %v1610 = vshrl.u32 %v1553, 16
      %v1612 = vrot.slane %v1610, 7
      %v1613 = vshll.u32 %v1553, 16
      %v1615 = vor.u32 %v1612, %v1613
      %v1616 = vsel %vm1583, %v1608, %v1615
      %v1617 = vrot.slane %v1612, 4
      %v1619 = vshrl.u32 %v1554, 16
      %v1621 = vrot.slane %v1619, 7
      %v1622 = vshll.u32 %v1554, 16
      %v1624 = vor.u32 %v1621, %v1622
      %v1625 = vrot.slane %v1621, 4
      %v1627 = vshrl.u32 %v1555, 16
      %v1629 = vrot.slane %v1627, 7
      %v1630 = vshll.u32 %v1555, 16
      %v1632 = vor.u32 %v1629, %v1630
      %v1633 = vsel %vm1583, %v1625, %v1632
      %v1634 = vrot.slane %v1629, 4
      %v1636 = vshrl.u32 %v1556, 16
      %v1638 = vrot.slane %v1636, 7
      %v1639 = vshll.u32 %v1556, 16
      %v1641 = vor.u32 %v1638, %v1639
      %v1642 = vrot.slane %v1638, 4
      %v1644 = vshrl.u32 %v1557, 16
      %v1646 = vrot.slane %v1644, 7
      %v1647 = vshll.u32 %v1557, 16
      %v1649 = vor.u32 %v1646, %v1647
      %v1650 = vsel %vm1583, %v1642, %v1649
      %v1651 = vrot.slane %v1646, 4
      %v1653 = vshrl.u32 %v1558, 16
      %v1655 = vrot.slane %v1653, 7
      %v1656 = vshll.u32 %v1558, 16
      %v1658 = vor.u32 %v1655, %v1656
      %v1659 = vrot.slane %v1655, 4
      %v1661 = vshrl.u32 %v1559, 16
      %v1663 = vrot.slane %v1661, 7
      %v1664 = vshll.u32 %v1559, 16
      %v1666 = vor.u32 %v1663, %v1664
      %v1667 = vsel %vm1583, %v1659, %v1666
      %v1668 = vrot.slane %v1663, 4
      %v1670 = vshrl.u32 %v1560, 16
      %v1672 = vrot.slane %v1670, 7
      %v1673 = vshll.u32 %v1560, 16
      %v1675 = vor.u32 %v1672, %v1673
      %v1676 = vrot.slane %v1672, 4
      %v1678 = vshrl.u32 %v1561, 16
      %v1680 = vrot.slane %v1678, 7
      %v1681 = vshll.u32 %v1561, 16
      %v1683 = vor.u32 %v1680, %v1681
      %v1684 = vsel %vm1583, %v1676, %v1683
      %v1685 = vrot.slane %v1680, 4
      %v1687 = vshrl.u32 %v1562, 16
      %v1689 = vrot.slane %v1687, 7
      %v1690 = vshll.u32 %v1562, 16
      %v1692 = vor.u32 %v1689, %v1690
      %v1693 = vrot.slane %v1689, 4
      %v1695 = vshrl.u32 %v1563, 16
      %v1697 = vrot.slane %v1695, 7
      %v1698 = vshll.u32 %v1563, 16
      %v1700 = vor.u32 %v1697, %v1698
      %v1701 = vsel %vm1583, %v1693, %v1700
      %v1702 = vrot.slane %v1697, 4
      %v1704 = vshrl.u32 %v1564, 16
      %v1706 = vrot.slane %v1704, 7
      %v1707 = vshll.u32 %v1564, 16
      %v1709 = vor.u32 %v1706, %v1707
      %v1710 = vrot.slane %v1706, 4
      %v1712 = vshrl.u32 %v1565, 16
      %v1714 = vrot.slane %v1712, 7
      %v1715 = vshll.u32 %v1565, 16
      %v1717 = vor.u32 %v1714, %v1715
      %v1718 = vsel %vm1583, %v1710, %v1717
      %v1719 = vrot.slane %v1714, 4
      %v1721 = vshrl.u32 %v1566, 16
      %v1723 = vrot.slane %v1721, 7
      %v1724 = vshll.u32 %v1566, 16
      %v1726 = vor.u32 %v1723, %v1724
      %v1727 = vrot.slane %v1723, 4
      %v1729 = vshrl.u32 %v1567, 16
      %v1731 = vrot.slane %v1729, 7
      %v1732 = vshll.u32 %v1567, 16
      %v1734 = vor.u32 %v1731, %v1732
      %v1735 = vsel %vm1583, %v1727, %v1734
      %v1736 = vrot.slane %v1731, 4
      %v1738 = vshrl.u32 %v1568, 16
      %v1740 = vrot.slane %v1738, 7
      %v1741 = vshll.u32 %v1568, 16
      %v1743 = vor.u32 %v1740, %v1741
      %v1744 = vrot.slane %v1740, 4
      %v1746 = vshrl.u32 %v1569, 16
      %v1748 = vrot.slane %v1746, 7
      %v1749 = vshll.u32 %v1569, 16
      %v1751 = vor.u32 %v1748, %v1749
      %v1752 = vsel %vm1583, %v1744, %v1751
      %v1753 = vrot.slane %v1748, 4
      %v1755 = vshrl.u32 %v1570, 16
      %v1757 = vrot.slane %v1755, 7
      %v1758 = vshll.u32 %v1570, 16
      %v1760 = vor.u32 %v1757, %v1758
      %v1761 = vrot.slane %v1757, 4
      %v1763 = vshrl.u32 %v1571, 16
      %v1765 = vrot.slane %v1763, 7
      %v1766 = vshll.u32 %v1571, 16
      %v1768 = vor.u32 %v1765, %v1766
      %v1769 = vsel %vm1583, %v1761, %v1768
      %v1770 = vrot.slane %v1765, 4
      %v1772 = vshrl.u32 %v1572, 16
      %v1774 = vrot.slane %v1772, 7
      %v1775 = vshll.u32 %v1572, 16
      %v1777 = vor.u32 %v1774, %v1775
      %v1778 = vrot.slane %v1774, 4
      %v1780 = vshrl.u32 %v1573, 16
      %v1782 = vrot.slane %v1780, 7
      %v1783 = vshll.u32 %v1573, 16
      %v1785 = vor.u32 %v1782, %v1783
      %v1786 = vsel %vm1583, %v1778, %v1785
      %v1787 = vrot.slane %v1782, 4
      %v1789 = vshrl.u32 %v1574, 16
      %v1791 = vrot.slane %v1789, 7
      %v1792 = vshll.u32 %v1574, 16
      %v1794 = vor.u32 %v1791, %v1792
      %v1795 = vrot.slane %v1791, 4
      %v1797 = vshrl.u32 %v1575, 16
      %v1799 = vrot.slane %v1797, 7
      %v1800 = vshll.u32 %v1575, 16
      %v1802 = vor.u32 %v1799, %v1800
      %v1803 = vsel %vm1583, %v1795, %v1802
      %v1804 = vrot.slane %v1799, 4
      %v1806 = vshrl.u32 %v1576, 16
      %v1808 = vrot.slane %v1806, 7
      %v1809 = vshll.u32 %v1576, 16
      %v1811 = vor.u32 %v1808, %v1809
      %v1812 = vrot.slane %v1808, 4
      %v1814 = vshrl.u32 %v1577, 16
      %v1816 = vrot.slane %v1814, 7
      %v1817 = vshll.u32 %v1577, 16
      %v1819 = vor.u32 %v1816, %v1817
      %v1820 = vsel %vm1583, %v1812, %v1819
      %v1821 = vrot.slane %v1816, 4
      %v1823 = vshrl.u32 %v1578, 16
      %v1825 = vrot.slane %v1823, 7
      %v1826 = vshll.u32 %v1578, 16
      %v1828 = vor.u32 %v1825, %v1826
      %v1829 = vrot.slane %v1825, 4
      %v1831 = vshrl.u32 %v1579, 16
      %v1833 = vrot.slane %v1831, 7
      %v1834 = vshll.u32 %v1579, 16
      %v1836 = vor.u32 %v1833, %v1834
      %v1837 = vsel %vm1583, %v1829, %v1836
      %v1838 = vrot.slane %v1833, 4
      %v1840 = vshrl.u32 %v1580, 16
      %v1842 = vrot.slane %v1840, 7
      %v1843 = vshll.u32 %v1580, 16
      %v1845 = vor.u32 %v1842, %v1843
      %v1846 = vrot.slane %v1842, 4
      %v1848 = vshrl.u32 %v1581, 16
      %v1850 = vrot.slane %v1848, 7
      %v1851 = vshll.u32 %v1581, 16
      %v1853 = vor.u32 %v1850, %v1851
      %v1854 = vsel %vm1583, %v1846, %v1853
      %v1855 = vrot.slane %v1850, 4
      %s1904 = scalar_lea.vmem [#allocation2], 12
      %vm1905 = vcmask 60416
      %vm1906 = vmand %vm1905, %vm474
      %v1907 = vld [vmem:[%s1904] sm:$0xf]
      %v1908 = vsel %vm1906, %v1590, %v1907
      %1909 = vst [vmem:[%s1904] sm:$0xf] %v1908
      %1910 = vst.msk [vmem:[%s1904 + $0x4] sm:$0xf] %vm408, %v1599
      %v1911 = vld [vmem:[%s1904 + $0x8] sm:$0x1]
      %v1912 = vsel %vm419, %v1600, %v1911
      %1913 = vst [vmem:[%s1904 + $0x8] sm:$0x1] %v1912
      %v1914 = vld [vmem:[%s1904 + $0xc] sm:$0xf]
      %v1915 = vsel %vm1906, %v1607, %v1914
      %1916 = vst [vmem:[%s1904 + $0xc] sm:$0xf] %v1915
      %1917 = vst.msk [vmem:[%s1904 + $0x10] sm:$0xf] %vm408, %v1616
      %v1918 = vld [vmem:[%s1904 + $0x14] sm:$0x1]
      %v1919 = vsel %vm419, %v1617, %v1918
      %1920 = vst [vmem:[%s1904 + $0x14] sm:$0x1] %v1919
      %v1921 = vld [vmem:[%s1904 + $0x18] sm:$0xf]
      %v1922 = vsel %vm1906, %v1624, %v1921
      %1923 = vst [vmem:[%s1904 + $0x18] sm:$0xf] %v1922
      %1924 = vst.msk [vmem:[%s1904 + $0x1c] sm:$0xf] %vm408, %v1633
      %v1925 = vld [vmem:[%s1904 + $0x20] sm:$0x1]
      %v1926 = vsel %vm419, %v1634, %v1925
      %1927 = vst [vmem:[%s1904 + $0x20] sm:$0x1] %v1926
      %v1928 = vld [vmem:[%s1904 + $0x24] sm:$0xf]
      %v1929 = vsel %vm1906, %v1641, %v1928
      %1930 = vst [vmem:[%s1904 + $0x24] sm:$0xf] %v1929
      %1931 = vst.msk [vmem:[%s1904 + $0x28] sm:$0xf] %vm408, %v1650
      %v1932 = vld [vmem:[%s1904 + $0x2c] sm:$0x1]
      %v1933 = vsel %vm419, %v1651, %v1932
      %1934 = vst [vmem:[%s1904 + $0x2c] sm:$0x1] %v1933
      %v1935 = vld [vmem:[%s1904 + $0x30] sm:$0xf]
      %v1936 = vsel %vm1906, %v1658, %v1935
      %1937 = vst [vmem:[%s1904 + $0x30] sm:$0xf] %v1936
      %1938 = vst.msk [vmem:[%s1904 + $0x34] sm:$0xf] %vm408, %v1667
      %v1939 = vld [vmem:[%s1904 + $0x38] sm:$0x1]
      %v1940 = vsel %vm419, %v1668, %v1939
      %1941 = vst [vmem:[%s1904 + $0x38] sm:$0x1] %v1940
      %v1942 = vld [vmem:[%s1904 + $0x3c] sm:$0xf]
      %v1943 = vsel %vm1906, %v1675, %v1942
      %1944 = vst [vmem:[%s1904 + $0x3c] sm:$0xf] %v1943
      %1945 = vst.msk [vmem:[%s1904 + $0x40] sm:$0xf] %vm408, %v1684
      %v1946 = vld [vmem:[%s1904 + $0x44] sm:$0x1]
      %v1947 = vsel %vm419, %v1685, %v1946
      %1948 = vst [vmem:[%s1904 + $0x44] sm:$0x1] %v1947
      %v1949 = vld [vmem:[%s1904 + $0x48] sm:$0xf]
      %v1950 = vsel %vm1906, %v1692, %v1949
      %1951 = vst [vmem:[%s1904 + $0x48] sm:$0xf] %v1950
      %1952 = vst.msk [vmem:[%s1904 + $0x4c] sm:$0xf] %vm408, %v1701
      %v1953 = vld [vmem:[%s1904 + $0x50] sm:$0x1]
      %v1954 = vsel %vm419, %v1702, %v1953
      %1955 = vst [vmem:[%s1904 + $0x50] sm:$0x1] %v1954
      %v1956 = vld [vmem:[%s1904 + $0x54] sm:$0xf]
      %v1957 = vsel %vm1906, %v1709, %v1956
      %1958 = vst [vmem:[%s1904 + $0x54] sm:$0xf] %v1957
      %1959 = vst.msk [vmem:[%s1904 + $0x58] sm:$0xf] %vm408, %v1718
      %v1960 = vld [vmem:[%s1904 + $0x5c] sm:$0x1]
      %v1961 = vsel %vm419, %v1719, %v1960
      %1962 = vst [vmem:[%s1904 + $0x5c] sm:$0x1] %v1961
      %v1963 = vld [vmem:[%s1904 + $0x60] sm:$0xf]
      %v1964 = vsel %vm1906, %v1726, %v1963
      %1965 = vst [vmem:[%s1904 + $0x60] sm:$0xf] %v1964
      %1966 = vst.msk [vmem:[%s1904 + $0x64] sm:$0xf] %vm408, %v1735
      %v1967 = vld [vmem:[%s1904 + $0x68] sm:$0x1]
      %v1968 = vsel %vm419, %v1736, %v1967
      %1969 = vst [vmem:[%s1904 + $0x68] sm:$0x1] %v1968
      %v1970 = vld [vmem:[%s1904 + $0x6c] sm:$0xf]
      %v1971 = vsel %vm1906, %v1743, %v1970
      %1972 = vst [vmem:[%s1904 + $0x6c] sm:$0xf] %v1971
      %1973 = vst.msk [vmem:[%s1904 + $0x70] sm:$0xf] %vm408, %v1752
      %v1974 = vld [vmem:[%s1904 + $0x74] sm:$0x1]
      %v1975 = vsel %vm419, %v1753, %v1974
      %1976 = vst [vmem:[%s1904 + $0x74] sm:$0x1] %v1975
      %v1977 = vld [vmem:[%s1904 + $0x78] sm:$0xf]
      %v1978 = vsel %vm1906, %v1760, %v1977
      %1979 = vst [vmem:[%s1904 + $0x78] sm:$0xf] %v1978
      %1980 = vst.msk [vmem:[%s1904 + $0x7c] sm:$0xf] %vm408, %v1769
      %v1981 = vld [vmem:[%s1904 + $0x80] sm:$0x1]
      %v1982 = vsel %vm419, %v1770, %v1981
      %1983 = vst [vmem:[%s1904 + $0x80] sm:$0x1] %v1982
      %v1984 = vld [vmem:[%s1904 + $0x84] sm:$0xf]
      %v1985 = vsel %vm1906, %v1777, %v1984
      %1986 = vst [vmem:[%s1904 + $0x84] sm:$0xf] %v1985
      %1987 = vst.msk [vmem:[%s1904 + $0x88] sm:$0xf] %vm408, %v1786
      %v1988 = vld [vmem:[%s1904 + $0x8c] sm:$0x1]
      %v1989 = vsel %vm419, %v1787, %v1988
      %1990 = vst [vmem:[%s1904 + $0x8c] sm:$0x1] %v1989
      %v1991 = vld [vmem:[%s1904 + $0x90] sm:$0xf]
      %v1992 = vsel %vm1906, %v1794, %v1991
      %1993 = vst [vmem:[%s1904 + $0x90] sm:$0xf] %v1992
      %1994 = vst.msk [vmem:[%s1904 + $0x94] sm:$0xf] %vm408, %v1803
      %v1995 = vld [vmem:[%s1904 + $0x98] sm:$0x1]
      %v1996 = vsel %vm419, %v1804, %v1995
      %1997 = vst [vmem:[%s1904 + $0x98] sm:$0x1] %v1996
      %v1998 = vld [vmem:[%s1904 + $0x9c] sm:$0xf]
      %v1999 = vsel %vm1906, %v1811, %v1998
      %2000 = vst [vmem:[%s1904 + $0x9c] sm:$0xf] %v1999
      %2001 = vst.msk [vmem:[%s1904 + $0xa0] sm:$0xf] %vm408, %v1820
      %v2002 = vld [vmem:[%s1904 + $0xa4] sm:$0x1]
      %v2003 = vsel %vm419, %v1821, %v2002
      %2004 = vst [vmem:[%s1904 + $0xa4] sm:$0x1] %v2003
      %v2005 = vld [vmem:[%s1904 + $0xa8] sm:$0xf]
      %v2006 = vsel %vm1906, %v1828, %v2005
      %2007 = vst [vmem:[%s1904 + $0xa8] sm:$0xf] %v2006
      %2008 = vst.msk [vmem:[%s1904 + $0xac] sm:$0xf] %vm408, %v1837
      %v2009 = vld [vmem:[%s1904 + $0xb0] sm:$0x1]
      %v2010 = vsel %vm419, %v1838, %v2009
      %2011 = vst [vmem:[%s1904 + $0xb0] sm:$0x1] %v2010
      %v2012 = vld [vmem:[%s1904 + $0xb4] sm:$0xf]
      %v2013 = vsel %vm1906, %v1845, %v2012
      %2014 = vst [vmem:[%s1904 + $0xb4] sm:$0xf] %v2013
      %2015 = vst.msk [vmem:[%s1904 + $0xb8] sm:$0xf] %vm408, %v1854
      %v2016 = vld [vmem:[%s1904 + $0xbc] sm:$0x1]
      %v2017 = vsel %vm419, %v1855, %v2016
      %2018 = vst [vmem:[%s1904 + $0xbc] sm:$0x1] %v2017
      %v2019 = vld [vmem:[%s8] sm:$0x1]
      %v2020 = vld [vmem:[#allocation2] sm:$0xf]
      %v2021 = vld [vmem:[#allocation2 + $0x4] sm:$0xf]
      %v2022 = vld [vmem:[#allocation2 + $0xc] sm:$0xf]
      %v2023 = vld [vmem:[#allocation2 + $0x10] sm:$0xf]
      %v2024 = vld [vmem:[#allocation2 + $0x18] sm:$0xf]
      %v2025 = vld [vmem:[#allocation2 + $0x1c] sm:$0xf]
      %v2026 = vld [vmem:[#allocation2 + $0x24] sm:$0xf]
      %v2027 = vld [vmem:[#allocation2 + $0x28] sm:$0xf]
      %v2028 = vld [vmem:[#allocation2 + $0x30] sm:$0xf]
      %v2029 = vld [vmem:[#allocation2 + $0x34] sm:$0xf]
      %v2030 = vld [vmem:[#allocation2 + $0x3c] sm:$0xf]
      %v2031 = vld [vmem:[#allocation2 + $0x40] sm:$0xf]
      %v2032 = vld [vmem:[#allocation2 + $0x48] sm:$0xf]
      %v2033 = vld [vmem:[#allocation2 + $0x4c] sm:$0xf]
      %v2034 = vld [vmem:[#allocation2 + $0x54] sm:$0xf]
      %v2035 = vld [vmem:[#allocation2 + $0x58] sm:$0xf]
      %v2036 = vld [vmem:[#allocation2 + $0x60] sm:$0xf]
      %v2037 = vld [vmem:[#allocation2 + $0x64] sm:$0xf]
      %v2038 = vld [vmem:[#allocation2 + $0x6c] sm:$0xf]
      %v2039 = vld [vmem:[#allocation2 + $0x70] sm:$0xf]
      %v2040 = vld [vmem:[#allocation2 + $0x78] sm:$0xf]
      %v2041 = vld [vmem:[#allocation2 + $0x7c] sm:$0xf]
      %v2042 = vld [vmem:[#allocation2 + $0x84] sm:$0xf]
      %v2043 = vld [vmem:[#allocation2 + $0x88] sm:$0xf]
      %v2044 = vld [vmem:[#allocation2 + $0x90] sm:$0xf]
      %v2045 = vld [vmem:[#allocation2 + $0x94] sm:$0xf]
      %v2046 = vld [vmem:[#allocation2 + $0x9c] sm:$0xf]
      %v2047 = vld [vmem:[#allocation2 + $0xa0] sm:$0xf]
      %v2048 = vld [vmem:[#allocation2 + $0xa8] sm:$0xf]
      %v2049 = vld [vmem:[#allocation2 + $0xac] sm:$0xf]
      %v2050 = vld [vmem:[#allocation2 + $0xb4] sm:$0xf]
      %v2051 = vld [vmem:[#allocation2 + $0xb8] sm:$0xf]
      %v2052 = vld [vmem:[%s7] sm:$0xf]
      %v2053 = vld [vmem:[#allocation2 + $0x8] sm:$0x1]
      %v2054 = vld [vmem:[#allocation2 + $0x14] sm:$0x1]
      %v2055 = vld [vmem:[#allocation2 + $0x20] sm:$0x1]
      %v2056 = vld [vmem:[#allocation2 + $0x2c] sm:$0x1]
      %v2057 = vld [vmem:[#allocation2 + $0x38] sm:$0x1]
      %v2058 = vld [vmem:[#allocation2 + $0x44] sm:$0x1]
      %v2059 = vld [vmem:[#allocation2 + $0x50] sm:$0x1]
      %v2060 = vld [vmem:[#allocation2 + $0x5c] sm:$0x1]
      %v2061 = vld [vmem:[#allocation2 + $0x68] sm:$0x1]
      %v2062 = vld [vmem:[#allocation2 + $0x74] sm:$0x1]
      %v2063 = vld [vmem:[#allocation2 + $0x80] sm:$0x1]
      %v2064 = vld [vmem:[#allocation2 + $0x8c] sm:$0x1]
      %v2065 = vld [vmem:[#allocation2 + $0x98] sm:$0x1]
      %v2066 = vld [vmem:[#allocation2 + $0xa4] sm:$0x1]
      %v2067 = vld [vmem:[#allocation2 + $0xb0] sm:$0x1]
      %v2068 = vld [vmem:[#allocation2 + $0xbc] sm:$0x1]
      %vm2069 = vsmask.f32 3328
      %vm2070 = vsmask.f32 7440
      %vm2071 = vmor %vm2069, %vm2070
      %v2073 = vshrl.u32 %v2020, 16
      %v2075 = vrot.slane %v2073, 4
      %v2076 = vshll.u32 %v2020, 16
      %v2078 = vrot.slane %v2076, 5
      %v2079 = vor.u32 %v2075, %v2078
      %v2080 = vrot.slane %v2079, 4
      %v2082 = vshll.u32 %v2021, 16
      %v2084 = vrot.slane %v2082, 5
      %v2085 = vsel %vm2071, %v2080, %v2084
      %v2086 = vshrl.u32 %v2021, 16
      %v2088 = vrot.slane %v2086, 4
      %v2089 = vor.u32 %v2088, %v2084
      %v2090 = vrot.slane %v2089, 4
      %v2092 = vshll.u32 %v2053, 16
      %v2094 = vrot.slane %v2092, 5
      %v2095 = vsel %vm2071, %v2090, %v2094
      %v2097 = vshrl.u32 %v2022, 16
      %v2099 = vrot.slane %v2097, 4
      %v2100 = vshll.u32 %v2022, 16
      %v2102 = vrot.slane %v2100, 5
      %v2103 = vor.u32 %v2099, %v2102
      %v2104 = vrot.slane %v2103, 4
      %v2106 = vshll.u32 %v2023, 16
      %v2108 = vrot.slane %v2106, 5
      %v2109 = vsel %vm2071, %v2104, %v2108
      %v2110 = vshrl.u32 %v2023, 16
      %v2112 = vrot.slane %v2110, 4
      %v2113 = vor.u32 %v2112, %v2108
      %v2114 = vrot.slane %v2113, 4
      %v2116 = vshll.u32 %v2054, 16
      %v2118 = vrot.slane %v2116, 5
      %v2119 = vsel %vm2071, %v2114, %v2118
      %v2121 = vshrl.u32 %v2024, 16
      %v2123 = vrot.slane %v2121, 4
      %v2124 = vshll.u32 %v2024, 16
      %v2126 = vrot.slane %v2124, 5
      %v2127 = vor.u32 %v2123, %v2126
      %v2128 = vrot.slane %v2127, 4
      %v2130 = vshll.u32 %v2025, 16
      %v2132 = vrot.slane %v2130, 5
      %v2133 = vsel %vm2071, %v2128, %v2132
      %v2134 = vshrl.u32 %v2025, 16
      %v2136 = vrot.slane %v2134, 4
      %v2137 = vor.u32 %v2136, %v2132
      %v2138 = vrot.slane %v2137, 4
      %v2140 = vshll.u32 %v2055, 16
      %v2142 = vrot.slane %v2140, 5
      %v2143 = vsel %vm2071, %v2138, %v2142
      %v2145 = vshrl.u32 %v2026, 16
      %v2147 = vrot.slane %v2145, 4
      %v2148 = vshll.u32 %v2026, 16
      %v2150 = vrot.slane %v2148, 5
      %v2151 = vor.u32 %v2147, %v2150
      %v2152 = vrot.slane %v2151, 4
      %v2154 = vshll.u32 %v2027, 16
      %v2156 = vrot.slane %v2154, 5
      %v2157 = vsel %vm2071, %v2152, %v2156
      %v2158 = vshrl.u32 %v2027, 16
      %v2160 = vrot.slane %v2158, 4
      %v2161 = vor.u32 %v2160, %v2156
      %v2162 = vrot.slane %v2161, 4
      %v2164 = vshll.u32 %v2056, 16
      %v2166 = vrot.slane %v2164, 5
      %v2167 = vsel %vm2071, %v2162, %v2166
      %v2169 = vshrl.u32 %v2028, 16
      %v2171 = vrot.slane %v2169, 4
      %v2172 = vshll.u32 %v2028, 16
      %v2174 = vrot.slane %v2172, 5
      %v2175 = vor.u32 %v2171, %v2174
      %v2176 = vrot.slane %v2175, 4
      %v2178 = vshll.u32 %v2029, 16
      %v2180 = vrot.slane %v2178, 5
      %v2181 = vsel %vm2071, %v2176, %v2180
      %v2182 = vshrl.u32 %v2029, 16
      %v2184 = vrot.slane %v2182, 4
      %v2185 = vor.u32 %v2184, %v2180
      %v2186 = vrot.slane %v2185, 4
      %v2188 = vshll.u32 %v2057, 16
      %v2190 = vrot.slane %v2188, 5
      %v2191 = vsel %vm2071, %v2186, %v2190
      %v2193 = vshrl.u32 %v2030, 16
      %v2195 = vrot.slane %v2193, 4
      %v2196 = vshll.u32 %v2030, 16
      %v2198 = vrot.slane %v2196, 5
      %v2199 = vor.u32 %v2195, %v2198
      %v2200 = vrot.slane %v2199, 4
      %v2202 = vshll.u32 %v2031, 16
      %v2204 = vrot.slane %v2202, 5
      %v2205 = vsel %vm2071, %v2200, %v2204
      %v2206 = vshrl.u32 %v2031, 16
      %v2208 = vrot.slane %v2206, 4
      %v2209 = vor.u32 %v2208, %v2204
      %v2210 = vrot.slane %v2209, 4
      %v2212 = vshll.u32 %v2058, 16
      %v2214 = vrot.slane %v2212, 5
      %v2215 = vsel %vm2071, %v2210, %v2214
      %v2217 = vshrl.u32 %v2032, 16
      %v2219 = vrot.slane %v2217, 4
      %v2220 = vshll.u32 %v2032, 16
      %v2222 = vrot.slane %v2220, 5
      %v2223 = vor.u32 %v2219, %v2222
      %v2224 = vrot.slane %v2223, 4
      %v2226 = vshll.u32 %v2033, 16
      %v2228 = vrot.slane %v2226, 5
      %v2229 = vsel %vm2071, %v2224, %v2228
      %v2230 = vshrl.u32 %v2033, 16
      %v2232 = vrot.slane %v2230, 4
      %v2233 = vor.u32 %v2232, %v2228
      %v2234 = vrot.slane %v2233, 4
      %v2236 = vshll.u32 %v2059, 16
      %v2238 = vrot.slane %v2236, 5
      %v2239 = vsel %vm2071, %v2234, %v2238
      %v2241 = vshrl.u32 %v2034, 16
      %v2243 = vrot.slane %v2241, 4
      %v2244 = vshll.u32 %v2034, 16
      %v2246 = vrot.slane %v2244, 5
      %v2247 = vor.u32 %v2243, %v2246
      %v2248 = vrot.slane %v2247, 4
      %v2250 = vshll.u32 %v2035, 16
      %v2252 = vrot.slane %v2250, 5
      %v2253 = vsel %vm2071, %v2248, %v2252
      %v2254 = vshrl.u32 %v2035, 16
      %v2256 = vrot.slane %v2254, 4
      %v2257 = vor.u32 %v2256, %v2252
      %v2258 = vrot.slane %v2257, 4
      %v2260 = vshll.u32 %v2060, 16
      %v2262 = vrot.slane %v2260, 5
      %v2263 = vsel %vm2071, %v2258, %v2262
      %v2265 = vshrl.u32 %v2036, 16
      %v2267 = vrot.slane %v2265, 4
      %v2268 = vshll.u32 %v2036, 16
      %v2270 = vrot.slane %v2268, 5
      %v2271 = vor.u32 %v2267, %v2270
      %v2272 = vrot.slane %v2271, 4
      %v2274 = vshll.u32 %v2037, 16
      %v2276 = vrot.slane %v2274, 5
      %v2277 = vsel %vm2071, %v2272, %v2276
      %v2278 = vshrl.u32 %v2037, 16
      %v2280 = vrot.slane %v2278, 4
      %v2281 = vor.u32 %v2280, %v2276
      %v2282 = vrot.slane %v2281, 4
      %v2284 = vshll.u32 %v2061, 16
      %v2286 = vrot.slane %v2284, 5
      %v2287 = vsel %vm2071, %v2282, %v2286
      %v2289 = vshrl.u32 %v2038, 16
      %v2291 = vrot.slane %v2289, 4
      %v2292 = vshll.u32 %v2038, 16
      %v2294 = vrot.slane %v2292, 5
      %v2295 = vor.u32 %v2291, %v2294
      %v2296 = vrot.slane %v2295, 4
      %v2298 = vshll.u32 %v2039, 16
      %v2300 = vrot.slane %v2298, 5
      %v2301 = vsel %vm2071, %v2296, %v2300
      %v2302 = vshrl.u32 %v2039, 16
      %v2304 = vrot.slane %v2302, 4
      %v2305 = vor.u32 %v2304, %v2300
      %v2306 = vrot.slane %v2305, 4
      %v2308 = vshll.u32 %v2062, 16
      %v2310 = vrot.slane %v2308, 5
      %v2311 = vsel %vm2071, %v2306, %v2310
      %v2313 = vshrl.u32 %v2040, 16
      %v2315 = vrot.slane %v2313, 4
      %v2316 = vshll.u32 %v2040, 16
      %v2318 = vrot.slane %v2316, 5
      %v2319 = vor.u32 %v2315, %v2318
      %v2320 = vrot.slane %v2319, 4
      %v2322 = vshll.u32 %v2041, 16
      %v2324 = vrot.slane %v2322, 5
      %v2325 = vsel %vm2071, %v2320, %v2324
      %v2326 = vshrl.u32 %v2041, 16
      %v2328 = vrot.slane %v2326, 4
      %v2329 = vor.u32 %v2328, %v2324
      %v2330 = vrot.slane %v2329, 4
      %v2332 = vshll.u32 %v2063, 16
      %v2334 = vrot.slane %v2332, 5
      %v2335 = vsel %vm2071, %v2330, %v2334
      %v2337 = vshrl.u32 %v2042, 16
      %v2339 = vrot.slane %v2337, 4
      %v2340 = vshll.u32 %v2042, 16
      %v2342 = vrot.slane %v2340, 5
      %v2343 = vor.u32 %v2339, %v2342
      %v2344 = vrot.slane %v2343, 4
      %v2346 = vshll.u32 %v2043, 16
      %v2348 = vrot.slane %v2346, 5
      %v2349 = vsel %vm2071, %v2344, %v2348
      %v2350 = vshrl.u32 %v2043, 16
      %v2352 = vrot.slane %v2350, 4
      %v2353 = vor.u32 %v2352, %v2348
      %v2354 = vrot.slane %v2353, 4
      %v2356 = vshll.u32 %v2064, 16
      %v2358 = vrot.slane %v2356, 5
      %v2359 = vsel %vm2071, %v2354, %v2358
      %v2361 = vshrl.u32 %v2044, 16
      %v2363 = vrot.slane %v2361, 4
      %v2364 = vshll.u32 %v2044, 16
      %v2366 = vrot.slane %v2364, 5
      %v2367 = vor.u32 %v2363, %v2366
      %v2368 = vrot.slane %v2367, 4
      %v2370 = vshll.u32 %v2045, 16
      %v2372 = vrot.slane %v2370, 5
      %v2373 = vsel %vm2071, %v2368, %v2372
      %v2374 = vshrl.u32 %v2045, 16
      %v2376 = vrot.slane %v2374, 4
      %v2377 = vor.u32 %v2376, %v2372
      %v2378 = vrot.slane %v2377, 4
      %v2380 = vshll.u32 %v2065, 16
      %v2382 = vrot.slane %v2380, 5
      %v2383 = vsel %vm2071, %v2378, %v2382
      %v2385 = vshrl.u32 %v2046, 16
      %v2387 = vrot.slane %v2385, 4
      %v2388 = vshll.u32 %v2046, 16
      %v2390 = vrot.slane %v2388, 5
      %v2391 = vor.u32 %v2387, %v2390
      %v2392 = vrot.slane %v2391, 4
      %v2394 = vshll.u32 %v2047, 16
      %v2396 = vrot.slane %v2394, 5
      %v2397 = vsel %vm2071, %v2392, %v2396
      %v2398 = vshrl.u32 %v2047, 16
      %v2400 = vrot.slane %v2398, 4
      %v2401 = vor.u32 %v2400, %v2396
      %v2402 = vrot.slane %v2401, 4
      %v2404 = vshll.u32 %v2066, 16
      %v2406 = vrot.slane %v2404, 5
      %v2407 = vsel %vm2071, %v2402, %v2406
      %v2409 = vshrl.u32 %v2048, 16
      %v2411 = vrot.slane %v2409, 4
      %v2412 = vshll.u32 %v2048, 16
      %v2414 = vrot.slane %v2412, 5
      %v2415 = vor.u32 %v2411, %v2414
      %v2416 = vrot.slane %v2415, 4
      %v2418 = vshll.u32 %v2049, 16
      %v2420 = vrot.slane %v2418, 5
      %v2421 = vsel %vm2071, %v2416, %v2420
      %v2422 = vshrl.u32 %v2049, 16
      %v2424 = vrot.slane %v2422, 4
      %v2425 = vor.u32 %v2424, %v2420
      %v2426 = vrot.slane %v2425, 4
      %v2428 = vshll.u32 %v2067, 16
      %v2430 = vrot.slane %v2428, 5
      %v2431 = vsel %vm2071, %v2426, %v2430
      %v2433 = vshrl.u32 %v2050, 16
      %v2435 = vrot.slane %v2433, 4
      %v2436 = vshll.u32 %v2050, 16
      %v2438 = vrot.slane %v2436, 5
      %v2439 = vor.u32 %v2435, %v2438
      %v2440 = vrot.slane %v2439, 4
      %v2442 = vshll.u32 %v2051, 16
      %v2444 = vrot.slane %v2442, 5
      %v2445 = vsel %vm2071, %v2440, %v2444
      %v2446 = vshrl.u32 %v2051, 16
      %v2448 = vrot.slane %v2446, 4
      %v2449 = vor.u32 %v2448, %v2444
      %v2450 = vrot.slane %v2449, 4
      %v2452 = vshll.u32 %v2068, 16
      %v2454 = vrot.slane %v2452, 5
      %v2455 = vsel %vm2071, %v2450, %v2454
      %s2456 = scalar_lea.vmem %s7, 4
      %v2457 = vld [vmem:[%s2456] sm:$0xf]
      %v2458 = vunpack.c.l.b16 %v2085
      %v2459 = vunpack.c.l.b16 %v2095
      %v2460 = vunpack.c.l.b16 %v2109
      %v2461 = vunpack.c.l.b16 %v2119
      %v2462 = vunpack.c.l.b16 %v2133
      %v2463 = vunpack.c.l.b16 %v2143
      %v2464 = vunpack.c.l.b16 %v2157
      %v2465 = vunpack.c.l.b16 %v2167
      %v2466 = vunpack.c.l.b16 %v2181
      %v2467 = vunpack.c.l.b16 %v2191
      %v2468 = vunpack.c.l.b16 %v2205
      %v2469 = vunpack.c.l.b16 %v2215
      %v2470 = vunpack.c.l.b16 %v2229
      %v2471 = vunpack.c.l.b16 %v2239
      %v2472 = vunpack.c.l.b16 %v2253
      %v2473 = vunpack.c.l.b16 %v2263
      %v2474 = vunpack.c.l.b16 %v2277
      %v2475 = vunpack.c.l.b16 %v2287
      %v2476 = vunpack.c.l.b16 %v2301
      %v2477 = vunpack.c.l.b16 %v2311
      %v2478 = vunpack.c.l.b16 %v2325
      %v2479 = vunpack.c.l.b16 %v2335
      %v2480 = vunpack.c.l.b16 %v2349
      %v2481 = vunpack.c.l.b16 %v2359
      %v2482 = vunpack.c.l.b16 %v2373
      %v2483 = vunpack.c.l.b16 %v2383
      %v2484 = vunpack.c.l.b16 %v2397
      %v2485 = vunpack.c.l.b16 %v2407
      %v2486 = vunpack.c.l.b16 %v2421
      %v2487 = vunpack.c.l.b16 %v2431
      %v2488 = vunpack.c.l.b16 %v2445
      %v2489 = vunpack.c.l.b16 %v2455
      %v2490 = vpack.c.b16 %v2459, %v2458
      %v2491 = vpack.c.b16 %v2461, %v2460
      %v2492 = vpack.c.b16 %v2463, %v2462
      %v2493 = vpack.c.b16 %v2465, %v2464
      %v2494 = vpack.c.b16 %v2467, %v2466
      %v2495 = vpack.c.b16 %v2469, %v2468
      %v2496 = vpack.c.b16 %v2471, %v2470
      %v2497 = vpack.c.b16 %v2473, %v2472
      %v2498 = vpack.c.b16 %v2475, %v2474
      %v2499 = vpack.c.b16 %v2477, %v2476
      %v2500 = vpack.c.b16 %v2479, %v2478
      %v2501 = vpack.c.b16 %v2481, %v2480
      %v2502 = vpack.c.b16 %v2483, %v2482
      %v2503 = vpack.c.b16 %v2485, %v2484
      %v2504 = vpack.c.b16 %v2487, %v2486
      %v2505 = vpack.c.b16 %v2489, %v2488
      %v2507 = vsel %vm1034, %v2490, 0
      %v2510 = vsel %vm1034, %v2491, 0
      %v2513 = vsel %vm1034, %v2492, 0
      %v2516 = vsel %vm1034, %v2493, 0
      %v2519 = vsel %vm1034, %v2494, 0
      %v2522 = vsel %vm1034, %v2495, 0
      %v2525 = vsel %vm1034, %v2496, 0
      %v2528 = vsel %vm1034, %v2497, 0
      %v2531 = vsel %vm1034, %v2498, 0
      %v2534 = vsel %vm1034, %v2499, 0
      %v2537 = vsel %vm1034, %v2500, 0
      %v2540 = vsel %vm1034, %v2501, 0
      %v2543 = vsel %vm1034, %v2502, 0
      %v2546 = vsel %vm1034, %v2503, 0
      %v2549 = vsel %vm1034, %v2504, 0
      %v2552 = vsel %vm1034, %v2505, 0
      %v2555 = vsel %vm791, %v2457, 0
      %2557 = vmatprep.subr.bf16.mxu0 0
      %2558 = vmatpush1.bf16.msra.mxu0 %v2555
      %2559 = vmatprep.subr.bf16.mxu0 0
      %2560 = vmatpush1.bf16.msra.mxu0 0
      %2561 = vmatprep.subr.bf16.mxu0 0
      %2562 = vmatpush1.bf16.msra.mxu0 0
      %2563 = vmatprep.subr.bf16.mxu0 0
      %2564 = vmatpush1.bf16.msra.mxu0 0
      %2565 = vmatprep.subr.bf16.mxu0 0
      %2566 = vmatpush1.bf16.msra.mxu0 0
      %2567 = vmatprep.subr.bf16.mxu0 0
      %2568 = vmatpush1.bf16.msra.mxu0 0
      %2569 = vmatprep.subr.bf16.mxu0 0
      %2570 = vmatpush1.bf16.msra.mxu0 0
      %2571 = vmatprep.subr.bf16.mxu0 0
      %2572 = vmatpush1.bf16.msra.mxu0 0
      %2573 = vmatprep.subr.bf16.mxu0 0
      %2574 = vmatpush1.bf16.msra.mxu0 0
      %2575 = vmatprep.subr.bf16.mxu0 0
      %2576 = vmatpush1.bf16.msra.mxu0 0
      %2577 = vmatprep.subr.bf16.mxu0 0
      %2578 = vmatpush1.bf16.msra.mxu0 0
      %2579 = vmatprep.subr.bf16.mxu0 0
      %2580 = vmatpush1.bf16.msra.mxu0 0
      %2581 = vmatprep.subr.bf16.mxu0 0
      %2582 = vmatpush1.bf16.msra.mxu0 0
      %2583 = vmatprep.subr.bf16.mxu0 0
      %2584 = vmatpush1.bf16.msra.mxu0 0
      %2585 = vmatprep.subr.bf16.mxu0 0
      %2586 = vmatpush1.bf16.msra.mxu0 0
      %2587 = vmatprep.subr.bf16.mxu0 0
      %2588 = vmatpush1.bf16.msra.mxu0 0
      %2589 = vmatprep.mubr.bf16.mxu0 0
      %2590 = vmatmul.mubr.bf16.gmra.mrb[0].mxu0 %v2507
      %v2591 = vpop.f32.mrb[0].mxu0
      %v2592 = vadd.f32 0.0, %v2591
      %v2593 = vpop.f32.mrb[0].mxu0
      %v2594 = vpop.f32.mrb[0].mxu0
      %v2595 = vadd.f32 0.0, %v2594
      %v2596 = vpop.f32.mrb[0].mxu0
      %2597 = vmatprep.mubr.bf16.mxu0 0
      %2598 = vmatmul.mubr.bf16.gmra.mrb[0].mxu0 %v2510
      %v2599 = vpop.f32.mrb[0].mxu0
      %v2600 = vadd.f32 0.0, %v2599
      %v2601 = vpop.f32.mrb[0].mxu0
      %v2602 = vpop.f32.mrb[0].mxu0
      %v2603 = vadd.f32 0.0, %v2602
      %v2604 = vpop.f32.mrb[0].mxu0
      %2605 = vmatprep.mubr.bf16.mxu0 0
      %2606 = vmatmul.mubr.bf16.gmra.mrb[0].mxu0 %v2513
      %v2607 = vpop.f32.mrb[0].mxu0
      %v2608 = vadd.f32 0.0, %v2607
      %v2609 = vpop.f32.mrb[0].mxu0
      %v2610 = vpop.f32.mrb[0].mxu0
      %v2611 = vadd.f32 0.0, %v2610
      %v2612 = vpop.f32.mrb[0].mxu0
      %2613 = vmatprep.mubr.bf16.mxu0 0
      %2614 = vmatmul.mubr.bf16.gmra.mrb[0].mxu0 %v2516
      %v2615 = vpop.f32.mrb[0].mxu0
      %v2616 = vadd.f32 0.0, %v2615
      %v2617 = vpop.f32.mrb[0].mxu0
      %v2618 = vpop.f32.mrb[0].mxu0
      %v2619 = vadd.f32 0.0, %v2618
      %v2620 = vpop.f32.mrb[0].mxu0
      %2621 = vmatprep.mubr.bf16.mxu0 0
      %2622 = vmatmul.mubr.bf16.gmra.mrb[0].mxu0 %v2519
      %v2623 = vpop.f32.mrb[0].mxu0
      %v2624 = vadd.f32 0.0, %v2623
      %v2625 = vpop.f32.mrb[0].mxu0
      %v2626 = vpop.f32.mrb[0].mxu0
      %v2627 = vadd.f32 0.0, %v2626
      %v2628 = vpop.f32.mrb[0].mxu0
      %2629 = vmatprep.mubr.bf16.mxu0 0
      %2630 = vmatmul.mubr.bf16.gmra.mrb[0].mxu0 %v2522
      %v2631 = vpop.f32.mrb[0].mxu0
      %v2632 = vadd.f32 0.0, %v2631
      %v2633 = vpop.f32.mrb[0].mxu0
      %v2634 = vpop.f32.mrb[0].mxu0
      %v2635 = vadd.f32 0.0, %v2634
      %v2636 = vpop.f32.mrb[0].mxu0
      %2637 = vmatprep.mubr.bf16.mxu0 0
      %2638 = vmatmul.mubr.bf16.gmra.mrb[0].mxu0 %v2525
      %v2639 = vpop.f32.mrb[0].mxu0
      %v2640 = vadd.f32 0.0, %v2639
      %v2641 = vpop.f32.mrb[0].mxu0
      %v2642 = vpop.f32.mrb[0].mxu0
      %v2643 = vadd.f32 0.0, %v2642
      %v2644 = vpop.f32.mrb[0].mxu0
      %2645 = vmatprep.mubr.bf16.mxu0 0
      %2646 = vmatmul.mubr.bf16.gmra.mrb[0].mxu0 %v2528
      %v2647 = vpop.f32.mrb[0].mxu0
      %v2648 = vadd.f32 0.0, %v2647
      %v2649 = vpop.f32.mrb[0].mxu0
      %v2650 = vpop.f32.mrb[0].mxu0
      %v2651 = vadd.f32 0.0, %v2650
      %v2652 = vpop.f32.mrb[0].mxu0
      %2653 = vmatprep.mubr.bf16.mxu0 0
      %2654 = vmatmul.mubr.bf16.gmra.mrb[0].mxu0 %v2531
      %v2655 = vpop.f32.mrb[0].mxu0
      %v2656 = vadd.f32 0.0, %v2655
      %v2657 = vpop.f32.mrb[0].mxu0
      %v2658 = vpop.f32.mrb[0].mxu0
      %v2659 = vadd.f32 0.0, %v2658
      %v2660 = vpop.f32.mrb[0].mxu0
      %2661 = vmatprep.mubr.bf16.mxu0 0
      %2662 = vmatmul.mubr.bf16.gmra.mrb[0].mxu0 %v2534
      %v2663 = vpop.f32.mrb[0].mxu0
      %v2664 = vadd.f32 0.0, %v2663
      %v2665 = vpop.f32.mrb[0].mxu0
      %v2666 = vpop.f32.mrb[0].mxu0
      %v2667 = vadd.f32 0.0, %v2666
      %v2668 = vpop.f32.mrb[0].mxu0
      %2669 = vmatprep.mubr.bf16.mxu0 0
      %2670 = vmatmul.mubr.bf16.gmra.mrb[0].mxu0 %v2537
      %v2671 = vpop.f32.mrb[0].mxu0
      %v2672 = vadd.f32 0.0, %v2671
      %v2673 = vpop.f32.mrb[0].mxu0
      %v2674 = vpop.f32.mrb[0].mxu0
      %v2675 = vadd.f32 0.0, %v2674
      %v2676 = vpop.f32.mrb[0].mxu0
      %2677 = vmatprep.mubr.bf16.mxu0 0
      %2678 = vmatmul.mubr.bf16.gmra.mrb[0].mxu0 %v2540
      %v2679 = vpop.f32.mrb[0].mxu0
      %v2680 = vadd.f32 0.0, %v2679
      %v2681 = vpop.f32.mrb[0].mxu0
      %v2682 = vpop.f32.mrb[0].mxu0
      %v2683 = vadd.f32 0.0, %v2682
      %v2684 = vpop.f32.mrb[0].mxu0
      %2685 = vmatprep.mubr.bf16.mxu0 0
      %2686 = vmatmul.mubr.bf16.gmra.mrb[0].mxu0 %v2543
      %v2687 = vpop.f32.mrb[0].mxu0
      %v2688 = vadd.f32 0.0, %v2687
      %v2689 = vpop.f32.mrb[0].mxu0
      %v2690 = vpop.f32.mrb[0].mxu0
      %v2691 = vadd.f32 0.0, %v2690
      %v2692 = vpop.f32.mrb[0].mxu0
      %2693 = vmatprep.mubr.bf16.mxu0 0
      %2694 = vmatmul.mubr.bf16.gmra.mrb[0].mxu0 %v2546
      %v2695 = vpop.f32.mrb[0].mxu0
      %v2696 = vadd.f32 0.0, %v2695
      %v2697 = vpop.f32.mrb[0].mxu0
      %v2698 = vpop.f32.mrb[0].mxu0
      %v2699 = vadd.f32 0.0, %v2698
      %v2700 = vpop.f32.mrb[0].mxu0
      %2701 = vmatprep.mubr.bf16.mxu0 0
      %2702 = vmatmul.mubr.bf16.gmra.mrb[0].mxu0 %v2549
      %v2703 = vpop.f32.mrb[0].mxu0
      %v2704 = vadd.f32 0.0, %v2703
      %v2705 = vpop.f32.mrb[0].mxu0
      %v2706 = vpop.f32.mrb[0].mxu0
      %v2707 = vadd.f32 0.0, %v2706
      %v2708 = vpop.f32.mrb[0].mxu0
      %2709 = vmatprep.mubr.bf16.mxu0 0
      %2710 = vmatmul.mubr.bf16.gmra.mrb[0].mxu0 %v2552
      %v2711 = vpop.f32.mrb[0].mxu0
      %v2712 = vadd.f32 0.0, %v2711
      %v2713 = vpop.f32.mrb[0].mxu0
      %v2714 = vpop.f32.mrb[0].mxu0
      %v2715 = vadd.f32 0.0, %v2714
      %v2716 = vpop.f32.mrb[0].mxu0
      %2717 = vdwg.mxu0
      %v2750 = vunpack.c.l.b16 %v2020
      %v2751 = vunpack.c.l.b16 %v2021
      %v2752 = vunpack.c.l.b16 %v2022
      %v2753 = vunpack.c.l.b16 %v2023
      %v2754 = vunpack.c.l.b16 %v2024
      %v2755 = vunpack.c.l.b16 %v2025
      %v2756 = vunpack.c.l.b16 %v2026
      %v2757 = vunpack.c.l.b16 %v2027
      %v2758 = vunpack.c.l.b16 %v2028
      %v2759 = vunpack.c.l.b16 %v2029
      %v2760 = vunpack.c.l.b16 %v2030
      %v2761 = vunpack.c.l.b16 %v2031
      %v2762 = vunpack.c.l.b16 %v2032
      %v2763 = vunpack.c.l.b16 %v2033
      %v2764 = vunpack.c.l.b16 %v2034
      %v2765 = vunpack.c.l.b16 %v2035
      %v2766 = vunpack.c.l.b16 %v2036
      %v2767 = vunpack.c.l.b16 %v2037
      %v2768 = vunpack.c.l.b16 %v2038
      %v2769 = vunpack.c.l.b16 %v2039
      %v2770 = vunpack.c.l.b16 %v2040
      %v2771 = vunpack.c.l.b16 %v2041
      %v2772 = vunpack.c.l.b16 %v2042
      %v2773 = vunpack.c.l.b16 %v2043
      %v2774 = vunpack.c.l.b16 %v2044
      %v2775 = vunpack.c.l.b16 %v2045
      %v2776 = vunpack.c.l.b16 %v2046
      %v2777 = vunpack.c.l.b16 %v2047
      %v2778 = vunpack.c.l.b16 %v2048
      %v2779 = vunpack.c.l.b16 %v2049
      %v2780 = vunpack.c.l.b16 %v2050
      %v2781 = vunpack.c.l.b16 %v2051
      %v2782 = vpack.c.b16 %v2751, %v2750
      %v2783 = vpack.c.b16 %v2753, %v2752
      %v2784 = vpack.c.b16 %v2755, %v2754
      %v2785 = vpack.c.b16 %v2757, %v2756
      %v2786 = vpack.c.b16 %v2759, %v2758
      %v2787 = vpack.c.b16 %v2761, %v2760
      %v2788 = vpack.c.b16 %v2763, %v2762
      %v2789 = vpack.c.b16 %v2765, %v2764
      %v2790 = vpack.c.b16 %v2767, %v2766
      %v2791 = vpack.c.b16 %v2769, %v2768
      %v2792 = vpack.c.b16 %v2771, %v2770
      %v2793 = vpack.c.b16 %v2773, %v2772
      %v2794 = vpack.c.b16 %v2775, %v2774
      %v2795 = vpack.c.b16 %v2777, %v2776
      %v2796 = vpack.c.b16 %v2779, %v2778
      %v2797 = vpack.c.b16 %v2781, %v2780
      %v2799 = vsel %vm1034, %v2782, 0
      %v2802 = vsel %vm1034, %v2783, 0
      %v2805 = vsel %vm1034, %v2784, 0
      %v2808 = vsel %vm1034, %v2785, 0
      %v2811 = vsel %vm1034, %v2786, 0
      %v2814 = vsel %vm1034, %v2787, 0
      %v2817 = vsel %vm1034, %v2788, 0
      %v2820 = vsel %vm1034, %v2789, 0
      %v2823 = vsel %vm1034, %v2790, 0
      %v2826 = vsel %vm1034, %v2791, 0
      %v2829 = vsel %vm1034, %v2792, 0
      %v2832 = vsel %vm1034, %v2793, 0
      %v2835 = vsel %vm1034, %v2794, 0
      %v2838 = vsel %vm1034, %v2795, 0
      %v2841 = vsel %vm1034, %v2796, 0
      %v2844 = vsel %vm1034, %v2797, 0
      %v2847 = vsel %vm791, %v2052, 0
      %2849 = vmatprep.subr.bf16.mxu0 0
      %2850 = vmatpush1.bf16.msra.mxu0 %v2847
      %2851 = vmatprep.subr.bf16.mxu0 0
      %2852 = vmatpush1.bf16.msra.mxu0 0
      %2853 = vmatprep.subr.bf16.mxu0 0
      %2854 = vmatpush1.bf16.msra.mxu0 0
      %2855 = vmatprep.subr.bf16.mxu0 0
      %2856 = vmatpush1.bf16.msra.mxu0 0
      %2857 = vmatprep.subr.bf16.mxu0 0
      %2858 = vmatpush1.bf16.msra.mxu0 0
      %2859 = vmatprep.subr.bf16.mxu0 0
      %2860 = vmatpush1.bf16.msra.mxu0 0
      %2861 = vmatprep.subr.bf16.mxu0 0
      %2862 = vmatpush1.bf16.msra.mxu0 0
      %2863 = vmatprep.subr.bf16.mxu0 0
      %2864 = vmatpush1.bf16.msra.mxu0 0
      %2865 = vmatprep.subr.bf16.mxu0 0
      %2866 = vmatpush1.bf16.msra.mxu0 0
      %2867 = vmatprep.subr.bf16.mxu0 0
      %2868 = vmatpush1.bf16.msra.mxu0 0
      %2869 = vmatprep.subr.bf16.mxu0 0
      %2870 = vmatpush1.bf16.msra.mxu0 0
      %2871 = vmatprep.subr.bf16.mxu0 0
      %2872 = vmatpush1.bf16.msra.mxu0 0
      %2873 = vmatprep.subr.bf16.mxu0 0
      %2874 = vmatpush1.bf16.msra.mxu0 0
      %2875 = vmatprep.subr.bf16.mxu0 0
      %2876 = vmatpush1.bf16.msra.mxu0 0
      %2877 = vmatprep.subr.bf16.mxu0 0
      %2878 = vmatpush1.bf16.msra.mxu0 0
      %2879 = vmatprep.subr.bf16.mxu0 0
      %2880 = vmatpush1.bf16.msra.mxu0 0
      %2881 = vmatprep.mubr.bf16.mxu0 0
      %2882 = vmatmul.mubr.bf16.gmra.mrb[0].mxu0 %v2799
      %v2883 = vpop.f32.mrb[0].mxu0
      %v2884 = vadd.f32 %v2592, %v2883
      %v2885 = vpop.f32.mrb[0].mxu0
      %v2886 = vpop.f32.mrb[0].mxu0
      %v2887 = vadd.f32 %v2595, %v2886
      %v2888 = vpop.f32.mrb[0].mxu0
      %2889 = vmatprep.mubr.bf16.mxu0 0
      %2890 = vmatmul.mubr.bf16.gmra.mrb[0].mxu0 %v2802
      %v2891 = vpop.f32.mrb[0].mxu0
      %v2892 = vadd.f32 %v2600, %v2891
      %v2893 = vpop.f32.mrb[0].mxu0
      %v2894 = vpop.f32.mrb[0].mxu0
      %v2895 = vadd.f32 %v2603, %v2894
      %v2896 = vpop.f32.mrb[0].mxu0
      %2897 = vmatprep.mubr.bf16.mxu0 0
      %2898 = vmatmul.mubr.bf16.gmra.mrb[0].mxu0 %v2805
      %v2899 = vpop.f32.mrb[0].mxu0
      %v2900 = vadd.f32 %v2608, %v2899
      %v2901 = vpop.f32.mrb[0].mxu0
      %v2902 = vpop.f32.mrb[0].mxu0
      %v2903 = vadd.f32 %v2611, %v2902
      %v2904 = vpop.f32.mrb[0].mxu0
      %2905 = vmatprep.mubr.bf16.mxu0 0
      %2906 = vmatmul.mubr.bf16.gmra.mrb[0].mxu0 %v2808
      %v2907 = vpop.f32.mrb[0].mxu0
      %v2908 = vadd.f32 %v2616, %v2907
      %v2909 = vpop.f32.mrb[0].mxu0
      %v2910 = vpop.f32.mrb[0].mxu0
      %v2911 = vadd.f32 %v2619, %v2910
      %v2912 = vpop.f32.mrb[0].mxu0
      %2913 = vmatprep.mubr.bf16.mxu0 0
      %2914 = vmatmul.mubr.bf16.gmra.mrb[0].mxu0 %v2811
      %v2915 = vpop.f32.mrb[0].mxu0
      %v2916 = vadd.f32 %v2624, %v2915
      %v2917 = vpop.f32.mrb[0].mxu0
      %v2918 = vpop.f32.mrb[0].mxu0
      %v2919 = vadd.f32 %v2627, %v2918
      %v2920 = vpop.f32.mrb[0].mxu0
      %2921 = vmatprep.mubr.bf16.mxu0 0
      %2922 = vmatmul.mubr.bf16.gmra.mrb[0].mxu0 %v2814
      %v2923 = vpop.f32.mrb[0].mxu0
      %v2924 = vadd.f32 %v2632, %v2923
      %v2925 = vpop.f32.mrb[0].mxu0
      %v2926 = vpop.f32.mrb[0].mxu0
      %v2927 = vadd.f32 %v2635, %v2926
      %v2928 = vpop.f32.mrb[0].mxu0
      %2929 = vmatprep.mubr.bf16.mxu0 0
      %2930 = vmatmul.mubr.bf16.gmra.mrb[0].mxu0 %v2817
      %v2931 = vpop.f32.mrb[0].mxu0
      %v2932 = vadd.f32 %v2640, %v2931
      %v2933 = vpop.f32.mrb[0].mxu0
      %v2934 = vpop.f32.mrb[0].mxu0
      %v2935 = vadd.f32 %v2643, %v2934
      %v2936 = vpop.f32.mrb[0].mxu0
      %2937 = vmatprep.mubr.bf16.mxu0 0
      %2938 = vmatmul.mubr.bf16.gmra.mrb[0].mxu0 %v2820
      %v2939 = vpop.f32.mrb[0].mxu0
      %v2940 = vadd.f32 %v2648, %v2939
      %v2941 = vpop.f32.mrb[0].mxu0
      %v2942 = vpop.f32.mrb[0].mxu0
      %v2943 = vadd.f32 %v2651, %v2942
      %v2944 = vpop.f32.mrb[0].mxu0
      %2945 = vmatprep.mubr.bf16.mxu0 0
      %2946 = vmatmul.mubr.bf16.gmra.mrb[0].mxu0 %v2823
      %v2947 = vpop.f32.mrb[0].mxu0
      %v2948 = vadd.f32 %v2656, %v2947
      %v2949 = vpop.f32.mrb[0].mxu0
      %v2950 = vpop.f32.mrb[0].mxu0
      %v2951 = vadd.f32 %v2659, %v2950
      %v2952 = vpop.f32.mrb[0].mxu0
      %2953 = vmatprep.mubr.bf16.mxu0 0
      %2954 = vmatmul.mubr.bf16.gmra.mrb[0].mxu0 %v2826
      %v2955 = vpop.f32.mrb[0].mxu0
      %v2956 = vadd.f32 %v2664, %v2955
      %v2957 = vpop.f32.mrb[0].mxu0
      %v2958 = vpop.f32.mrb[0].mxu0
      %v2959 = vadd.f32 %v2667, %v2958
      %v2960 = vpop.f32.mrb[0].mxu0
      %2961 = vmatprep.mubr.bf16.mxu0 0
      %2962 = vmatmul.mubr.bf16.gmra.mrb[0].mxu0 %v2829
      %v2963 = vpop.f32.mrb[0].mxu0
      %v2964 = vadd.f32 %v2672, %v2963
      %v2965 = vpop.f32.mrb[0].mxu0
      %v2966 = vpop.f32.mrb[0].mxu0
      %v2967 = vadd.f32 %v2675, %v2966
      %v2968 = vpop.f32.mrb[0].mxu0
      %2969 = vmatprep.mubr.bf16.mxu0 0
      %2970 = vmatmul.mubr.bf16.gmra.mrb[0].mxu0 %v2832
      %v2971 = vpop.f32.mrb[0].mxu0
      %v2972 = vadd.f32 %v2680, %v2971
      %v2973 = vpop.f32.mrb[0].mxu0
      %v2974 = vpop.f32.mrb[0].mxu0
      %v2975 = vadd.f32 %v2683, %v2974
      %v2976 = vpop.f32.mrb[0].mxu0
      %2977 = vmatprep.mubr.bf16.mxu0 0
      %2978 = vmatmul.mubr.bf16.gmra.mrb[0].mxu0 %v2835
      %v2979 = vpop.f32.mrb[0].mxu0
      %v2980 = vadd.f32 %v2688, %v2979
      %v2981 = vpop.f32.mrb[0].mxu0
      %v2982 = vpop.f32.mrb[0].mxu0
      %v2983 = vadd.f32 %v2691, %v2982
      %v2984 = vpop.f32.mrb[0].mxu0
      %2985 = vmatprep.mubr.bf16.mxu0 0
      %2986 = vmatmul.mubr.bf16.gmra.mrb[0].mxu0 %v2838
      %v2987 = vpop.f32.mrb[0].mxu0
      %v2988 = vadd.f32 %v2696, %v2987
      %v2989 = vpop.f32.mrb[0].mxu0
      %v2990 = vpop.f32.mrb[0].mxu0
      %v2991 = vadd.f32 %v2699, %v2990
      %v2992 = vpop.f32.mrb[0].mxu0
      %2993 = vmatprep.mubr.bf16.mxu0 0
      %2994 = vmatmul.mubr.bf16.gmra.mrb[0].mxu0 %v2841
      %v2995 = vpop.f32.mrb[0].mxu0
      %v2996 = vadd.f32 %v2704, %v2995
      %v2997 = vpop.f32.mrb[0].mxu0
      %v2998 = vpop.f32.mrb[0].mxu0
      %v2999 = vadd.f32 %v2707, %v2998
      %v3000 = vpop.f32.mrb[0].mxu0
      %3001 = vmatprep.mubr.bf16.mxu0 0
      %3002 = vmatmul.mubr.bf16.gmra.mrb[0].mxu0 %v2844
      %v3003 = vpop.f32.mrb[0].mxu0
      %v3004 = vadd.f32 %v2712, %v3003
      %v3005 = vpop.f32.mrb[0].mxu0
      %v3006 = vpop.f32.mrb[0].mxu0
      %v3007 = vadd.f32 %v2715, %v3006
      %v3008 = vpop.f32.mrb[0].mxu0
      %3009 = vdwg.mxu0
      %v3010 = vld [vmem:[#allocation2] sm:$0xe]
      %v3011 = vld [vmem:[#allocation2 + $0xc] sm:$0xe]
      %v3012 = vld [vmem:[#allocation2 + $0x18] sm:$0xe]
      %v3013 = vld [vmem:[#allocation2 + $0x24] sm:$0xe]
      %v3014 = vld [vmem:[#allocation2 + $0x30] sm:$0xe]
      %v3015 = vld [vmem:[#allocation2 + $0x3c] sm:$0xe]
      %v3016 = vld [vmem:[#allocation2 + $0x48] sm:$0xe]
      %v3017 = vld [vmem:[#allocation2 + $0x54] sm:$0xe]
      %v3018 = vld [vmem:[#allocation2 + $0x60] sm:$0xe]
      %v3019 = vld [vmem:[#allocation2 + $0x6c] sm:$0xe]
      %v3020 = vld [vmem:[#allocation2 + $0x78] sm:$0xe]
      %v3021 = vld [vmem:[#allocation2 + $0x84] sm:$0xe]
      %v3022 = vld [vmem:[#allocation2 + $0x90] sm:$0xe]
      %v3023 = vld [vmem:[#allocation2 + $0x9c] sm:$0xe]
      %v3024 = vld [vmem:[#allocation2 + $0xa8] sm:$0xe]
      %v3025 = vld [vmem:[#allocation2 + $0xb4] sm:$0xe]
      %vm3058 = vcmask 1042432
      %vm3059 = vcmask 1046532
      %vm3060 = vmor %vm3058, %vm3059
      %v3061 = vrot.slane %v3010, 5
      %v3062 = vrot.slane %v3061, 4
      %v3063 = vrot.slane %v2021, 5
      %v3064 = vsel %vm3060, %v3062, %v3063
      %v3065 = vrot.slane %v3063, 4
      %v3066 = vrot.slane %v2053, 5
      %v3067 = vsel %vm3060, %v3065, %v3066
      %v3068 = vrot.slane %v3011, 5
      %v3069 = vrot.slane %v3068, 4
      %v3070 = vrot.slane %v2023, 5
      %v3071 = vsel %vm3060, %v3069, %v3070
      %v3072 = vrot.slane %v3070, 4
      %v3073 = vrot.slane %v2054, 5
      %v3074 = vsel %vm3060, %v3072, %v3073
      %v3075 = vrot.slane %v3012, 5
      %v3076 = vrot.slane %v3075, 4
      %v3077 = vrot.slane %v2025, 5
      %v3078 = vsel %vm3060, %v3076, %v3077
      %v3079 = vrot.slane %v3077, 4
      %v3080 = vrot.slane %v2055, 5
      %v3081 = vsel %vm3060, %v3079, %v3080
      %v3082 = vrot.slane %v3013, 5
      %v3083 = vrot.slane %v3082, 4
      %v3084 = vrot.slane %v2027, 5
      %v3085 = vsel %vm3060, %v3083, %v3084
      %v3086 = vrot.slane %v3084, 4
      %v3087 = vrot.slane %v2056, 5
      %v3088 = vsel %vm3060, %v3086, %v3087
      %v3089 = vrot.slane %v3014, 5
      %v3090 = vrot.slane %v3089, 4
      %v3091 = vrot.slane %v2029, 5
      %v3092 = vsel %vm3060, %v3090, %v3091
      %v3093 = vrot.slane %v3091, 4
      %v3094 = vrot.slane %v2057, 5
      %v3095 = vsel %vm3060, %v3093, %v3094
      %v3096 = vrot.slane %v3015, 5
      %v3097 = vrot.slane %v3096, 4
      %v3098 = vrot.slane %v2031, 5
      %v3099 = vsel %vm3060, %v3097, %v3098
      %v3100 = vrot.slane %v3098, 4
      %v3101 = vrot.slane %v2058, 5
      %v3102 = vsel %vm3060, %v3100, %v3101
      %v3103 = vrot.slane %v3016, 5
      %v3104 = vrot.slane %v3103, 4
      %v3105 = vrot.slane %v2033, 5
      %v3106 = vsel %vm3060, %v3104, %v3105
      %v3107 = vrot.slane %v3105, 4
      %v3108 = vrot.slane %v2059, 5
      %v3109 = vsel %vm3060, %v3107, %v3108
      %v3110 = vrot.slane %v3017, 5
      %v3111 = vrot.slane %v3110, 4
      %v3112 = vrot.slane %v2035, 5
      %v3113 = vsel %vm3060, %v3111, %v3112
      %v3114 = vrot.slane %v3112, 4
      %v3115 = vrot.slane %v2060, 5
      %v3116 = vsel %vm3060, %v3114, %v3115
      %v3117 = vrot.slane %v3018, 5
      %v3118 = vrot.slane %v3117, 4
      %v3119 = vrot.slane %v2037, 5
      %v3120 = vsel %vm3060, %v3118, %v3119
      %v3121 = vrot.slane %v3119, 4
      %v3122 = vrot.slane %v2061, 5
      %v3123 = vsel %vm3060, %v3121, %v3122
      %v3124 = vrot.slane %v3019, 5
      %v3125 = vrot.slane %v3124, 4
      %v3126 = vrot.slane %v2039, 5
      %v3127 = vsel %vm3060, %v3125, %v3126
      %v3128 = vrot.slane %v3126, 4
      %v3129 = vrot.slane %v2062, 5
      %v3130 = vsel %vm3060, %v3128, %v3129
      %v3131 = vrot.slane %v3020, 5
      %v3132 = vrot.slane %v3131, 4
      %v3133 = vrot.slane %v2041, 5
      %v3134 = vsel %vm3060, %v3132, %v3133
      %v3135 = vrot.slane %v3133, 4
      %v3136 = vrot.slane %v2063, 5
      %v3137 = vsel %vm3060, %v3135, %v3136
      %v3138 = vrot.slane %v3021, 5
      %v3139 = vrot.slane %v3138, 4
      %v3140 = vrot.slane %v2043, 5
      %v3141 = vsel %vm3060, %v3139, %v3140
      %v3142 = vrot.slane %v3140, 4
      %v3143 = vrot.slane %v2064, 5
      %v3144 = vsel %vm3060, %v3142, %v3143
      %v3145 = vrot.slane %v3022, 5
      %v3146 = vrot.slane %v3145, 4
      %v3147 = vrot.slane %v2045, 5
      %v3148 = vsel %vm3060, %v3146, %v3147
      %v3149 = vrot.slane %v3147, 4
      %v3150 = vrot.slane %v2065, 5
      %v3151 = vsel %vm3060, %v3149, %v3150
      %v3152 = vrot.slane %v3023, 5
      %v3153 = vrot.slane %v3152, 4
      %v3154 = vrot.slane %v2047, 5
      %v3155 = vsel %vm3060, %v3153, %v3154
      %v3156 = vrot.slane %v3154, 4
      %v3157 = vrot.slane %v2066, 5
      %v3158 = vsel %vm3060, %v3156, %v3157
      %v3159 = vrot.slane %v3024, 5
      %v3160 = vrot.slane %v3159, 4
      %v3161 = vrot.slane %v2049, 5
      %v3162 = vsel %vm3060, %v3160, %v3161
      %v3163 = vrot.slane %v3161, 4
      %v3164 = vrot.slane %v2067, 5
      %v3165 = vsel %vm3060, %v3163, %v3164
      %v3166 = vrot.slane %v3025, 5
      %v3167 = vrot.slane %v3166, 4
      %v3168 = vrot.slane %v2051, 5
      %v3169 = vsel %vm3060, %v3167, %v3168
      %v3170 = vrot.slane %v3168, 4
      %v3171 = vrot.slane %v2068, 5
      %v3172 = vsel %vm3060, %v3170, %v3171
      %s3173 = scalar_lea.vmem %s7, 8
      %v3174 = vld [vmem:[%s3173] sm:$0xf]
      %v3175 = vunpack.c.l.b16 %v3064
      %v3176 = vunpack.c.l.b16 %v3067
      %v3177 = vunpack.c.l.b16 %v3071
      %v3178 = vunpack.c.l.b16 %v3074
      %v3179 = vunpack.c.l.b16 %v3078
      %v3180 = vunpack.c.l.b16 %v3081
      %v3181 = vunpack.c.l.b16 %v3085
      %v3182 = vunpack.c.l.b16 %v3088
      %v3183 = vunpack.c.l.b16 %v3092
      %v3184 = vunpack.c.l.b16 %v3095
      %v3185 = vunpack.c.l.b16 %v3099
      %v3186 = vunpack.c.l.b16 %v3102
      %v3187 = vunpack.c.l.b16 %v3106
      %v3188 = vunpack.c.l.b16 %v3109
      %v3189 = vunpack.c.l.b16 %v3113
      %v3190 = vunpack.c.l.b16 %v3116
      %v3191 = vunpack.c.l.b16 %v3120
      %v3192 = vunpack.c.l.b16 %v3123
      %v3193 = vunpack.c.l.b16 %v3127
      %v3194 = vunpack.c.l.b16 %v3130
      %v3195 = vunpack.c.l.b16 %v3134
      %v3196 = vunpack.c.l.b16 %v3137
      %v3197 = vunpack.c.l.b16 %v3141
      %v3198 = vunpack.c.l.b16 %v3144
      %v3199 = vunpack.c.l.b16 %v3148
      %v3200 = vunpack.c.l.b16 %v3151
      %v3201 = vunpack.c.l.b16 %v3155
      %v3202 = vunpack.c.l.b16 %v3158
      %v3203 = vunpack.c.l.b16 %v3162
      %v3204 = vunpack.c.l.b16 %v3165
      %v3205 = vunpack.c.l.b16 %v3169
      %v3206 = vunpack.c.l.b16 %v3172
      %v3207 = vpack.c.b16 %v3176, %v3175
      %v3208 = vpack.c.b16 %v3178, %v3177
      %v3209 = vpack.c.b16 %v3180, %v3179
      %v3210 = vpack.c.b16 %v3182, %v3181
      %v3211 = vpack.c.b16 %v3184, %v3183
      %v3212 = vpack.c.b16 %v3186, %v3185
      %v3213 = vpack.c.b16 %v3188, %v3187
      %v3214 = vpack.c.b16 %v3190, %v3189
      %v3215 = vpack.c.b16 %v3192, %v3191
      %v3216 = vpack.c.b16 %v3194, %v3193
      %v3217 = vpack.c.b16 %v3196, %v3195
      %v3218 = vpack.c.b16 %v3198, %v3197
      %v3219 = vpack.c.b16 %v3200, %v3199
      %v3220 = vpack.c.b16 %v3202, %v3201
      %v3221 = vpack.c.b16 %v3204, %v3203
      %v3222 = vpack.c.b16 %v3206, %v3205
      %v3224 = vsel %vm1034, %v3207, 0
      %v3227 = vsel %vm1034, %v3208, 0
      %v3230 = vsel %vm1034, %v3209, 0
      %v3233 = vsel %vm1034, %v3210, 0
      %v3236 = vsel %vm1034, %v3211, 0
      %v3239 = vsel %vm1034, %v3212, 0
      %v3242 = vsel %vm1034, %v3213, 0
      %v3245 = vsel %vm1034, %v3214, 0
      %v3248 = vsel %vm1034, %v3215, 0
      %v3251 = vsel %vm1034, %v3216, 0
      %v3254 = vsel %vm1034, %v3217, 0
      %v3257 = vsel %vm1034, %v3218, 0
      %v3260 = vsel %vm1034, %v3219, 0
      %v3263 = vsel %vm1034, %v3220, 0
      %v3266 = vsel %vm1034, %v3221, 0
      %v3269 = vsel %vm1034, %v3222, 0
      %v3272 = vsel %vm791, %v3174, 0
      %3274 = vmatprep.subr.bf16.mxu0 0
      %3275 = vmatpush1.bf16.msra.mxu0 %v3272
      %3276 = vmatprep.subr.bf16.mxu0 0
      %3277 = vmatpush1.bf16.msra.mxu0 0
      %3278 = vmatprep.subr.bf16.mxu0 0
      %3279 = vmatpush1.bf16.msra.mxu0 0
      %3280 = vmatprep.subr.bf16.mxu0 0
      %3281 = vmatpush1.bf16.msra.mxu0 0
      %3282 = vmatprep.subr.bf16.mxu0 0
      %3283 = vmatpush1.bf16.msra.mxu0 0
      %3284 = vmatprep.subr.bf16.mxu0 0
      %3285 = vmatpush1.bf16.msra.mxu0 0
      %3286 = vmatprep.subr.bf16.mxu0 0
      %3287 = vmatpush1.bf16.msra.mxu0 0
      %3288 = vmatprep.subr.bf16.mxu0 0
      %3289 = vmatpush1.bf16.msra.mxu0 0
      %3290 = vmatprep.subr.bf16.mxu0 0
      %3291 = vmatpush1.bf16.msra.mxu0 0
      %3292 = vmatprep.subr.bf16.mxu0 0
      %3293 = vmatpush1.bf16.msra.mxu0 0
      %3294 = vmatprep.subr.bf16.mxu0 0
      %3295 = vmatpush1.bf16.msra.mxu0 0
      %3296 = vmatprep.subr.bf16.mxu0 0
      %3297 = vmatpush1.bf16.msra.mxu0 0
      %3298 = vmatprep.subr.bf16.mxu0 0
      %3299 = vmatpush1.bf16.msra.mxu0 0
      %3300 = vmatprep.subr.bf16.mxu0 0
      %3301 = vmatpush1.bf16.msra.mxu0 0
      %3302 = vmatprep.subr.bf16.mxu0 0
      %3303 = vmatpush1.bf16.msra.mxu0 0
      %3304 = vmatprep.subr.bf16.mxu0 0
      %3305 = vmatpush1.bf16.msra.mxu0 0
      %3306 = vmatprep.mubr.bf16.mxu0 0
      %3307 = vmatmul.mubr.bf16.gmra.mrb[0].mxu0 %v3224
      %v3308 = vpop.f32.mrb[0].mxu0
      %v3309 = vadd.f32 0.0, %v3308
      %v3310 = vpop.f32.mrb[0].mxu0
      %v3311 = vpop.f32.mrb[0].mxu0
      %v3312 = vadd.f32 0.0, %v3311
      %v3313 = vpop.f32.mrb[0].mxu0
      %3314 = vmatprep.mubr.bf16.mxu0 0
      %3315 = vmatmul.mubr.bf16.gmra.mrb[0].mxu0 %v3227
      %v3316 = vpop.f32.mrb[0].mxu0
      %v3317 = vadd.f32 0.0, %v3316
      %v3318 = vpop.f32.mrb[0].mxu0
      %v3319 = vpop.f32.mrb[0].mxu0
      %v3320 = vadd.f32 0.0, %v3319
      %v3321 = vpop.f32.mrb[0].mxu0
      %3322 = vmatprep.mubr.bf16.mxu0 0
      %3323 = vmatmul.mubr.bf16.gmra.mrb[0].mxu0 %v3230
      %v3324 = vpop.f32.mrb[0].mxu0
      %v3325 = vadd.f32 0.0, %v3324
      %v3326 = vpop.f32.mrb[0].mxu0
      %v3327 = vpop.f32.mrb[0].mxu0
      %v3328 = vadd.f32 0.0, %v3327
      %v3329 = vpop.f32.mrb[0].mxu0
      %3330 = vmatprep.mubr.bf16.mxu0 0
      %3331 = vmatmul.mubr.bf16.gmra.mrb[0].mxu0 %v3233
      %v3332 = vpop.f32.mrb[0].mxu0
      %v3333 = vadd.f32 0.0, %v3332
      %v3334 = vpop.f32.mrb[0].mxu0
      %v3335 = vpop.f32.mrb[0].mxu0
      %v3336 = vadd.f32 0.0, %v3335
      %v3337 = vpop.f32.mrb[0].mxu0
      %3338 = vmatprep.mubr.bf16.mxu0 0
      %3339 = vmatmul.mubr.bf16.gmra.mrb[0].mxu0 %v3236
      %v3340 = vpop.f32.mrb[0].mxu0
      %v3341 = vadd.f32 0.0, %v3340
      %v3342 = vpop.f32.mrb[0].mxu0
      %v3343 = vpop.f32.mrb[0].mxu0
      %v3344 = vadd.f32 0.0, %v3343
      %v3345 = vpop.f32.mrb[0].mxu0
      %3346 = vmatprep.mubr.bf16.mxu0 0
      %3347 = vmatmul.mubr.bf16.gmra.mrb[0].mxu0 %v3239
      %v3348 = vpop.f32.mrb[0].mxu0
      %v3349 = vadd.f32 0.0, %v3348
      %v3350 = vpop.f32.mrb[0].mxu0
      %v3351 = vpop.f32.mrb[0].mxu0
      %v3352 = vadd.f32 0.0, %v3351
      %v3353 = vpop.f32.mrb[0].mxu0
      %3354 = vmatprep.mubr.bf16.mxu0 0
      %3355 = vmatmul.mubr.bf16.gmra.mrb[0].mxu0 %v3242
      %v3356 = vpop.f32.mrb[0].mxu0
      %v3357 = vadd.f32 0.0, %v3356
      %v3358 = vpop.f32.mrb[0].mxu0
      %v3359 = vpop.f32.mrb[0].mxu0
      %v3360 = vadd.f32 0.0, %v3359
      %v3361 = vpop.f32.mrb[0].mxu0
      %3362 = vmatprep.mubr.bf16.mxu0 0
      %3363 = vmatmul.mubr.bf16.gmra.mrb[0].mxu0 %v3245
      %v3364 = vpop.f32.mrb[0].mxu0
      %v3365 = vadd.f32 0.0, %v3364
      %v3366 = vpop.f32.mrb[0].mxu0
      %v3367 = vpop.f32.mrb[0].mxu0
      %v3368 = vadd.f32 0.0, %v3367
      %v3369 = vpop.f32.mrb[0].mxu0
      %3370 = vmatprep.mubr.bf16.mxu0 0
      %3371 = vmatmul.mubr.bf16.gmra.mrb[0].mxu0 %v3248
      %v3372 = vpop.f32.mrb[0].mxu0
      %v3373 = vadd.f32 0.0, %v3372
      %v3374 = vpop.f32.mrb[0].mxu0
      %v3375 = vpop.f32.mrb[0].mxu0
      %v3376 = vadd.f32 0.0, %v3375
      %v3377 = vpop.f32.mrb[0].mxu0
      %3378 = vmatprep.mubr.bf16.mxu0 0
      %3379 = vmatmul.mubr.bf16.gmra.mrb[0].mxu0 %v3251
      %v3380 = vpop.f32.mrb[0].mxu0
      %v3381 = vadd.f32 0.0, %v3380
      %v3382 = vpop.f32.mrb[0].mxu0
      %v3383 = vpop.f32.mrb[0].mxu0
      %v3384 = vadd.f32 0.0, %v3383
      %v3385 = vpop.f32.mrb[0].mxu0
      %3386 = vmatprep.mubr.bf16.mxu0 0
      %3387 = vmatmul.mubr.bf16.gmra.mrb[0].mxu0 %v3254
      %v3388 = vpop.f32.mrb[0].mxu0
      %v3389 = vadd.f32 0.0, %v3388
      %v3390 = vpop.f32.mrb[0].mxu0
      %v3391 = vpop.f32.mrb[0].mxu0
      %v3392 = vadd.f32 0.0, %v3391
      %v3393 = vpop.f32.mrb[0].mxu0
      %3394 = vmatprep.mubr.bf16.mxu0 0
      %3395 = vmatmul.mubr.bf16.gmra.mrb[0].mxu0 %v3257
      %v3396 = vpop.f32.mrb[0].mxu0
      %v3397 = vadd.f32 0.0, %v3396
      %v3398 = vpop.f32.mrb[0].mxu0
      %v3399 = vpop.f32.mrb[0].mxu0
      %v3400 = vadd.f32 0.0, %v3399
      %v3401 = vpop.f32.mrb[0].mxu0
      %3402 = vmatprep.mubr.bf16.mxu0 0
      %3403 = vmatmul.mubr.bf16.gmra.mrb[0].mxu0 %v3260
      %v3404 = vpop.f32.mrb[0].mxu0
      %v3405 = vadd.f32 0.0, %v3404
      %v3406 = vpop.f32.mrb[0].mxu0
      %v3407 = vpop.f32.mrb[0].mxu0
      %v3408 = vadd.f32 0.0, %v3407
      %v3409 = vpop.f32.mrb[0].mxu0
      %3410 = vmatprep.mubr.bf16.mxu0 0
      %3411 = vmatmul.mubr.bf16.gmra.mrb[0].mxu0 %v3263
      %v3412 = vpop.f32.mrb[0].mxu0
      %v3413 = vadd.f32 0.0, %v3412
      %v3414 = vpop.f32.mrb[0].mxu0
      %v3415 = vpop.f32.mrb[0].mxu0
      %v3416 = vadd.f32 0.0, %v3415
      %v3417 = vpop.f32.mrb[0].mxu0
      %3418 = vmatprep.mubr.bf16.mxu0 0
      %3419 = vmatmul.mubr.bf16.gmra.mrb[0].mxu0 %v3266
      %v3420 = vpop.f32.mrb[0].mxu0
      %v3421 = vadd.f32 0.0, %v3420
      %v3422 = vpop.f32.mrb[0].mxu0
      %v3423 = vpop.f32.mrb[0].mxu0
      %v3424 = vadd.f32 0.0, %v3423
      %v3425 = vpop.f32.mrb[0].mxu0
      %3426 = vmatprep.mubr.bf16.mxu0 0
      %3427 = vmatmul.mubr.bf16.gmra.mrb[0].mxu0 %v3269
      %v3428 = vpop.f32.mrb[0].mxu0
      %v3429 = vadd.f32 0.0, %v3428
      %v3430 = vpop.f32.mrb[0].mxu0
      %v3431 = vpop.f32.mrb[0].mxu0
      %v3432 = vadd.f32 0.0, %v3431
      %v3433 = vpop.f32.mrb[0].mxu0
      %3434 = vdwg.mxu0
      %v3435 = vadd.f32 %v2884, %v3309
      %v3436 = vadd.f32 %v2887, %v3312
      %v3437 = vadd.f32 %v2892, %v3317
      %v3438 = vadd.f32 %v2895, %v3320
      %v3439 = vadd.f32 %v2900, %v3325
      %v3440 = vadd.f32 %v2903, %v3328
      %v3441 = vadd.f32 %v2908, %v3333
      %v3442 = vadd.f32 %v2911, %v3336
      %v3443 = vadd.f32 %v2916, %v3341
      %v3444 = vadd.f32 %v2919, %v3344
      %v3445 = vadd.f32 %v2924, %v3349
      %v3446 = vadd.f32 %v2927, %v3352
      %v3447 = vadd.f32 %v2932, %v3357
      %v3448 = vadd.f32 %v2935, %v3360
      %v3449 = vadd.f32 %v2940, %v3365
      %v3450 = vadd.f32 %v2943, %v3368
      %v3451 = vadd.f32 %v2948, %v3373
      %v3452 = vadd.f32 %v2951, %v3376
      %v3453 = vadd.f32 %v2956, %v3381
      %v3454 = vadd.f32 %v2959, %v3384
      %v3455 = vadd.f32 %v2964, %v3389
      %v3456 = vadd.f32 %v2967, %v3392
      %v3457 = vadd.f32 %v2972, %v3397
      %v3458 = vadd.f32 %v2975, %v3400
      %v3459 = vadd.f32 %v2980, %v3405
      %v3460 = vadd.f32 %v2983, %v3408
      %v3461 = vadd.f32 %v2988, %v3413
      %v3462 = vadd.f32 %v2991, %v3416
      %v3463 = vadd.f32 %v2996, %v3421
      %v3464 = vadd.f32 %v2999, %v3424
      %v3465 = vadd.f32 %v3004, %v3429
      %v3466 = vadd.f32 %v3007, %v3432
      %v3467 = vld [vmem:[%s1904] sm:$0xf]
      %v3468 = vld [vmem:[%s1904 + $0x4] sm:$0xf]
      %v3469 = vld [vmem:[%s1904 + $0xc] sm:$0xf]
      %v3470 = vld [vmem:[%s1904 + $0x10] sm:$0xf]
      %v3471 = vld [vmem:[%s1904 + $0x18] sm:$0xf]
      %v3472 = vld [vmem:[%s1904 + $0x1c] sm:$0xf]
      %v3473 = vld [vmem:[%s1904 + $0x24] sm:$0xf]
      %v3474 = vld [vmem:[%s1904 + $0x28] sm:$0xf]
      %v3475 = vld [vmem:[%s1904 + $0x30] sm:$0xf]
      %v3476 = vld [vmem:[%s1904 + $0x34] sm:$0xf]
      %v3477 = vld [vmem:[%s1904 + $0x3c] sm:$0xf]
      %v3478 = vld [vmem:[%s1904 + $0x40] sm:$0xf]
      %v3479 = vld [vmem:[%s1904 + $0x48] sm:$0xf]
      %v3480 = vld [vmem:[%s1904 + $0x4c] sm:$0xf]
      %v3481 = vld [vmem:[%s1904 + $0x54] sm:$0xf]
      %v3482 = vld [vmem:[%s1904 + $0x58] sm:$0xf]
      %v3483 = vld [vmem:[%s1904 + $0x60] sm:$0xf]
      %v3484 = vld [vmem:[%s1904 + $0x64] sm:$0xf]
      %v3485 = vld [vmem:[%s1904 + $0x6c] sm:$0xf]
      %v3486 = vld [vmem:[%s1904 + $0x70] sm:$0xf]
      %v3487 = vld [vmem:[%s1904 + $0x78] sm:$0xf]
      %v3488 = vld [vmem:[%s1904 + $0x7c] sm:$0xf]
      %v3489 = vld [vmem:[%s1904 + $0x84] sm:$0xf]
      %v3490 = vld [vmem:[%s1904 + $0x88] sm:$0xf]
      %v3491 = vld [vmem:[%s1904 + $0x90] sm:$0xf]
      %v3492 = vld [vmem:[%s1904 + $0x94] sm:$0xf]
      %v3493 = vld [vmem:[%s1904 + $0x9c] sm:$0xf]
      %v3494 = vld [vmem:[%s1904 + $0xa0] sm:$0xf]
      %v3495 = vld [vmem:[%s1904 + $0xa8] sm:$0xf]
      %v3496 = vld [vmem:[%s1904 + $0xac] sm:$0xf]
      %v3497 = vld [vmem:[%s1904 + $0xb4] sm:$0xf]
      %v3498 = vld [vmem:[%s1904 + $0xb8] sm:$0xf]
      %s3499 = scalar_lea.vmem %s7, 12
      %v3500 = vld [vmem:[%s3499] sm:$0xf]
      %v3533 = vunpack.c.l.b16 %v3467
      %v3534 = vunpack.c.l.b16 %v3468
      %v3535 = vunpack.c.l.b16 %v3469
      %v3536 = vunpack.c.l.b16 %v3470
      %v3537 = vunpack.c.l.b16 %v3471
      %v3538 = vunpack.c.l.b16 %v3472
      %v3539 = vunpack.c.l.b16 %v3473
      %v3540 = vunpack.c.l.b16 %v3474
      %v3541 = vunpack.c.l.b16 %v3475
      %v3542 = vunpack.c.l.b16 %v3476
      %v3543 = vunpack.c.l.b16 %v3477
      %v3544 = vunpack.c.l.b16 %v3478
      %v3545 = vunpack.c.l.b16 %v3479
      %v3546 = vunpack.c.l.b16 %v3480
      %v3547 = vunpack.c.l.b16 %v3481
      %v3548 = vunpack.c.l.b16 %v3482
      %v3549 = vunpack.c.l.b16 %v3483
      %v3550 = vunpack.c.l.b16 %v3484
      %v3551 = vunpack.c.l.b16 %v3485
      %v3552 = vunpack.c.l.b16 %v3486
      %v3553 = vunpack.c.l.b16 %v3487
      %v3554 = vunpack.c.l.b16 %v3488
      %v3555 = vunpack.c.l.b16 %v3489
      %v3556 = vunpack.c.l.b16 %v3490
      %v3557 = vunpack.c.l.b16 %v3491
      %v3558 = vunpack.c.l.b16 %v3492
      %v3559 = vunpack.c.l.b16 %v3493
      %v3560 = vunpack.c.l.b16 %v3494
      %v3561 = vunpack.c.l.b16 %v3495
      %v3562 = vunpack.c.l.b16 %v3496
      %v3563 = vunpack.c.l.b16 %v3497
      %v3564 = vunpack.c.l.b16 %v3498
      %v3565 = vpack.c.b16 %v3534, %v3533
      %v3566 = vpack.c.b16 %v3536, %v3535
      %v3567 = vpack.c.b16 %v3538, %v3537
      %v3568 = vpack.c.b16 %v3540, %v3539
      %v3569 = vpack.c.b16 %v3542, %v3541
      %v3570 = vpack.c.b16 %v3544, %v3543
      %v3571 = vpack.c.b16 %v3546, %v3545
      %v3572 = vpack.c.b16 %v3548, %v3547
      %v3573 = vpack.c.b16 %v3550, %v3549
      %v3574 = vpack.c.b16 %v3552, %v3551
      %v3575 = vpack.c.b16 %v3554, %v3553
      %v3576 = vpack.c.b16 %v3556, %v3555
      %v3577 = vpack.c.b16 %v3558, %v3557
      %v3578 = vpack.c.b16 %v3560, %v3559
      %v3579 = vpack.c.b16 %v3562, %v3561
      %v3580 = vpack.c.b16 %v3564, %v3563
      %v3582 = vsel %vm1034, %v3565, 0
      %v3585 = vsel %vm1034, %v3566, 0
      %v3588 = vsel %vm1034, %v3567, 0
      %v3591 = vsel %vm1034, %v3568, 0
      %v3594 = vsel %vm1034, %v3569, 0
      %v3597 = vsel %vm1034, %v3570, 0
      %v3600 = vsel %vm1034, %v3571, 0
      %v3603 = vsel %vm1034, %v3572, 0
      %v3606 = vsel %vm1034, %v3573, 0
      %v3609 = vsel %vm1034, %v3574, 0
      %v3612 = vsel %vm1034, %v3575, 0
      %v3615 = vsel %vm1034, %v3576, 0
      %v3618 = vsel %vm1034, %v3577, 0
      %v3621 = vsel %vm1034, %v3578, 0
      %v3624 = vsel %vm1034, %v3579, 0
      %v3627 = vsel %vm1034, %v3580, 0
      %v3630 = vsel %vm791, %v3500, 0
      %3632 = vmatprep.subr.bf16.mxu0 0
      %3633 = vmatpush1.bf16.msra.mxu0 %v3630
      %3634 = vmatprep.subr.bf16.mxu0 0
      %3635 = vmatpush1.bf16.msra.mxu0 0
      %3636 = vmatprep.subr.bf16.mxu0 0
      %3637 = vmatpush1.bf16.msra.mxu0 0
      %3638 = vmatprep.subr.bf16.mxu0 0
      %3639 = vmatpush1.bf16.msra.mxu0 0
      %3640 = vmatprep.subr.bf16.mxu0 0
      %3641 = vmatpush1.bf16.msra.mxu0 0
      %3642 = vmatprep.subr.bf16.mxu0 0
      %3643 = vmatpush1.bf16.msra.mxu0 0
      %3644 = vmatprep.subr.bf16.mxu0 0
      %3645 = vmatpush1.bf16.msra.mxu0 0
      %3646 = vmatprep.subr.bf16.mxu0 0
      %3647 = vmatpush1.bf16.msra.mxu0 0
      %3648 = vmatprep.subr.bf16.mxu0 0
      %3649 = vmatpush1.bf16.msra.mxu0 0
      %3650 = vmatprep.subr.bf16.mxu0 0
      %3651 = vmatpush1.bf16.msra.mxu0 0
      %3652 = vmatprep.subr.bf16.mxu0 0
      %3653 = vmatpush1.bf16.msra.mxu0 0
      %3654 = vmatprep.subr.bf16.mxu0 0
      %3655 = vmatpush1.bf16.msra.mxu0 0
      %3656 = vmatprep.subr.bf16.mxu0 0
      %3657 = vmatpush1.bf16.msra.mxu0 0
      %3658 = vmatprep.subr.bf16.mxu0 0
      %3659 = vmatpush1.bf16.msra.mxu0 0
      %3660 = vmatprep.subr.bf16.mxu0 0
      %3661 = vmatpush1.bf16.msra.mxu0 0
      %3662 = vmatprep.subr.bf16.mxu0 0
      %3663 = vmatpush1.bf16.msra.mxu0 0
      %3664 = vmatprep.mubr.bf16.mxu0 0
      %3665 = vmatmul.mubr.bf16.gmra.mrb[0].mxu0 %v3582
      %v3666 = vpop.f32.mrb[0].mxu0
      %v3667 = vadd.f32 0.0, %v3666
      %v3668 = vpop.f32.mrb[0].mxu0
      %v3669 = vpop.f32.mrb[0].mxu0
      %v3670 = vadd.f32 0.0, %v3669
      %v3671 = vpop.f32.mrb[0].mxu0
      %3672 = vmatprep.mubr.bf16.mxu0 0
      %3673 = vmatmul.mubr.bf16.gmra.mrb[0].mxu0 %v3585
      %v3674 = vpop.f32.mrb[0].mxu0
      %v3675 = vadd.f32 0.0, %v3674
      %v3676 = vpop.f32.mrb[0].mxu0
      %v3677 = vpop.f32.mrb[0].mxu0
      %v3678 = vadd.f32 0.0, %v3677
      %v3679 = vpop.f32.mrb[0].mxu0
      %3680 = vmatprep.mubr.bf16.mxu0 0
      %3681 = vmatmul.mubr.bf16.gmra.mrb[0].mxu0 %v3588
      %v3682 = vpop.f32.mrb[0].mxu0
      %v3683 = vadd.f32 0.0, %v3682
      %v3684 = vpop.f32.mrb[0].mxu0
      %v3685 = vpop.f32.mrb[0].mxu0
      %v3686 = vadd.f32 0.0, %v3685
      %v3687 = vpop.f32.mrb[0].mxu0
      %3688 = vmatprep.mubr.bf16.mxu0 0
      %3689 = vmatmul.mubr.bf16.gmra.mrb[0].mxu0 %v3591
      %v3690 = vpop.f32.mrb[0].mxu0
      %v3691 = vadd.f32 0.0, %v3690
      %v3692 = vpop.f32.mrb[0].mxu0
      %v3693 = vpop.f32.mrb[0].mxu0
      %v3694 = vadd.f32 0.0, %v3693
      %v3695 = vpop.f32.mrb[0].mxu0
      %3696 = vmatprep.mubr.bf16.mxu0 0
      %3697 = vmatmul.mubr.bf16.gmra.mrb[0].mxu0 %v3594
      %v3698 = vpop.f32.mrb[0].mxu0
      %v3699 = vadd.f32 0.0, %v3698
      %v3700 = vpop.f32.mrb[0].mxu0
      %v3701 = vpop.f32.mrb[0].mxu0
      %v3702 = vadd.f32 0.0, %v3701
      %v3703 = vpop.f32.mrb[0].mxu0
      %3704 = vmatprep.mubr.bf16.mxu0 0
      %3705 = vmatmul.mubr.bf16.gmra.mrb[0].mxu0 %v3597
      %v3706 = vpop.f32.mrb[0].mxu0
      %v3707 = vadd.f32 0.0, %v3706
      %v3708 = vpop.f32.mrb[0].mxu0
      %v3709 = vpop.f32.mrb[0].mxu0
      %v3710 = vadd.f32 0.0, %v3709
      %v3711 = vpop.f32.mrb[0].mxu0
      %3712 = vmatprep.mubr.bf16.mxu0 0
      %3713 = vmatmul.mubr.bf16.gmra.mrb[0].mxu0 %v3600
      %v3714 = vpop.f32.mrb[0].mxu0
      %v3715 = vadd.f32 0.0, %v3714
      %v3716 = vpop.f32.mrb[0].mxu0
      %v3717 = vpop.f32.mrb[0].mxu0
      %v3718 = vadd.f32 0.0, %v3717
      %v3719 = vpop.f32.mrb[0].mxu0
      %3720 = vmatprep.mubr.bf16.mxu0 0
      %3721 = vmatmul.mubr.bf16.gmra.mrb[0].mxu0 %v3603
      %v3722 = vpop.f32.mrb[0].mxu0
      %v3723 = vadd.f32 0.0, %v3722
      %v3724 = vpop.f32.mrb[0].mxu0
      %v3725 = vpop.f32.mrb[0].mxu0
      %v3726 = vadd.f32 0.0, %v3725
      %v3727 = vpop.f32.mrb[0].mxu0
      %3728 = vmatprep.mubr.bf16.mxu0 0
      %3729 = vmatmul.mubr.bf16.gmra.mrb[0].mxu0 %v3606
      %v3730 = vpop.f32.mrb[0].mxu0
      %v3731 = vadd.f32 0.0, %v3730
      %v3732 = vpop.f32.mrb[0].mxu0
      %v3733 = vpop.f32.mrb[0].mxu0
      %v3734 = vadd.f32 0.0, %v3733
      %v3735 = vpop.f32.mrb[0].mxu0
      %3736 = vmatprep.mubr.bf16.mxu0 0
      %3737 = vmatmul.mubr.bf16.gmra.mrb[0].mxu0 %v3609
      %v3738 = vpop.f32.mrb[0].mxu0
      %v3739 = vadd.f32 0.0, %v3738
      %v3740 = vpop.f32.mrb[0].mxu0
      %v3741 = vpop.f32.mrb[0].mxu0
      %v3742 = vadd.f32 0.0, %v3741
      %v3743 = vpop.f32.mrb[0].mxu0
      %3744 = vmatprep.mubr.bf16.mxu0 0
      %3745 = vmatmul.mubr.bf16.gmra.mrb[0].mxu0 %v3612
      %v3746 = vpop.f32.mrb[0].mxu0
      %v3747 = vadd.f32 0.0, %v3746
      %v3748 = vpop.f32.mrb[0].mxu0
      %v3749 = vpop.f32.mrb[0].mxu0
      %v3750 = vadd.f32 0.0, %v3749
      %v3751 = vpop.f32.mrb[0].mxu0
      %3752 = vmatprep.mubr.bf16.mxu0 0
      %3753 = vmatmul.mubr.bf16.gmra.mrb[0].mxu0 %v3615
      %v3754 = vpop.f32.mrb[0].mxu0
      %v3755 = vadd.f32 0.0, %v3754
      %v3756 = vpop.f32.mrb[0].mxu0
      %v3757 = vpop.f32.mrb[0].mxu0
      %v3758 = vadd.f32 0.0, %v3757
      %v3759 = vpop.f32.mrb[0].mxu0
      %3760 = vmatprep.mubr.bf16.mxu0 0
      %3761 = vmatmul.mubr.bf16.gmra.mrb[0].mxu0 %v3618
      %v3762 = vpop.f32.mrb[0].mxu0
      %v3763 = vadd.f32 0.0, %v3762
      %v3764 = vpop.f32.mrb[0].mxu0
      %v3765 = vpop.f32.mrb[0].mxu0
      %v3766 = vadd.f32 0.0, %v3765
      %v3767 = vpop.f32.mrb[0].mxu0
      %3768 = vmatprep.mubr.bf16.mxu0 0
      %3769 = vmatmul.mubr.bf16.gmra.mrb[0].mxu0 %v3621
      %v3770 = vpop.f32.mrb[0].mxu0
      %v3771 = vadd.f32 0.0, %v3770
      %v3772 = vpop.f32.mrb[0].mxu0
      %v3773 = vpop.f32.mrb[0].mxu0
      %v3774 = vadd.f32 0.0, %v3773
      %v3775 = vpop.f32.mrb[0].mxu0
      %3776 = vmatprep.mubr.bf16.mxu0 0
      %3777 = vmatmul.mubr.bf16.gmra.mrb[0].mxu0 %v3624
      %v3778 = vpop.f32.mrb[0].mxu0
      %v3779 = vadd.f32 0.0, %v3778
      %v3780 = vpop.f32.mrb[0].mxu0
      %v3781 = vpop.f32.mrb[0].mxu0
      %v3782 = vadd.f32 0.0, %v3781
      %v3783 = vpop.f32.mrb[0].mxu0
      %3784 = vmatprep.mubr.bf16.mxu0 0
      %3785 = vmatmul.mubr.bf16.gmra.mrb[0].mxu0 %v3627
      %v3786 = vpop.f32.mrb[0].mxu0
      %v3787 = vadd.f32 0.0, %v3786
      %v3788 = vpop.f32.mrb[0].mxu0
      %v3789 = vpop.f32.mrb[0].mxu0
      %v3790 = vadd.f32 0.0, %v3789
      %v3791 = vpop.f32.mrb[0].mxu0
      %3792 = vdwg.mxu0
      %v3793 = vadd.f32 %v3435, %v3667
      %v3794 = vadd.f32 %v3436, %v3670
      %v3795 = vadd.f32 %v3437, %v3675
      %v3796 = vadd.f32 %v3438, %v3678
      %v3797 = vadd.f32 %v3439, %v3683
      %v3798 = vadd.f32 %v3440, %v3686
      %v3799 = vadd.f32 %v3441, %v3691
      %v3800 = vadd.f32 %v3442, %v3694
      %v3801 = vadd.f32 %v3443, %v3699
      %v3802 = vadd.f32 %v3444, %v3702
      %v3803 = vadd.f32 %v3445, %v3707
      %v3804 = vadd.f32 %v3446, %v3710
      %v3805 = vadd.f32 %v3447, %v3715
      %v3806 = vadd.f32 %v3448, %v3718
      %v3807 = vadd.f32 %v3449, %v3723
      %v3808 = vadd.f32 %v3450, %v3726
      %v3809 = vadd.f32 %v3451, %v3731
      %v3810 = vadd.f32 %v3452, %v3734
      %v3811 = vadd.f32 %v3453, %v3739
      %v3812 = vadd.f32 %v3454, %v3742
      %v3813 = vadd.f32 %v3455, %v3747
      %v3814 = vadd.f32 %v3456, %v3750
      %v3815 = vadd.f32 %v3457, %v3755
      %v3816 = vadd.f32 %v3458, %v3758
      %v3817 = vadd.f32 %v3459, %v3763
      %v3818 = vadd.f32 %v3460, %v3766
      %v3819 = vadd.f32 %v3461, %v3771
      %v3820 = vadd.f32 %v3462, %v3774
      %v3821 = vadd.f32 %v3463, %v3779
      %v3822 = vadd.f32 %v3464, %v3782
      %v3823 = vadd.f32 %v3465, %v3787
      %v3824 = vadd.f32 %v3466, %v3790
      %v3825 = vld [vmem:[%s1904] sm:$0xf]
      %v3826 = vld [vmem:[%s1904 + $0x4] sm:$0xf]
      %v3827 = vld [vmem:[%s1904 + $0x8] sm:$0x1]
      %v3828 = vld [vmem:[%s1904 + $0xc] sm:$0xf]
      %v3829 = vld [vmem:[%s1904 + $0x10] sm:$0xf]
      %v3830 = vld [vmem:[%s1904 + $0x14] sm:$0x1]
      %v3831 = vld [vmem:[%s1904 + $0x18] sm:$0xf]
      %v3832 = vld [vmem:[%s1904 + $0x1c] sm:$0xf]
      %v3833 = vld [vmem:[%s1904 + $0x20] sm:$0x1]
      %v3834 = vld [vmem:[%s1904 + $0x24] sm:$0xf]
      %v3835 = vld [vmem:[%s1904 + $0x28] sm:$0xf]
      %v3836 = vld [vmem:[%s1904 + $0x2c] sm:$0x1]
      %v3837 = vld [vmem:[%s1904 + $0x30] sm:$0xf]
      %v3838 = vld [vmem:[%s1904 + $0x34] sm:$0xf]
      %v3839 = vld [vmem:[%s1904 + $0x38] sm:$0x1]
      %v3840 = vld [vmem:[%s1904 + $0x3c] sm:$0xf]
      %v3841 = vld [vmem:[%s1904 + $0x40] sm:$0xf]
      %v3842 = vld [vmem:[%s1904 + $0x44] sm:$0x1]
      %v3843 = vld [vmem:[%s1904 + $0x48] sm:$0xf]
      %v3844 = vld [vmem:[%s1904 + $0x4c] sm:$0xf]
      %v3845 = vld [vmem:[%s1904 + $0x50] sm:$0x1]
      %v3846 = vld [vmem:[%s1904 + $0x54] sm:$0xf]
      %v3847 = vld [vmem:[%s1904 + $0x58] sm:$0xf]
      %v3848 = vld [vmem:[%s1904 + $0x5c] sm:$0x1]
      %v3849 = vld [vmem:[%s1904 + $0x60] sm:$0xf]
      %v3850 = vld [vmem:[%s1904 + $0x64] sm:$0xf]
      %v3851 = vld [vmem:[%s1904 + $0x68] sm:$0x1]
      %v3852 = vld [vmem:[%s1904 + $0x6c] sm:$0xf]
      %v3853 = vld [vmem:[%s1904 + $0x70] sm:$0xf]
      %v3854 = vld [vmem:[%s1904 + $0x74] sm:$0x1]
      %v3855 = vld [vmem:[%s1904 + $0x78] sm:$0xf]
      %v3856 = vld [vmem:[%s1904 + $0x7c] sm:$0xf]
      %v3857 = vld [vmem:[%s1904 + $0x80] sm:$0x1]
      %v3858 = vld [vmem:[%s1904 + $0x84] sm:$0xf]
      %v3859 = vld [vmem:[%s1904 + $0x88] sm:$0xf]
      %v3860 = vld [vmem:[%s1904 + $0x8c] sm:$0x1]
      %v3861 = vld [vmem:[%s1904 + $0x90] sm:$0xf]
      %v3862 = vld [vmem:[%s1904 + $0x94] sm:$0xf]
      %v3863 = vld [vmem:[%s1904 + $0x98] sm:$0x1]
      %v3864 = vld [vmem:[%s1904 + $0x9c] sm:$0xf]
      %v3865 = vld [vmem:[%s1904 + $0xa0] sm:$0xf]
      %v3866 = vld [vmem:[%s1904 + $0xa4] sm:$0x1]
      %v3867 = vld [vmem:[%s1904 + $0xa8] sm:$0xf]
      %v3868 = vld [vmem:[%s1904 + $0xac] sm:$0xf]
      %v3869 = vld [vmem:[%s1904 + $0xb0] sm:$0x1]
      %v3870 = vld [vmem:[%s1904 + $0xb4] sm:$0xf]
      %v3871 = vld [vmem:[%s1904 + $0xb8] sm:$0xf]
      %v3872 = vld [vmem:[%s1904 + $0xbc] sm:$0x1]
      %v3874 = vshrl.u32 %v3825, 16
      %v3876 = vrot.slane %v3874, 4
      %v3877 = vshll.u32 %v3825, 16
      %v3879 = vrot.slane %v3877, 5
      %v3880 = vor.u32 %v3876, %v3879
      %v3881 = vrot.slane %v3880, 4
      %v3883 = vshll.u32 %v3826, 16
      %v3885 = vrot.slane %v3883, 5
      %v3886 = vsel %vm2071, %v3881, %v3885
      %v3887 = vshrl.u32 %v3826, 16
      %v3889 = vrot.slane %v3887, 4
      %v3890 = vor.u32 %v3889, %v3885
      %v3891 = vrot.slane %v3890, 4
      %v3893 = vshll.u32 %v3827, 16
      %v3895 = vrot.slane %v3893, 5
      %v3896 = vsel %vm2071, %v3891, %v3895
      %v3898 = vshrl.u32 %v3828, 16
      %v3900 = vrot.slane %v3898, 4
      %v3901 = vshll.u32 %v3828, 16
      %v3903 = vrot.slane %v3901, 5
      %v3904 = vor.u32 %v3900, %v3903
      %v3905 = vrot.slane %v3904, 4
      %v3907 = vshll.u32 %v3829, 16
      %v3909 = vrot.slane %v3907, 5
      %v3910 = vsel %vm2071, %v3905, %v3909
      %v3911 = vshrl.u32 %v3829, 16
      %v3913 = vrot.slane %v3911, 4
      %v3914 = vor.u32 %v3913, %v3909
      %v3915 = vrot.slane %v3914, 4
      %v3917 = vshll.u32 %v3830, 16
      %v3919 = vrot.slane %v3917, 5
      %v3920 = vsel %vm2071, %v3915, %v3919
      %v3922 = vshrl.u32 %v3831, 16
      %v3924 = vrot.slane %v3922, 4
      %v3925 = vshll.u32 %v3831, 16
      %v3927 = vrot.slane %v3925, 5
      %v3928 = vor.u32 %v3924, %v3927
      %v3929 = vrot.slane %v3928, 4
      %v3931 = vshll.u32 %v3832, 16
      %v3933 = vrot.slane %v3931, 5
      %v3934 = vsel %vm2071, %v3929, %v3933
      %v3935 = vshrl.u32 %v3832, 16
      %v3937 = vrot.slane %v3935, 4
      %v3938 = vor.u32 %v3937, %v3933
      %v3939 = vrot.slane %v3938, 4
      %v3941 = vshll.u32 %v3833, 16
      %v3943 = vrot.slane %v3941, 5
      %v3944 = vsel %vm2071, %v3939, %v3943
      %v3946 = vshrl.u32 %v3834, 16
      %v3948 = vrot.slane %v3946, 4
      %v3949 = vshll.u32 %v3834, 16
      %v3951 = vrot.slane %v3949, 5
      %v3952 = vor.u32 %v3948, %v3951
      %v3953 = vrot.slane %v3952, 4
      %v3955 = vshll.u32 %v3835, 16
      %v3957 = vrot.slane %v3955, 5
      %v3958 = vsel %vm2071, %v3953, %v3957
      %v3959 = vshrl.u32 %v3835, 16
      %v3961 = vrot.slane %v3959, 4
      %v3962 = vor.u32 %v3961, %v3957
      %v3963 = vrot.slane %v3962, 4
      %v3965 = vshll.u32 %v3836, 16
      %v3967 = vrot.slane %v3965, 5
      %v3968 = vsel %vm2071, %v3963, %v3967
      %v3970 = vshrl.u32 %v3837, 16
      %v3972 = vrot.slane %v3970, 4
      %v3973 = vshll.u32 %v3837, 16
      %v3975 = vrot.slane %v3973, 5
      %v3976 = vor.u32 %v3972, %v3975
      %v3977 = vrot.slane %v3976, 4
      %v3979 = vshll.u32 %v3838, 16
      %v3981 = vrot.slane %v3979, 5
      %v3982 = vsel %vm2071, %v3977, %v3981
      %v3983 = vshrl.u32 %v3838, 16
      %v3985 = vrot.slane %v3983, 4
      %v3986 = vor.u32 %v3985, %v3981
      %v3987 = vrot.slane %v3986, 4
      %v3989 = vshll.u32 %v3839, 16
      %v3991 = vrot.slane %v3989, 5
      %v3992 = vsel %vm2071, %v3987, %v3991
      %v3994 = vshrl.u32 %v3840, 16
      %v3996 = vrot.slane %v3994, 4
      %v3997 = vshll.u32 %v3840, 16
      %v3999 = vrot.slane %v3997, 5
      %v4000 = vor.u32 %v3996, %v3999
      %v4001 = vrot.slane %v4000, 4
      %v4003 = vshll.u32 %v3841, 16
      %v4005 = vrot.slane %v4003, 5
      %v4006 = vsel %vm2071, %v4001, %v4005
      %v4007 = vshrl.u32 %v3841, 16
      %v4009 = vrot.slane %v4007, 4
      %v4010 = vor.u32 %v4009, %v4005
      %v4011 = vrot.slane %v4010, 4
      %v4013 = vshll.u32 %v3842, 16
      %v4015 = vrot.slane %v4013, 5
      %v4016 = vsel %vm2071, %v4011, %v4015
      %v4018 = vshrl.u32 %v3843, 16
      %v4020 = vrot.slane %v4018, 4
      %v4021 = vshll.u32 %v3843, 16
      %v4023 = vrot.slane %v4021, 5
      %v4024 = vor.u32 %v4020, %v4023
      %v4025 = vrot.slane %v4024, 4
      %v4027 = vshll.u32 %v3844, 16
      %v4029 = vrot.slane %v4027, 5
      %v4030 = vsel %vm2071, %v4025, %v4029
      %v4031 = vshrl.u32 %v3844, 16
      %v4033 = vrot.slane %v4031, 4
      %v4034 = vor.u32 %v4033, %v4029
      %v4035 = vrot.slane %v4034, 4
      %v4037 = vshll.u32 %v3845, 16
      %v4039 = vrot.slane %v4037, 5
      %v4040 = vsel %vm2071, %v4035, %v4039
      %v4042 = vshrl.u32 %v3846, 16
      %v4044 = vrot.slane %v4042, 4
      %v4045 = vshll.u32 %v3846, 16
      %v4047 = vrot.slane %v4045, 5
      %v4048 = vor.u32 %v4044, %v4047
      %v4049 = vrot.slane %v4048, 4
      %v4051 = vshll.u32 %v3847, 16
      %v4053 = vrot.slane %v4051, 5
      %v4054 = vsel %vm2071, %v4049, %v4053
      %v4055 = vshrl.u32 %v3847, 16
      %v4057 = vrot.slane %v4055, 4
      %v4058 = vor.u32 %v4057, %v4053
      %v4059 = vrot.slane %v4058, 4
      %v4061 = vshll.u32 %v3848, 16
      %v4063 = vrot.slane %v4061, 5
      %v4064 = vsel %vm2071, %v4059, %v4063
      %v4066 = vshrl.u32 %v3849, 16
      %v4068 = vrot.slane %v4066, 4
      %v4069 = vshll.u32 %v3849, 16
      %v4071 = vrot.slane %v4069, 5
      %v4072 = vor.u32 %v4068, %v4071
      %v4073 = vrot.slane %v4072, 4
      %v4075 = vshll.u32 %v3850, 16
      %v4077 = vrot.slane %v4075, 5
      %v4078 = vsel %vm2071, %v4073, %v4077
      %v4079 = vshrl.u32 %v3850, 16
      %v4081 = vrot.slane %v4079, 4
      %v4082 = vor.u32 %v4081, %v4077
      %v4083 = vrot.slane %v4082, 4
      %v4085 = vshll.u32 %v3851, 16
      %v4087 = vrot.slane %v4085, 5
      %v4088 = vsel %vm2071, %v4083, %v4087
      %v4090 = vshrl.u32 %v3852, 16
      %v4092 = vrot.slane %v4090, 4
      %v4093 = vshll.u32 %v3852, 16
      %v4095 = vrot.slane %v4093, 5
      %v4096 = vor.u32 %v4092, %v4095
      %v4097 = vrot.slane %v4096, 4
      %v4099 = vshll.u32 %v3853, 16
      %v4101 = vrot.slane %v4099, 5
      %v4102 = vsel %vm2071, %v4097, %v4101
      %v4103 = vshrl.u32 %v3853, 16
      %v4105 = vrot.slane %v4103, 4
      %v4106 = vor.u32 %v4105, %v4101
      %v4107 = vrot.slane %v4106, 4
      %v4109 = vshll.u32 %v3854, 16
      %v4111 = vrot.slane %v4109, 5
      %v4112 = vsel %vm2071, %v4107, %v4111
      %v4114 = vshrl.u32 %v3855, 16
      %v4116 = vrot.slane %v4114, 4
      %v4117 = vshll.u32 %v3855, 16
      %v4119 = vrot.slane %v4117, 5
      %v4120 = vor.u32 %v4116, %v4119
      %v4121 = vrot.slane %v4120, 4
      %v4123 = vshll.u32 %v3856, 16
      %v4125 = vrot.slane %v4123, 5
      %v4126 = vsel %vm2071, %v4121, %v4125
      %v4127 = vshrl.u32 %v3856, 16
      %v4129 = vrot.slane %v4127, 4
      %v4130 = vor.u32 %v4129, %v4125
      %v4131 = vrot.slane %v4130, 4
      %v4133 = vshll.u32 %v3857, 16
      %v4135 = vrot.slane %v4133, 5
      %v4136 = vsel %vm2071, %v4131, %v4135
      %v4138 = vshrl.u32 %v3858, 16
      %v4140 = vrot.slane %v4138, 4
      %v4141 = vshll.u32 %v3858, 16
      %v4143 = vrot.slane %v4141, 5
      %v4144 = vor.u32 %v4140, %v4143
      %v4145 = vrot.slane %v4144, 4
      %v4147 = vshll.u32 %v3859, 16
      %v4149 = vrot.slane %v4147, 5
      %v4150 = vsel %vm2071, %v4145, %v4149
      %v4151 = vshrl.u32 %v3859, 16
      %v4153 = vrot.slane %v4151, 4
      %v4154 = vor.u32 %v4153, %v4149
      %v4155 = vrot.slane %v4154, 4
      %v4157 = vshll.u32 %v3860, 16
      %v4159 = vrot.slane %v4157, 5
      %v4160 = vsel %vm2071, %v4155, %v4159
      %v4162 = vshrl.u32 %v3861, 16
      %v4164 = vrot.slane %v4162, 4
      %v4165 = vshll.u32 %v3861, 16
      %v4167 = vrot.slane %v4165, 5
      %v4168 = vor.u32 %v4164, %v4167
      %v4169 = vrot.slane %v4168, 4
      %v4171 = vshll.u32 %v3862, 16
      %v4173 = vrot.slane %v4171, 5
      %v4174 = vsel %vm2071, %v4169, %v4173
      %v4175 = vshrl.u32 %v3862, 16
      %v4177 = vrot.slane %v4175, 4
      %v4178 = vor.u32 %v4177, %v4173
      %v4179 = vrot.slane %v4178, 4
      %v4181 = vshll.u32 %v3863, 16
      %v4183 = vrot.slane %v4181, 5
      %v4184 = vsel %vm2071, %v4179, %v4183
      %v4186 = vshrl.u32 %v3864, 16
      %v4188 = vrot.slane %v4186, 4
      %v4189 = vshll.u32 %v3864, 16
      %v4191 = vrot.slane %v4189, 5
      %v4192 = vor.u32 %v4188, %v4191
      %v4193 = vrot.slane %v4192, 4
      %v4195 = vshll.u32 %v3865, 16
      %v4197 = vrot.slane %v4195, 5
      %v4198 = vsel %vm2071, %v4193, %v4197
      %v4199 = vshrl.u32 %v3865, 16
      %v4201 = vrot.slane %v4199, 4
      %v4202 = vor.u32 %v4201, %v4197
      %v4203 = vrot.slane %v4202, 4
      %v4205 = vshll.u32 %v3866, 16
      %v4207 = vrot.slane %v4205, 5
      %v4208 = vsel %vm2071, %v4203, %v4207
      %v4210 = vshrl.u32 %v3867, 16
      %v4212 = vrot.slane %v4210, 4
      %v4213 = vshll.u32 %v3867, 16
      %v4215 = vrot.slane %v4213, 5
      %v4216 = vor.u32 %v4212, %v4215
      %v4217 = vrot.slane %v4216, 4
      %v4219 = vshll.u32 %v3868, 16
      %v4221 = vrot.slane %v4219, 5
      %v4222 = vsel %vm2071, %v4217, %v4221
      %v4223 = vshrl.u32 %v3868, 16
      %v4225 = vrot.slane %v4223, 4
      %v4226 = vor.u32 %v4225, %v4221
      %v4227 = vrot.slane %v4226, 4
      %v4229 = vshll.u32 %v3869, 16
      %v4231 = vrot.slane %v4229, 5
      %v4232 = vsel %vm2071, %v4227, %v4231
      %v4234 = vshrl.u32 %v3870, 16
      %v4236 = vrot.slane %v4234, 4
      %v4237 = vshll.u32 %v3870, 16
      %v4239 = vrot.slane %v4237, 5
      %v4240 = vor.u32 %v4236, %v4239
      %v4241 = vrot.slane %v4240, 4
      %v4243 = vshll.u32 %v3871, 16
      %v4245 = vrot.slane %v4243, 5
      %v4246 = vsel %vm2071, %v4241, %v4245
      %v4247 = vshrl.u32 %v3871, 16
      %v4249 = vrot.slane %v4247, 4
      %v4250 = vor.u32 %v4249, %v4245
      %v4251 = vrot.slane %v4250, 4
      %v4253 = vshll.u32 %v3872, 16
      %v4255 = vrot.slane %v4253, 5
      %v4256 = vsel %vm2071, %v4251, %v4255
      %s4257 = scalar_lea.vmem %s7, 16
      %v4258 = vld [vmem:[%s4257] sm:$0xf]
      %v4259 = vunpack.c.l.b16 %v3886
      %v4260 = vunpack.c.l.b16 %v3896
      %v4261 = vunpack.c.l.b16 %v3910
      %v4262 = vunpack.c.l.b16 %v3920
      %v4263 = vunpack.c.l.b16 %v3934
      %v4264 = vunpack.c.l.b16 %v3944
      %v4265 = vunpack.c.l.b16 %v3958
      %v4266 = vunpack.c.l.b16 %v3968
      %v4267 = vunpack.c.l.b16 %v3982
      %v4268 = vunpack.c.l.b16 %v3992
      %v4269 = vunpack.c.l.b16 %v4006
      %v4270 = vunpack.c.l.b16 %v4016
      %v4271 = vunpack.c.l.b16 %v4030
      %v4272 = vunpack.c.l.b16 %v4040
      %v4273 = vunpack.c.l.b16 %v4054
      %v4274 = vunpack.c.l.b16 %v4064
      %v4275 = vunpack.c.l.b16 %v4078
      %v4276 = vunpack.c.l.b16 %v4088
      %v4277 = vunpack.c.l.b16 %v4102
      %v4278 = vunpack.c.l.b16 %v4112
      %v4279 = vunpack.c.l.b16 %v4126
      %v4280 = vunpack.c.l.b16 %v4136
      %v4281 = vunpack.c.l.b16 %v4150
      %v4282 = vunpack.c.l.b16 %v4160
      %v4283 = vunpack.c.l.b16 %v4174
      %v4284 = vunpack.c.l.b16 %v4184
      %v4285 = vunpack.c.l.b16 %v4198
      %v4286 = vunpack.c.l.b16 %v4208
      %v4287 = vunpack.c.l.b16 %v4222
      %v4288 = vunpack.c.l.b16 %v4232
      %v4289 = vunpack.c.l.b16 %v4246
      %v4290 = vunpack.c.l.b16 %v4256
      %v4291 = vpack.c.b16 %v4260, %v4259
      %v4292 = vpack.c.b16 %v4262, %v4261
      %v4293 = vpack.c.b16 %v4264, %v4263
      %v4294 = vpack.c.b16 %v4266, %v4265
      %v4295 = vpack.c.b16 %v4268, %v4267
      %v4296 = vpack.c.b16 %v4270, %v4269
      %v4297 = vpack.c.b16 %v4272, %v4271
      %v4298 = vpack.c.b16 %v4274, %v4273
      %v4299 = vpack.c.b16 %v4276, %v4275
      %v4300 = vpack.c.b16 %v4278, %v4277
      %v4301 = vpack.c.b16 %v4280, %v4279
      %v4302 = vpack.c.b16 %v4282, %v4281
      %v4303 = vpack.c.b16 %v4284, %v4283
      %v4304 = vpack.c.b16 %v4286, %v4285
      %v4305 = vpack.c.b16 %v4288, %v4287
      %v4306 = vpack.c.b16 %v4290, %v4289
      %v4308 = vsel %vm1034, %v4291, 0
      %v4311 = vsel %vm1034, %v4292, 0
      %v4314 = vsel %vm1034, %v4293, 0
      %v4317 = vsel %vm1034, %v4294, 0
      %v4320 = vsel %vm1034, %v4295, 0
      %v4323 = vsel %vm1034, %v4296, 0
      %v4326 = vsel %vm1034, %v4297, 0
      %v4329 = vsel %vm1034, %v4298, 0
      %v4332 = vsel %vm1034, %v4299, 0
      %v4335 = vsel %vm1034, %v4300, 0
      %v4338 = vsel %vm1034, %v4301, 0
      %v4341 = vsel %vm1034, %v4302, 0
      %v4344 = vsel %vm1034, %v4303, 0
      %v4347 = vsel %vm1034, %v4304, 0
      %v4350 = vsel %vm1034, %v4305, 0
      %v4353 = vsel %vm1034, %v4306, 0
      %v4356 = vsel %vm791, %v4258, 0
      %4358 = vmatprep.subr.bf16.mxu0 0
      %4359 = vmatpush1.bf16.msra.mxu0 %v4356
      %4360 = vmatprep.subr.bf16.mxu0 0
      %4361 = vmatpush1.bf16.msra.mxu0 0
      %4362 = vmatprep.subr.bf16.mxu0 0
      %4363 = vmatpush1.bf16.msra.mxu0 0
      %4364 = vmatprep.subr.bf16.mxu0 0
      %4365 = vmatpush1.bf16.msra.mxu0 0
      %4366 = vmatprep.subr.bf16.mxu0 0
      %4367 = vmatpush1.bf16.msra.mxu0 0
      %4368 = vmatprep.subr.bf16.mxu0 0
      %4369 = vmatpush1.bf16.msra.mxu0 0
      %4370 = vmatprep.subr.bf16.mxu0 0
      %4371 = vmatpush1.bf16.msra.mxu0 0
      %4372 = vmatprep.subr.bf16.mxu0 0
      %4373 = vmatpush1.bf16.msra.mxu0 0
      %4374 = vmatprep.subr.bf16.mxu0 0
      %4375 = vmatpush1.bf16.msra.mxu0 0
      %4376 = vmatprep.subr.bf16.mxu0 0
      %4377 = vmatpush1.bf16.msra.mxu0 0
      %4378 = vmatprep.subr.bf16.mxu0 0
      %4379 = vmatpush1.bf16.msra.mxu0 0
      %4380 = vmatprep.subr.bf16.mxu0 0
      %4381 = vmatpush1.bf16.msra.mxu0 0
      %4382 = vmatprep.subr.bf16.mxu0 0
      %4383 = vmatpush1.bf16.msra.mxu0 0
      %4384 = vmatprep.subr.bf16.mxu0 0
      %4385 = vmatpush1.bf16.msra.mxu0 0
      %4386 = vmatprep.subr.bf16.mxu0 0
      %4387 = vmatpush1.bf16.msra.mxu0 0
      %4388 = vmatprep.subr.bf16.mxu0 0
      %4389 = vmatpush1.bf16.msra.mxu0 0
      %4390 = vmatprep.mubr.bf16.mxu0 0
      %4391 = vmatmul.mubr.bf16.gmra.mrb[0].mxu0 %v4308
      %v4392 = vpop.f32.mrb[0].mxu0
      %v4393 = vadd.f32 0.0, %v4392
      %v4394 = vpop.f32.mrb[0].mxu0
      %v4395 = vpop.f32.mrb[0].mxu0
      %v4396 = vadd.f32 0.0, %v4395
      %v4397 = vpop.f32.mrb[0].mxu0
      %4398 = vmatprep.mubr.bf16.mxu0 0
      %4399 = vmatmul.mubr.bf16.gmra.mrb[0].mxu0 %v4311
      %v4400 = vpop.f32.mrb[0].mxu0
      %v4401 = vadd.f32 0.0, %v4400
      %v4402 = vpop.f32.mrb[0].mxu0
      %v4403 = vpop.f32.mrb[0].mxu0
      %v4404 = vadd.f32 0.0, %v4403
      %v4405 = vpop.f32.mrb[0].mxu0
      %4406 = vmatprep.mubr.bf16.mxu0 0
      %4407 = vmatmul.mubr.bf16.gmra.mrb[0].mxu0 %v4314
      %v4408 = vpop.f32.mrb[0].mxu0
      %v4409 = vadd.f32 0.0, %v4408
      %v4410 = vpop.f32.mrb[0].mxu0
      %v4411 = vpop.f32.mrb[0].mxu0
      %v4412 = vadd.f32 0.0, %v4411
      %v4413 = vpop.f32.mrb[0].mxu0
      %4414 = vmatprep.mubr.bf16.mxu0 0
      %4415 = vmatmul.mubr.bf16.gmra.mrb[0].mxu0 %v4317
      %v4416 = vpop.f32.mrb[0].mxu0
      %v4417 = vadd.f32 0.0, %v4416
      %v4418 = vpop.f32.mrb[0].mxu0
      %v4419 = vpop.f32.mrb[0].mxu0
      %v4420 = vadd.f32 0.0, %v4419
      %v4421 = vpop.f32.mrb[0].mxu0
      %4422 = vmatprep.mubr.bf16.mxu0 0
      %4423 = vmatmul.mubr.bf16.gmra.mrb[0].mxu0 %v4320
      %v4424 = vpop.f32.mrb[0].mxu0
      %v4425 = vadd.f32 0.0, %v4424
      %v4426 = vpop.f32.mrb[0].mxu0
      %v4427 = vpop.f32.mrb[0].mxu0
      %v4428 = vadd.f32 0.0, %v4427
      %v4429 = vpop.f32.mrb[0].mxu0
      %4430 = vmatprep.mubr.bf16.mxu0 0
      %4431 = vmatmul.mubr.bf16.gmra.mrb[0].mxu0 %v4323
      %v4432 = vpop.f32.mrb[0].mxu0
      %v4433 = vadd.f32 0.0, %v4432
      %v4434 = vpop.f32.mrb[0].mxu0
      %v4435 = vpop.f32.mrb[0].mxu0
      %v4436 = vadd.f32 0.0, %v4435
      %v4437 = vpop.f32.mrb[0].mxu0
      %4438 = vmatprep.mubr.bf16.mxu0 0
      %4439 = vmatmul.mubr.bf16.gmra.mrb[0].mxu0 %v4326
      %v4440 = vpop.f32.mrb[0].mxu0
      %v4441 = vadd.f32 0.0, %v4440
      %v4442 = vpop.f32.mrb[0].mxu0
      %v4443 = vpop.f32.mrb[0].mxu0
      %v4444 = vadd.f32 0.0, %v4443
      %v4445 = vpop.f32.mrb[0].mxu0
      %4446 = vmatprep.mubr.bf16.mxu0 0
      %4447 = vmatmul.mubr.bf16.gmra.mrb[0].mxu0 %v4329
      %v4448 = vpop.f32.mrb[0].mxu0
      %v4449 = vadd.f32 0.0, %v4448
      %v4450 = vpop.f32.mrb[0].mxu0
      %v4451 = vpop.f32.mrb[0].mxu0
      %v4452 = vadd.f32 0.0, %v4451
      %v4453 = vpop.f32.mrb[0].mxu0
      %4454 = vmatprep.mubr.bf16.mxu0 0
      %4455 = vmatmul.mubr.bf16.gmra.mrb[0].mxu0 %v4332
      %v4456 = vpop.f32.mrb[0].mxu0
      %v4457 = vadd.f32 0.0, %v4456
      %v4458 = vpop.f32.mrb[0].mxu0
      %v4459 = vpop.f32.mrb[0].mxu0
      %v4460 = vadd.f32 0.0, %v4459
      %v4461 = vpop.f32.mrb[0].mxu0
      %4462 = vmatprep.mubr.bf16.mxu0 0
      %4463 = vmatmul.mubr.bf16.gmra.mrb[0].mxu0 %v4335
      %v4464 = vpop.f32.mrb[0].mxu0
      %v4465 = vadd.f32 0.0, %v4464
      %v4466 = vpop.f32.mrb[0].mxu0
      %v4467 = vpop.f32.mrb[0].mxu0
      %v4468 = vadd.f32 0.0, %v4467
      %v4469 = vpop.f32.mrb[0].mxu0
      %4470 = vmatprep.mubr.bf16.mxu0 0
      %4471 = vmatmul.mubr.bf16.gmra.mrb[0].mxu0 %v4338
      %v4472 = vpop.f32.mrb[0].mxu0
      %v4473 = vadd.f32 0.0, %v4472
      %v4474 = vpop.f32.mrb[0].mxu0
      %v4475 = vpop.f32.mrb[0].mxu0
      %v4476 = vadd.f32 0.0, %v4475
      %v4477 = vpop.f32.mrb[0].mxu0
      %4478 = vmatprep.mubr.bf16.mxu0 0
      %4479 = vmatmul.mubr.bf16.gmra.mrb[0].mxu0 %v4341
      %v4480 = vpop.f32.mrb[0].mxu0
      %v4481 = vadd.f32 0.0, %v4480
      %v4482 = vpop.f32.mrb[0].mxu0
      %v4483 = vpop.f32.mrb[0].mxu0
      %v4484 = vadd.f32 0.0, %v4483
      %v4485 = vpop.f32.mrb[0].mxu0
      %4486 = vmatprep.mubr.bf16.mxu0 0
      %4487 = vmatmul.mubr.bf16.gmra.mrb[0].mxu0 %v4344
      %v4488 = vpop.f32.mrb[0].mxu0
      %v4489 = vadd.f32 0.0, %v4488
      %v4490 = vpop.f32.mrb[0].mxu0
      %v4491 = vpop.f32.mrb[0].mxu0
      %v4492 = vadd.f32 0.0, %v4491
      %v4493 = vpop.f32.mrb[0].mxu0
      %4494 = vmatprep.mubr.bf16.mxu0 0
      %4495 = vmatmul.mubr.bf16.gmra.mrb[0].mxu0 %v4347
      %v4496 = vpop.f32.mrb[0].mxu0
      %v4497 = vadd.f32 0.0, %v4496
      %v4498 = vpop.f32.mrb[0].mxu0
      %v4499 = vpop.f32.mrb[0].mxu0
      %v4500 = vadd.f32 0.0, %v4499
      %v4501 = vpop.f32.mrb[0].mxu0
      %4502 = vmatprep.mubr.bf16.mxu0 0
      %4503 = vmatmul.mubr.bf16.gmra.mrb[0].mxu0 %v4350
      %v4504 = vpop.f32.mrb[0].mxu0
      %v4505 = vadd.f32 0.0, %v4504
      %v4506 = vpop.f32.mrb[0].mxu0
      %v4507 = vpop.f32.mrb[0].mxu0
      %v4508 = vadd.f32 0.0, %v4507
      %v4509 = vpop.f32.mrb[0].mxu0
      %4510 = vmatprep.mubr.bf16.mxu0 0
      %4511 = vmatmul.mubr.bf16.gmra.mrb[0].mxu0 %v4353
      %v4512 = vpop.f32.mrb[0].mxu0
      %v4513 = vadd.f32 0.0, %v4512
      %v4514 = vpop.f32.mrb[0].mxu0
      %v4515 = vpop.f32.mrb[0].mxu0
      %v4516 = vadd.f32 0.0, %v4515
      %v4517 = vpop.f32.mrb[0].mxu0
      %4518 = vdwg.mxu0
      %v4519 = vadd.f32 %v3793, %v4393
      %v4520 = vadd.f32 %v3794, %v4396
      %v4521 = vadd.f32 %v3795, %v4401
      %v4522 = vadd.f32 %v3796, %v4404
      %v4523 = vadd.f32 %v3797, %v4409
      %v4524 = vadd.f32 %v3798, %v4412
      %v4525 = vadd.f32 %v3799, %v4417
      %v4526 = vadd.f32 %v3800, %v4420
      %v4527 = vadd.f32 %v3801, %v4425
      %v4528 = vadd.f32 %v3802, %v4428
      %v4529 = vadd.f32 %v3803, %v4433
      %v4530 = vadd.f32 %v3804, %v4436
      %v4531 = vadd.f32 %v3805, %v4441
      %v4532 = vadd.f32 %v3806, %v4444
      %v4533 = vadd.f32 %v3807, %v4449
      %v4534 = vadd.f32 %v3808, %v4452
      %v4535 = vadd.f32 %v3809, %v4457
      %v4536 = vadd.f32 %v3810, %v4460
      %v4537 = vadd.f32 %v3811, %v4465
      %v4538 = vadd.f32 %v3812, %v4468
      %v4539 = vadd.f32 %v3813, %v4473
      %v4540 = vadd.f32 %v3814, %v4476
      %v4541 = vadd.f32 %v3815, %v4481
      %v4542 = vadd.f32 %v3816, %v4484
      %v4543 = vadd.f32 %v3817, %v4489
      %v4544 = vadd.f32 %v3818, %v4492
      %v4545 = vadd.f32 %v3819, %v4497
      %v4546 = vadd.f32 %v3820, %v4500
      %v4547 = vadd.f32 %v3821, %v4505
      %v4548 = vadd.f32 %v3822, %v4508
      %v4549 = vadd.f32 %v3823, %v4513
      %v4550 = vadd.f32 %v3824, %v4516
      %v4551 = vld [vmem:[%s1904] sm:$0xe]
      %v4552 = vld [vmem:[%s1904 + $0xc] sm:$0xe]
      %v4553 = vld [vmem:[%s1904 + $0x18] sm:$0xe]
      %v4554 = vld [vmem:[%s1904 + $0x24] sm:$0xe]
      %v4555 = vld [vmem:[%s1904 + $0x30] sm:$0xe]
      %v4556 = vld [vmem:[%s1904 + $0x3c] sm:$0xe]
      %v4557 = vld [vmem:[%s1904 + $0x48] sm:$0xe]
      %v4558 = vld [vmem:[%s1904 + $0x54] sm:$0xe]
      %v4559 = vld [vmem:[%s1904 + $0x60] sm:$0xe]
      %v4560 = vld [vmem:[%s1904 + $0x6c] sm:$0xe]
      %v4561 = vld [vmem:[%s1904 + $0x78] sm:$0xe]
      %v4562 = vld [vmem:[%s1904 + $0x84] sm:$0xe]
      %v4563 = vld [vmem:[%s1904 + $0x90] sm:$0xe]
      %v4564 = vld [vmem:[%s1904 + $0x9c] sm:$0xe]
      %v4565 = vld [vmem:[%s1904 + $0xa8] sm:$0xe]
      %v4566 = vld [vmem:[%s1904 + $0xb4] sm:$0xe]
      %v4615 = vrot.slane %v4551, 5
      %v4616 = vrot.slane %v4615, 4
      %v4617 = vrot.slane %v3826, 5
      %v4618 = vsel %vm3060, %v4616, %v4617
      %v4619 = vrot.slane %v4617, 4
      %v4620 = vrot.slane %v3827, 5
      %v4621 = vsel %vm3060, %v4619, %v4620
      %v4622 = vrot.slane %v4552, 5
      %v4623 = vrot.slane %v4622, 4
      %v4624 = vrot.slane %v3829, 5
      %v4625 = vsel %vm3060, %v4623, %v4624
      %v4626 = vrot.slane %v4624, 4
      %v4627 = vrot.slane %v3830, 5
      %v4628 = vsel %vm3060, %v4626, %v4627
      %v4629 = vrot.slane %v4553, 5
      %v4630 = vrot.slane %v4629, 4
      %v4631 = vrot.slane %v3832, 5
      %v4632 = vsel %vm3060, %v4630, %v4631
      %v4633 = vrot.slane %v4631, 4
      %v4634 = vrot.slane %v3833, 5
      %v4635 = vsel %vm3060, %v4633, %v4634
      %v4636 = vrot.slane %v4554, 5
      %v4637 = vrot.slane %v4636, 4
      %v4638 = vrot.slane %v3835, 5
      %v4639 = vsel %vm3060, %v4637, %v4638
      %v4640 = vrot.slane %v4638, 4
      %v4641 = vrot.slane %v3836, 5
      %v4642 = vsel %vm3060, %v4640, %v4641
      %v4643 = vrot.slane %v4555, 5
      %v4644 = vrot.slane %v4643, 4
      %v4645 = vrot.slane %v3838, 5
      %v4646 = vsel %vm3060, %v4644, %v4645
      %v4647 = vrot.slane %v4645, 4
      %v4648 = vrot.slane %v3839, 5
      %v4649 = vsel %vm3060, %v4647, %v4648
      %v4650 = vrot.slane %v4556, 5
      %v4651 = vrot.slane %v4650, 4
      %v4652 = vrot.slane %v3841, 5
      %v4653 = vsel %vm3060, %v4651, %v4652
      %v4654 = vrot.slane %v4652, 4
      %v4655 = vrot.slane %v3842, 5
      %v4656 = vsel %vm3060, %v4654, %v4655
      %v4657 = vrot.slane %v4557, 5
      %v4658 = vrot.slane %v4657, 4
      %v4659 = vrot.slane %v3844, 5
      %v4660 = vsel %vm3060, %v4658, %v4659
      %v4661 = vrot.slane %v4659, 4
      %v4662 = vrot.slane %v3845, 5
      %v4663 = vsel %vm3060, %v4661, %v4662
      %v4664 = vrot.slane %v4558, 5
      %v4665 = vrot.slane %v4664, 4
      %v4666 = vrot.slane %v3847, 5
      %v4667 = vsel %vm3060, %v4665, %v4666
      %v4668 = vrot.slane %v4666, 4
      %v4669 = vrot.slane %v3848, 5
      %v4670 = vsel %vm3060, %v4668, %v4669
      %v4671 = vrot.slane %v4559, 5
      %v4672 = vrot.slane %v4671, 4
      %v4673 = vrot.slane %v3850, 5
      %v4674 = vsel %vm3060, %v4672, %v4673
      %v4675 = vrot.slane %v4673, 4
      %v4676 = vrot.slane %v3851, 5
      %v4677 = vsel %vm3060, %v4675, %v4676
      %v4678 = vrot.slane %v4560, 5
      %v4679 = vrot.slane %v4678, 4
      %v4680 = vrot.slane %v3853, 5
      %v4681 = vsel %vm3060, %v4679, %v4680
      %v4682 = vrot.slane %v4680, 4
      %v4683 = vrot.slane %v3854, 5
      %v4684 = vsel %vm3060, %v4682, %v4683
      %v4685 = vrot.slane %v4561, 5
      %v4686 = vrot.slane %v4685, 4
      %v4687 = vrot.slane %v3856, 5
      %v4688 = vsel %vm3060, %v4686, %v4687
      %v4689 = vrot.slane %v4687, 4
      %v4690 = vrot.slane %v3857, 5
      %v4691 = vsel %vm3060, %v4689, %v4690
      %v4692 = vrot.slane %v4562, 5
      %v4693 = vrot.slane %v4692, 4
      %v4694 = vrot.slane %v3859, 5
      %v4695 = vsel %vm3060, %v4693, %v4694
      %v4696 = vrot.slane %v4694, 4
      %v4697 = vrot.slane %v3860, 5
      %v4698 = vsel %vm3060, %v4696, %v4697
      %v4699 = vrot.slane %v4563, 5
      %v4700 = vrot.slane %v4699, 4
      %v4701 = vrot.slane %v3862, 5
      %v4702 = vsel %vm3060, %v4700, %v4701
      %v4703 = vrot.slane %v4701, 4
      %v4704 = vrot.slane %v3863, 5
      %v4705 = vsel %vm3060, %v4703, %v4704
      %v4706 = vrot.slane %v4564, 5
      %v4707 = vrot.slane %v4706, 4
      %v4708 = vrot.slane %v3865, 5
      %v4709 = vsel %vm3060, %v4707, %v4708
      %v4710 = vrot.slane %v4708, 4
      %v4711 = vrot.slane %v3866, 5
      %v4712 = vsel %vm3060, %v4710, %v4711
      %v4713 = vrot.slane %v4565, 5
      %v4714 = vrot.slane %v4713, 4
      %v4715 = vrot.slane %v3868, 5
      %v4716 = vsel %vm3060, %v4714, %v4715
      %v4717 = vrot.slane %v4715, 4
      %v4718 = vrot.slane %v3869, 5
      %v4719 = vsel %vm3060, %v4717, %v4718
      %v4720 = vrot.slane %v4566, 5
      %v4721 = vrot.slane %v4720, 4
      %v4722 = vrot.slane %v3871, 5
      %v4723 = vsel %vm3060, %v4721, %v4722
      %v4724 = vrot.slane %v4722, 4
      %v4725 = vrot.slane %v3872, 5
      %v4726 = vsel %vm3060, %v4724, %v4725
      %s4727 = scalar_lea.vmem %s7, 20
      %v4728 = vld [vmem:[%s4727] sm:$0xf]
      %v4729 = vunpack.c.l.b16 %v4618
      %v4730 = vunpack.c.l.b16 %v4621
      %v4731 = vunpack.c.l.b16 %v4625
      %v4732 = vunpack.c.l.b16 %v4628
      %v4733 = vunpack.c.l.b16 %v4632
      %v4734 = vunpack.c.l.b16 %v4635
      %v4735 = vunpack.c.l.b16 %v4639
      %v4736 = vunpack.c.l.b16 %v4642
      %v4737 = vunpack.c.l.b16 %v4646
      %v4738 = vunpack.c.l.b16 %v4649
      %v4739 = vunpack.c.l.b16 %v4653
      %v4740 = vunpack.c.l.b16 %v4656
      %v4741 = vunpack.c.l.b16 %v4660
      %v4742 = vunpack.c.l.b16 %v4663
      %v4743 = vunpack.c.l.b16 %v4667
      %v4744 = vunpack.c.l.b16 %v4670
      %v4745 = vunpack.c.l.b16 %v4674
      %v4746 = vunpack.c.l.b16 %v4677
      %v4747 = vunpack.c.l.b16 %v4681
      %v4748 = vunpack.c.l.b16 %v4684
      %v4749 = vunpack.c.l.b16 %v4688
      %v4750 = vunpack.c.l.b16 %v4691
      %v4751 = vunpack.c.l.b16 %v4695
      %v4752 = vunpack.c.l.b16 %v4698
      %v4753 = vunpack.c.l.b16 %v4702
      %v4754 = vunpack.c.l.b16 %v4705
      %v4755 = vunpack.c.l.b16 %v4709
      %v4756 = vunpack.c.l.b16 %v4712
      %v4757 = vunpack.c.l.b16 %v4716
      %v4758 = vunpack.c.l.b16 %v4719
      %v4759 = vunpack.c.l.b16 %v4723
      %v4760 = vunpack.c.l.b16 %v4726
      %v4761 = vpack.c.b16 %v4730, %v4729
      %v4762 = vpack.c.b16 %v4732, %v4731
      %v4763 = vpack.c.b16 %v4734, %v4733
      %v4764 = vpack.c.b16 %v4736, %v4735
      %v4765 = vpack.c.b16 %v4738, %v4737
      %v4766 = vpack.c.b16 %v4740, %v4739
      %v4767 = vpack.c.b16 %v4742, %v4741
      %v4768 = vpack.c.b16 %v4744, %v4743
      %v4769 = vpack.c.b16 %v4746, %v4745
      %v4770 = vpack.c.b16 %v4748, %v4747
      %v4771 = vpack.c.b16 %v4750, %v4749
      %v4772 = vpack.c.b16 %v4752, %v4751
      %v4773 = vpack.c.b16 %v4754, %v4753
      %v4774 = vpack.c.b16 %v4756, %v4755
      %v4775 = vpack.c.b16 %v4758, %v4757
      %v4776 = vpack.c.b16 %v4760, %v4759
      %v4778 = vsel %vm1034, %v4761, 0
      %v4781 = vsel %vm1034, %v4762, 0
      %v4784 = vsel %vm1034, %v4763, 0
      %v4787 = vsel %vm1034, %v4764, 0
      %v4790 = vsel %vm1034, %v4765, 0
      %v4793 = vsel %vm1034, %v4766, 0
      %v4796 = vsel %vm1034, %v4767, 0
      %v4799 = vsel %vm1034, %v4768, 0
      %v4802 = vsel %vm1034, %v4769, 0
      %v4805 = vsel %vm1034, %v4770, 0
      %v4808 = vsel %vm1034, %v4771, 0
      %v4811 = vsel %vm1034, %v4772, 0
      %v4814 = vsel %vm1034, %v4773, 0
      %v4817 = vsel %vm1034, %v4774, 0
      %v4820 = vsel %vm1034, %v4775, 0
      %v4823 = vsel %vm1034, %v4776, 0
      %v4826 = vsel %vm791, %v4728, 0
      %4828 = vmatprep.subr.bf16.mxu0 0
      %4829 = vmatpush1.bf16.msra.mxu0 %v4826
      %4830 = vmatprep.subr.bf16.mxu0 0
      %4831 = vmatpush1.bf16.msra.mxu0 0
      %4832 = vmatprep.subr.bf16.mxu0 0
      %4833 = vmatpush1.bf16.msra.mxu0 0
      %4834 = vmatprep.subr.bf16.mxu0 0
      %4835 = vmatpush1.bf16.msra.mxu0 0
      %4836 = vmatprep.subr.bf16.mxu0 0
      %4837 = vmatpush1.bf16.msra.mxu0 0
      %4838 = vmatprep.subr.bf16.mxu0 0
      %4839 = vmatpush1.bf16.msra.mxu0 0
      %4840 = vmatprep.subr.bf16.mxu0 0
      %4841 = vmatpush1.bf16.msra.mxu0 0
      %4842 = vmatprep.subr.bf16.mxu0 0
      %4843 = vmatpush1.bf16.msra.mxu0 0
      %4844 = vmatprep.subr.bf16.mxu0 0
      %4845 = vmatpush1.bf16.msra.mxu0 0
      %4846 = vmatprep.subr.bf16.mxu0 0
      %4847 = vmatpush1.bf16.msra.mxu0 0
      %4848 = vmatprep.subr.bf16.mxu0 0
      %4849 = vmatpush1.bf16.msra.mxu0 0
      %4850 = vmatprep.subr.bf16.mxu0 0
      %4851 = vmatpush1.bf16.msra.mxu0 0
      %4852 = vmatprep.subr.bf16.mxu0 0
      %4853 = vmatpush1.bf16.msra.mxu0 0
      %4854 = vmatprep.subr.bf16.mxu0 0
      %4855 = vmatpush1.bf16.msra.mxu0 0
      %4856 = vmatprep.subr.bf16.mxu0 0
      %4857 = vmatpush1.bf16.msra.mxu0 0
      %4858 = vmatprep.subr.bf16.mxu0 0
      %4859 = vmatpush1.bf16.msra.mxu0 0
      %4860 = vmatprep.mubr.bf16.mxu0 0
      %4861 = vmatmul.mubr.bf16.gmra.mrb[0].mxu0 %v4778
      %v4862 = vpop.f32.mrb[0].mxu0
      %v4863 = vadd.f32 0.0, %v4862
      %v4864 = vpop.f32.mrb[0].mxu0
      %v4865 = vpop.f32.mrb[0].mxu0
      %v4866 = vadd.f32 0.0, %v4865
      %v4867 = vpop.f32.mrb[0].mxu0
      %4868 = vmatprep.mubr.bf16.mxu0 0
      %4869 = vmatmul.mubr.bf16.gmra.mrb[0].mxu0 %v4781
      %v4870 = vpop.f32.mrb[0].mxu0
      %v4871 = vadd.f32 0.0, %v4870
      %v4872 = vpop.f32.mrb[0].mxu0
      %v4873 = vpop.f32.mrb[0].mxu0
      %v4874 = vadd.f32 0.0, %v4873
      %v4875 = vpop.f32.mrb[0].mxu0
      %4876 = vmatprep.mubr.bf16.mxu0 0
      %4877 = vmatmul.mubr.bf16.gmra.mrb[0].mxu0 %v4784
      %v4878 = vpop.f32.mrb[0].mxu0
      %v4879 = vadd.f32 0.0, %v4878
      %v4880 = vpop.f32.mrb[0].mxu0
      %v4881 = vpop.f32.mrb[0].mxu0
      %v4882 = vadd.f32 0.0, %v4881
      %v4883 = vpop.f32.mrb[0].mxu0
      %4884 = vmatprep.mubr.bf16.mxu0 0
      %4885 = vmatmul.mubr.bf16.gmra.mrb[0].mxu0 %v4787
      %v4886 = vpop.f32.mrb[0].mxu0
      %v4887 = vadd.f32 0.0, %v4886
      %v4888 = vpop.f32.mrb[0].mxu0
      %v4889 = vpop.f32.mrb[0].mxu0
      %v4890 = vadd.f32 0.0, %v4889
      %v4891 = vpop.f32.mrb[0].mxu0
      %4892 = vmatprep.mubr.bf16.mxu0 0
      %4893 = vmatmul.mubr.bf16.gmra.mrb[0].mxu0 %v4790
      %v4894 = vpop.f32.mrb[0].mxu0
      %v4895 = vadd.f32 0.0, %v4894
      %v4896 = vpop.f32.mrb[0].mxu0
      %v4897 = vpop.f32.mrb[0].mxu0
      %v4898 = vadd.f32 0.0, %v4897
      %v4899 = vpop.f32.mrb[0].mxu0
      %4900 = vmatprep.mubr.bf16.mxu0 0
      %4901 = vmatmul.mubr.bf16.gmra.mrb[0].mxu0 %v4793
      %v4902 = vpop.f32.mrb[0].mxu0
      %v4903 = vadd.f32 0.0, %v4902
      %v4904 = vpop.f32.mrb[0].mxu0
      %v4905 = vpop.f32.mrb[0].mxu0
      %v4906 = vadd.f32 0.0, %v4905
      %v4907 = vpop.f32.mrb[0].mxu0
      %4908 = vmatprep.mubr.bf16.mxu0 0
      %4909 = vmatmul.mubr.bf16.gmra.mrb[0].mxu0 %v4796
      %v4910 = vpop.f32.mrb[0].mxu0
      %v4911 = vadd.f32 0.0, %v4910
      %v4912 = vpop.f32.mrb[0].mxu0
      %v4913 = vpop.f32.mrb[0].mxu0
      %v4914 = vadd.f32 0.0, %v4913
      %v4915 = vpop.f32.mrb[0].mxu0
      %4916 = vmatprep.mubr.bf16.mxu0 0
      %4917 = vmatmul.mubr.bf16.gmra.mrb[0].mxu0 %v4799
      %v4918 = vpop.f32.mrb[0].mxu0
      %v4919 = vadd.f32 0.0, %v4918
      %v4920 = vpop.f32.mrb[0].mxu0
      %v4921 = vpop.f32.mrb[0].mxu0
      %v4922 = vadd.f32 0.0, %v4921
      %v4923 = vpop.f32.mrb[0].mxu0
      %4924 = vmatprep.mubr.bf16.mxu0 0
      %4925 = vmatmul.mubr.bf16.gmra.mrb[0].mxu0 %v4802
      %v4926 = vpop.f32.mrb[0].mxu0
      %v4927 = vadd.f32 0.0, %v4926
      %v4928 = vpop.f32.mrb[0].mxu0
      %v4929 = vpop.f32.mrb[0].mxu0
      %v4930 = vadd.f32 0.0, %v4929
      %v4931 = vpop.f32.mrb[0].mxu0
      %4932 = vmatprep.mubr.bf16.mxu0 0
      %4933 = vmatmul.mubr.bf16.gmra.mrb[0].mxu0 %v4805
      %v4934 = vpop.f32.mrb[0].mxu0
      %v4935 = vadd.f32 0.0, %v4934
      %v4936 = vpop.f32.mrb[0].mxu0
      %v4937 = vpop.f32.mrb[0].mxu0
      %v4938 = vadd.f32 0.0, %v4937
      %v4939 = vpop.f32.mrb[0].mxu0
      %4940 = vmatprep.mubr.bf16.mxu0 0
      %4941 = vmatmul.mubr.bf16.gmra.mrb[0].mxu0 %v4808
      %v4942 = vpop.f32.mrb[0].mxu0
      %v4943 = vadd.f32 0.0, %v4942
      %v4944 = vpop.f32.mrb[0].mxu0
      %v4945 = vpop.f32.mrb[0].mxu0
      %v4946 = vadd.f32 0.0, %v4945
      %v4947 = vpop.f32.mrb[0].mxu0
      %4948 = vmatprep.mubr.bf16.mxu0 0
      %4949 = vmatmul.mubr.bf16.gmra.mrb[0].mxu0 %v4811
      %v4950 = vpop.f32.mrb[0].mxu0
      %v4951 = vadd.f32 0.0, %v4950
      %v4952 = vpop.f32.mrb[0].mxu0
      %v4953 = vpop.f32.mrb[0].mxu0
      %v4954 = vadd.f32 0.0, %v4953
      %v4955 = vpop.f32.mrb[0].mxu0
      %4956 = vmatprep.mubr.bf16.mxu0 0
      %4957 = vmatmul.mubr.bf16.gmra.mrb[0].mxu0 %v4814
      %v4958 = vpop.f32.mrb[0].mxu0
      %v4959 = vadd.f32 0.0, %v4958
      %v4960 = vpop.f32.mrb[0].mxu0
      %v4961 = vpop.f32.mrb[0].mxu0
      %v4962 = vadd.f32 0.0, %v4961
      %v4963 = vpop.f32.mrb[0].mxu0
      %4964 = vmatprep.mubr.bf16.mxu0 0
      %4965 = vmatmul.mubr.bf16.gmra.mrb[0].mxu0 %v4817
      %v4966 = vpop.f32.mrb[0].mxu0
      %v4967 = vadd.f32 0.0, %v4966
      %v4968 = vpop.f32.mrb[0].mxu0
      %v4969 = vpop.f32.mrb[0].mxu0
      %v4970 = vadd.f32 0.0, %v4969
      %v4971 = vpop.f32.mrb[0].mxu0
      %4972 = vmatprep.mubr.bf16.mxu0 0
      %4973 = vmatmul.mubr.bf16.gmra.mrb[0].mxu0 %v4820
      %v4974 = vpop.f32.mrb[0].mxu0
      %v4975 = vadd.f32 0.0, %v4974
      %v4976 = vpop.f32.mrb[0].mxu0
      %v4977 = vpop.f32.mrb[0].mxu0
      %v4978 = vadd.f32 0.0, %v4977
      %v4979 = vpop.f32.mrb[0].mxu0
      %4980 = vmatprep.mubr.bf16.mxu0 0
      %4981 = vmatmul.mubr.bf16.gmra.mrb[0].mxu0 %v4823
      %v4982 = vpop.f32.mrb[0].mxu0
      %v4983 = vadd.f32 0.0, %v4982
      %v4984 = vpop.f32.mrb[0].mxu0
      %v4985 = vpop.f32.mrb[0].mxu0
      %v4986 = vadd.f32 0.0, %v4985
      %v4987 = vpop.f32.mrb[0].mxu0
      %4988 = vdwg.mxu0
      %v4989 = vadd.f32 %v4519, %v4863
      %v4990 = vadd.f32 %v4520, %v4866
      %v4991 = vadd.f32 %v4521, %v4871
      %v4992 = vadd.f32 %v4522, %v4874
      %v4993 = vadd.f32 %v4523, %v4879
      %v4994 = vadd.f32 %v4524, %v4882
      %v4995 = vadd.f32 %v4525, %v4887
      %v4996 = vadd.f32 %v4526, %v4890
      %v4997 = vadd.f32 %v4527, %v4895
      %v4998 = vadd.f32 %v4528, %v4898
      %v4999 = vadd.f32 %v4529, %v4903
      %v5000 = vadd.f32 %v4530, %v4906
      %v5001 = vadd.f32 %v4531, %v4911
      %v5002 = vadd.f32 %v4532, %v4914
      %v5003 = vadd.f32 %v4533, %v4919
      %v5004 = vadd.f32 %v4534, %v4922
      %v5005 = vadd.f32 %v4535, %v4927
      %v5006 = vadd.f32 %v4536, %v4930
      %v5007 = vadd.f32 %v4537, %v4935
      %v5008 = vadd.f32 %v4538, %v4938
      %v5009 = vadd.f32 %v4539, %v4943
      %v5010 = vadd.f32 %v4540, %v4946
      %v5011 = vadd.f32 %v4541, %v4951
      %v5012 = vadd.f32 %v4542, %v4954
      %v5013 = vadd.f32 %v4543, %v4959
      %v5014 = vadd.f32 %v4544, %v4962
      %v5015 = vadd.f32 %v4545, %v4967
      %v5016 = vadd.f32 %v4546, %v4970
      %v5017 = vadd.f32 %v4547, %v4975
      %v5018 = vadd.f32 %v4548, %v4978
      %v5019 = vadd.f32 %v4549, %v4983
      %v5020 = vadd.f32 %v4550, %v4986
      %s5021 = scalar_lea.vmem [#allocation2], 24
      %v5022 = vld [vmem:[%s5021] sm:$0xf]
      %v5023 = vld [vmem:[%s5021 + $0x4] sm:$0xf]
      %v5024 = vld [vmem:[%s5021 + $0xc] sm:$0xf]
      %v5025 = vld [vmem:[%s5021 + $0x10] sm:$0xf]
      %v5026 = vld [vmem:[%s5021 + $0x18] sm:$0xf]
      %v5027 = vld [vmem:[%s5021 + $0x1c] sm:$0xf]
      %v5028 = vld [vmem:[%s5021 + $0x24] sm:$0xf]
      %v5029 = vld [vmem:[%s5021 + $0x28] sm:$0xf]
      %v5030 = vld [vmem:[%s5021 + $0x30] sm:$0xf]
      %v5031 = vld [vmem:[%s5021 + $0x34] sm:$0xf]
      %v5032 = vld [vmem:[%s5021 + $0x3c] sm:$0xf]
      %v5033 = vld [vmem:[%s5021 + $0x40] sm:$0xf]
      %v5034 = vld [vmem:[%s5021 + $0x48] sm:$0xf]
      %v5035 = vld [vmem:[%s5021 + $0x4c] sm:$0xf]
      %v5036 = vld [vmem:[%s5021 + $0x54] sm:$0xf]
      %v5037 = vld [vmem:[%s5021 + $0x58] sm:$0xf]
      %v5038 = vld [vmem:[%s5021 + $0x60] sm:$0xf]
      %v5039 = vld [vmem:[%s5021 + $0x64] sm:$0xf]
      %v5040 = vld [vmem:[%s5021 + $0x6c] sm:$0xf]
      %v5041 = vld [vmem:[%s5021 + $0x70] sm:$0xf]
      %v5042 = vld [vmem:[%s5021 + $0x78] sm:$0xf]
      %v5043 = vld [vmem:[%s5021 + $0x7c] sm:$0xf]
      %v5044 = vld [vmem:[%s5021 + $0x84] sm:$0xf]
      %v5045 = vld [vmem:[%s5021 + $0x88] sm:$0xf]
      %v5046 = vld [vmem:[%s5021 + $0x90] sm:$0xf]
      %v5047 = vld [vmem:[%s5021 + $0x94] sm:$0xf]
      %v5048 = vld [vmem:[%s5021 + $0x9c] sm:$0xf]
      %v5049 = vld [vmem:[%s5021 + $0xa0] sm:$0xf]
      %v5050 = vld [vmem:[%s5021 + $0xa8] sm:$0xf]
      %v5051 = vld [vmem:[%s5021 + $0xac] sm:$0xf]
      %v5052 = vld [vmem:[%s5021 + $0xb4] sm:$0xf]
      %v5053 = vld [vmem:[%s5021 + $0xb8] sm:$0xf]
      %s5054 = scalar_lea.vmem %s7, 24
      %v5055 = vld [vmem:[%s5054] sm:$0xf]
      %v5088 = vunpack.c.l.b16 %v5022
      %v5089 = vunpack.c.l.b16 %v5023
      %v5090 = vunpack.c.l.b16 %v5024
      %v5091 = vunpack.c.l.b16 %v5025
      %v5092 = vunpack.c.l.b16 %v5026
      %v5093 = vunpack.c.l.b16 %v5027
      %v5094 = vunpack.c.l.b16 %v5028
      %v5095 = vunpack.c.l.b16 %v5029
      %v5096 = vunpack.c.l.b16 %v5030
      %v5097 = vunpack.c.l.b16 %v5031
      %v5098 = vunpack.c.l.b16 %v5032
      %v5099 = vunpack.c.l.b16 %v5033
      %v5100 = vunpack.c.l.b16 %v5034
      %v5101 = vunpack.c.l.b16 %v5035
      %v5102 = vunpack.c.l.b16 %v5036
      %v5103 = vunpack.c.l.b16 %v5037
      %v5104 = vunpack.c.l.b16 %v5038
      %v5105 = vunpack.c.l.b16 %v5039
      %v5106 = vunpack.c.l.b16 %v5040
      %v5107 = vunpack.c.l.b16 %v5041
      %v5108 = vunpack.c.l.b16 %v5042
      %v5109 = vunpack.c.l.b16 %v5043
      %v5110 = vunpack.c.l.b16 %v5044
      %v5111 = vunpack.c.l.b16 %v5045
      %v5112 = vunpack.c.l.b16 %v5046
      %v5113 = vunpack.c.l.b16 %v5047
      %v5114 = vunpack.c.l.b16 %v5048
      %v5115 = vunpack.c.l.b16 %v5049
      %v5116 = vunpack.c.l.b16 %v5050
      %v5117 = vunpack.c.l.b16 %v5051
      %v5118 = vunpack.c.l.b16 %v5052
      %v5119 = vunpack.c.l.b16 %v5053
      %v5120 = vpack.c.b16 %v5089, %v5088
      %v5121 = vpack.c.b16 %v5091, %v5090
      %v5122 = vpack.c.b16 %v5093, %v5092
      %v5123 = vpack.c.b16 %v5095, %v5094
      %v5124 = vpack.c.b16 %v5097, %v5096
      %v5125 = vpack.c.b16 %v5099, %v5098
      %v5126 = vpack.c.b16 %v5101, %v5100
      %v5127 = vpack.c.b16 %v5103, %v5102
      %v5128 = vpack.c.b16 %v5105, %v5104
      %v5129 = vpack.c.b16 %v5107, %v5106
      %v5130 = vpack.c.b16 %v5109, %v5108
      %v5131 = vpack.c.b16 %v5111, %v5110
      %v5132 = vpack.c.b16 %v5113, %v5112
      %v5133 = vpack.c.b16 %v5115, %v5114
      %v5134 = vpack.c.b16 %v5117, %v5116
      %v5135 = vpack.c.b16 %v5119, %v5118
      %v5137 = vsel %vm1034, %v5120, 0
      %v5140 = vsel %vm1034, %v5121, 0
      %v5143 = vsel %vm1034, %v5122, 0
      %v5146 = vsel %vm1034, %v5123, 0
      %v5149 = vsel %vm1034, %v5124, 0
      %v5152 = vsel %vm1034, %v5125, 0
      %v5155 = vsel %vm1034, %v5126, 0
      %v5158 = vsel %vm1034, %v5127, 0
      %v5161 = vsel %vm1034, %v5128, 0
      %v5164 = vsel %vm1034, %v5129, 0
      %v5167 = vsel %vm1034, %v5130, 0
      %v5170 = vsel %vm1034, %v5131, 0
      %v5173 = vsel %vm1034, %v5132, 0
      %v5176 = vsel %vm1034, %v5133, 0
      %v5179 = vsel %vm1034, %v5134, 0
      %v5182 = vsel %vm1034, %v5135, 0
      %v5185 = vsel %vm791, %v5055, 0
      %5187 = vmatprep.subr.bf16.mxu0 0
      %5188 = vmatpush1.bf16.msra.mxu0 %v5185
      %5189 = vmatprep.subr.bf16.mxu0 0
      %5190 = vmatpush1.bf16.msra.mxu0 0
      %5191 = vmatprep.subr.bf16.mxu0 0
      %5192 = vmatpush1.bf16.msra.mxu0 0
      %5193 = vmatprep.subr.bf16.mxu0 0
      %5194 = vmatpush1.bf16.msra.mxu0 0
      %5195 = vmatprep.subr.bf16.mxu0 0
      %5196 = vmatpush1.bf16.msra.mxu0 0
      %5197 = vmatprep.subr.bf16.mxu0 0
      %5198 = vmatpush1.bf16.msra.mxu0 0
      %5199 = vmatprep.subr.bf16.mxu0 0
      %5200 = vmatpush1.bf16.msra.mxu0 0
      %5201 = vmatprep.subr.bf16.mxu0 0
      %5202 = vmatpush1.bf16.msra.mxu0 0
      %5203 = vmatprep.subr.bf16.mxu0 0
      %5204 = vmatpush1.bf16.msra.mxu0 0
      %5205 = vmatprep.subr.bf16.mxu0 0
      %5206 = vmatpush1.bf16.msra.mxu0 0
      %5207 = vmatprep.subr.bf16.mxu0 0
      %5208 = vmatpush1.bf16.msra.mxu0 0
      %5209 = vmatprep.subr.bf16.mxu0 0
      %5210 = vmatpush1.bf16.msra.mxu0 0
      %5211 = vmatprep.subr.bf16.mxu0 0
      %5212 = vmatpush1.bf16.msra.mxu0 0
      %5213 = vmatprep.subr.bf16.mxu0 0
      %5214 = vmatpush1.bf16.msra.mxu0 0
      %5215 = vmatprep.subr.bf16.mxu0 0
      %5216 = vmatpush1.bf16.msra.mxu0 0
      %5217 = vmatprep.subr.bf16.mxu0 0
      %5218 = vmatpush1.bf16.msra.mxu0 0
      %5219 = vmatprep.mubr.bf16.mxu0 0
      %5220 = vmatmul.mubr.bf16.gmra.mrb[0].mxu0 %v5137
      %v5221 = vpop.f32.mrb[0].mxu0
      %v5222 = vadd.f32 0.0, %v5221
      %v5223 = vpop.f32.mrb[0].mxu0
      %v5224 = vpop.f32.mrb[0].mxu0
      %v5225 = vadd.f32 0.0, %v5224
      %v5226 = vpop.f32.mrb[0].mxu0
      %5227 = vmatprep.mubr.bf16.mxu0 0
      %5228 = vmatmul.mubr.bf16.gmra.mrb[0].mxu0 %v5140
      %v5229 = vpop.f32.mrb[0].mxu0
      %v5230 = vadd.f32 0.0, %v5229
      %v5231 = vpop.f32.mrb[0].mxu0
      %v5232 = vpop.f32.mrb[0].mxu0
      %v5233 = vadd.f32 0.0, %v5232
      %v5234 = vpop.f32.mrb[0].mxu0
      %5235 = vmatprep.mubr.bf16.mxu0 0
      %5236 = vmatmul.mubr.bf16.gmra.mrb[0].mxu0 %v5143
      %v5237 = vpop.f32.mrb[0].mxu0
      %v5238 = vadd.f32 0.0, %v5237
      %v5239 = vpop.f32.mrb[0].mxu0
      %v5240 = vpop.f32.mrb[0].mxu0
      %v5241 = vadd.f32 0.0, %v5240
      %v5242 = vpop.f32.mrb[0].mxu0
      %5243 = vmatprep.mubr.bf16.mxu0 0
      %5244 = vmatmul.mubr.bf16.gmra.mrb[0].mxu0 %v5146
      %v5245 = vpop.f32.mrb[0].mxu0
      %v5246 = vadd.f32 0.0, %v5245
      %v5247 = vpop.f32.mrb[0].mxu0
      %v5248 = vpop.f32.mrb[0].mxu0
      %v5249 = vadd.f32 0.0, %v5248
      %v5250 = vpop.f32.mrb[0].mxu0
      %5251 = vmatprep.mubr.bf16.mxu0 0
      %5252 = vmatmul.mubr.bf16.gmra.mrb[0].mxu0 %v5149
      %v5253 = vpop.f32.mrb[0].mxu0
      %v5254 = vadd.f32 0.0, %v5253
      %v5255 = vpop.f32.mrb[0].mxu0
      %v5256 = vpop.f32.mrb[0].mxu0
      %v5257 = vadd.f32 0.0, %v5256
      %v5258 = vpop.f32.mrb[0].mxu0
      %5259 = vmatprep.mubr.bf16.mxu0 0
      %5260 = vmatmul.mubr.bf16.gmra.mrb[0].mxu0 %v5152
      %v5261 = vpop.f32.mrb[0].mxu0
      %v5262 = vadd.f32 0.0, %v5261
      %v5263 = vpop.f32.mrb[0].mxu0
      %v5264 = vpop.f32.mrb[0].mxu0
      %v5265 = vadd.f32 0.0, %v5264
      %v5266 = vpop.f32.mrb[0].mxu0
      %5267 = vmatprep.mubr.bf16.mxu0 0
      %5268 = vmatmul.mubr.bf16.gmra.mrb[0].mxu0 %v5155
      %v5269 = vpop.f32.mrb[0].mxu0
      %v5270 = vadd.f32 0.0, %v5269
      %v5271 = vpop.f32.mrb[0].mxu0
      %v5272 = vpop.f32.mrb[0].mxu0
      %v5273 = vadd.f32 0.0, %v5272
      %v5274 = vpop.f32.mrb[0].mxu0
      %5275 = vmatprep.mubr.bf16.mxu0 0
      %5276 = vmatmul.mubr.bf16.gmra.mrb[0].mxu0 %v5158
      %v5277 = vpop.f32.mrb[0].mxu0
      %v5278 = vadd.f32 0.0, %v5277
      %v5279 = vpop.f32.mrb[0].mxu0
      %v5280 = vpop.f32.mrb[0].mxu0
      %v5281 = vadd.f32 0.0, %v5280
      %v5282 = vpop.f32.mrb[0].mxu0
      %5283 = vmatprep.mubr.bf16.mxu0 0
      %5284 = vmatmul.mubr.bf16.gmra.mrb[0].mxu0 %v5161
      %v5285 = vpop.f32.mrb[0].mxu0
      %v5286 = vadd.f32 0.0, %v5285
      %v5287 = vpop.f32.mrb[0].mxu0
      %v5288 = vpop.f32.mrb[0].mxu0
      %v5289 = vadd.f32 0.0, %v5288
      %v5290 = vpop.f32.mrb[0].mxu0
      %5291 = vmatprep.mubr.bf16.mxu0 0
      %5292 = vmatmul.mubr.bf16.gmra.mrb[0].mxu0 %v5164
      %v5293 = vpop.f32.mrb[0].mxu0
      %v5294 = vadd.f32 0.0, %v5293
      %v5295 = vpop.f32.mrb[0].mxu0
      %v5296 = vpop.f32.mrb[0].mxu0
      %v5297 = vadd.f32 0.0, %v5296
      %v5298 = vpop.f32.mrb[0].mxu0
      %5299 = vmatprep.mubr.bf16.mxu0 0
      %5300 = vmatmul.mubr.bf16.gmra.mrb[0].mxu0 %v5167
      %v5301 = vpop.f32.mrb[0].mxu0
      %v5302 = vadd.f32 0.0, %v5301
      %v5303 = vpop.f32.mrb[0].mxu0
      %v5304 = vpop.f32.mrb[0].mxu0
      %v5305 = vadd.f32 0.0, %v5304
      %v5306 = vpop.f32.mrb[0].mxu0
      %5307 = vmatprep.mubr.bf16.mxu0 0
      %5308 = vmatmul.mubr.bf16.gmra.mrb[0].mxu0 %v5170
      %v5309 = vpop.f32.mrb[0].mxu0
      %v5310 = vadd.f32 0.0, %v5309
      %v5311 = vpop.f32.mrb[0].mxu0
      %v5312 = vpop.f32.mrb[0].mxu0
      %v5313 = vadd.f32 0.0, %v5312
      %v5314 = vpop.f32.mrb[0].mxu0
      %5315 = vmatprep.mubr.bf16.mxu0 0
      %5316 = vmatmul.mubr.bf16.gmra.mrb[0].mxu0 %v5173
      %v5317 = vpop.f32.mrb[0].mxu0
      %v5318 = vadd.f32 0.0, %v5317
      %v5319 = vpop.f32.mrb[0].mxu0
      %v5320 = vpop.f32.mrb[0].mxu0
      %v5321 = vadd.f32 0.0, %v5320
      %v5322 = vpop.f32.mrb[0].mxu0
      %5323 = vmatprep.mubr.bf16.mxu0 0
      %5324 = vmatmul.mubr.bf16.gmra.mrb[0].mxu0 %v5176
      %v5325 = vpop.f32.mrb[0].mxu0
      %v5326 = vadd.f32 0.0, %v5325
      %v5327 = vpop.f32.mrb[0].mxu0
      %v5328 = vpop.f32.mrb[0].mxu0
      %v5329 = vadd.f32 0.0, %v5328
      %v5330 = vpop.f32.mrb[0].mxu0
      %5331 = vmatprep.mubr.bf16.mxu0 0
      %5332 = vmatmul.mubr.bf16.gmra.mrb[0].mxu0 %v5179
      %v5333 = vpop.f32.mrb[0].mxu0
      %v5334 = vadd.f32 0.0, %v5333
      %v5335 = vpop.f32.mrb[0].mxu0
      %v5336 = vpop.f32.mrb[0].mxu0
      %v5337 = vadd.f32 0.0, %v5336
      %v5338 = vpop.f32.mrb[0].mxu0
      %5339 = vmatprep.mubr.bf16.mxu0 0
      %5340 = vmatmul.mubr.bf16.gmra.mrb[0].mxu0 %v5182
      %v5341 = vpop.f32.mrb[0].mxu0
      %v5342 = vadd.f32 0.0, %v5341
      %v5343 = vpop.f32.mrb[0].mxu0
      %v5344 = vpop.f32.mrb[0].mxu0
      %v5345 = vadd.f32 0.0, %v5344
      %v5346 = vpop.f32.mrb[0].mxu0
      %5347 = vdwg.mxu0
      %v5348 = vadd.f32 %v4989, %v5222
      %v5349 = vadd.f32 %v4990, %v5225
      %v5350 = vadd.f32 %v4991, %v5230
      %v5351 = vadd.f32 %v4992, %v5233
      %v5352 = vadd.f32 %v4993, %v5238
      %v5353 = vadd.f32 %v4994, %v5241
      %v5354 = vadd.f32 %v4995, %v5246
      %v5355 = vadd.f32 %v4996, %v5249
      %v5356 = vadd.f32 %v4997, %v5254
      %v5357 = vadd.f32 %v4998, %v5257
      %v5358 = vadd.f32 %v4999, %v5262
      %v5359 = vadd.f32 %v5000, %v5265
      %v5360 = vadd.f32 %v5001, %v5270
      %v5361 = vadd.f32 %v5002, %v5273
      %v5362 = vadd.f32 %v5003, %v5278
      %v5363 = vadd.f32 %v5004, %v5281
      %v5364 = vadd.f32 %v5005, %v5286
      %v5365 = vadd.f32 %v5006, %v5289
      %v5366 = vadd.f32 %v5007, %v5294
      %v5367 = vadd.f32 %v5008, %v5297
      %v5368 = vadd.f32 %v5009, %v5302
      %v5369 = vadd.f32 %v5010, %v5305
      %v5370 = vadd.f32 %v5011, %v5310
      %v5371 = vadd.f32 %v5012, %v5313
      %v5372 = vadd.f32 %v5013, %v5318
      %v5373 = vadd.f32 %v5014, %v5321
      %v5374 = vadd.f32 %v5015, %v5326
      %v5375 = vadd.f32 %v5016, %v5329
      %v5376 = vadd.f32 %v5017, %v5334
      %v5377 = vadd.f32 %v5018, %v5337
      %v5378 = vadd.f32 %v5019, %v5342
      %v5379 = vadd.f32 %v5020, %v5345
      %v5380 = vld [vmem:[%s5021] sm:$0xf]
      %v5381 = vld [vmem:[%s5021 + $0x4] sm:$0xf]
      %v5382 = vld [vmem:[%s5021 + $0x8] sm:$0x1]
      %v5383 = vld [vmem:[%s5021 + $0xc] sm:$0xf]
      %v5384 = vld [vmem:[%s5021 + $0x10] sm:$0xf]
      %v5385 = vld [vmem:[%s5021 + $0x14] sm:$0x1]
      %v5386 = vld [vmem:[%s5021 + $0x18] sm:$0xf]
      %v5387 = vld [vmem:[%s5021 + $0x1c] sm:$0xf]
      %v5388 = vld [vmem:[%s5021 + $0x20] sm:$0x1]
      %v5389 = vld [vmem:[%s5021 + $0x24] sm:$0xf]
      %v5390 = vld [vmem:[%s5021 + $0x28] sm:$0xf]
      %v5391 = vld [vmem:[%s5021 + $0x2c] sm:$0x1]
      %v5392 = vld [vmem:[%s5021 + $0x30] sm:$0xf]
      %v5393 = vld [vmem:[%s5021 + $0x34] sm:$0xf]
      %v5394 = vld [vmem:[%s5021 + $0x38] sm:$0x1]
      %v5395 = vld [vmem:[%s5021 + $0x3c] sm:$0xf]
      %v5396 = vld [vmem:[%s5021 + $0x40] sm:$0xf]
      %v5397 = vld [vmem:[%s5021 + $0x44] sm:$0x1]
      %v5398 = vld [vmem:[%s5021 + $0x48] sm:$0xf]
      %v5399 = vld [vmem:[%s5021 + $0x4c] sm:$0xf]
      %v5400 = vld [vmem:[%s5021 + $0x50] sm:$0x1]
      %v5401 = vld [vmem:[%s5021 + $0x54] sm:$0xf]
      %v5402 = vld [vmem:[%s5021 + $0x58] sm:$0xf]
      %v5403 = vld [vmem:[%s5021 + $0x5c] sm:$0x1]
      %v5404 = vld [vmem:[%s5021 + $0x60] sm:$0xf]
      %v5405 = vld [vmem:[%s5021 + $0x64] sm:$0xf]
      %v5406 = vld [vmem:[%s5021 + $0x68] sm:$0x1]
      %v5407 = vld [vmem:[%s5021 + $0x6c] sm:$0xf]
      %v5408 = vld [vmem:[%s5021 + $0x70] sm:$0xf]
      %v5409 = vld [vmem:[%s5021 + $0x74] sm:$0x1]
      %v5410 = vld [vmem:[%s5021 + $0x78] sm:$0xf]
      %v5411 = vld [vmem:[%s5021 + $0x7c] sm:$0xf]
      %v5412 = vld [vmem:[%s5021 + $0x80] sm:$0x1]
      %v5413 = vld [vmem:[%s5021 + $0x84] sm:$0xf]
      %v5414 = vld [vmem:[%s5021 + $0x88] sm:$0xf]
      %v5415 = vld [vmem:[%s5021 + $0x8c] sm:$0x1]
      %v5416 = vld [vmem:[%s5021 + $0x90] sm:$0xf]
      %v5417 = vld [vmem:[%s5021 + $0x94] sm:$0xf]
      %v5418 = vld [vmem:[%s5021 + $0x98] sm:$0x1]
      %v5419 = vld [vmem:[%s5021 + $0x9c] sm:$0xf]
      %v5420 = vld [vmem:[%s5021 + $0xa0] sm:$0xf]
      %v5421 = vld [vmem:[%s5021 + $0xa4] sm:$0x1]
      %v5422 = vld [vmem:[%s5021 + $0xa8] sm:$0xf]
      %v5423 = vld [vmem:[%s5021 + $0xac] sm:$0xf]
      %v5424 = vld [vmem:[%s5021 + $0xb0] sm:$0x1]
      %v5425 = vld [vmem:[%s5021 + $0xb4] sm:$0xf]
      %v5426 = vld [vmem:[%s5021 + $0xb8] sm:$0xf]
      %v5427 = vld [vmem:[%s5021 + $0xbc] sm:$0x1]
      %v5429 = vshrl.u32 %v5380, 16
      %v5431 = vrot.slane %v5429, 4
      %v5432 = vshll.u32 %v5380, 16
      %v5434 = vrot.slane %v5432, 5
      %v5435 = vor.u32 %v5431, %v5434
      %v5436 = vrot.slane %v5435, 4
      %v5438 = vshll.u32 %v5381, 16
      %v5440 = vrot.slane %v5438, 5
      %v5441 = vsel %vm2071, %v5436, %v5440
      %v5442 = vshrl.u32 %v5381, 16
      %v5444 = vrot.slane %v5442, 4
      %v5445 = vor.u32 %v5444, %v5440
      %v5446 = vrot.slane %v5445, 4
      %v5448 = vshll.u32 %v5382, 16
      %v5450 = vrot.slane %v5448, 5
      %v5451 = vsel %vm2071, %v5446, %v5450
      %v5453 = vshrl.u32 %v5383, 16
      %v5455 = vrot.slane %v5453, 4
      %v5456 = vshll.u32 %v5383, 16
      %v5458 = vrot.slane %v5456, 5
      %v5459 = vor.u32 %v5455, %v5458
      %v5460 = vrot.slane %v5459, 4
      %v5462 = vshll.u32 %v5384, 16
      %v5464 = vrot.slane %v5462, 5
      %v5465 = vsel %vm2071, %v5460, %v5464
      %v5466 = vshrl.u32 %v5384, 16
      %v5468 = vrot.slane %v5466, 4
      %v5469 = vor.u32 %v5468, %v5464
      %v5470 = vrot.slane %v5469, 4
      %v5472 = vshll.u32 %v5385, 16
      %v5474 = vrot.slane %v5472, 5
      %v5475 = vsel %vm2071, %v5470, %v5474
      %v5477 = vshrl.u32 %v5386, 16
      %v5479 = vrot.slane %v5477, 4
      %v5480 = vshll.u32 %v5386, 16
      %v5482 = vrot.slane %v5480, 5
      %v5483 = vor.u32 %v5479, %v5482
      %v5484 = vrot.slane %v5483, 4
      %v5486 = vshll.u32 %v5387, 16
      %v5488 = vrot.slane %v5486, 5
      %v5489 = vsel %vm2071, %v5484, %v5488
      %v5490 = vshrl.u32 %v5387, 16
      %v5492 = vrot.slane %v5490, 4
      %v5493 = vor.u32 %v5492, %v5488
      %v5494 = vrot.slane %v5493, 4
      %v5496 = vshll.u32 %v5388, 16
      %v5498 = vrot.slane %v5496, 5
      %v5499 = vsel %vm2071, %v5494, %v5498
      %v5501 = vshrl.u32 %v5389, 16
      %v5503 = vrot.slane %v5501, 4
      %v5504 = vshll.u32 %v5389, 16
      %v5506 = vrot.slane %v5504, 5
      %v5507 = vor.u32 %v5503, %v5506
      %v5508 = vrot.slane %v5507, 4
      %v5510 = vshll.u32 %v5390, 16
      %v5512 = vrot.slane %v5510, 5
      %v5513 = vsel %vm2071, %v5508, %v5512
      %v5514 = vshrl.u32 %v5390, 16
      %v5516 = vrot.slane %v5514, 4
      %v5517 = vor.u32 %v5516, %v5512
      %v5518 = vrot.slane %v5517, 4
      %v5520 = vshll.u32 %v5391, 16
      %v5522 = vrot.slane %v5520, 5
      %v5523 = vsel %vm2071, %v5518, %v5522
      %v5525 = vshrl.u32 %v5392, 16
      %v5527 = vrot.slane %v5525, 4
      %v5528 = vshll.u32 %v5392, 16
      %v5530 = vrot.slane %v5528, 5
      %v5531 = vor.u32 %v5527, %v5530
      %v5532 = vrot.slane %v5531, 4
      %v5534 = vshll.u32 %v5393, 16
      %v5536 = vrot.slane %v5534, 5
      %v5537 = vsel %vm2071, %v5532, %v5536
      %v5538 = vshrl.u32 %v5393, 16
      %v5540 = vrot.slane %v5538, 4
      %v5541 = vor.u32 %v5540, %v5536
      %v5542 = vrot.slane %v5541, 4
      %v5544 = vshll.u32 %v5394, 16
      %v5546 = vrot.slane %v5544, 5
      %v5547 = vsel %vm2071, %v5542, %v5546
      %v5549 = vshrl.u32 %v5395, 16
      %v5551 = vrot.slane %v5549, 4
      %v5552 = vshll.u32 %v5395, 16
      %v5554 = vrot.slane %v5552, 5
      %v5555 = vor.u32 %v5551, %v5554
      %v5556 = vrot.slane %v5555, 4
      %v5558 = vshll.u32 %v5396, 16
      %v5560 = vrot.slane %v5558, 5
      %v5561 = vsel %vm2071, %v5556, %v5560
      %v5562 = vshrl.u32 %v5396, 16
      %v5564 = vrot.slane %v5562, 4
      %v5565 = vor.u32 %v5564, %v5560
      %v5566 = vrot.slane %v5565, 4
      %v5568 = vshll.u32 %v5397, 16
      %v5570 = vrot.slane %v5568, 5
      %v5571 = vsel %vm2071, %v5566, %v5570
      %v5573 = vshrl.u32 %v5398, 16
      %v5575 = vrot.slane %v5573, 4
      %v5576 = vshll.u32 %v5398, 16
      %v5578 = vrot.slane %v5576, 5
      %v5579 = vor.u32 %v5575, %v5578
      %v5580 = vrot.slane %v5579, 4
      %v5582 = vshll.u32 %v5399, 16
      %v5584 = vrot.slane %v5582, 5
      %v5585 = vsel %vm2071, %v5580, %v5584
      %v5586 = vshrl.u32 %v5399, 16
      %v5588 = vrot.slane %v5586, 4
      %v5589 = vor.u32 %v5588, %v5584
      %v5590 = vrot.slane %v5589, 4
      %v5592 = vshll.u32 %v5400, 16
      %v5594 = vrot.slane %v5592, 5
      %v5595 = vsel %vm2071, %v5590, %v5594
      %v5597 = vshrl.u32 %v5401, 16
      %v5599 = vrot.slane %v5597, 4
      %v5600 = vshll.u32 %v5401, 16
      %v5602 = vrot.slane %v5600, 5
      %v5603 = vor.u32 %v5599, %v5602
      %v5604 = vrot.slane %v5603, 4
      %v5606 = vshll.u32 %v5402, 16
      %v5608 = vrot.slane %v5606, 5
      %v5609 = vsel %vm2071, %v5604, %v5608
      %v5610 = vshrl.u32 %v5402, 16
      %v5612 = vrot.slane %v5610, 4
      %v5613 = vor.u32 %v5612, %v5608
      %v5614 = vrot.slane %v5613, 4
      %v5616 = vshll.u32 %v5403, 16
      %v5618 = vrot.slane %v5616, 5
      %v5619 = vsel %vm2071, %v5614, %v5618
      %v5621 = vshrl.u32 %v5404, 16
      %v5623 = vrot.slane %v5621, 4
      %v5624 = vshll.u32 %v5404, 16
      %v5626 = vrot.slane %v5624, 5
      %v5627 = vor.u32 %v5623, %v5626
      %v5628 = vrot.slane %v5627, 4
      %v5630 = vshll.u32 %v5405, 16
      %v5632 = vrot.slane %v5630, 5
      %v5633 = vsel %vm2071, %v5628, %v5632
      %v5634 = vshrl.u32 %v5405, 16
      %v5636 = vrot.slane %v5634, 4
      %v5637 = vor.u32 %v5636, %v5632
      %v5638 = vrot.slane %v5637, 4
      %v5640 = vshll.u32 %v5406, 16
      %v5642 = vrot.slane %v5640, 5
      %v5643 = vsel %vm2071, %v5638, %v5642
      %v5645 = vshrl.u32 %v5407, 16
      %v5647 = vrot.slane %v5645, 4
      %v5648 = vshll.u32 %v5407, 16
      %v5650 = vrot.slane %v5648, 5
      %v5651 = vor.u32 %v5647, %v5650
      %v5652 = vrot.slane %v5651, 4
      %v5654 = vshll.u32 %v5408, 16
      %v5656 = vrot.slane %v5654, 5
      %v5657 = vsel %vm2071, %v5652, %v5656
      %v5658 = vshrl.u32 %v5408, 16
      %v5660 = vrot.slane %v5658, 4
      %v5661 = vor.u32 %v5660, %v5656
      %v5662 = vrot.slane %v5661, 4
      %v5664 = vshll.u32 %v5409, 16
      %v5666 = vrot.slane %v5664, 5
      %v5667 = vsel %vm2071, %v5662, %v5666
      %v5669 = vshrl.u32 %v5410, 16
      %v5671 = vrot.slane %v5669, 4
      %v5672 = vshll.u32 %v5410, 16
      %v5674 = vrot.slane %v5672, 5
      %v5675 = vor.u32 %v5671, %v5674
      %v5676 = vrot.slane %v5675, 4
      %v5678 = vshll.u32 %v5411, 16
      %v5680 = vrot.slane %v5678, 5
      %v5681 = vsel %vm2071, %v5676, %v5680
      %v5682 = vshrl.u32 %v5411, 16
      %v5684 = vrot.slane %v5682, 4
      %v5685 = vor.u32 %v5684, %v5680
      %v5686 = vrot.slane %v5685, 4
      %v5688 = vshll.u32 %v5412, 16
      %v5690 = vrot.slane %v5688, 5
      %v5691 = vsel %vm2071, %v5686, %v5690
      %v5693 = vshrl.u32 %v5413, 16
      %v5695 = vrot.slane %v5693, 4
      %v5696 = vshll.u32 %v5413, 16
      %v5698 = vrot.slane %v5696, 5
      %v5699 = vor.u32 %v5695, %v5698
      %v5700 = vrot.slane %v5699, 4
      %v5702 = vshll.u32 %v5414, 16
      %v5704 = vrot.slane %v5702, 5
      %v5705 = vsel %vm2071, %v5700, %v5704
      %v5706 = vshrl.u32 %v5414, 16
      %v5708 = vrot.slane %v5706, 4
      %v5709 = vor.u32 %v5708, %v5704
      %v5710 = vrot.slane %v5709, 4
      %v5712 = vshll.u32 %v5415, 16
      %v5714 = vrot.slane %v5712, 5
      %v5715 = vsel %vm2071, %v5710, %v5714
      %v5717 = vshrl.u32 %v5416, 16
      %v5719 = vrot.slane %v5717, 4
      %v5720 = vshll.u32 %v5416, 16
      %v5722 = vrot.slane %v5720, 5
      %v5723 = vor.u32 %v5719, %v5722
      %v5724 = vrot.slane %v5723, 4
      %v5726 = vshll.u32 %v5417, 16
      %v5728 = vrot.slane %v5726, 5
      %v5729 = vsel %vm2071, %v5724, %v5728
      %v5730 = vshrl.u32 %v5417, 16
      %v5732 = vrot.slane %v5730, 4
      %v5733 = vor.u32 %v5732, %v5728
      %v5734 = vrot.slane %v5733, 4
      %v5736 = vshll.u32 %v5418, 16
      %v5738 = vrot.slane %v5736, 5
      %v5739 = vsel %vm2071, %v5734, %v5738
      %v5741 = vshrl.u32 %v5419, 16
      %v5743 = vrot.slane %v5741, 4
      %v5744 = vshll.u32 %v5419, 16
      %v5746 = vrot.slane %v5744, 5
      %v5747 = vor.u32 %v5743, %v5746
      %v5748 = vrot.slane %v5747, 4
      %v5750 = vshll.u32 %v5420, 16
      %v5752 = vrot.slane %v5750, 5
      %v5753 = vsel %vm2071, %v5748, %v5752
      %v5754 = vshrl.u32 %v5420, 16
      %v5756 = vrot.slane %v5754, 4
      %v5757 = vor.u32 %v5756, %v5752
      %v5758 = vrot.slane %v5757, 4
      %v5760 = vshll.u32 %v5421, 16
      %v5762 = vrot.slane %v5760, 5
      %v5763 = vsel %vm2071, %v5758, %v5762
      %v5765 = vshrl.u32 %v5422, 16
      %v5767 = vrot.slane %v5765, 4
      %v5768 = vshll.u32 %v5422, 16
      %v5770 = vrot.slane %v5768, 5
      %v5771 = vor.u32 %v5767, %v5770
      %v5772 = vrot.slane %v5771, 4
      %v5774 = vshll.u32 %v5423, 16
      %v5776 = vrot.slane %v5774, 5
      %v5777 = vsel %vm2071, %v5772, %v5776
      %v5778 = vshrl.u32 %v5423, 16
      %v5780 = vrot.slane %v5778, 4
      %v5781 = vor.u32 %v5780, %v5776
      %v5782 = vrot.slane %v5781, 4
      %v5784 = vshll.u32 %v5424, 16
      %v5786 = vrot.slane %v5784, 5
      %v5787 = vsel %vm2071, %v5782, %v5786
      %v5789 = vshrl.u32 %v5425, 16
      %v5791 = vrot.slane %v5789, 4
      %v5792 = vshll.u32 %v5425, 16
      %v5794 = vrot.slane %v5792, 5
      %v5795 = vor.u32 %v5791, %v5794
      %v5796 = vrot.slane %v5795, 4
      %v5798 = vshll.u32 %v5426, 16
      %v5800 = vrot.slane %v5798, 5
      %v5801 = vsel %vm2071, %v5796, %v5800
      %v5802 = vshrl.u32 %v5426, 16
      %v5804 = vrot.slane %v5802, 4
      %v5805 = vor.u32 %v5804, %v5800
      %v5806 = vrot.slane %v5805, 4
      %v5808 = vshll.u32 %v5427, 16
      %v5810 = vrot.slane %v5808, 5
      %v5811 = vsel %vm2071, %v5806, %v5810
      %s5812 = scalar_lea.vmem %s7, 28
      %v5813 = vld [vmem:[%s5812] sm:$0xf]
      %v5814 = vunpack.c.l.b16 %v5441
      %v5815 = vunpack.c.l.b16 %v5451
      %v5816 = vunpack.c.l.b16 %v5465
      %v5817 = vunpack.c.l.b16 %v5475
      %v5818 = vunpack.c.l.b16 %v5489
      %v5819 = vunpack.c.l.b16 %v5499
      %v5820 = vunpack.c.l.b16 %v5513
      %v5821 = vunpack.c.l.b16 %v5523
      %v5822 = vunpack.c.l.b16 %v5537
      %v5823 = vunpack.c.l.b16 %v5547
      %v5824 = vunpack.c.l.b16 %v5561
      %v5825 = vunpack.c.l.b16 %v5571
      %v5826 = vunpack.c.l.b16 %v5585
      %v5827 = vunpack.c.l.b16 %v5595
      %v5828 = vunpack.c.l.b16 %v5609
      %v5829 = vunpack.c.l.b16 %v5619
      %v5830 = vunpack.c.l.b16 %v5633
      %v5831 = vunpack.c.l.b16 %v5643
      %v5832 = vunpack.c.l.b16 %v5657
      %v5833 = vunpack.c.l.b16 %v5667
      %v5834 = vunpack.c.l.b16 %v5681
      %v5835 = vunpack.c.l.b16 %v5691
      %v5836 = vunpack.c.l.b16 %v5705
      %v5837 = vunpack.c.l.b16 %v5715
      %v5838 = vunpack.c.l.b16 %v5729
      %v5839 = vunpack.c.l.b16 %v5739
      %v5840 = vunpack.c.l.b16 %v5753
      %v5841 = vunpack.c.l.b16 %v5763
      %v5842 = vunpack.c.l.b16 %v5777
      %v5843 = vunpack.c.l.b16 %v5787
      %v5844 = vunpack.c.l.b16 %v5801
      %v5845 = vunpack.c.l.b16 %v5811
      %v5846 = vpack.c.b16 %v5815, %v5814
      %v5847 = vpack.c.b16 %v5817, %v5816
      %v5848 = vpack.c.b16 %v5819, %v5818
      %v5849 = vpack.c.b16 %v5821, %v5820
      %v5850 = vpack.c.b16 %v5823, %v5822
      %v5851 = vpack.c.b16 %v5825, %v5824
      %v5852 = vpack.c.b16 %v5827, %v5826
      %v5853 = vpack.c.b16 %v5829, %v5828
      %v5854 = vpack.c.b16 %v5831, %v5830
      %v5855 = vpack.c.b16 %v5833, %v5832
      %v5856 = vpack.c.b16 %v5835, %v5834
      %v5857 = vpack.c.b16 %v5837, %v5836
      %v5858 = vpack.c.b16 %v5839, %v5838
      %v5859 = vpack.c.b16 %v5841, %v5840
      %v5860 = vpack.c.b16 %v5843, %v5842
      %v5861 = vpack.c.b16 %v5845, %v5844
      %v5863 = vsel %vm1034, %v5846, 0
      %v5866 = vsel %vm1034, %v5847, 0
      %v5869 = vsel %vm1034, %v5848, 0
      %v5872 = vsel %vm1034, %v5849, 0
      %v5875 = vsel %vm1034, %v5850, 0
      %v5878 = vsel %vm1034, %v5851, 0
      %v5881 = vsel %vm1034, %v5852, 0
      %v5884 = vsel %vm1034, %v5853, 0
      %v5887 = vsel %vm1034, %v5854, 0
      %v5890 = vsel %vm1034, %v5855, 0
      %v5893 = vsel %vm1034, %v5856, 0
      %v5896 = vsel %vm1034, %v5857, 0
      %v5899 = vsel %vm1034, %v5858, 0
      %v5902 = vsel %vm1034, %v5859, 0
      %v5905 = vsel %vm1034, %v5860, 0
      %v5908 = vsel %vm1034, %v5861, 0
      %v5911 = vsel %vm791, %v5813, 0
      %5913 = vmatprep.subr.bf16.mxu0 0
      %5914 = vmatpush1.bf16.msra.mxu0 %v5911
      %5915 = vmatprep.subr.bf16.mxu0 0
      %5916 = vmatpush1.bf16.msra.mxu0 0
      %5917 = vmatprep.subr.bf16.mxu0 0
      %5918 = vmatpush1.bf16.msra.mxu0 0
      %5919 = vmatprep.subr.bf16.mxu0 0
      %5920 = vmatpush1.bf16.msra.mxu0 0
      %5921 = vmatprep.subr.bf16.mxu0 0
      %5922 = vmatpush1.bf16.msra.mxu0 0
      %5923 = vmatprep.subr.bf16.mxu0 0
      %5924 = vmatpush1.bf16.msra.mxu0 0
      %5925 = vmatprep.subr.bf16.mxu0 0
      %5926 = vmatpush1.bf16.msra.mxu0 0
      %5927 = vmatprep.subr.bf16.mxu0 0
      %5928 = vmatpush1.bf16.msra.mxu0 0
      %5929 = vmatprep.subr.bf16.mxu0 0
      %5930 = vmatpush1.bf16.msra.mxu0 0
      %5931 = vmatprep.subr.bf16.mxu0 0
      %5932 = vmatpush1.bf16.msra.mxu0 0
      %5933 = vmatprep.subr.bf16.mxu0 0
      %5934 = vmatpush1.bf16.msra.mxu0 0
      %5935 = vmatprep.subr.bf16.mxu0 0
      %5936 = vmatpush1.bf16.msra.mxu0 0
      %5937 = vmatprep.subr.bf16.mxu0 0
      %5938 = vmatpush1.bf16.msra.mxu0 0
      %5939 = vmatprep.subr.bf16.mxu0 0
      %5940 = vmatpush1.bf16.msra.mxu0 0
      %5941 = vmatprep.subr.bf16.mxu0 0
      %5942 = vmatpush1.bf16.msra.mxu0 0
      %5943 = vmatprep.subr.bf16.mxu0 0
      %5944 = vmatpush1.bf16.msra.mxu0 0
      %5945 = vmatprep.mubr.bf16.mxu0 0
      %5946 = vmatmul.mubr.bf16.gmra.mrb[0].mxu0 %v5863
      %v5947 = vpop.f32.mrb[0].mxu0
      %v5948 = vadd.f32 0.0, %v5947
      %v5949 = vpop.f32.mrb[0].mxu0
      %v5950 = vpop.f32.mrb[0].mxu0
      %v5951 = vadd.f32 0.0, %v5950
      %v5952 = vpop.f32.mrb[0].mxu0
      %5953 = vmatprep.mubr.bf16.mxu0 0
      %5954 = vmatmul.mubr.bf16.gmra.mrb[0].mxu0 %v5866
      %v5955 = vpop.f32.mrb[0].mxu0
      %v5956 = vadd.f32 0.0, %v5955
      %v5957 = vpop.f32.mrb[0].mxu0
      %v5958 = vpop.f32.mrb[0].mxu0
      %v5959 = vadd.f32 0.0, %v5958
      %v5960 = vpop.f32.mrb[0].mxu0
      %5961 = vmatprep.mubr.bf16.mxu0 0
      %5962 = vmatmul.mubr.bf16.gmra.mrb[0].mxu0 %v5869
      %v5963 = vpop.f32.mrb[0].mxu0
      %v5964 = vadd.f32 0.0, %v5963
      %v5965 = vpop.f32.mrb[0].mxu0
      %v5966 = vpop.f32.mrb[0].mxu0
      %v5967 = vadd.f32 0.0, %v5966
      %v5968 = vpop.f32.mrb[0].mxu0
      %5969 = vmatprep.mubr.bf16.mxu0 0
      %5970 = vmatmul.mubr.bf16.gmra.mrb[0].mxu0 %v5872
      %v5971 = vpop.f32.mrb[0].mxu0
      %v5972 = vadd.f32 0.0, %v5971
      %v5973 = vpop.f32.mrb[0].mxu0
      %v5974 = vpop.f32.mrb[0].mxu0
      %v5975 = vadd.f32 0.0, %v5974
      %v5976 = vpop.f32.mrb[0].mxu0
      %5977 = vmatprep.mubr.bf16.mxu0 0
      %5978 = vmatmul.mubr.bf16.gmra.mrb[0].mxu0 %v5875
      %v5979 = vpop.f32.mrb[0].mxu0
      %v5980 = vadd.f32 0.0, %v5979
      %v5981 = vpop.f32.mrb[0].mxu0
      %v5982 = vpop.f32.mrb[0].mxu0
      %v5983 = vadd.f32 0.0, %v5982
      %v5984 = vpop.f32.mrb[0].mxu0
      %5985 = vmatprep.mubr.bf16.mxu0 0
      %5986 = vmatmul.mubr.bf16.gmra.mrb[0].mxu0 %v5878
      %v5987 = vpop.f32.mrb[0].mxu0
      %v5988 = vadd.f32 0.0, %v5987
      %v5989 = vpop.f32.mrb[0].mxu0
      %v5990 = vpop.f32.mrb[0].mxu0
      %v5991 = vadd.f32 0.0, %v5990
      %v5992 = vpop.f32.mrb[0].mxu0
      %5993 = vmatprep.mubr.bf16.mxu0 0
      %5994 = vmatmul.mubr.bf16.gmra.mrb[0].mxu0 %v5881
      %v5995 = vpop.f32.mrb[0].mxu0
      %v5996 = vadd.f32 0.0, %v5995
      %v5997 = vpop.f32.mrb[0].mxu0
      %v5998 = vpop.f32.mrb[0].mxu0
      %v5999 = vadd.f32 0.0, %v5998
      %v6000 = vpop.f32.mrb[0].mxu0
      %6001 = vmatprep.mubr.bf16.mxu0 0
      %6002 = vmatmul.mubr.bf16.gmra.mrb[0].mxu0 %v5884
      %v6003 = vpop.f32.mrb[0].mxu0
      %v6004 = vadd.f32 0.0, %v6003
      %v6005 = vpop.f32.mrb[0].mxu0
      %v6006 = vpop.f32.mrb[0].mxu0
      %v6007 = vadd.f32 0.0, %v6006
      %v6008 = vpop.f32.mrb[0].mxu0
      %6009 = vmatprep.mubr.bf16.mxu0 0
      %6010 = vmatmul.mubr.bf16.gmra.mrb[0].mxu0 %v5887
      %v6011 = vpop.f32.mrb[0].mxu0
      %v6012 = vadd.f32 0.0, %v6011
      %v6013 = vpop.f32.mrb[0].mxu0
      %v6014 = vpop.f32.mrb[0].mxu0
      %v6015 = vadd.f32 0.0, %v6014
      %v6016 = vpop.f32.mrb[0].mxu0
      %6017 = vmatprep.mubr.bf16.mxu0 0
      %6018 = vmatmul.mubr.bf16.gmra.mrb[0].mxu0 %v5890
      %v6019 = vpop.f32.mrb[0].mxu0
      %v6020 = vadd.f32 0.0, %v6019
      %v6021 = vpop.f32.mrb[0].mxu0
      %v6022 = vpop.f32.mrb[0].mxu0
      %v6023 = vadd.f32 0.0, %v6022
      %v6024 = vpop.f32.mrb[0].mxu0
      %6025 = vmatprep.mubr.bf16.mxu0 0
      %6026 = vmatmul.mubr.bf16.gmra.mrb[0].mxu0 %v5893
      %v6027 = vpop.f32.mrb[0].mxu0
      %v6028 = vadd.f32 0.0, %v6027
      %v6029 = vpop.f32.mrb[0].mxu0
      %v6030 = vpop.f32.mrb[0].mxu0
      %v6031 = vadd.f32 0.0, %v6030
      %v6032 = vpop.f32.mrb[0].mxu0
      %6033 = vmatprep.mubr.bf16.mxu0 0
      %6034 = vmatmul.mubr.bf16.gmra.mrb[0].mxu0 %v5896
      %v6035 = vpop.f32.mrb[0].mxu0
      %v6036 = vadd.f32 0.0, %v6035
      %v6037 = vpop.f32.mrb[0].mxu0
      %v6038 = vpop.f32.mrb[0].mxu0
      %v6039 = vadd.f32 0.0, %v6038
      %v6040 = vpop.f32.mrb[0].mxu0
      %6041 = vmatprep.mubr.bf16.mxu0 0
      %6042 = vmatmul.mubr.bf16.gmra.mrb[0].mxu0 %v5899
      %v6043 = vpop.f32.mrb[0].mxu0
      %v6044 = vadd.f32 0.0, %v6043
      %v6045 = vpop.f32.mrb[0].mxu0
      %v6046 = vpop.f32.mrb[0].mxu0
      %v6047 = vadd.f32 0.0, %v6046
      %v6048 = vpop.f32.mrb[0].mxu0
      %6049 = vmatprep.mubr.bf16.mxu0 0
      %6050 = vmatmul.mubr.bf16.gmra.mrb[0].mxu0 %v5902
      %v6051 = vpop.f32.mrb[0].mxu0
      %v6052 = vadd.f32 0.0, %v6051
      %v6053 = vpop.f32.mrb[0].mxu0
      %v6054 = vpop.f32.mrb[0].mxu0
      %v6055 = vadd.f32 0.0, %v6054
      %v6056 = vpop.f32.mrb[0].mxu0
      %6057 = vmatprep.mubr.bf16.mxu0 0
      %6058 = vmatmul.mubr.bf16.gmra.mrb[0].mxu0 %v5905
      %v6059 = vpop.f32.mrb[0].mxu0
      %v6060 = vadd.f32 0.0, %v6059
      %v6061 = vpop.f32.mrb[0].mxu0
      %v6062 = vpop.f32.mrb[0].mxu0
      %v6063 = vadd.f32 0.0, %v6062
      %v6064 = vpop.f32.mrb[0].mxu0
      %6065 = vmatprep.mubr.bf16.mxu0 0
      %6066 = vmatmul.mubr.bf16.gmra.mrb[0].mxu0 %v5908
      %v6067 = vpop.f32.mrb[0].mxu0
      %v6068 = vadd.f32 0.0, %v6067
      %v6069 = vpop.f32.mrb[0].mxu0
      %v6070 = vpop.f32.mrb[0].mxu0
      %v6071 = vadd.f32 0.0, %v6070
      %v6072 = vpop.f32.mrb[0].mxu0
      %6073 = vdwg.mxu0
      %v6074 = vadd.f32 %v5348, %v5948
      %v6075 = vadd.f32 %v5349, %v5951
      %v6076 = vadd.f32 %v5350, %v5956
      %v6077 = vadd.f32 %v5351, %v5959
      %v6078 = vadd.f32 %v5352, %v5964
      %v6079 = vadd.f32 %v5353, %v5967
      %v6080 = vadd.f32 %v5354, %v5972
      %v6081 = vadd.f32 %v5355, %v5975
      %v6082 = vadd.f32 %v5356, %v5980
      %v6083 = vadd.f32 %v5357, %v5983
      %v6084 = vadd.f32 %v5358, %v5988
      %v6085 = vadd.f32 %v5359, %v5991
      %v6086 = vadd.f32 %v5360, %v5996
      %v6087 = vadd.f32 %v5361, %v5999
      %v6088 = vadd.f32 %v5362, %v6004
      %v6089 = vadd.f32 %v5363, %v6007
      %v6090 = vadd.f32 %v5364, %v6012
      %v6091 = vadd.f32 %v5365, %v6015
      %v6092 = vadd.f32 %v5366, %v6020
      %v6093 = vadd.f32 %v5367, %v6023
      %v6094 = vadd.f32 %v5368, %v6028
      %v6095 = vadd.f32 %v5369, %v6031
      %v6096 = vadd.f32 %v5370, %v6036
      %v6097 = vadd.f32 %v5371, %v6039
      %v6098 = vadd.f32 %v5372, %v6044
      %v6099 = vadd.f32 %v5373, %v6047
      %v6100 = vadd.f32 %v5374, %v6052
      %v6101 = vadd.f32 %v5375, %v6055
      %v6102 = vadd.f32 %v5376, %v6060
      %v6103 = vadd.f32 %v5377, %v6063
      %v6104 = vadd.f32 %v5378, %v6068
      %v6105 = vadd.f32 %v5379, %v6071
      %v6106 = vld [vmem:[%s5021] sm:$0xe]
      %v6107 = vld [vmem:[%s5021 + $0xc] sm:$0xe]
      %v6108 = vld [vmem:[%s5021 + $0x18] sm:$0xe]
      %v6109 = vld [vmem:[%s5021 + $0x24] sm:$0xe]
      %v6110 = vld [vmem:[%s5021 + $0x30] sm:$0xe]
      %v6111 = vld [vmem:[%s5021 + $0x3c] sm:$0xe]
      %v6112 = vld [vmem:[%s5021 + $0x48] sm:$0xe]
      %v6113 = vld [vmem:[%s5021 + $0x54] sm:$0xe]
      %v6114 = vld [vmem:[%s5021 + $0x60] sm:$0xe]
      %v6115 = vld [vmem:[%s5021 + $0x6c] sm:$0xe]
      %v6116 = vld [vmem:[%s5021 + $0x78] sm:$0xe]
      %v6117 = vld [vmem:[%s5021 + $0x84] sm:$0xe]
      %v6118 = vld [vmem:[%s5021 + $0x90] sm:$0xe]
      %v6119 = vld [vmem:[%s5021 + $0x9c] sm:$0xe]
      %v6120 = vld [vmem:[%s5021 + $0xa8] sm:$0xe]
      %v6121 = vld [vmem:[%s5021 + $0xb4] sm:$0xe]
      %v6170 = vrot.slane %v6106, 5
      %v6171 = vrot.slane %v6170, 4
      %v6172 = vrot.slane %v5381, 5
      %v6173 = vsel %vm3060, %v6171, %v6172
      %v6174 = vrot.slane %v6172, 4
      %v6175 = vrot.slane %v5382, 5
      %v6176 = vsel %vm3060, %v6174, %v6175
      %v6177 = vrot.slane %v6107, 5
      %v6178 = vrot.slane %v6177, 4
      %v6179 = vrot.slane %v5384, 5
      %v6180 = vsel %vm3060, %v6178, %v6179
      %v6181 = vrot.slane %v6179, 4
      %v6182 = vrot.slane %v5385, 5
      %v6183 = vsel %vm3060, %v6181, %v6182
      %v6184 = vrot.slane %v6108, 5
      %v6185 = vrot.slane %v6184, 4
      %v6186 = vrot.slane %v5387, 5
      %v6187 = vsel %vm3060, %v6185, %v6186
      %v6188 = vrot.slane %v6186, 4
      %v6189 = vrot.slane %v5388, 5
      %v6190 = vsel %vm3060, %v6188, %v6189
      %v6191 = vrot.slane %v6109, 5
      %v6192 = vrot.slane %v6191, 4
      %v6193 = vrot.slane %v5390, 5
      %v6194 = vsel %vm3060, %v6192, %v6193
      %v6195 = vrot.slane %v6193, 4
      %v6196 = vrot.slane %v5391, 5
      %v6197 = vsel %vm3060, %v6195, %v6196
      %v6198 = vrot.slane %v6110, 5
      %v6199 = vrot.slane %v6198, 4
      %v6200 = vrot.slane %v5393, 5
      %v6201 = vsel %vm3060, %v6199, %v6200
      %v6202 = vrot.slane %v6200, 4
      %v6203 = vrot.slane %v5394, 5
      %v6204 = vsel %vm3060, %v6202, %v6203
      %v6205 = vrot.slane %v6111, 5
      %v6206 = vrot.slane %v6205, 4
      %v6207 = vrot.slane %v5396, 5
      %v6208 = vsel %vm3060, %v6206, %v6207
      %v6209 = vrot.slane %v6207, 4
      %v6210 = vrot.slane %v5397, 5
      %v6211 = vsel %vm3060, %v6209, %v6210
      %v6212 = vrot.slane %v6112, 5
      %v6213 = vrot.slane %v6212, 4
      %v6214 = vrot.slane %v5399, 5
      %v6215 = vsel %vm3060, %v6213, %v6214
      %v6216 = vrot.slane %v6214, 4
      %v6217 = vrot.slane %v5400, 5
      %v6218 = vsel %vm3060, %v6216, %v6217
      %v6219 = vrot.slane %v6113, 5
      %v6220 = vrot.slane %v6219, 4
      %v6221 = vrot.slane %v5402, 5
      %v6222 = vsel %vm3060, %v6220, %v6221
      %v6223 = vrot.slane %v6221, 4
      %v6224 = vrot.slane %v5403, 5
      %v6225 = vsel %vm3060, %v6223, %v6224
      %v6226 = vrot.slane %v6114, 5
      %v6227 = vrot.slane %v6226, 4
      %v6228 = vrot.slane %v5405, 5
      %v6229 = vsel %vm3060, %v6227, %v6228
      %v6230 = vrot.slane %v6228, 4
      %v6231 = vrot.slane %v5406, 5
      %v6232 = vsel %vm3060, %v6230, %v6231
      %v6233 = vrot.slane %v6115, 5
      %v6234 = vrot.slane %v6233, 4
      %v6235 = vrot.slane %v5408, 5
      %v6236 = vsel %vm3060, %v6234, %v6235
      %v6237 = vrot.slane %v6235, 4
      %v6238 = vrot.slane %v5409, 5
      %v6239 = vsel %vm3060, %v6237, %v6238
      %v6240 = vrot.slane %v6116, 5
      %v6241 = vrot.slane %v6240, 4
      %v6242 = vrot.slane %v5411, 5
      %v6243 = vsel %vm3060, %v6241, %v6242
      %v6244 = vrot.slane %v6242, 4
      %v6245 = vrot.slane %v5412, 5
      %v6246 = vsel %vm3060, %v6244, %v6245
      %v6247 = vrot.slane %v6117, 5
      %v6248 = vrot.slane %v6247, 4
      %v6249 = vrot.slane %v5414, 5
      %v6250 = vsel %vm3060, %v6248, %v6249
      %v6251 = vrot.slane %v6249, 4
      %v6252 = vrot.slane %v5415, 5
      %v6253 = vsel %vm3060, %v6251, %v6252
      %v6254 = vrot.slane %v6118, 5
      %v6255 = vrot.slane %v6254, 4
      %v6256 = vrot.slane %v5417, 5
      %v6257 = vsel %vm3060, %v6255, %v6256
      %v6258 = vrot.slane %v6256, 4
      %v6259 = vrot.slane %v5418, 5
      %v6260 = vsel %vm3060, %v6258, %v6259
      %v6261 = vrot.slane %v6119, 5
      %v6262 = vrot.slane %v6261, 4
      %v6263 = vrot.slane %v5420, 5
      %v6264 = vsel %vm3060, %v6262, %v6263
      %v6265 = vrot.slane %v6263, 4
      %v6266 = vrot.slane %v5421, 5
      %v6267 = vsel %vm3060, %v6265, %v6266
      %v6268 = vrot.slane %v6120, 5
      %v6269 = vrot.slane %v6268, 4
      %v6270 = vrot.slane %v5423, 5
      %v6271 = vsel %vm3060, %v6269, %v6270
      %v6272 = vrot.slane %v6270, 4
      %v6273 = vrot.slane %v5424, 5
      %v6274 = vsel %vm3060, %v6272, %v6273
      %v6275 = vrot.slane %v6121, 5
      %v6276 = vrot.slane %v6275, 4
      %v6277 = vrot.slane %v5426, 5
      %v6278 = vsel %vm3060, %v6276, %v6277
      %v6279 = vrot.slane %v6277, 4
      %v6280 = vrot.slane %v5427, 5
      %v6281 = vsel %vm3060, %v6279, %v6280
      %s6282 = scalar_lea.vmem %s7, 32
      %v6283 = vld [vmem:[%s6282] sm:$0xf]
      %v6284 = vunpack.c.l.b16 %v6173
      %v6285 = vunpack.c.l.b16 %v6176
      %v6286 = vunpack.c.l.b16 %v6180
      %v6287 = vunpack.c.l.b16 %v6183
      %v6288 = vunpack.c.l.b16 %v6187
      %v6289 = vunpack.c.l.b16 %v6190
      %v6290 = vunpack.c.l.b16 %v6194
      %v6291 = vunpack.c.l.b16 %v6197
      %v6292 = vunpack.c.l.b16 %v6201
      %v6293 = vunpack.c.l.b16 %v6204
      %v6294 = vunpack.c.l.b16 %v6208
      %v6295 = vunpack.c.l.b16 %v6211
      %v6296 = vunpack.c.l.b16 %v6215
      %v6297 = vunpack.c.l.b16 %v6218
      %v6298 = vunpack.c.l.b16 %v6222
      %v6299 = vunpack.c.l.b16 %v6225
      %v6300 = vunpack.c.l.b16 %v6229
      %v6301 = vunpack.c.l.b16 %v6232
      %v6302 = vunpack.c.l.b16 %v6236
      %v6303 = vunpack.c.l.b16 %v6239
      %v6304 = vunpack.c.l.b16 %v6243
      %v6305 = vunpack.c.l.b16 %v6246
      %v6306 = vunpack.c.l.b16 %v6250
      %v6307 = vunpack.c.l.b16 %v6253
      %v6308 = vunpack.c.l.b16 %v6257
      %v6309 = vunpack.c.l.b16 %v6260
      %v6310 = vunpack.c.l.b16 %v6264
      %v6311 = vunpack.c.l.b16 %v6267
      %v6312 = vunpack.c.l.b16 %v6271
      %v6313 = vunpack.c.l.b16 %v6274
      %v6314 = vunpack.c.l.b16 %v6278
      %v6315 = vunpack.c.l.b16 %v6281
      %v6316 = vpack.c.b16 %v6285, %v6284
      %v6317 = vpack.c.b16 %v6287, %v6286
      %v6318 = vpack.c.b16 %v6289, %v6288
      %v6319 = vpack.c.b16 %v6291, %v6290
      %v6320 = vpack.c.b16 %v6293, %v6292
      %v6321 = vpack.c.b16 %v6295, %v6294
      %v6322 = vpack.c.b16 %v6297, %v6296
      %v6323 = vpack.c.b16 %v6299, %v6298
      %v6324 = vpack.c.b16 %v6301, %v6300
      %v6325 = vpack.c.b16 %v6303, %v6302
      %v6326 = vpack.c.b16 %v6305, %v6304
      %v6327 = vpack.c.b16 %v6307, %v6306
      %v6328 = vpack.c.b16 %v6309, %v6308
      %v6329 = vpack.c.b16 %v6311, %v6310
      %v6330 = vpack.c.b16 %v6313, %v6312
      %v6331 = vpack.c.b16 %v6315, %v6314
      %v6333 = vsel %vm1034, %v6316, 0
      %v6336 = vsel %vm1034, %v6317, 0
      %v6339 = vsel %vm1034, %v6318, 0
      %v6342 = vsel %vm1034, %v6319, 0
      %v6345 = vsel %vm1034, %v6320, 0
      %v6348 = vsel %vm1034, %v6321, 0
      %v6351 = vsel %vm1034, %v6322, 0
      %v6354 = vsel %vm1034, %v6323, 0
      %v6357 = vsel %vm1034, %v6324, 0
      %v6360 = vsel %vm1034, %v6325, 0
      %v6363 = vsel %vm1034, %v6326, 0
      %v6366 = vsel %vm1034, %v6327, 0
      %v6369 = vsel %vm1034, %v6328, 0
      %v6372 = vsel %vm1034, %v6329, 0
      %v6375 = vsel %vm1034, %v6330, 0
      %v6378 = vsel %vm1034, %v6331, 0
      %v6381 = vsel %vm791, %v6283, 0
      %6383 = vmatprep.subr.bf16.mxu0 0
      %6384 = vmatpush1.bf16.msra.mxu0 %v6381
      %6385 = vmatprep.subr.bf16.mxu0 0
      %6386 = vmatpush1.bf16.msra.mxu0 0
      %6387 = vmatprep.subr.bf16.mxu0 0
      %6388 = vmatpush1.bf16.msra.mxu0 0
      %6389 = vmatprep.subr.bf16.mxu0 0
      %6390 = vmatpush1.bf16.msra.mxu0 0
      %6391 = vmatprep.subr.bf16.mxu0 0
      %6392 = vmatpush1.bf16.msra.mxu0 0
      %6393 = vmatprep.subr.bf16.mxu0 0
      %6394 = vmatpush1.bf16.msra.mxu0 0
      %6395 = vmatprep.subr.bf16.mxu0 0
      %6396 = vmatpush1.bf16.msra.mxu0 0
      %6397 = vmatprep.subr.bf16.mxu0 0
      %6398 = vmatpush1.bf16.msra.mxu0 0
      %6399 = vmatprep.subr.bf16.mxu0 0
      %6400 = vmatpush1.bf16.msra.mxu0 0
      %6401 = vmatprep.subr.bf16.mxu0 0
      %6402 = vmatpush1.bf16.msra.mxu0 0
      %6403 = vmatprep.subr.bf16.mxu0 0
      %6404 = vmatpush1.bf16.msra.mxu0 0
      %6405 = vmatprep.subr.bf16.mxu0 0
      %6406 = vmatpush1.bf16.msra.mxu0 0
      %6407 = vmatprep.subr.bf16.mxu0 0
      %6408 = vmatpush1.bf16.msra.mxu0 0
      %6409 = vmatprep.subr.bf16.mxu0 0
      %6410 = vmatpush1.bf16.msra.mxu0 0
      %6411 = vmatprep.subr.bf16.mxu0 0
      %6412 = vmatpush1.bf16.msra.mxu0 0
      %6413 = vmatprep.subr.bf16.mxu0 0
      %6414 = vmatpush1.bf16.msra.mxu0 0
      %6415 = vmatprep.mubr.bf16.mxu0 0
      %6416 = vmatmul.mubr.bf16.gmra.mrb[0].mxu0 %v6333
      %v6417 = vpop.f32.mrb[0].mxu0
      %v6418 = vadd.f32 0.0, %v6417
      %v6419 = vpop.f32.mrb[0].mxu0
      %v6420 = vpop.f32.mrb[0].mxu0
      %v6421 = vadd.f32 0.0, %v6420
      %v6422 = vpop.f32.mrb[0].mxu0
      %6423 = vmatprep.mubr.bf16.mxu0 0
      %6424 = vmatmul.mubr.bf16.gmra.mrb[0].mxu0 %v6336
      %v6425 = vpop.f32.mrb[0].mxu0
      %v6426 = vadd.f32 0.0, %v6425
      %v6427 = vpop.f32.mrb[0].mxu0
      %v6428 = vpop.f32.mrb[0].mxu0
      %v6429 = vadd.f32 0.0, %v6428
      %v6430 = vpop.f32.mrb[0].mxu0
      %6431 = vmatprep.mubr.bf16.mxu0 0
      %6432 = vmatmul.mubr.bf16.gmra.mrb[0].mxu0 %v6339
      %v6433 = vpop.f32.mrb[0].mxu0
      %v6434 = vadd.f32 0.0, %v6433
      %v6435 = vpop.f32.mrb[0].mxu0
      %v6436 = vpop.f32.mrb[0].mxu0
      %v6437 = vadd.f32 0.0, %v6436
      %v6438 = vpop.f32.mrb[0].mxu0
      %6439 = vmatprep.mubr.bf16.mxu0 0
      %6440 = vmatmul.mubr.bf16.gmra.mrb[0].mxu0 %v6342
      %v6441 = vpop.f32.mrb[0].mxu0
      %v6442 = vadd.f32 0.0, %v6441
      %v6443 = vpop.f32.mrb[0].mxu0
      %v6444 = vpop.f32.mrb[0].mxu0
      %v6445 = vadd.f32 0.0, %v6444
      %v6446 = vpop.f32.mrb[0].mxu0
      %6447 = vmatprep.mubr.bf16.mxu0 0
      %6448 = vmatmul.mubr.bf16.gmra.mrb[0].mxu0 %v6345
      %v6449 = vpop.f32.mrb[0].mxu0
      %v6450 = vadd.f32 0.0, %v6449
      %v6451 = vpop.f32.mrb[0].mxu0
      %v6452 = vpop.f32.mrb[0].mxu0
      %v6453 = vadd.f32 0.0, %v6452
      %v6454 = vpop.f32.mrb[0].mxu0
      %6455 = vmatprep.mubr.bf16.mxu0 0
      %6456 = vmatmul.mubr.bf16.gmra.mrb[0].mxu0 %v6348
      %v6457 = vpop.f32.mrb[0].mxu0
      %v6458 = vadd.f32 0.0, %v6457
      %v6459 = vpop.f32.mrb[0].mxu0
      %v6460 = vpop.f32.mrb[0].mxu0
      %v6461 = vadd.f32 0.0, %v6460
      %v6462 = vpop.f32.mrb[0].mxu0
      %6463 = vmatprep.mubr.bf16.mxu0 0
      %6464 = vmatmul.mubr.bf16.gmra.mrb[0].mxu0 %v6351
      %v6465 = vpop.f32.mrb[0].mxu0
      %v6466 = vadd.f32 0.0, %v6465
      %v6467 = vpop.f32.mrb[0].mxu0
      %v6468 = vpop.f32.mrb[0].mxu0
      %v6469 = vadd.f32 0.0, %v6468
      %v6470 = vpop.f32.mrb[0].mxu0
      %6471 = vmatprep.mubr.bf16.mxu0 0
      %6472 = vmatmul.mubr.bf16.gmra.mrb[0].mxu0 %v6354
      %v6473 = vpop.f32.mrb[0].mxu0
      %v6474 = vadd.f32 0.0, %v6473
      %v6475 = vpop.f32.mrb[0].mxu0
      %v6476 = vpop.f32.mrb[0].mxu0
      %v6477 = vadd.f32 0.0, %v6476
      %v6478 = vpop.f32.mrb[0].mxu0
      %6479 = vmatprep.mubr.bf16.mxu0 0
      %6480 = vmatmul.mubr.bf16.gmra.mrb[0].mxu0 %v6357
      %v6481 = vpop.f32.mrb[0].mxu0
      %v6482 = vadd.f32 0.0, %v6481
      %v6483 = vpop.f32.mrb[0].mxu0
      %v6484 = vpop.f32.mrb[0].mxu0
      %v6485 = vadd.f32 0.0, %v6484
      %v6486 = vpop.f32.mrb[0].mxu0
      %6487 = vmatprep.mubr.bf16.mxu0 0
      %6488 = vmatmul.mubr.bf16.gmra.mrb[0].mxu0 %v6360
      %v6489 = vpop.f32.mrb[0].mxu0
      %v6490 = vadd.f32 0.0, %v6489
      %v6491 = vpop.f32.mrb[0].mxu0
      %v6492 = vpop.f32.mrb[0].mxu0
      %v6493 = vadd.f32 0.0, %v6492
      %v6494 = vpop.f32.mrb[0].mxu0
      %6495 = vmatprep.mubr.bf16.mxu0 0
      %6496 = vmatmul.mubr.bf16.gmra.mrb[0].mxu0 %v6363
      %v6497 = vpop.f32.mrb[0].mxu0
      %v6498 = vadd.f32 0.0, %v6497
      %v6499 = vpop.f32.mrb[0].mxu0
      %v6500 = vpop.f32.mrb[0].mxu0
      %v6501 = vadd.f32 0.0, %v6500
      %v6502 = vpop.f32.mrb[0].mxu0
      %6503 = vmatprep.mubr.bf16.mxu0 0
      %6504 = vmatmul.mubr.bf16.gmra.mrb[0].mxu0 %v6366
      %v6505 = vpop.f32.mrb[0].mxu0
      %v6506 = vadd.f32 0.0, %v6505
      %v6507 = vpop.f32.mrb[0].mxu0
      %v6508 = vpop.f32.mrb[0].mxu0
      %v6509 = vadd.f32 0.0, %v6508
      %v6510 = vpop.f32.mrb[0].mxu0
      %6511 = vmatprep.mubr.bf16.mxu0 0
      %6512 = vmatmul.mubr.bf16.gmra.mrb[0].mxu0 %v6369
      %v6513 = vpop.f32.mrb[0].mxu0
      %v6514 = vadd.f32 0.0, %v6513
      %v6515 = vpop.f32.mrb[0].mxu0
      %v6516 = vpop.f32.mrb[0].mxu0
      %v6517 = vadd.f32 0.0, %v6516
      %v6518 = vpop.f32.mrb[0].mxu0
      %6519 = vmatprep.mubr.bf16.mxu0 0
      %6520 = vmatmul.mubr.bf16.gmra.mrb[0].mxu0 %v6372
      %v6521 = vpop.f32.mrb[0].mxu0
      %v6522 = vadd.f32 0.0, %v6521
      %v6523 = vpop.f32.mrb[0].mxu0
      %v6524 = vpop.f32.mrb[0].mxu0
      %v6525 = vadd.f32 0.0, %v6524
      %v6526 = vpop.f32.mrb[0].mxu0
      %6527 = vmatprep.mubr.bf16.mxu0 0
      %6528 = vmatmul.mubr.bf16.gmra.mrb[0].mxu0 %v6375
      %v6529 = vpop.f32.mrb[0].mxu0
      %v6530 = vadd.f32 0.0, %v6529
      %v6531 = vpop.f32.mrb[0].mxu0
      %v6532 = vpop.f32.mrb[0].mxu0
      %v6533 = vadd.f32 0.0, %v6532
      %v6534 = vpop.f32.mrb[0].mxu0
      %6535 = vmatprep.mubr.bf16.mxu0 0
      %6536 = vmatmul.mubr.bf16.gmra.mrb[0].mxu0 %v6378
      %v6537 = vpop.f32.mrb[0].mxu0
      %v6538 = vadd.f32 0.0, %v6537
      %v6539 = vpop.f32.mrb[0].mxu0
      %v6540 = vpop.f32.mrb[0].mxu0
      %v6541 = vadd.f32 0.0, %v6540
      %v6542 = vpop.f32.mrb[0].mxu0
      %6543 = vdwg.mxu0
      %v6544 = vadd.f32 %v6074, %v6418
      %v6545 = vadd.f32 %v6075, %v6421
      %v6546 = vadd.f32 %v6076, %v6426
      %v6547 = vadd.f32 %v6077, %v6429
      %v6548 = vadd.f32 %v6078, %v6434
      %v6549 = vadd.f32 %v6079, %v6437
      %v6550 = vadd.f32 %v6080, %v6442
      %v6551 = vadd.f32 %v6081, %v6445
      %v6552 = vadd.f32 %v6082, %v6450
      %v6553 = vadd.f32 %v6083, %v6453
      %v6554 = vadd.f32 %v6084, %v6458
      %v6555 = vadd.f32 %v6085, %v6461
      %v6556 = vadd.f32 %v6086, %v6466
      %v6557 = vadd.f32 %v6087, %v6469
      %v6558 = vadd.f32 %v6088, %v6474
      %v6559 = vadd.f32 %v6089, %v6477
      %v6560 = vadd.f32 %v6090, %v6482
      %v6561 = vadd.f32 %v6091, %v6485
      %v6562 = vadd.f32 %v6092, %v6490
      %v6563 = vadd.f32 %v6093, %v6493
      %v6564 = vadd.f32 %v6094, %v6498
      %v6565 = vadd.f32 %v6095, %v6501
      %v6566 = vadd.f32 %v6096, %v6506
      %v6567 = vadd.f32 %v6097, %v6509
      %v6568 = vadd.f32 %v6098, %v6514
      %v6569 = vadd.f32 %v6099, %v6517
      %v6570 = vadd.f32 %v6100, %v6522
      %v6571 = vadd.f32 %v6101, %v6525
      %v6572 = vadd.f32 %v6102, %v6530
      %v6573 = vadd.f32 %v6103, %v6533
      %v6574 = vadd.f32 %v6104, %v6538
      %v6575 = vadd.f32 %v6105, %v6541
      %v6577 = vlaneseq
      %v6578 = vshrl.u32 %v6577, 7
      %v6579 = vsub.s32 0, %v6578
      %v6580 = vrot.slane %v2019, %v6579
      %v6582 = vadd.f32 %v6544, %v6580
      %v6583 = vadd.f32 %v6545, %v6580
      %v6584 = vadd.f32 %v6546, %v6580
      %v6585 = vadd.f32 %v6547, %v6580
      %v6586 = vadd.f32 %v6548, %v6580
      %v6587 = vadd.f32 %v6549, %v6580
      %v6588 = vadd.f32 %v6550, %v6580
      %v6589 = vadd.f32 %v6551, %v6580
      %v6590 = vadd.f32 %v6552, %v6580
      %v6591 = vadd.f32 %v6553, %v6580
      %v6592 = vadd.f32 %v6554, %v6580
      %v6593 = vadd.f32 %v6555, %v6580
      %v6594 = vadd.f32 %v6556, %v6580
      %v6595 = vadd.f32 %v6557, %v6580
      %v6596 = vadd.f32 %v6558, %v6580
      %v6597 = vadd.f32 %v6559, %v6580
      %v6598 = vadd.f32 %v6560, %v6580
      %v6599 = vadd.f32 %v6561, %v6580
      %v6600 = vadd.f32 %v6562, %v6580
      %v6601 = vadd.f32 %v6563, %v6580
      %v6602 = vadd.f32 %v6564, %v6580
      %v6603 = vadd.f32 %v6565, %v6580
      %v6604 = vadd.f32 %v6566, %v6580
      %v6605 = vadd.f32 %v6567, %v6580
      %v6606 = vadd.f32 %v6568, %v6580
      %v6607 = vadd.f32 %v6569, %v6580
      %v6608 = vadd.f32 %v6570, %v6580
      %v6609 = vadd.f32 %v6571, %v6580
      %v6610 = vadd.f32 %v6572, %v6580
      %v6611 = vadd.f32 %v6573, %v6580
      %v6612 = vadd.f32 %v6574, %v6580
      %v6613 = vadd.f32 %v6575, %v6580
      %v6614 = vmax.f32 %v6582, 0.0
      %v6615 = vmax.f32 %v6583, 0.0
      %v6616 = vmax.f32 %v6584, 0.0
      %v6617 = vmax.f32 %v6585, 0.0
      %v6618 = vmax.f32 %v6586, 0.0
      %v6619 = vmax.f32 %v6587, 0.0
      %v6620 = vmax.f32 %v6588, 0.0
      %v6621 = vmax.f32 %v6589, 0.0
      %v6622 = vmax.f32 %v6590, 0.0
      %v6623 = vmax.f32 %v6591, 0.0
      %v6624 = vmax.f32 %v6592, 0.0
      %v6625 = vmax.f32 %v6593, 0.0
      %v6626 = vmax.f32 %v6594, 0.0
      %v6627 = vmax.f32 %v6595, 0.0
      %v6628 = vmax.f32 %v6596, 0.0
      %v6629 = vmax.f32 %v6597, 0.0
      %v6630 = vmax.f32 %v6598, 0.0
      %v6631 = vmax.f32 %v6599, 0.0
      %v6632 = vmax.f32 %v6600, 0.0
      %v6633 = vmax.f32 %v6601, 0.0
      %v6634 = vmax.f32 %v6602, 0.0
      %v6635 = vmax.f32 %v6603, 0.0
      %v6636 = vmax.f32 %v6604, 0.0
      %v6637 = vmax.f32 %v6605, 0.0
      %v6638 = vmax.f32 %v6606, 0.0
      %v6639 = vmax.f32 %v6607, 0.0
      %v6640 = vmax.f32 %v6608, 0.0
      %v6641 = vmax.f32 %v6609, 0.0
      %v6642 = vmax.f32 %v6610, 0.0
      %v6643 = vmax.f32 %v6611, 0.0
      %v6644 = vmax.f32 %v6612, 0.0
      %v6645 = vmax.f32 %v6613, 0.0
      %v6646 = vpack.c.bf16 %v6615, %v6614
      %v6647 = vpack.c.bf16 %v6617, %v6616
      %v6648 = vpack.c.bf16 %v6619, %v6618
      %v6649 = vpack.c.bf16 %v6621, %v6620
      %v6650 = vpack.c.bf16 %v6623, %v6622
      %v6651 = vpack.c.bf16 %v6625, %v6624
      %v6652 = vpack.c.bf16 %v6627, %v6626
      %v6653 = vpack.c.bf16 %v6629, %v6628
      %v6654 = vpack.c.bf16 %v6631, %v6630
      %v6655 = vpack.c.bf16 %v6633, %v6632
      %v6656 = vpack.c.bf16 %v6635, %v6634
      %v6657 = vpack.c.bf16 %v6637, %v6636
      %v6658 = vpack.c.bf16 %v6639, %v6638
      %v6659 = vpack.c.bf16 %v6641, %v6640
      %v6660 = vpack.c.bf16 %v6643, %v6642
      %v6661 = vpack.c.bf16 %v6645, %v6644
      %v6678 = vunpack.c.l.b16 %v6646
      %v6679 = vunpack.c.h.b16 %v6646
      %v6680 = vunpack.c.l.b16 %v6647
      %v6681 = vunpack.c.h.b16 %v6647
      %v6682 = vunpack.c.l.b16 %v6648
      %v6683 = vunpack.c.h.b16 %v6648
      %v6684 = vunpack.c.l.b16 %v6649
      %v6685 = vunpack.c.h.b16 %v6649
      %v6686 = vunpack.c.l.b16 %v6650
      %v6687 = vunpack.c.h.b16 %v6650
      %v6688 = vunpack.c.l.b16 %v6651
      %v6689 = vunpack.c.h.b16 %v6651
      %v6690 = vunpack.c.l.b16 %v6652
      %v6691 = vunpack.c.h.b16 %v6652
      %v6692 = vunpack.c.l.b16 %v6653
      %v6693 = vunpack.c.h.b16 %v6653
      %v6694 = vunpack.c.l.b16 %v6654
      %v6695 = vunpack.c.h.b16 %v6654
      %v6696 = vunpack.c.l.b16 %v6655
      %v6697 = vunpack.c.h.b16 %v6655
      %v6698 = vunpack.c.l.b16 %v6656
      %v6699 = vunpack.c.h.b16 %v6656
      %v6700 = vunpack.c.l.b16 %v6657
      %v6701 = vunpack.c.h.b16 %v6657
      %v6702 = vunpack.c.l.b16 %v6658
      %v6703 = vunpack.c.h.b16 %v6658
      %v6704 = vunpack.c.l.b16 %v6659
      %v6705 = vunpack.c.h.b16 %v6659
      %v6706 = vunpack.c.l.b16 %v6660
      %v6707 = vunpack.c.h.b16 %v6660
      %v6708 = vunpack.c.l.b16 %v6661
      %v6709 = vunpack.c.h.b16 %v6661
      %v6710 = vpack.c.b16 %v6678, %v6678
      %v6711 = vpack.c.b16 %v6679, %v6679
      %v6712 = vpack.c.b16 %v6680, %v6680
      %v6713 = vpack.c.b16 %v6681, %v6681
      %v6714 = vpack.c.b16 %v6682, %v6682
      %v6715 = vpack.c.b16 %v6683, %v6683
      %v6716 = vpack.c.b16 %v6684, %v6684
      %v6717 = vpack.c.b16 %v6685, %v6685
      %v6718 = vpack.c.b16 %v6686, %v6686
      %v6719 = vpack.c.b16 %v6687, %v6687
      %v6720 = vpack.c.b16 %v6688, %v6688
      %v6721 = vpack.c.b16 %v6689, %v6689
      %v6722 = vpack.c.b16 %v6690, %v6690
      %v6723 = vpack.c.b16 %v6691, %v6691
      %v6724 = vpack.c.b16 %v6692, %v6692
      %v6725 = vpack.c.b16 %v6693, %v6693
      %v6726 = vpack.c.b16 %v6694, %v6694
      %v6727 = vpack.c.b16 %v6695, %v6695
      %v6728 = vpack.c.b16 %v6696, %v6696
      %v6729 = vpack.c.b16 %v6697, %v6697
      %v6730 = vpack.c.b16 %v6698, %v6698
      %v6731 = vpack.c.b16 %v6699, %v6699
      %v6732 = vpack.c.b16 %v6700, %v6700
      %v6733 = vpack.c.b16 %v6701, %v6701
      %v6734 = vpack.c.b16 %v6702, %v6702
      %v6735 = vpack.c.b16 %v6703, %v6703
      %v6736 = vpack.c.b16 %v6704, %v6704
      %v6737 = vpack.c.b16 %v6705, %v6705
      %v6738 = vpack.c.b16 %v6706, %v6706
      %v6739 = vpack.c.b16 %v6707, %v6707
      %v6740 = vpack.c.b16 %v6708, %v6708
      %v6741 = vpack.c.b16 %v6709, %v6709
      %v6743 = vshrl.u32 %v6710, 16
      %v6745 = vrot.slane %v6743, 7
      %v6746 = vshll.u32 %v6710, 16
      %v6748 = vor.u32 %v6745, %v6746
      %v6749 = vrot.slane %v6745, 4
      %v6751 = vshrl.u32 %v6711, 16
      %v6753 = vrot.slane %v6751, 7
      %v6754 = vshll.u32 %v6711, 16
      %v6756 = vor.u32 %v6753, %v6754
      %v6757 = vsel %vm1583, %v6749, %v6756
      %v6758 = vrot.slane %v6753, 4
      %v6760 = vshrl.u32 %v6712, 16
      %v6762 = vrot.slane %v6760, 7
      %v6763 = vshll.u32 %v6712, 16
      %v6765 = vor.u32 %v6762, %v6763
      %v6766 = vrot.slane %v6762, 4
      %v6768 = vshrl.u32 %v6713, 16
      %v6770 = vrot.slane %v6768, 7
      %v6771 = vshll.u32 %v6713, 16
      %v6773 = vor.u32 %v6770, %v6771
      %v6774 = vsel %vm1583, %v6766, %v6773
      %v6775 = vrot.slane %v6770, 4
      %v6777 = vshrl.u32 %v6714, 16
      %v6779 = vrot.slane %v6777, 7
      %v6780 = vshll.u32 %v6714, 16
      %v6782 = vor.u32 %v6779, %v6780
      %v6783 = vrot.slane %v6779, 4
      %v6785 = vshrl.u32 %v6715, 16
      %v6787 = vrot.slane %v6785, 7
      %v6788 = vshll.u32 %v6715, 16
      %v6790 = vor.u32 %v6787, %v6788
      %v6791 = vsel %vm1583, %v6783, %v6790
      %v6792 = vrot.slane %v6787, 4
      %v6794 = vshrl.u32 %v6716, 16
      %v6796 = vrot.slane %v6794, 7
      %v6797 = vshll.u32 %v6716, 16
      %v6799 = vor.u32 %v6796, %v6797
      %v6800 = vrot.slane %v6796, 4
      %v6802 = vshrl.u32 %v6717, 16
      %v6804 = vrot.slane %v6802, 7
      %v6805 = vshll.u32 %v6717, 16
      %v6807 = vor.u32 %v6804, %v6805
      %v6808 = vsel %vm1583, %v6800, %v6807
      %v6809 = vrot.slane %v6804, 4
      %v6811 = vshrl.u32 %v6718, 16
      %v6813 = vrot.slane %v6811, 7
      %v6814 = vshll.u32 %v6718, 16
      %v6816 = vor.u32 %v6813, %v6814
      %v6817 = vrot.slane %v6813, 4
      %v6819 = vshrl.u32 %v6719, 16
      %v6821 = vrot.slane %v6819, 7
      %v6822 = vshll.u32 %v6719, 16
      %v6824 = vor.u32 %v6821, %v6822
      %v6825 = vsel %vm1583, %v6817, %v6824
      %v6826 = vrot.slane %v6821, 4
      %v6828 = vshrl.u32 %v6720, 16
      %v6830 = vrot.slane %v6828, 7
      %v6831 = vshll.u32 %v6720, 16
      %v6833 = vor.u32 %v6830, %v6831
      %v6834 = vrot.slane %v6830, 4
      %v6836 = vshrl.u32 %v6721, 16
      %v6838 = vrot.slane %v6836, 7
      %v6839 = vshll.u32 %v6721, 16
      %v6841 = vor.u32 %v6838, %v6839
      %v6842 = vsel %vm1583, %v6834, %v6841
      %v6843 = vrot.slane %v6838, 4
      %v6845 = vshrl.u32 %v6722, 16
      %v6847 = vrot.slane %v6845, 7
      %v6848 = vshll.u32 %v6722, 16
      %v6850 = vor.u32 %v6847, %v6848
      %v6851 = vrot.slane %v6847, 4
      %v6853 = vshrl.u32 %v6723, 16
      %v6855 = vrot.slane %v6853, 7
      %v6856 = vshll.u32 %v6723, 16
      %v6858 = vor.u32 %v6855, %v6856
      %v6859 = vsel %vm1583, %v6851, %v6858
      %v6860 = vrot.slane %v6855, 4
      %v6862 = vshrl.u32 %v6724, 16
      %v6864 = vrot.slane %v6862, 7
      %v6865 = vshll.u32 %v6724, 16
      %v6867 = vor.u32 %v6864, %v6865
      %v6868 = vrot.slane %v6864, 4
      %v6870 = vshrl.u32 %v6725, 16
      %v6872 = vrot.slane %v6870, 7
      %v6873 = vshll.u32 %v6725, 16
      %v6875 = vor.u32 %v6872, %v6873
      %v6876 = vsel %vm1583, %v6868, %v6875
      %v6877 = vrot.slane %v6872, 4
      %v6879 = vshrl.u32 %v6726, 16
      %v6881 = vrot.slane %v6879, 7
      %v6882 = vshll.u32 %v6726, 16
      %v6884 = vor.u32 %v6881, %v6882
      %v6885 = vrot.slane %v6881, 4
      %v6887 = vshrl.u32 %v6727, 16
      %v6889 = vrot.slane %v6887, 7
      %v6890 = vshll.u32 %v6727, 16
      %v6892 = vor.u32 %v6889, %v6890
      %v6893 = vsel %vm1583, %v6885, %v6892
      %v6894 = vrot.slane %v6889, 4
      %v6896 = vshrl.u32 %v6728, 16
      %v6898 = vrot.slane %v6896, 7
      %v6899 = vshll.u32 %v6728, 16
      %v6901 = vor.u32 %v6898, %v6899
      %v6902 = vrot.slane %v6898, 4
      %v6904 = vshrl.u32 %v6729, 16
      %v6906 = vrot.slane %v6904, 7
      %v6907 = vshll.u32 %v6729, 16
      %v6909 = vor.u32 %v6906, %v6907
      %v6910 = vsel %vm1583, %v6902, %v6909
      %v6911 = vrot.slane %v6906, 4
      %v6913 = vshrl.u32 %v6730, 16
      %v6915 = vrot.slane %v6913, 7
      %v6916 = vshll.u32 %v6730, 16
      %v6918 = vor.u32 %v6915, %v6916
      %v6919 = vrot.slane %v6915, 4
      %v6921 = vshrl.u32 %v6731, 16
      %v6923 = vrot.slane %v6921, 7
      %v6924 = vshll.u32 %v6731, 16
      %v6926 = vor.u32 %v6923, %v6924
      %v6927 = vsel %vm1583, %v6919, %v6926
      %v6928 = vrot.slane %v6923, 4
      %v6930 = vshrl.u32 %v6732, 16
      %v6932 = vrot.slane %v6930, 7
      %v6933 = vshll.u32 %v6732, 16
      %v6935 = vor.u32 %v6932, %v6933
      %v6936 = vrot.slane %v6932, 4
      %v6938 = vshrl.u32 %v6733, 16
      %v6940 = vrot.slane %v6938, 7
      %v6941 = vshll.u32 %v6733, 16
      %v6943 = vor.u32 %v6940, %v6941
      %v6944 = vsel %vm1583, %v6936, %v6943
      %v6945 = vrot.slane %v6940, 4
      %v6947 = vshrl.u32 %v6734, 16
      %v6949 = vrot.slane %v6947, 7
      %v6950 = vshll.u32 %v6734, 16
      %v6952 = vor.u32 %v6949, %v6950
      %v6953 = vrot.slane %v6949, 4
      %v6955 = vshrl.u32 %v6735, 16
      %v6957 = vrot.slane %v6955, 7
      %v6958 = vshll.u32 %v6735, 16
      %v6960 = vor.u32 %v6957, %v6958
      %v6961 = vsel %vm1583, %v6953, %v6960
      %v6962 = vrot.slane %v6957, 4
      %v6964 = vshrl.u32 %v6736, 16
      %v6966 = vrot.slane %v6964, 7
      %v6967 = vshll.u32 %v6736, 16
      %v6969 = vor.u32 %v6966, %v6967
      %v6970 = vrot.slane %v6966, 4
      %v6972 = vshrl.u32 %v6737, 16
      %v6974 = vrot.slane %v6972, 7
      %v6975 = vshll.u32 %v6737, 16
      %v6977 = vor.u32 %v6974, %v6975
      %v6978 = vsel %vm1583, %v6970, %v6977
      %v6979 = vrot.slane %v6974, 4
      %v6981 = vshrl.u32 %v6738, 16
      %v6983 = vrot.slane %v6981, 7
      %v6984 = vshll.u32 %v6738, 16
      %v6986 = vor.u32 %v6983, %v6984
      %v6987 = vrot.slane %v6983, 4
      %v6989 = vshrl.u32 %v6739, 16
      %v6991 = vrot.slane %v6989, 7
      %v6992 = vshll.u32 %v6739, 16
      %v6994 = vor.u32 %v6991, %v6992
      %v6995 = vsel %vm1583, %v6987, %v6994
      %v6996 = vrot.slane %v6991, 4
      %v6998 = vshrl.u32 %v6740, 16
      %v7000 = vrot.slane %v6998, 7
      %v7001 = vshll.u32 %v6740, 16
      %v7003 = vor.u32 %v7000, %v7001
      %v7004 = vrot.slane %v7000, 4
      %v7006 = vshrl.u32 %v6741, 16
      %v7008 = vrot.slane %v7006, 7
      %v7009 = vshll.u32 %v6741, 16
      %v7011 = vor.u32 %v7008, %v7009
      %v7012 = vsel %vm1583, %v7004, %v7011
      %v7013 = vrot.slane %v7008, 4
      %s7062 = scalar_lea.vmem [#allocation3], 12
      %vm7063 = vcmask 27648
      %vm7064 = vmand %vm7063, %vm474
      %v7065 = vld [vmem:[%s7062] sm:$0xf]
      %v7066 = vsel %vm7064, %v6748, %v7065
      %7067 = vst [vmem:[%s7062] sm:$0xf] %v7066
      %7068 = vst.msk [vmem:[%s7062 + $0x4] sm:$0xf] %vm530, %v6757
      %v7069 = vld [vmem:[%s7062 + $0x8] sm:$0x1]
      %v7070 = vsel %vm540, %v6758, %v7069
      %7071 = vst [vmem:[%s7062 + $0x8] sm:$0x1] %v7070
      %v7072 = vld [vmem:[%s7062 + $0xc] sm:$0xf]
      %v7073 = vsel %vm7064, %v6765, %v7072
      %7074 = vst [vmem:[%s7062 + $0xc] sm:$0xf] %v7073
      %7075 = vst.msk [vmem:[%s7062 + $0x10] sm:$0xf] %vm530, %v6774
      %v7076 = vld [vmem:[%s7062 + $0x14] sm:$0x1]
      %v7077 = vsel %vm540, %v6775, %v7076
      %7078 = vst [vmem:[%s7062 + $0x14] sm:$0x1] %v7077
      %v7079 = vld [vmem:[%s7062 + $0x18] sm:$0xf]
      %v7080 = vsel %vm7064, %v6782, %v7079
      %7081 = vst [vmem:[%s7062 + $0x18] sm:$0xf] %v7080
      %7082 = vst.msk [vmem:[%s7062 + $0x1c] sm:$0xf] %vm530, %v6791
      %v7083 = vld [vmem:[%s7062 + $0x20] sm:$0x1]
      %v7084 = vsel %vm540, %v6792, %v7083
      %7085 = vst [vmem:[%s7062 + $0x20] sm:$0x1] %v7084
      %v7086 = vld [vmem:[%s7062 + $0x24] sm:$0xf]
      %v7087 = vsel %vm7064, %v6799, %v7086
      %7088 = vst [vmem:[%s7062 + $0x24] sm:$0xf] %v7087
      %7089 = vst.msk [vmem:[%s7062 + $0x28] sm:$0xf] %vm530, %v6808
      %v7090 = vld [vmem:[%s7062 + $0x2c] sm:$0x1]
      %v7091 = vsel %vm540, %v6809, %v7090
      %7092 = vst [vmem:[%s7062 + $0x2c] sm:$0x1] %v7091
      %v7093 = vld [vmem:[%s7062 + $0x30] sm:$0xf]
      %v7094 = vsel %vm7064, %v6816, %v7093
      %7095 = vst [vmem:[%s7062 + $0x30] sm:$0xf] %v7094
      %7096 = vst.msk [vmem:[%s7062 + $0x34] sm:$0xf] %vm530, %v6825
      %v7097 = vld [vmem:[%s7062 + $0x38] sm:$0x1]
      %v7098 = vsel %vm540, %v6826, %v7097
      %7099 = vst [vmem:[%s7062 + $0x38] sm:$0x1] %v7098
      %v7100 = vld [vmem:[%s7062 + $0x3c] sm:$0xf]
      %v7101 = vsel %vm7064, %v6833, %v7100
      %7102 = vst [vmem:[%s7062 + $0x3c] sm:$0xf] %v7101
      %7103 = vst.msk [vmem:[%s7062 + $0x40] sm:$0xf] %vm530, %v6842
      %v7104 = vld [vmem:[%s7062 + $0x44] sm:$0x1]
      %v7105 = vsel %vm540, %v6843, %v7104
      %7106 = vst [vmem:[%s7062 + $0x44] sm:$0x1] %v7105
      %v7107 = vld [vmem:[%s7062 + $0x48] sm:$0xf]
      %v7108 = vsel %vm7064, %v6850, %v7107
      %7109 = vst [vmem:[%s7062 + $0x48] sm:$0xf] %v7108
      %7110 = vst.msk [vmem:[%s7062 + $0x4c] sm:$0xf] %vm530, %v6859
      %v7111 = vld [vmem:[%s7062 + $0x50] sm:$0x1]
      %v7112 = vsel %vm540, %v6860, %v7111
      %7113 = vst [vmem:[%s7062 + $0x50] sm:$0x1] %v7112
      %v7114 = vld [vmem:[%s7062 + $0x54] sm:$0xf]
      %v7115 = vsel %vm7064, %v6867, %v7114
      %7116 = vst [vmem:[%s7062 + $0x54] sm:$0xf] %v7115
      %7117 = vst.msk [vmem:[%s7062 + $0x58] sm:$0xf] %vm530, %v6876
      %v7118 = vld [vmem:[%s7062 + $0x5c] sm:$0x1]
      %v7119 = vsel %vm540, %v6877, %v7118
      %7120 = vst [vmem:[%s7062 + $0x5c] sm:$0x1] %v7119
      %v7121 = vld [vmem:[%s7062 + $0x60] sm:$0xf]
      %v7122 = vsel %vm7064, %v6884, %v7121
      %7123 = vst [vmem:[%s7062 + $0x60] sm:$0xf] %v7122
      %7124 = vst.msk [vmem:[%s7062 + $0x64] sm:$0xf] %vm530, %v6893
      %v7125 = vld [vmem:[%s7062 + $0x68] sm:$0x1]
      %v7126 = vsel %vm540, %v6894, %v7125
      %7127 = vst [vmem:[%s7062 + $0x68] sm:$0x1] %v7126
      %v7128 = vld [vmem:[%s7062 + $0x6c] sm:$0xf]
      %v7129 = vsel %vm7064, %v6901, %v7128
      %7130 = vst [vmem:[%s7062 + $0x6c] sm:$0xf] %v7129
      %7131 = vst.msk [vmem:[%s7062 + $0x70] sm:$0xf] %vm530, %v6910
      %v7132 = vld [vmem:[%s7062 + $0x74] sm:$0x1]
      %v7133 = vsel %vm540, %v6911, %v7132
      %7134 = vst [vmem:[%s7062 + $0x74] sm:$0x1] %v7133
      %v7135 = vld [vmem:[%s7062 + $0x78] sm:$0xf]
      %v7136 = vsel %vm7064, %v6918, %v7135
      %7137 = vst [vmem:[%s7062 + $0x78] sm:$0xf] %v7136
      %7138 = vst.msk [vmem:[%s7062 + $0x7c] sm:$0xf] %vm530, %v6927
      %v7139 = vld [vmem:[%s7062 + $0x80] sm:$0x1]
      %v7140 = vsel %vm540, %v6928, %v7139
      %7141 = vst [vmem:[%s7062 + $0x80] sm:$0x1] %v7140
      %v7142 = vld [vmem:[%s7062 + $0x84] sm:$0xf]
      %v7143 = vsel %vm7064, %v6935, %v7142
      %7144 = vst [vmem:[%s7062 + $0x84] sm:$0xf] %v7143
      %7145 = vst.msk [vmem:[%s7062 + $0x88] sm:$0xf] %vm530, %v6944
      %v7146 = vld [vmem:[%s7062 + $0x8c] sm:$0x1]
      %v7147 = vsel %vm540, %v6945, %v7146
      %7148 = vst [vmem:[%s7062 + $0x8c] sm:$0x1] %v7147
      %v7149 = vld [vmem:[%s7062 + $0x90] sm:$0xf]
      %v7150 = vsel %vm7064, %v6952, %v7149
      %7151 = vst [vmem:[%s7062 + $0x90] sm:$0xf] %v7150
      %7152 = vst.msk [vmem:[%s7062 + $0x94] sm:$0xf] %vm530, %v6961
      %v7153 = vld [vmem:[%s7062 + $0x98] sm:$0x1]
      %v7154 = vsel %vm540, %v6962, %v7153
      %7155 = vst [vmem:[%s7062 + $0x98] sm:$0x1] %v7154
      %v7156 = vld [vmem:[%s7062 + $0x9c] sm:$0xf]
      %v7157 = vsel %vm7064, %v6969, %v7156
      %7158 = vst [vmem:[%s7062 + $0x9c] sm:$0xf] %v7157
      %7159 = vst.msk [vmem:[%s7062 + $0xa0] sm:$0xf] %vm530, %v6978
      %v7160 = vld [vmem:[%s7062 + $0xa4] sm:$0x1]
      %v7161 = vsel %vm540, %v6979, %v7160
      %7162 = vst [vmem:[%s7062 + $0xa4] sm:$0x1] %v7161
      %v7163 = vld [vmem:[%s7062 + $0xa8] sm:$0xf]
      %v7164 = vsel %vm7064, %v6986, %v7163
      %7165 = vst [vmem:[%s7062 + $0xa8] sm:$0xf] %v7164
      %7166 = vst.msk [vmem:[%s7062 + $0xac] sm:$0xf] %vm530, %v6995
      %v7167 = vld [vmem:[%s7062 + $0xb0] sm:$0x1]
      %v7168 = vsel %vm540, %v6996, %v7167
      %7169 = vst [vmem:[%s7062 + $0xb0] sm:$0x1] %v7168
      %v7170 = vld [vmem:[%s7062 + $0xb4] sm:$0xf]
      %v7171 = vsel %vm7064, %v7003, %v7170
      %7172 = vst [vmem:[%s7062 + $0xb4] sm:$0xf] %v7171
      %7173 = vst.msk [vmem:[%s7062 + $0xb8] sm:$0xf] %vm530, %v7012
      %v7174 = vld [vmem:[%s7062 + $0xbc] sm:$0x1]
      %v7175 = vsel %vm540, %v7013, %v7174
      %7176 = vst [vmem:[%s7062 + $0xbc] sm:$0x1] %v7175
      %v7177 = vld [vmem:[%s10] sm:$0x1]
      %v7178 = vld [vmem:[#allocation3] sm:$0xf]
      %v7179 = vld [vmem:[#allocation3 + $0x4] sm:$0xf]
      %v7180 = vld [vmem:[#allocation3 + $0xc] sm:$0xf]
      %v7181 = vld [vmem:[#allocation3 + $0x10] sm:$0xf]
      %v7182 = vld [vmem:[#allocation3 + $0x18] sm:$0xf]
      %v7183 = vld [vmem:[#allocation3 + $0x1c] sm:$0xf]
      %v7184 = vld [vmem:[#allocation3 + $0x24] sm:$0xf]
      %v7185 = vld [vmem:[#allocation3 + $0x28] sm:$0xf]
      %v7186 = vld [vmem:[#allocation3 + $0x30] sm:$0xf]
      %v7187 = vld [vmem:[#allocation3 + $0x34] sm:$0xf]
      %v7188 = vld [vmem:[#allocation3 + $0x3c] sm:$0xf]
      %v7189 = vld [vmem:[#allocation3 + $0x40] sm:$0xf]
      %v7190 = vld [vmem:[#allocation3 + $0x48] sm:$0xf]
      %v7191 = vld [vmem:[#allocation3 + $0x4c] sm:$0xf]
      %v7192 = vld [vmem:[#allocation3 + $0x54] sm:$0xf]
      %v7193 = vld [vmem:[#allocation3 + $0x58] sm:$0xf]
      %v7194 = vld [vmem:[#allocation3 + $0x60] sm:$0xf]
      %v7195 = vld [vmem:[#allocation3 + $0x64] sm:$0xf]
      %v7196 = vld [vmem:[#allocation3 + $0x6c] sm:$0xf]
      %v7197 = vld [vmem:[#allocation3 + $0x70] sm:$0xf]
      %v7198 = vld [vmem:[#allocation3 + $0x78] sm:$0xf]
      %v7199 = vld [vmem:[#allocation3 + $0x7c] sm:$0xf]
      %v7200 = vld [vmem:[#allocation3 + $0x84] sm:$0xf]
      %v7201 = vld [vmem:[#allocation3 + $0x88] sm:$0xf]
      %v7202 = vld [vmem:[#allocation3 + $0x90] sm:$0xf]
      %v7203 = vld [vmem:[#allocation3 + $0x94] sm:$0xf]
      %v7204 = vld [vmem:[#allocation3 + $0x9c] sm:$0xf]
      %v7205 = vld [vmem:[#allocation3 + $0xa0] sm:$0xf]
      %v7206 = vld [vmem:[#allocation3 + $0xa8] sm:$0xf]
      %v7207 = vld [vmem:[#allocation3 + $0xac] sm:$0xf]
      %v7208 = vld [vmem:[#allocation3 + $0xb4] sm:$0xf]
      %v7209 = vld [vmem:[#allocation3 + $0xb8] sm:$0xf]
      %v7210 = vld [vmem:[%s9] sm:$0x3]
      %v7211 = vld [vmem:[#allocation3 + $0x8] sm:$0x1]
      %v7212 = vld [vmem:[#allocation3 + $0x14] sm:$0x1]
      %v7213 = vld [vmem:[#allocation3 + $0x20] sm:$0x1]
      %v7214 = vld [vmem:[#allocation3 + $0x2c] sm:$0x1]
      %v7215 = vld [vmem:[#allocation3 + $0x38] sm:$0x1]
      %v7216 = vld [vmem:[#allocation3 + $0x44] sm:$0x1]
      %v7217 = vld [vmem:[#allocation3 + $0x50] sm:$0x1]
      %v7218 = vld [vmem:[#allocation3 + $0x5c] sm:$0x1]
      %v7219 = vld [vmem:[#allocation3 + $0x68] sm:$0x1]
      %v7220 = vld [vmem:[#allocation3 + $0x74] sm:$0x1]
      %v7221 = vld [vmem:[#allocation3 + $0x80] sm:$0x1]
      %v7222 = vld [vmem:[#allocation3 + $0x8c] sm:$0x1]
      %v7223 = vld [vmem:[#allocation3 + $0x98] sm:$0x1]
      %v7224 = vld [vmem:[#allocation3 + $0xa4] sm:$0x1]
      %v7225 = vld [vmem:[#allocation3 + $0xb0] sm:$0x1]
      %v7226 = vld [vmem:[#allocation3 + $0xbc] sm:$0x1]
      %v7228 = vshrl.u32 %v7178, 16
      %v7230 = vrot.slane %v7228, 4
      %v7231 = vshll.u32 %v7178, 16
      %v7233 = vrot.slane %v7231, 5
      %v7234 = vor.u32 %v7230, %v7233
      %v7235 = vrot.slane %v7234, 4
      %v7237 = vshll.u32 %v7179, 16
      %v7239 = vrot.slane %v7237, 5
      %v7240 = vsel %vm2071, %v7235, %v7239
      %v7241 = vshrl.u32 %v7179, 16
      %v7243 = vrot.slane %v7241, 4
      %v7244 = vor.u32 %v7243, %v7239
      %v7245 = vrot.slane %v7244, 4
      %v7247 = vshll.u32 %v7211, 16
      %v7249 = vrot.slane %v7247, 5
      %v7250 = vsel %vm2071, %v7245, %v7249
      %v7252 = vshrl.u32 %v7180, 16
      %v7254 = vrot.slane %v7252, 4
      %v7255 = vshll.u32 %v7180, 16
      %v7257 = vrot.slane %v7255, 5
      %v7258 = vor.u32 %v7254, %v7257
      %v7259 = vrot.slane %v7258, 4
      %v7261 = vshll.u32 %v7181, 16
      %v7263 = vrot.slane %v7261, 5
      %v7264 = vsel %vm2071, %v7259, %v7263
      %v7265 = vshrl.u32 %v7181, 16
      %v7267 = vrot.slane %v7265, 4
      %v7268 = vor.u32 %v7267, %v7263
      %v7269 = vrot.slane %v7268, 4
      %v7271 = vshll.u32 %v7212, 16
      %v7273 = vrot.slane %v7271, 5
      %v7274 = vsel %vm2071, %v7269, %v7273
      %v7276 = vshrl.u32 %v7182, 16
      %v7278 = vrot.slane %v7276, 4
      %v7279 = vshll.u32 %v7182, 16
      %v7281 = vrot.slane %v7279, 5
      %v7282 = vor.u32 %v7278, %v7281
      %v7283 = vrot.slane %v7282, 4
      %v7285 = vshll.u32 %v7183, 16
      %v7287 = vrot.slane %v7285, 5
      %v7288 = vsel %vm2071, %v7283, %v7287
      %v7289 = vshrl.u32 %v7183, 16
      %v7291 = vrot.slane %v7289, 4
      %v7292 = vor.u32 %v7291, %v7287
      %v7293 = vrot.slane %v7292, 4
      %v7295 = vshll.u32 %v7213, 16
      %v7297 = vrot.slane %v7295, 5
      %v7298 = vsel %vm2071, %v7293, %v7297
      %v7300 = vshrl.u32 %v7184, 16
      %v7302 = vrot.slane %v7300, 4
      %v7303 = vshll.u32 %v7184, 16
      %v7305 = vrot.slane %v7303, 5
      %v7306 = vor.u32 %v7302, %v7305
      %v7307 = vrot.slane %v7306, 4
      %v7309 = vshll.u32 %v7185, 16
      %v7311 = vrot.slane %v7309, 5
      %v7312 = vsel %vm2071, %v7307, %v7311
      %v7313 = vshrl.u32 %v7185, 16
      %v7315 = vrot.slane %v7313, 4
      %v7316 = vor.u32 %v7315, %v7311
      %v7317 = vrot.slane %v7316, 4
      %v7319 = vshll.u32 %v7214, 16
      %v7321 = vrot.slane %v7319, 5
      %v7322 = vsel %vm2071, %v7317, %v7321
      %v7324 = vshrl.u32 %v7186, 16
      %v7326 = vrot.slane %v7324, 4
      %v7327 = vshll.u32 %v7186, 16
      %v7329 = vrot.slane %v7327, 5
      %v7330 = vor.u32 %v7326, %v7329
      %v7331 = vrot.slane %v7330, 4
      %v7333 = vshll.u32 %v7187, 16
      %v7335 = vrot.slane %v7333, 5
      %v7336 = vsel %vm2071, %v7331, %v7335
      %v7337 = vshrl.u32 %v7187, 16
      %v7339 = vrot.slane %v7337, 4
      %v7340 = vor.u32 %v7339, %v7335
      %v7341 = vrot.slane %v7340, 4
      %v7343 = vshll.u32 %v7215, 16
      %v7345 = vrot.slane %v7343, 5
      %v7346 = vsel %vm2071, %v7341, %v7345
      %v7348 = vshrl.u32 %v7188, 16
      %v7350 = vrot.slane %v7348, 4
      %v7351 = vshll.u32 %v7188, 16
      %v7353 = vrot.slane %v7351, 5
      %v7354 = vor.u32 %v7350, %v7353
      %v7355 = vrot.slane %v7354, 4
      %v7357 = vshll.u32 %v7189, 16
      %v7359 = vrot.slane %v7357, 5
      %v7360 = vsel %vm2071, %v7355, %v7359
      %v7361 = vshrl.u32 %v7189, 16
      %v7363 = vrot.slane %v7361, 4
      %v7364 = vor.u32 %v7363, %v7359
      %v7365 = vrot.slane %v7364, 4
      %v7367 = vshll.u32 %v7216, 16
      %v7369 = vrot.slane %v7367, 5
      %v7370 = vsel %vm2071, %v7365, %v7369
      %v7372 = vshrl.u32 %v7190, 16
      %v7374 = vrot.slane %v7372, 4
      %v7375 = vshll.u32 %v7190, 16
      %v7377 = vrot.slane %v7375, 5
      %v7378 = vor.u32 %v7374, %v7377
      %v7379 = vrot.slane %v7378, 4
      %v7381 = vshll.u32 %v7191, 16
      %v7383 = vrot.slane %v7381, 5
      %v7384 = vsel %vm2071, %v7379, %v7383
      %v7385 = vshrl.u32 %v7191, 16
      %v7387 = vrot.slane %v7385, 4
      %v7388 = vor.u32 %v7387, %v7383
      %v7389 = vrot.slane %v7388, 4
      %v7391 = vshll.u32 %v7217, 16
      %v7393 = vrot.slane %v7391, 5
      %v7394 = vsel %vm2071, %v7389, %v7393
      %v7396 = vshrl.u32 %v7192, 16
      %v7398 = vrot.slane %v7396, 4
      %v7399 = vshll.u32 %v7192, 16
      %v7401 = vrot.slane %v7399, 5
      %v7402 = vor.u32 %v7398, %v7401
      %v7403 = vrot.slane %v7402, 4
      %v7405 = vshll.u32 %v7193, 16
      %v7407 = vrot.slane %v7405, 5
      %v7408 = vsel %vm2071, %v7403, %v7407
      %v7409 = vshrl.u32 %v7193, 16
      %v7411 = vrot.slane %v7409, 4
      %v7412 = vor.u32 %v7411, %v7407
      %v7413 = vrot.slane %v7412, 4
      %v7415 = vshll.u32 %v7218, 16
      %v7417 = vrot.slane %v7415, 5
      %v7418 = vsel %vm2071, %v7413, %v7417
      %v7420 = vshrl.u32 %v7194, 16
      %v7422 = vrot.slane %v7420, 4
      %v7423 = vshll.u32 %v7194, 16
      %v7425 = vrot.slane %v7423, 5
      %v7426 = vor.u32 %v7422, %v7425
      %v7427 = vrot.slane %v7426, 4
      %v7429 = vshll.u32 %v7195, 16
      %v7431 = vrot.slane %v7429, 5
      %v7432 = vsel %vm2071, %v7427, %v7431
      %v7433 = vshrl.u32 %v7195, 16
      %v7435 = vrot.slane %v7433, 4
      %v7436 = vor.u32 %v7435, %v7431
      %v7437 = vrot.slane %v7436, 4
      %v7439 = vshll.u32 %v7219, 16
      %v7441 = vrot.slane %v7439, 5
      %v7442 = vsel %vm2071, %v7437, %v7441
      %v7444 = vshrl.u32 %v7196, 16
      %v7446 = vrot.slane %v7444, 4
      %v7447 = vshll.u32 %v7196, 16
      %v7449 = vrot.slane %v7447, 5
      %v7450 = vor.u32 %v7446, %v7449
      %v7451 = vrot.slane %v7450, 4
      %v7453 = vshll.u32 %v7197, 16
      %v7455 = vrot.slane %v7453, 5
      %v7456 = vsel %vm2071, %v7451, %v7455
      %v7457 = vshrl.u32 %v7197, 16
      %v7459 = vrot.slane %v7457, 4
      %v7460 = vor.u32 %v7459, %v7455
      %v7461 = vrot.slane %v7460, 4
      %v7463 = vshll.u32 %v7220, 16
      %v7465 = vrot.slane %v7463, 5
      %v7466 = vsel %vm2071, %v7461, %v7465
      %v7468 = vshrl.u32 %v7198, 16
      %v7470 = vrot.slane %v7468, 4
      %v7471 = vshll.u32 %v7198, 16
      %v7473 = vrot.slane %v7471, 5
      %v7474 = vor.u32 %v7470, %v7473
      %v7475 = vrot.slane %v7474, 4
      %v7477 = vshll.u32 %v7199, 16
      %v7479 = vrot.slane %v7477, 5
      %v7480 = vsel %vm2071, %v7475, %v7479
      %v7481 = vshrl.u32 %v7199, 16
      %v7483 = vrot.slane %v7481, 4
      %v7484 = vor.u32 %v7483, %v7479
      %v7485 = vrot.slane %v7484, 4
      %v7487 = vshll.u32 %v7221, 16
      %v7489 = vrot.slane %v7487, 5
      %v7490 = vsel %vm2071, %v7485, %v7489
      %v7492 = vshrl.u32 %v7200, 16
      %v7494 = vrot.slane %v7492, 4
      %v7495 = vshll.u32 %v7200, 16
      %v7497 = vrot.slane %v7495, 5
      %v7498 = vor.u32 %v7494, %v7497
      %v7499 = vrot.slane %v7498, 4
      %v7501 = vshll.u32 %v7201, 16
      %v7503 = vrot.slane %v7501, 5
      %v7504 = vsel %vm2071, %v7499, %v7503
      %v7505 = vshrl.u32 %v7201, 16
      %v7507 = vrot.slane %v7505, 4
      %v7508 = vor.u32 %v7507, %v7503
      %v7509 = vrot.slane %v7508, 4
      %v7511 = vshll.u32 %v7222, 16
      %v7513 = vrot.slane %v7511, 5
      %v7514 = vsel %vm2071, %v7509, %v7513
      %v7516 = vshrl.u32 %v7202, 16
      %v7518 = vrot.slane %v7516, 4
      %v7519 = vshll.u32 %v7202, 16
      %v7521 = vrot.slane %v7519, 5
      %v7522 = vor.u32 %v7518, %v7521
      %v7523 = vrot.slane %v7522, 4
      %v7525 = vshll.u32 %v7203, 16
      %v7527 = vrot.slane %v7525, 5
      %v7528 = vsel %vm2071, %v7523, %v7527
      %v7529 = vshrl.u32 %v7203, 16
      %v7531 = vrot.slane %v7529, 4
      %v7532 = vor.u32 %v7531, %v7527
      %v7533 = vrot.slane %v7532, 4
      %v7535 = vshll.u32 %v7223, 16
      %v7537 = vrot.slane %v7535, 5
      %v7538 = vsel %vm2071, %v7533, %v7537
      %v7540 = vshrl.u32 %v7204, 16
      %v7542 = vrot.slane %v7540, 4
      %v7543 = vshll.u32 %v7204, 16
      %v7545 = vrot.slane %v7543, 5
      %v7546 = vor.u32 %v7542, %v7545
      %v7547 = vrot.slane %v7546, 4
      %v7549 = vshll.u32 %v7205, 16
      %v7551 = vrot.slane %v7549, 5
      %v7552 = vsel %vm2071, %v7547, %v7551
      %v7553 = vshrl.u32 %v7205, 16
      %v7555 = vrot.slane %v7553, 4
      %v7556 = vor.u32 %v7555, %v7551
      %v7557 = vrot.slane %v7556, 4
      %v7559 = vshll.u32 %v7224, 16
      %v7561 = vrot.slane %v7559, 5
      %v7562 = vsel %vm2071, %v7557, %v7561
      %v7564 = vshrl.u32 %v7206, 16
      %v7566 = vrot.slane %v7564, 4
      %v7567 = vshll.u32 %v7206, 16
      %v7569 = vrot.slane %v7567, 5
      %v7570 = vor.u32 %v7566, %v7569
      %v7571 = vrot.slane %v7570, 4
      %v7573 = vshll.u32 %v7207, 16
      %v7575 = vrot.slane %v7573, 5
      %v7576 = vsel %vm2071, %v7571, %v7575
      %v7577 = vshrl.u32 %v7207, 16
      %v7579 = vrot.slane %v7577, 4
      %v7580 = vor.u32 %v7579, %v7575
      %v7581 = vrot.slane %v7580, 4
      %v7583 = vshll.u32 %v7225, 16
      %v7585 = vrot.slane %v7583, 5
      %v7586 = vsel %vm2071, %v7581, %v7585
      %v7588 = vshrl.u32 %v7208, 16
      %v7590 = vrot.slane %v7588, 4
      %v7591 = vshll.u32 %v7208, 16
      %v7593 = vrot.slane %v7591, 5
      %v7594 = vor.u32 %v7590, %v7593
      %v7595 = vrot.slane %v7594, 4
      %v7597 = vshll.u32 %v7209, 16
      %v7599 = vrot.slane %v7597, 5
      %v7600 = vsel %vm2071, %v7595, %v7599
      %v7601 = vshrl.u32 %v7209, 16
      %v7603 = vrot.slane %v7601, 4
      %v7604 = vor.u32 %v7603, %v7599
      %v7605 = vrot.slane %v7604, 4
      %v7607 = vshll.u32 %v7226, 16
      %v7609 = vrot.slane %v7607, 5
      %v7610 = vsel %vm2071, %v7605, %v7609
      %s7611 = scalar_lea.vmem %s9, 2
      %v7612 = vld [vmem:[%s7611] sm:$0x3]
      %v7613 = vunpack.c.l.b16 %v7240
      %v7614 = vunpack.c.l.b16 %v7250
      %v7615 = vunpack.c.l.b16 %v7264
      %v7616 = vunpack.c.l.b16 %v7274
      %v7617 = vunpack.c.l.b16 %v7288
      %v7618 = vunpack.c.l.b16 %v7298
      %v7619 = vunpack.c.l.b16 %v7312
      %v7620 = vunpack.c.l.b16 %v7322
      %v7621 = vunpack.c.l.b16 %v7336
      %v7622 = vunpack.c.l.b16 %v7346
      %v7623 = vunpack.c.l.b16 %v7360
      %v7624 = vunpack.c.l.b16 %v7370
      %v7625 = vunpack.c.l.b16 %v7384
      %v7626 = vunpack.c.l.b16 %v7394
      %v7627 = vunpack.c.l.b16 %v7408
      %v7628 = vunpack.c.l.b16 %v7418
      %v7629 = vunpack.c.l.b16 %v7432
      %v7630 = vunpack.c.l.b16 %v7442
      %v7631 = vunpack.c.l.b16 %v7456
      %v7632 = vunpack.c.l.b16 %v7466
      %v7633 = vunpack.c.l.b16 %v7480
      %v7634 = vunpack.c.l.b16 %v7490
      %v7635 = vunpack.c.l.b16 %v7504
      %v7636 = vunpack.c.l.b16 %v7514
      %v7637 = vunpack.c.l.b16 %v7528
      %v7638 = vunpack.c.l.b16 %v7538
      %v7639 = vunpack.c.l.b16 %v7552
      %v7640 = vunpack.c.l.b16 %v7562
      %v7641 = vunpack.c.l.b16 %v7576
      %v7642 = vunpack.c.l.b16 %v7586
      %v7643 = vunpack.c.l.b16 %v7600
      %v7644 = vunpack.c.l.b16 %v7610
      %v7645 = vpack.c.b16 %v7614, %v7613
      %v7646 = vpack.c.b16 %v7616, %v7615
      %v7647 = vpack.c.b16 %v7618, %v7617
      %v7648 = vpack.c.b16 %v7620, %v7619
      %v7649 = vpack.c.b16 %v7622, %v7621
      %v7650 = vpack.c.b16 %v7624, %v7623
      %v7651 = vpack.c.b16 %v7626, %v7625
      %v7652 = vpack.c.b16 %v7628, %v7627
      %v7653 = vpack.c.b16 %v7630, %v7629
      %v7654 = vpack.c.b16 %v7632, %v7631
      %v7655 = vpack.c.b16 %v7634, %v7633
      %v7656 = vpack.c.b16 %v7636, %v7635
      %v7657 = vpack.c.b16 %v7638, %v7637
      %v7658 = vpack.c.b16 %v7640, %v7639
      %v7659 = vpack.c.b16 %v7642, %v7641
      %v7660 = vpack.c.b16 %v7644, %v7643
      %v7662 = vsel %vm690, %v7645, 0
      %v7665 = vsel %vm690, %v7646, 0
      %v7668 = vsel %vm690, %v7647, 0
      %v7671 = vsel %vm690, %v7648, 0
      %v7674 = vsel %vm690, %v7649, 0
      %v7677 = vsel %vm690, %v7650, 0
      %v7680 = vsel %vm690, %v7651, 0
      %v7683 = vsel %vm690, %v7652, 0
      %v7686 = vsel %vm690, %v7653, 0
      %v7689 = vsel %vm690, %v7654, 0
      %v7692 = vsel %vm690, %v7655, 0
      %v7695 = vsel %vm690, %v7656, 0
      %v7698 = vsel %vm690, %v7657, 0
      %v7701 = vsel %vm690, %v7658, 0
      %v7704 = vsel %vm690, %v7659, 0
      %v7707 = vsel %vm690, %v7660, 0
      %vm7709 = vcmask 1041408
      %v7711 = vsel %vm7709, %v7612, 0
      %7713 = vmatprep.subr.bf16.mxu0 0
      %7714 = vmatpush1.bf16.msra.mxu0 %v7711
      %7715 = vmatprep.subr.bf16.mxu0 0
      %7716 = vmatpush1.bf16.msra.mxu0 0
      %7717 = vmatprep.subr.bf16.mxu0 0
      %7718 = vmatpush1.bf16.msra.mxu0 0
      %7719 = vmatprep.subr.bf16.mxu0 0
      %7720 = vmatpush1.bf16.msra.mxu0 0
      %7721 = vmatprep.subr.bf16.mxu0 0
      %7722 = vmatpush1.bf16.msra.mxu0 0
      %7723 = vmatprep.subr.bf16.mxu0 0
      %7724 = vmatpush1.bf16.msra.mxu0 0
      %7725 = vmatprep.subr.bf16.mxu0 0
      %7726 = vmatpush1.bf16.msra.mxu0 0
      %7727 = vmatprep.subr.bf16.mxu0 0
      %7728 = vmatpush1.bf16.msra.mxu0 0
      %7729 = vmatprep.subr.bf16.mxu0 0
      %7730 = vmatpush1.bf16.msra.mxu0 0
      %7731 = vmatprep.subr.bf16.mxu0 0
      %7732 = vmatpush1.bf16.msra.mxu0 0
      %7733 = vmatprep.subr.bf16.mxu0 0
      %7734 = vmatpush1.bf16.msra.mxu0 0
      %7735 = vmatprep.subr.bf16.mxu0 0
      %7736 = vmatpush1.bf16.msra.mxu0 0
      %7737 = vmatprep.subr.bf16.mxu0 0
      %7738 = vmatpush1.bf16.msra.mxu0 0
      %7739 = vmatprep.subr.bf16.mxu0 0
      %7740 = vmatpush1.bf16.msra.mxu0 0
      %7741 = vmatprep.subr.bf16.mxu0 0
      %7742 = vmatpush1.bf16.msra.mxu0 0
      %7743 = vmatprep.subr.bf16.mxu0 0
      %7744 = vmatpush1.bf16.msra.mxu0 0
      %7745 = vmatprep.mubr.bf16.mxu0 0
      %7746 = vmatmul.mubr.bf16.gmra.mrb[0].mxu0 %v7662
      %v7747 = vpop.f32.mrb[0].mxu0
      %v7748 = vadd.f32 0.0, %v7747
      %v7749 = vpop.f32.mrb[0].mxu0
      %v7750 = vpop.f32.mrb[0].mxu0
      %v7751 = vadd.f32 0.0, %v7750
      %v7752 = vpop.f32.mrb[0].mxu0
      %7753 = vmatprep.mubr.bf16.mxu0 0
      %7754 = vmatmul.mubr.bf16.gmra.mrb[0].mxu0 %v7665
      %v7755 = vpop.f32.mrb[0].mxu0
      %v7756 = vadd.f32 0.0, %v7755
      %v7757 = vpop.f32.mrb[0].mxu0
      %v7758 = vpop.f32.mrb[0].mxu0
      %v7759 = vadd.f32 0.0, %v7758
      %v7760 = vpop.f32.mrb[0].mxu0
      %7761 = vmatprep.mubr.bf16.mxu0 0
      %7762 = vmatmul.mubr.bf16.gmra.mrb[0].mxu0 %v7668
      %v7763 = vpop.f32.mrb[0].mxu0
      %v7764 = vadd.f32 0.0, %v7763
      %v7765 = vpop.f32.mrb[0].mxu0
      %v7766 = vpop.f32.mrb[0].mxu0
      %v7767 = vadd.f32 0.0, %v7766
      %v7768 = vpop.f32.mrb[0].mxu0
      %7769 = vmatprep.mubr.bf16.mxu0 0
      %7770 = vmatmul.mubr.bf16.gmra.mrb[0].mxu0 %v7671
      %v7771 = vpop.f32.mrb[0].mxu0
      %v7772 = vadd.f32 0.0, %v7771
      %v7773 = vpop.f32.mrb[0].mxu0
      %v7774 = vpop.f32.mrb[0].mxu0
      %v7775 = vadd.f32 0.0, %v7774
      %v7776 = vpop.f32.mrb[0].mxu0
      %7777 = vmatprep.mubr.bf16.mxu0 0
      %7778 = vmatmul.mubr.bf16.gmra.mrb[0].mxu0 %v7674
      %v7779 = vpop.f32.mrb[0].mxu0
      %v7780 = vadd.f32 0.0, %v7779
      %v7781 = vpop.f32.mrb[0].mxu0
      %v7782 = vpop.f32.mrb[0].mxu0
      %v7783 = vadd.f32 0.0, %v7782
      %v7784 = vpop.f32.mrb[0].mxu0
      %7785 = vmatprep.mubr.bf16.mxu0 0
      %7786 = vmatmul.mubr.bf16.gmra.mrb[0].mxu0 %v7677
      %v7787 = vpop.f32.mrb[0].mxu0
      %v7788 = vadd.f32 0.0, %v7787
      %v7789 = vpop.f32.mrb[0].mxu0
      %v7790 = vpop.f32.mrb[0].mxu0
      %v7791 = vadd.f32 0.0, %v7790
      %v7792 = vpop.f32.mrb[0].mxu0
      %7793 = vmatprep.mubr.bf16.mxu0 0
      %7794 = vmatmul.mubr.bf16.gmra.mrb[0].mxu0 %v7680
      %v7795 = vpop.f32.mrb[0].mxu0
      %v7796 = vadd.f32 0.0, %v7795
      %v7797 = vpop.f32.mrb[0].mxu0
      %v7798 = vpop.f32.mrb[0].mxu0
      %v7799 = vadd.f32 0.0, %v7798
      %v7800 = vpop.f32.mrb[0].mxu0
      %7801 = vmatprep.mubr.bf16.mxu0 0
      %7802 = vmatmul.mubr.bf16.gmra.mrb[0].mxu0 %v7683
      %v7803 = vpop.f32.mrb[0].mxu0
      %v7804 = vadd.f32 0.0, %v7803
      %v7805 = vpop.f32.mrb[0].mxu0
      %v7806 = vpop.f32.mrb[0].mxu0
      %v7807 = vadd.f32 0.0, %v7806
      %v7808 = vpop.f32.mrb[0].mxu0
      %7809 = vmatprep.mubr.bf16.mxu0 0
      %7810 = vmatmul.mubr.bf16.gmra.mrb[0].mxu0 %v7686
      %v7811 = vpop.f32.mrb[0].mxu0
      %v7812 = vadd.f32 0.0, %v7811
      %v7813 = vpop.f32.mrb[0].mxu0
      %v7814 = vpop.f32.mrb[0].mxu0
      %v7815 = vadd.f32 0.0, %v7814
      %v7816 = vpop.f32.mrb[0].mxu0
      %7817 = vmatprep.mubr.bf16.mxu0 0
      %7818 = vmatmul.mubr.bf16.gmra.mrb[0].mxu0 %v7689
      %v7819 = vpop.f32.mrb[0].mxu0
      %v7820 = vadd.f32 0.0, %v7819
      %v7821 = vpop.f32.mrb[0].mxu0
      %v7822 = vpop.f32.mrb[0].mxu0
      %v7823 = vadd.f32 0.0, %v7822
      %v7824 = vpop.f32.mrb[0].mxu0
      %7825 = vmatprep.mubr.bf16.mxu0 0
      %7826 = vmatmul.mubr.bf16.gmra.mrb[0].mxu0 %v7692
      %v7827 = vpop.f32.mrb[0].mxu0
      %v7828 = vadd.f32 0.0, %v7827
      %v7829 = vpop.f32.mrb[0].mxu0
      %v7830 = vpop.f32.mrb[0].mxu0
      %v7831 = vadd.f32 0.0, %v7830
      %v7832 = vpop.f32.mrb[0].mxu0
      %7833 = vmatprep.mubr.bf16.mxu0 0
      %7834 = vmatmul.mubr.bf16.gmra.mrb[0].mxu0 %v7695
      %v7835 = vpop.f32.mrb[0].mxu0
      %v7836 = vadd.f32 0.0, %v7835
      %v7837 = vpop.f32.mrb[0].mxu0
      %v7838 = vpop.f32.mrb[0].mxu0
      %v7839 = vadd.f32 0.0, %v7838
      %v7840 = vpop.f32.mrb[0].mxu0
      %7841 = vmatprep.mubr.bf16.mxu0 0
      %7842 = vmatmul.mubr.bf16.gmra.mrb[0].mxu0 %v7698
      %v7843 = vpop.f32.mrb[0].mxu0
      %v7844 = vadd.f32 0.0, %v7843
      %v7845 = vpop.f32.mrb[0].mxu0
      %v7846 = vpop.f32.mrb[0].mxu0
      %v7847 = vadd.f32 0.0, %v7846
      %v7848 = vpop.f32.mrb[0].mxu0
      %7849 = vmatprep.mubr.bf16.mxu0 0
      %7850 = vmatmul.mubr.bf16.gmra.mrb[0].mxu0 %v7701
      %v7851 = vpop.f32.mrb[0].mxu0
      %v7852 = vadd.f32 0.0, %v7851
      %v7853 = vpop.f32.mrb[0].mxu0
      %v7854 = vpop.f32.mrb[0].mxu0
      %v7855 = vadd.f32 0.0, %v7854
      %v7856 = vpop.f32.mrb[0].mxu0
      %7857 = vmatprep.mubr.bf16.mxu0 0
      %7858 = vmatmul.mubr.bf16.gmra.mrb[0].mxu0 %v7704
      %v7859 = vpop.f32.mrb[0].mxu0
      %v7860 = vadd.f32 0.0, %v7859
      %v7861 = vpop.f32.mrb[0].mxu0
      %v7862 = vpop.f32.mrb[0].mxu0
      %v7863 = vadd.f32 0.0, %v7862
      %v7864 = vpop.f32.mrb[0].mxu0
      %7865 = vmatprep.mubr.bf16.mxu0 0
      %7866 = vmatmul.mubr.bf16.gmra.mrb[0].mxu0 %v7707
      %v7867 = vpop.f32.mrb[0].mxu0
      %v7868 = vadd.f32 0.0, %v7867
      %v7869 = vpop.f32.mrb[0].mxu0
      %v7870 = vpop.f32.mrb[0].mxu0
      %v7871 = vadd.f32 0.0, %v7870
      %v7872 = vpop.f32.mrb[0].mxu0
      %7873 = vdwg.mxu0
      %v7906 = vunpack.c.l.b16 %v7178
      %v7907 = vunpack.c.l.b16 %v7179
      %v7908 = vunpack.c.l.b16 %v7180
      %v7909 = vunpack.c.l.b16 %v7181
      %v7910 = vunpack.c.l.b16 %v7182
      %v7911 = vunpack.c.l.b16 %v7183
      %v7912 = vunpack.c.l.b16 %v7184
      %v7913 = vunpack.c.l.b16 %v7185
      %v7914 = vunpack.c.l.b16 %v7186
      %v7915 = vunpack.c.l.b16 %v7187
      %v7916 = vunpack.c.l.b16 %v7188
      %v7917 = vunpack.c.l.b16 %v7189
      %v7918 = vunpack.c.l.b16 %v7190
      %v7919 = vunpack.c.l.b16 %v7191
      %v7920 = vunpack.c.l.b16 %v7192
      %v7921 = vunpack.c.l.b16 %v7193
      %v7922 = vunpack.c.l.b16 %v7194
      %v7923 = vunpack.c.l.b16 %v7195
      %v7924 = vunpack.c.l.b16 %v7196
      %v7925 = vunpack.c.l.b16 %v7197
      %v7926 = vunpack.c.l.b16 %v7198
      %v7927 = vunpack.c.l.b16 %v7199
      %v7928 = vunpack.c.l.b16 %v7200
      %v7929 = vunpack.c.l.b16 %v7201
      %v7930 = vunpack.c.l.b16 %v7202
      %v7931 = vunpack.c.l.b16 %v7203
      %v7932 = vunpack.c.l.b16 %v7204
      %v7933 = vunpack.c.l.b16 %v7205
      %v7934 = vunpack.c.l.b16 %v7206
      %v7935 = vunpack.c.l.b16 %v7207
      %v7936 = vunpack.c.l.b16 %v7208
      %v7937 = vunpack.c.l.b16 %v7209
      %v7938 = vpack.c.b16 %v7907, %v7906
      %v7939 = vpack.c.b16 %v7909, %v7908
      %v7940 = vpack.c.b16 %v7911, %v7910
      %v7941 = vpack.c.b16 %v7913, %v7912
      %v7942 = vpack.c.b16 %v7915, %v7914
      %v7943 = vpack.c.b16 %v7917, %v7916
      %v7944 = vpack.c.b16 %v7919, %v7918
      %v7945 = vpack.c.b16 %v7921, %v7920
      %v7946 = vpack.c.b16 %v7923, %v7922
      %v7947 = vpack.c.b16 %v7925, %v7924
      %v7948 = vpack.c.b16 %v7927, %v7926
      %v7949 = vpack.c.b16 %v7929, %v7928
      %v7950 = vpack.c.b16 %v7931, %v7930
      %v7951 = vpack.c.b16 %v7933, %v7932
      %v7952 = vpack.c.b16 %v7935, %v7934
      %v7953 = vpack.c.b16 %v7937, %v7936
      %v7955 = vsel %vm690, %v7938, 0
      %v7958 = vsel %vm690, %v7939, 0
      %v7961 = vsel %vm690, %v7940, 0
      %v7964 = vsel %vm690, %v7941, 0
      %v7967 = vsel %vm690, %v7942, 0
      %v7970 = vsel %vm690, %v7943, 0
      %v7973 = vsel %vm690, %v7944, 0
      %v7976 = vsel %vm690, %v7945, 0
      %v7979 = vsel %vm690, %v7946, 0
      %v7982 = vsel %vm690, %v7947, 0
      %v7985 = vsel %vm690, %v7948, 0
      %v7988 = vsel %vm690, %v7949, 0
      %v7991 = vsel %vm690, %v7950, 0
      %v7994 = vsel %vm690, %v7951, 0
      %v7997 = vsel %vm690, %v7952, 0
      %v8000 = vsel %vm690, %v7953, 0
      %v8003 = vsel %vm7709, %v7210, 0
      %8005 = vmatprep.subr.bf16.mxu0 0
      %8006 = vmatpush1.bf16.msra.mxu0 %v8003
      %8007 = vmatprep.subr.bf16.mxu0 0
      %8008 = vmatpush1.bf16.msra.mxu0 0
      %8009 = vmatprep.subr.bf16.mxu0 0
      %8010 = vmatpush1.bf16.msra.mxu0 0
      %8011 = vmatprep.subr.bf16.mxu0 0
      %8012 = vmatpush1.bf16.msra.mxu0 0
      %8013 = vmatprep.subr.bf16.mxu0 0
      %8014 = vmatpush1.bf16.msra.mxu0 0
      %8015 = vmatprep.subr.bf16.mxu0 0
      %8016 = vmatpush1.bf16.msra.mxu0 0
      %8017 = vmatprep.subr.bf16.mxu0 0
      %8018 = vmatpush1.bf16.msra.mxu0 0
      %8019 = vmatprep.subr.bf16.mxu0 0
      %8020 = vmatpush1.bf16.msra.mxu0 0
      %8021 = vmatprep.subr.bf16.mxu0 0
      %8022 = vmatpush1.bf16.msra.mxu0 0
      %8023 = vmatprep.subr.bf16.mxu0 0
      %8024 = vmatpush1.bf16.msra.mxu0 0
      %8025 = vmatprep.subr.bf16.mxu0 0
      %8026 = vmatpush1.bf16.msra.mxu0 0
      %8027 = vmatprep.subr.bf16.mxu0 0
      %8028 = vmatpush1.bf16.msra.mxu0 0
      %8029 = vmatprep.subr.bf16.mxu0 0
      %8030 = vmatpush1.bf16.msra.mxu0 0
      %8031 = vmatprep.subr.bf16.mxu0 0
      %8032 = vmatpush1.bf16.msra.mxu0 0
      %8033 = vmatprep.subr.bf16.mxu0 0
      %8034 = vmatpush1.bf16.msra.mxu0 0
      %8035 = vmatprep.subr.bf16.mxu0 0
      %8036 = vmatpush1.bf16.msra.mxu0 0
      %8037 = vmatprep.mubr.bf16.mxu0 0
      %8038 = vmatmul.mubr.bf16.gmra.mrb[0].mxu0 %v7955
      %v8039 = vpop.f32.mrb[0].mxu0
      %v8040 = vadd.f32 %v7748, %v8039
      %v8041 = vpop.f32.mrb[0].mxu0
      %v8042 = vpop.f32.mrb[0].mxu0
      %v8043 = vadd.f32 %v7751, %v8042
      %v8044 = vpop.f32.mrb[0].mxu0
      %8045 = vmatprep.mubr.bf16.mxu0 0
      %8046 = vmatmul.mubr.bf16.gmra.mrb[0].mxu0 %v7958
      %v8047 = vpop.f32.mrb[0].mxu0
      %v8048 = vadd.f32 %v7756, %v8047
      %v8049 = vpop.f32.mrb[0].mxu0
      %v8050 = vpop.f32.mrb[0].mxu0
      %v8051 = vadd.f32 %v7759, %v8050
      %v8052 = vpop.f32.mrb[0].mxu0
      %8053 = vmatprep.mubr.bf16.mxu0 0
      %8054 = vmatmul.mubr.bf16.gmra.mrb[0].mxu0 %v7961
      %v8055 = vpop.f32.mrb[0].mxu0
      %v8056 = vadd.f32 %v7764, %v8055
      %v8057 = vpop.f32.mrb[0].mxu0
      %v8058 = vpop.f32.mrb[0].mxu0
      %v8059 = vadd.f32 %v7767, %v8058
      %v8060 = vpop.f32.mrb[0].mxu0
      %8061 = vmatprep.mubr.bf16.mxu0 0
      %8062 = vmatmul.mubr.bf16.gmra.mrb[0].mxu0 %v7964
      %v8063 = vpop.f32.mrb[0].mxu0
      %v8064 = vadd.f32 %v7772, %v8063
      %v8065 = vpop.f32.mrb[0].mxu0
      %v8066 = vpop.f32.mrb[0].mxu0
      %v8067 = vadd.f32 %v7775, %v8066
      %v8068 = vpop.f32.mrb[0].mxu0
      %8069 = vmatprep.mubr.bf16.mxu0 0
      %8070 = vmatmul.mubr.bf16.gmra.mrb[0].mxu0 %v7967
      %v8071 = vpop.f32.mrb[0].mxu0
      %v8072 = vadd.f32 %v7780, %v8071
      %v8073 = vpop.f32.mrb[0].mxu0
      %v8074 = vpop.f32.mrb[0].mxu0
      %v8075 = vadd.f32 %v7783, %v8074
      %v8076 = vpop.f32.mrb[0].mxu0
      %8077 = vmatprep.mubr.bf16.mxu0 0
      %8078 = vmatmul.mubr.bf16.gmra.mrb[0].mxu0 %v7970
      %v8079 = vpop.f32.mrb[0].mxu0
      %v8080 = vadd.f32 %v7788, %v8079
      %v8081 = vpop.f32.mrb[0].mxu0
      %v8082 = vpop.f32.mrb[0].mxu0
      %v8083 = vadd.f32 %v7791, %v8082
      %v8084 = vpop.f32.mrb[0].mxu0
      %8085 = vmatprep.mubr.bf16.mxu0 0
      %8086 = vmatmul.mubr.bf16.gmra.mrb[0].mxu0 %v7973
      %v8087 = vpop.f32.mrb[0].mxu0
      %v8088 = vadd.f32 %v7796, %v8087
      %v8089 = vpop.f32.mrb[0].mxu0
      %v8090 = vpop.f32.mrb[0].mxu0
      %v8091 = vadd.f32 %v7799, %v8090
      %v8092 = vpop.f32.mrb[0].mxu0
      %8093 = vmatprep.mubr.bf16.mxu0 0
      %8094 = vmatmul.mubr.bf16.gmra.mrb[0].mxu0 %v7976
      %v8095 = vpop.f32.mrb[0].mxu0
      %v8096 = vadd.f32 %v7804, %v8095
      %v8097 = vpop.f32.mrb[0].mxu0
      %v8098 = vpop.f32.mrb[0].mxu0
      %v8099 = vadd.f32 %v7807, %v8098
      %v8100 = vpop.f32.mrb[0].mxu0
      %8101 = vmatprep.mubr.bf16.mxu0 0
      %8102 = vmatmul.mubr.bf16.gmra.mrb[0].mxu0 %v7979
      %v8103 = vpop.f32.mrb[0].mxu0
      %v8104 = vadd.f32 %v7812, %v8103
      %v8105 = vpop.f32.mrb[0].mxu0
      %v8106 = vpop.f32.mrb[0].mxu0
      %v8107 = vadd.f32 %v7815, %v8106
      %v8108 = vpop.f32.mrb[0].mxu0
      %8109 = vmatprep.mubr.bf16.mxu0 0
      %8110 = vmatmul.mubr.bf16.gmra.mrb[0].mxu0 %v7982
      %v8111 = vpop.f32.mrb[0].mxu0
      %v8112 = vadd.f32 %v7820, %v8111
      %v8113 = vpop.f32.mrb[0].mxu0
      %v8114 = vpop.f32.mrb[0].mxu0
      %v8115 = vadd.f32 %v7823, %v8114
      %v8116 = vpop.f32.mrb[0].mxu0
      %8117 = vmatprep.mubr.bf16.mxu0 0
      %8118 = vmatmul.mubr.bf16.gmra.mrb[0].mxu0 %v7985
      %v8119 = vpop.f32.mrb[0].mxu0
      %v8120 = vadd.f32 %v7828, %v8119
      %v8121 = vpop.f32.mrb[0].mxu0
      %v8122 = vpop.f32.mrb[0].mxu0
      %v8123 = vadd.f32 %v7831, %v8122
      %v8124 = vpop.f32.mrb[0].mxu0
      %8125 = vmatprep.mubr.bf16.mxu0 0
      %8126 = vmatmul.mubr.bf16.gmra.mrb[0].mxu0 %v7988
      %v8127 = vpop.f32.mrb[0].mxu0
      %v8128 = vadd.f32 %v7836, %v8127
      %v8129 = vpop.f32.mrb[0].mxu0
      %v8130 = vpop.f32.mrb[0].mxu0
      %v8131 = vadd.f32 %v7839, %v8130
      %v8132 = vpop.f32.mrb[0].mxu0
      %8133 = vmatprep.mubr.bf16.mxu0 0
      %8134 = vmatmul.mubr.bf16.gmra.mrb[0].mxu0 %v7991
      %v8135 = vpop.f32.mrb[0].mxu0
      %v8136 = vadd.f32 %v7844, %v8135
      %v8137 = vpop.f32.mrb[0].mxu0
      %v8138 = vpop.f32.mrb[0].mxu0
      %v8139 = vadd.f32 %v7847, %v8138
      %v8140 = vpop.f32.mrb[0].mxu0
      %8141 = vmatprep.mubr.bf16.mxu0 0
      %8142 = vmatmul.mubr.bf16.gmra.mrb[0].mxu0 %v7994
      %v8143 = vpop.f32.mrb[0].mxu0
      %v8144 = vadd.f32 %v7852, %v8143
      %v8145 = vpop.f32.mrb[0].mxu0
      %v8146 = vpop.f32.mrb[0].mxu0
      %v8147 = vadd.f32 %v7855, %v8146
      %v8148 = vpop.f32.mrb[0].mxu0
      %8149 = vmatprep.mubr.bf16.mxu0 0
      %8150 = vmatmul.mubr.bf16.gmra.mrb[0].mxu0 %v7997
      %v8151 = vpop.f32.mrb[0].mxu0
      %v8152 = vadd.f32 %v7860, %v8151
      %v8153 = vpop.f32.mrb[0].mxu0
      %v8154 = vpop.f32.mrb[0].mxu0
      %v8155 = vadd.f32 %v7863, %v8154
      %v8156 = vpop.f32.mrb[0].mxu0
      %8157 = vmatprep.mubr.bf16.mxu0 0
      %8158 = vmatmul.mubr.bf16.gmra.mrb[0].mxu0 %v8000
      %v8159 = vpop.f32.mrb[0].mxu0
      %v8160 = vadd.f32 %v7868, %v8159
      %v8161 = vpop.f32.mrb[0].mxu0
      %v8162 = vpop.f32.mrb[0].mxu0
      %v8163 = vadd.f32 %v7871, %v8162
      %v8164 = vpop.f32.mrb[0].mxu0
      %8165 = vdwg.mxu0
      %v8166 = vld [vmem:[#allocation3] sm:$0xe]
      %v8167 = vld [vmem:[#allocation3 + $0xc] sm:$0xe]
      %v8168 = vld [vmem:[#allocation3 + $0x18] sm:$0xe]
      %v8169 = vld [vmem:[#allocation3 + $0x24] sm:$0xe]
      %v8170 = vld [vmem:[#allocation3 + $0x30] sm:$0xe]
      %v8171 = vld [vmem:[#allocation3 + $0x3c] sm:$0xe]
      %v8172 = vld [vmem:[#allocation3 + $0x48] sm:$0xe]
      %v8173 = vld [vmem:[#allocation3 + $0x54] sm:$0xe]
      %v8174 = vld [vmem:[#allocation3 + $0x60] sm:$0xe]
      %v8175 = vld [vmem:[#allocation3 + $0x6c] sm:$0xe]
      %v8176 = vld [vmem:[#allocation3 + $0x78] sm:$0xe]
      %v8177 = vld [vmem:[#allocation3 + $0x84] sm:$0xe]
      %v8178 = vld [vmem:[#allocation3 + $0x90] sm:$0xe]
      %v8179 = vld [vmem:[#allocation3 + $0x9c] sm:$0xe]
      %v8180 = vld [vmem:[#allocation3 + $0xa8] sm:$0xe]
      %v8181 = vld [vmem:[#allocation3 + $0xb4] sm:$0xe]
      %v8214 = vrot.slane %v8166, 5
      %v8215 = vrot.slane %v8214, 4
      %v8216 = vrot.slane %v7179, 5
      %v8217 = vsel %vm3060, %v8215, %v8216
      %v8218 = vrot.slane %v8216, 4
      %v8219 = vrot.slane %v7211, 5
      %v8220 = vsel %vm3060, %v8218, %v8219
      %v8221 = vrot.slane %v8167, 5
      %v8222 = vrot.slane %v8221, 4
      %v8223 = vrot.slane %v7181, 5
      %v8224 = vsel %vm3060, %v8222, %v8223
      %v8225 = vrot.slane %v8223, 4
      %v8226 = vrot.slane %v7212, 5
      %v8227 = vsel %vm3060, %v8225, %v8226
      %v8228 = vrot.slane %v8168, 5
      %v8229 = vrot.slane %v8228, 4
      %v8230 = vrot.slane %v7183, 5
      %v8231 = vsel %vm3060, %v8229, %v8230
      %v8232 = vrot.slane %v8230, 4
      %v8233 = vrot.slane %v7213, 5
      %v8234 = vsel %vm3060, %v8232, %v8233
      %v8235 = vrot.slane %v8169, 5
      %v8236 = vrot.slane %v8235, 4
      %v8237 = vrot.slane %v7185, 5
      %v8238 = vsel %vm3060, %v8236, %v8237
      %v8239 = vrot.slane %v8237, 4
      %v8240 = vrot.slane %v7214, 5
      %v8241 = vsel %vm3060, %v8239, %v8240
      %v8242 = vrot.slane %v8170, 5
      %v8243 = vrot.slane %v8242, 4
      %v8244 = vrot.slane %v7187, 5
      %v8245 = vsel %vm3060, %v8243, %v8244
      %v8246 = vrot.slane %v8244, 4
      %v8247 = vrot.slane %v7215, 5
      %v8248 = vsel %vm3060, %v8246, %v8247
      %v8249 = vrot.slane %v8171, 5
      %v8250 = vrot.slane %v8249, 4
      %v8251 = vrot.slane %v7189, 5
      %v8252 = vsel %vm3060, %v8250, %v8251
      %v8253 = vrot.slane %v8251, 4
      %v8254 = vrot.slane %v7216, 5
      %v8255 = vsel %vm3060, %v8253, %v8254
      %v8256 = vrot.slane %v8172, 5
      %v8257 = vrot.slane %v8256, 4
      %v8258 = vrot.slane %v7191, 5
      %v8259 = vsel %vm3060, %v8257, %v8258
      %v8260 = vrot.slane %v8258, 4
      %v8261 = vrot.slane %v7217, 5
      %v8262 = vsel %vm3060, %v8260, %v8261
      %v8263 = vrot.slane %v8173, 5
      %v8264 = vrot.slane %v8263, 4
      %v8265 = vrot.slane %v7193, 5
      %v8266 = vsel %vm3060, %v8264, %v8265
      %v8267 = vrot.slane %v8265, 4
      %v8268 = vrot.slane %v7218, 5
      %v8269 = vsel %vm3060, %v8267, %v8268
      %v8270 = vrot.slane %v8174, 5
      %v8271 = vrot.slane %v8270, 4
      %v8272 = vrot.slane %v7195, 5
      %v8273 = vsel %vm3060, %v8271, %v8272
      %v8274 = vrot.slane %v8272, 4
      %v8275 = vrot.slane %v7219, 5
      %v8276 = vsel %vm3060, %v8274, %v8275
      %v8277 = vrot.slane %v8175, 5
      %v8278 = vrot.slane %v8277, 4
      %v8279 = vrot.slane %v7197, 5
      %v8280 = vsel %vm3060, %v8278, %v8279
      %v8281 = vrot.slane %v8279, 4
      %v8282 = vrot.slane %v7220, 5
      %v8283 = vsel %vm3060, %v8281, %v8282
      %v8284 = vrot.slane %v8176, 5
      %v8285 = vrot.slane %v8284, 4
      %v8286 = vrot.slane %v7199, 5
      %v8287 = vsel %vm3060, %v8285, %v8286
      %v8288 = vrot.slane %v8286, 4
      %v8289 = vrot.slane %v7221, 5
      %v8290 = vsel %vm3060, %v8288, %v8289
      %v8291 = vrot.slane %v8177, 5
      %v8292 = vrot.slane %v8291, 4
      %v8293 = vrot.slane %v7201, 5
      %v8294 = vsel %vm3060, %v8292, %v8293
      %v8295 = vrot.slane %v8293, 4
      %v8296 = vrot.slane %v7222, 5
      %v8297 = vsel %vm3060, %v8295, %v8296
      %v8298 = vrot.slane %v8178, 5
      %v8299 = vrot.slane %v8298, 4
      %v8300 = vrot.slane %v7203, 5
      %v8301 = vsel %vm3060, %v8299, %v8300
      %v8302 = vrot.slane %v8300, 4
      %v8303 = vrot.slane %v7223, 5
      %v8304 = vsel %vm3060, %v8302, %v8303
      %v8305 = vrot.slane %v8179, 5
      %v8306 = vrot.slane %v8305, 4
      %v8307 = vrot.slane %v7205, 5
      %v8308 = vsel %vm3060, %v8306, %v8307
      %v8309 = vrot.slane %v8307, 4
      %v8310 = vrot.slane %v7224, 5
      %v8311 = vsel %vm3060, %v8309, %v8310
      %v8312 = vrot.slane %v8180, 5
      %v8313 = vrot.slane %v8312, 4
      %v8314 = vrot.slane %v7207, 5
      %v8315 = vsel %vm3060, %v8313, %v8314
      %v8316 = vrot.slane %v8314, 4
      %v8317 = vrot.slane %v7225, 5
      %v8318 = vsel %vm3060, %v8316, %v8317
      %v8319 = vrot.slane %v8181, 5
      %v8320 = vrot.slane %v8319, 4
      %v8321 = vrot.slane %v7209, 5
      %v8322 = vsel %vm3060, %v8320, %v8321
      %v8323 = vrot.slane %v8321, 4
      %v8324 = vrot.slane %v7226, 5
      %v8325 = vsel %vm3060, %v8323, %v8324
      %s8326 = scalar_lea.vmem %s9, 4
      %v8327 = vld [vmem:[%s8326] sm:$0x3]
      %v8328 = vunpack.c.l.b16 %v8217
      %v8329 = vunpack.c.l.b16 %v8220
      %v8330 = vunpack.c.l.b16 %v8224
      %v8331 = vunpack.c.l.b16 %v8227
      %v8332 = vunpack.c.l.b16 %v8231
      %v8333 = vunpack.c.l.b16 %v8234
      %v8334 = vunpack.c.l.b16 %v8238
      %v8335 = vunpack.c.l.b16 %v8241
      %v8336 = vunpack.c.l.b16 %v8245
      %v8337 = vunpack.c.l.b16 %v8248
      %v8338 = vunpack.c.l.b16 %v8252
      %v8339 = vunpack.c.l.b16 %v8255
      %v8340 = vunpack.c.l.b16 %v8259
      %v8341 = vunpack.c.l.b16 %v8262
      %v8342 = vunpack.c.l.b16 %v8266
      %v8343 = vunpack.c.l.b16 %v8269
      %v8344 = vunpack.c.l.b16 %v8273
      %v8345 = vunpack.c.l.b16 %v8276
      %v8346 = vunpack.c.l.b16 %v8280
      %v8347 = vunpack.c.l.b16 %v8283
      %v8348 = vunpack.c.l.b16 %v8287
      %v8349 = vunpack.c.l.b16 %v8290
      %v8350 = vunpack.c.l.b16 %v8294
      %v8351 = vunpack.c.l.b16 %v8297
      %v8352 = vunpack.c.l.b16 %v8301
      %v8353 = vunpack.c.l.b16 %v8304
      %v8354 = vunpack.c.l.b16 %v8308
      %v8355 = vunpack.c.l.b16 %v8311
      %v8356 = vunpack.c.l.b16 %v8315
      %v8357 = vunpack.c.l.b16 %v8318
      %v8358 = vunpack.c.l.b16 %v8322
      %v8359 = vunpack.c.l.b16 %v8325
      %v8360 = vpack.c.b16 %v8329, %v8328
      %v8361 = vpack.c.b16 %v8331, %v8330
      %v8362 = vpack.c.b16 %v8333, %v8332
      %v8363 = vpack.c.b16 %v8335, %v8334
      %v8364 = vpack.c.b16 %v8337, %v8336
      %v8365 = vpack.c.b16 %v8339, %v8338
      %v8366 = vpack.c.b16 %v8341, %v8340
      %v8367 = vpack.c.b16 %v8343, %v8342
      %v8368 = vpack.c.b16 %v8345, %v8344
      %v8369 = vpack.c.b16 %v8347, %v8346
      %v8370 = vpack.c.b16 %v8349, %v8348
      %v8371 = vpack.c.b16 %v8351, %v8350
      %v8372 = vpack.c.b16 %v8353, %v8352
      %v8373 = vpack.c.b16 %v8355, %v8354
      %v8374 = vpack.c.b16 %v8357, %v8356
      %v8375 = vpack.c.b16 %v8359, %v8358
      %v8377 = vsel %vm690, %v8360, 0
      %v8380 = vsel %vm690, %v8361, 0
      %v8383 = vsel %vm690, %v8362, 0
      %v8386 = vsel %vm690, %v8363, 0
      %v8389 = vsel %vm690, %v8364, 0
      %v8392 = vsel %vm690, %v8365, 0
      %v8395 = vsel %vm690, %v8366, 0
      %v8398 = vsel %vm690, %v8367, 0
      %v8401 = vsel %vm690, %v8368, 0
      %v8404 = vsel %vm690, %v8369, 0
      %v8407 = vsel %vm690, %v8370, 0
      %v8410 = vsel %vm690, %v8371, 0
      %v8413 = vsel %vm690, %v8372, 0
      %v8416 = vsel %vm690, %v8373, 0
      %v8419 = vsel %vm690, %v8374, 0
      %v8422 = vsel %vm690, %v8375, 0
      %v8425 = vsel %vm7709, %v8327, 0
      %8427 = vmatprep.subr.bf16.mxu0 0
      %8428 = vmatpush1.bf16.msra.mxu0 %v8425
      %8429 = vmatprep.subr.bf16.mxu0 0
      %8430 = vmatpush1.bf16.msra.mxu0 0
      %8431 = vmatprep.subr.bf16.mxu0 0
      %8432 = vmatpush1.bf16.msra.mxu0 0
      %8433 = vmatprep.subr.bf16.mxu0 0
      %8434 = vmatpush1.bf16.msra.mxu0 0
      %8435 = vmatprep.subr.bf16.mxu0 0
      %8436 = vmatpush1.bf16.msra.mxu0 0
      %8437 = vmatprep.subr.bf16.mxu0 0
      %8438 = vmatpush1.bf16.msra.mxu0 0
      %8439 = vmatprep.subr.bf16.mxu0 0
      %8440 = vmatpush1.bf16.msra.mxu0 0
      %8441 = vmatprep.subr.bf16.mxu0 0
      %8442 = vmatpush1.bf16.msra.mxu0 0
      %8443 = vmatprep.subr.bf16.mxu0 0
      %8444 = vmatpush1.bf16.msra.mxu0 0
      %8445 = vmatprep.subr.bf16.mxu0 0
      %8446 = vmatpush1.bf16.msra.mxu0 0
      %8447 = vmatprep.subr.bf16.mxu0 0
      %8448 = vmatpush1.bf16.msra.mxu0 0
      %8449 = vmatprep.subr.bf16.mxu0 0
      %8450 = vmatpush1.bf16.msra.mxu0 0
      %8451 = vmatprep.subr.bf16.mxu0 0
      %8452 = vmatpush1.bf16.msra.mxu0 0
      %8453 = vmatprep.subr.bf16.mxu0 0
      %8454 = vmatpush1.bf16.msra.mxu0 0
      %8455 = vmatprep.subr.bf16.mxu0 0
      %8456 = vmatpush1.bf16.msra.mxu0 0
      %8457 = vmatprep.subr.bf16.mxu0 0
      %8458 = vmatpush1.bf16.msra.mxu0 0
      %8459 = vmatprep.mubr.bf16.mxu0 0
      %8460 = vmatmul.mubr.bf16.gmra.mrb[0].mxu0 %v8377
      %v8461 = vpop.f32.mrb[0].mxu0
      %v8462 = vadd.f32 0.0, %v8461
      %v8463 = vpop.f32.mrb[0].mxu0
      %v8464 = vpop.f32.mrb[0].mxu0
      %v8465 = vadd.f32 0.0, %v8464
      %v8466 = vpop.f32.mrb[0].mxu0
      %8467 = vmatprep.mubr.bf16.mxu0 0
      %8468 = vmatmul.mubr.bf16.gmra.mrb[0].mxu0 %v8380
      %v8469 = vpop.f32.mrb[0].mxu0
      %v8470 = vadd.f32 0.0, %v8469
      %v8471 = vpop.f32.mrb[0].mxu0
      %v8472 = vpop.f32.mrb[0].mxu0
      %v8473 = vadd.f32 0.0, %v8472
      %v8474 = vpop.f32.mrb[0].mxu0
      %8475 = vmatprep.mubr.bf16.mxu0 0
      %8476 = vmatmul.mubr.bf16.gmra.mrb[0].mxu0 %v8383
      %v8477 = vpop.f32.mrb[0].mxu0
      %v8478 = vadd.f32 0.0, %v8477
      %v8479 = vpop.f32.mrb[0].mxu0
      %v8480 = vpop.f32.mrb[0].mxu0
      %v8481 = vadd.f32 0.0, %v8480
      %v8482 = vpop.f32.mrb[0].mxu0
      %8483 = vmatprep.mubr.bf16.mxu0 0
      %8484 = vmatmul.mubr.bf16.gmra.mrb[0].mxu0 %v8386
      %v8485 = vpop.f32.mrb[0].mxu0
      %v8486 = vadd.f32 0.0, %v8485
      %v8487 = vpop.f32.mrb[0].mxu0
      %v8488 = vpop.f32.mrb[0].mxu0
      %v8489 = vadd.f32 0.0, %v8488
      %v8490 = vpop.f32.mrb[0].mxu0
      %8491 = vmatprep.mubr.bf16.mxu0 0
      %8492 = vmatmul.mubr.bf16.gmra.mrb[0].mxu0 %v8389
      %v8493 = vpop.f32.mrb[0].mxu0
      %v8494 = vadd.f32 0.0, %v8493
      %v8495 = vpop.f32.mrb[0].mxu0
      %v8496 = vpop.f32.mrb[0].mxu0
      %v8497 = vadd.f32 0.0, %v8496
      %v8498 = vpop.f32.mrb[0].mxu0
      %8499 = vmatprep.mubr.bf16.mxu0 0
      %8500 = vmatmul.mubr.bf16.gmra.mrb[0].mxu0 %v8392
      %v8501 = vpop.f32.mrb[0].mxu0
      %v8502 = vadd.f32 0.0, %v8501
      %v8503 = vpop.f32.mrb[0].mxu0
      %v8504 = vpop.f32.mrb[0].mxu0
      %v8505 = vadd.f32 0.0, %v8504
      %v8506 = vpop.f32.mrb[0].mxu0
      %8507 = vmatprep.mubr.bf16.mxu0 0
      %8508 = vmatmul.mubr.bf16.gmra.mrb[0].mxu0 %v8395
      %v8509 = vpop.f32.mrb[0].mxu0
      %v8510 = vadd.f32 0.0, %v8509
      %v8511 = vpop.f32.mrb[0].mxu0
      %v8512 = vpop.f32.mrb[0].mxu0
      %v8513 = vadd.f32 0.0, %v8512
      %v8514 = vpop.f32.mrb[0].mxu0
      %8515 = vmatprep.mubr.bf16.mxu0 0
      %8516 = vmatmul.mubr.bf16.gmra.mrb[0].mxu0 %v8398
      %v8517 = vpop.f32.mrb[0].mxu0
      %v8518 = vadd.f32 0.0, %v8517
      %v8519 = vpop.f32.mrb[0].mxu0
      %v8520 = vpop.f32.mrb[0].mxu0
      %v8521 = vadd.f32 0.0, %v8520
      %v8522 = vpop.f32.mrb[0].mxu0
      %8523 = vmatprep.mubr.bf16.mxu0 0
      %8524 = vmatmul.mubr.bf16.gmra.mrb[0].mxu0 %v8401
      %v8525 = vpop.f32.mrb[0].mxu0
      %v8526 = vadd.f32 0.0, %v8525
      %v8527 = vpop.f32.mrb[0].mxu0
      %v8528 = vpop.f32.mrb[0].mxu0
      %v8529 = vadd.f32 0.0, %v8528
      %v8530 = vpop.f32.mrb[0].mxu0
      %8531 = vmatprep.mubr.bf16.mxu0 0
      %8532 = vmatmul.mubr.bf16.gmra.mrb[0].mxu0 %v8404
      %v8533 = vpop.f32.mrb[0].mxu0
      %v8534 = vadd.f32 0.0, %v8533
      %v8535 = vpop.f32.mrb[0].mxu0
      %v8536 = vpop.f32.mrb[0].mxu0
      %v8537 = vadd.f32 0.0, %v8536
      %v8538 = vpop.f32.mrb[0].mxu0
      %8539 = vmatprep.mubr.bf16.mxu0 0
      %8540 = vmatmul.mubr.bf16.gmra.mrb[0].mxu0 %v8407
      %v8541 = vpop.f32.mrb[0].mxu0
      %v8542 = vadd.f32 0.0, %v8541
      %v8543 = vpop.f32.mrb[0].mxu0
      %v8544 = vpop.f32.mrb[0].mxu0
      %v8545 = vadd.f32 0.0, %v8544
      %v8546 = vpop.f32.mrb[0].mxu0
      %8547 = vmatprep.mubr.bf16.mxu0 0
      %8548 = vmatmul.mubr.bf16.gmra.mrb[0].mxu0 %v8410
      %v8549 = vpop.f32.mrb[0].mxu0
      %v8550 = vadd.f32 0.0, %v8549
      %v8551 = vpop.f32.mrb[0].mxu0
      %v8552 = vpop.f32.mrb[0].mxu0
      %v8553 = vadd.f32 0.0, %v8552
      %v8554 = vpop.f32.mrb[0].mxu0
      %8555 = vmatprep.mubr.bf16.mxu0 0
      %8556 = vmatmul.mubr.bf16.gmra.mrb[0].mxu0 %v8413
      %v8557 = vpop.f32.mrb[0].mxu0
      %v8558 = vadd.f32 0.0, %v8557
      %v8559 = vpop.f32.mrb[0].mxu0
      %v8560 = vpop.f32.mrb[0].mxu0
      %v8561 = vadd.f32 0.0, %v8560
      %v8562 = vpop.f32.mrb[0].mxu0
      %8563 = vmatprep.mubr.bf16.mxu0 0
      %8564 = vmatmul.mubr.bf16.gmra.mrb[0].mxu0 %v8416
      %v8565 = vpop.f32.mrb[0].mxu0
      %v8566 = vadd.f32 0.0, %v8565
      %v8567 = vpop.f32.mrb[0].mxu0
      %v8568 = vpop.f32.mrb[0].mxu0
      %v8569 = vadd.f32 0.0, %v8568
      %v8570 = vpop.f32.mrb[0].mxu0
      %8571 = vmatprep.mubr.bf16.mxu0 0
      %8572 = vmatmul.mubr.bf16.gmra.mrb[0].mxu0 %v8419
      %v8573 = vpop.f32.mrb[0].mxu0
      %v8574 = vadd.f32 0.0, %v8573
      %v8575 = vpop.f32.mrb[0].mxu0
      %v8576 = vpop.f32.mrb[0].mxu0
      %v8577 = vadd.f32 0.0, %v8576
      %v8578 = vpop.f32.mrb[0].mxu0
      %8579 = vmatprep.mubr.bf16.mxu0 0
      %8580 = vmatmul.mubr.bf16.gmra.mrb[0].mxu0 %v8422
      %v8581 = vpop.f32.mrb[0].mxu0
      %v8582 = vadd.f32 0.0, %v8581
      %v8583 = vpop.f32.mrb[0].mxu0
      %v8584 = vpop.f32.mrb[0].mxu0
      %v8585 = vadd.f32 0.0, %v8584
      %v8586 = vpop.f32.mrb[0].mxu0
      %8587 = vdwg.mxu0
      %v8588 = vadd.f32 %v8040, %v8462
      %v8589 = vadd.f32 %v8043, %v8465
      %v8590 = vadd.f32 %v8048, %v8470
      %v8591 = vadd.f32 %v8051, %v8473
      %v8592 = vadd.f32 %v8056, %v8478
      %v8593 = vadd.f32 %v8059, %v8481
      %v8594 = vadd.f32 %v8064, %v8486
      %v8595 = vadd.f32 %v8067, %v8489
      %v8596 = vadd.f32 %v8072, %v8494
      %v8597 = vadd.f32 %v8075, %v8497
      %v8598 = vadd.f32 %v8080, %v8502
      %v8599 = vadd.f32 %v8083, %v8505
      %v8600 = vadd.f32 %v8088, %v8510
      %v8601 = vadd.f32 %v8091, %v8513
      %v8602 = vadd.f32 %v8096, %v8518
      %v8603 = vadd.f32 %v8099, %v8521
      %v8604 = vadd.f32 %v8104, %v8526
      %v8605 = vadd.f32 %v8107, %v8529
      %v8606 = vadd.f32 %v8112, %v8534
      %v8607 = vadd.f32 %v8115, %v8537
      %v8608 = vadd.f32 %v8120, %v8542
      %v8609 = vadd.f32 %v8123, %v8545
      %v8610 = vadd.f32 %v8128, %v8550
      %v8611 = vadd.f32 %v8131, %v8553
      %v8612 = vadd.f32 %v8136, %v8558
      %v8613 = vadd.f32 %v8139, %v8561
      %v8614 = vadd.f32 %v8144, %v8566
      %v8615 = vadd.f32 %v8147, %v8569
      %v8616 = vadd.f32 %v8152, %v8574
      %v8617 = vadd.f32 %v8155, %v8577
      %v8618 = vadd.f32 %v8160, %v8582
      %v8619 = vadd.f32 %v8163, %v8585
      %v8620 = vld [vmem:[%s7062] sm:$0xf]
      %v8621 = vld [vmem:[%s7062 + $0x4] sm:$0xf]
      %v8622 = vld [vmem:[%s7062 + $0xc] sm:$0xf]
      %v8623 = vld [vmem:[%s7062 + $0x10] sm:$0xf]
      %v8624 = vld [vmem:[%s7062 + $0x18] sm:$0xf]
      %v8625 = vld [vmem:[%s7062 + $0x1c] sm:$0xf]
      %v8626 = vld [vmem:[%s7062 + $0x24] sm:$0xf]
      %v8627 = vld [vmem:[%s7062 + $0x28] sm:$0xf]
      %v8628 = vld [vmem:[%s7062 + $0x30] sm:$0xf]
      %v8629 = vld [vmem:[%s7062 + $0x34] sm:$0xf]
      %v8630 = vld [vmem:[%s7062 + $0x3c] sm:$0xf]
      %v8631 = vld [vmem:[%s7062 + $0x40] sm:$0xf]
      %v8632 = vld [vmem:[%s7062 + $0x48] sm:$0xf]
      %v8633 = vld [vmem:[%s7062 + $0x4c] sm:$0xf]
      %v8634 = vld [vmem:[%s7062 + $0x54] sm:$0xf]
      %v8635 = vld [vmem:[%s7062 + $0x58] sm:$0xf]
      %v8636 = vld [vmem:[%s7062 + $0x60] sm:$0xf]
      %v8637 = vld [vmem:[%s7062 + $0x64] sm:$0xf]
      %v8638 = vld [vmem:[%s7062 + $0x6c] sm:$0xf]
      %v8639 = vld [vmem:[%s7062 + $0x70] sm:$0xf]
      %v8640 = vld [vmem:[%s7062 + $0x78] sm:$0xf]
      %v8641 = vld [vmem:[%s7062 + $0x7c] sm:$0xf]
      %v8642 = vld [vmem:[%s7062 + $0x84] sm:$0xf]
      %v8643 = vld [vmem:[%s7062 + $0x88] sm:$0xf]
      %v8644 = vld [vmem:[%s7062 + $0x90] sm:$0xf]
      %v8645 = vld [vmem:[%s7062 + $0x94] sm:$0xf]
      %v8646 = vld [vmem:[%s7062 + $0x9c] sm:$0xf]
      %v8647 = vld [vmem:[%s7062 + $0xa0] sm:$0xf]
      %v8648 = vld [vmem:[%s7062 + $0xa8] sm:$0xf]
      %v8649 = vld [vmem:[%s7062 + $0xac] sm:$0xf]
      %v8650 = vld [vmem:[%s7062 + $0xb4] sm:$0xf]
      %v8651 = vld [vmem:[%s7062 + $0xb8] sm:$0xf]
      %s8652 = scalar_lea.vmem %s9, 6
      %v8653 = vld [vmem:[%s8652] sm:$0x3]
      %v8686 = vunpack.c.l.b16 %v8620
      %v8687 = vunpack.c.l.b16 %v8621
      %v8688 = vunpack.c.l.b16 %v8622
      %v8689 = vunpack.c.l.b16 %v8623
      %v8690 = vunpack.c.l.b16 %v8624
      %v8691 = vunpack.c.l.b16 %v8625
      %v8692 = vunpack.c.l.b16 %v8626
      %v8693 = vunpack.c.l.b16 %v8627
      %v8694 = vunpack.c.l.b16 %v8628
      %v8695 = vunpack.c.l.b16 %v8629
      %v8696 = vunpack.c.l.b16 %v8630
      %v8697 = vunpack.c.l.b16 %v8631
      %v8698 = vunpack.c.l.b16 %v8632
      %v8699 = vunpack.c.l.b16 %v8633
      %v8700 = vunpack.c.l.b16 %v8634
      %v8701 = vunpack.c.l.b16 %v8635
      %v8702 = vunpack.c.l.b16 %v8636
      %v8703 = vunpack.c.l.b16 %v8637
      %v8704 = vunpack.c.l.b16 %v8638
      %v8705 = vunpack.c.l.b16 %v8639
      %v8706 = vunpack.c.l.b16 %v8640
      %v8707 = vunpack.c.l.b16 %v8641
      %v8708 = vunpack.c.l.b16 %v8642
      %v8709 = vunpack.c.l.b16 %v8643
      %v8710 = vunpack.c.l.b16 %v8644
      %v8711 = vunpack.c.l.b16 %v8645
      %v8712 = vunpack.c.l.b16 %v8646
      %v8713 = vunpack.c.l.b16 %v8647
      %v8714 = vunpack.c.l.b16 %v8648
      %v8715 = vunpack.c.l.b16 %v8649
      %v8716 = vunpack.c.l.b16 %v8650
      %v8717 = vunpack.c.l.b16 %v8651
      %v8718 = vpack.c.b16 %v8687, %v8686
      %v8719 = vpack.c.b16 %v8689, %v8688
      %v8720 = vpack.c.b16 %v8691, %v8690
      %v8721 = vpack.c.b16 %v8693, %v8692
      %v8722 = vpack.c.b16 %v8695, %v8694
      %v8723 = vpack.c.b16 %v8697, %v8696
      %v8724 = vpack.c.b16 %v8699, %v8698
      %v8725 = vpack.c.b16 %v8701, %v8700
      %v8726 = vpack.c.b16 %v8703, %v8702
      %v8727 = vpack.c.b16 %v8705, %v8704
      %v8728 = vpack.c.b16 %v8707, %v8706
      %v8729 = vpack.c.b16 %v8709, %v8708
      %v8730 = vpack.c.b16 %v8711, %v8710
      %v8731 = vpack.c.b16 %v8713, %v8712
      %v8732 = vpack.c.b16 %v8715, %v8714
      %v8733 = vpack.c.b16 %v8717, %v8716
      %v8735 = vsel %vm690, %v8718, 0
      %v8738 = vsel %vm690, %v8719, 0
      %v8741 = vsel %vm690, %v8720, 0
      %v8744 = vsel %vm690, %v8721, 0
      %v8747 = vsel %vm690, %v8722, 0
      %v8750 = vsel %vm690, %v8723, 0
      %v8753 = vsel %vm690, %v8724, 0
      %v8756 = vsel %vm690, %v8725, 0
      %v8759 = vsel %vm690, %v8726, 0
      %v8762 = vsel %vm690, %v8727, 0
      %v8765 = vsel %vm690, %v8728, 0
      %v8768 = vsel %vm690, %v8729, 0
      %v8771 = vsel %vm690, %v8730, 0
      %v8774 = vsel %vm690, %v8731, 0
      %v8777 = vsel %vm690, %v8732, 0
      %v8780 = vsel %vm690, %v8733, 0
      %v8783 = vsel %vm7709, %v8653, 0
      %8785 = vmatprep.subr.bf16.mxu0 0
      %8786 = vmatpush1.bf16.msra.mxu0 %v8783
      %8787 = vmatprep.subr.bf16.mxu0 0
      %8788 = vmatpush1.bf16.msra.mxu0 0
      %8789 = vmatprep.subr.bf16.mxu0 0
      %8790 = vmatpush1.bf16.msra.mxu0 0
      %8791 = vmatprep.subr.bf16.mxu0 0
      %8792 = vmatpush1.bf16.msra.mxu0 0
      %8793 = vmatprep.subr.bf16.mxu0 0
      %8794 = vmatpush1.bf16.msra.mxu0 0
      %8795 = vmatprep.subr.bf16.mxu0 0
      %8796 = vmatpush1.bf16.msra.mxu0 0
      %8797 = vmatprep.subr.bf16.mxu0 0
      %8798 = vmatpush1.bf16.msra.mxu0 0
      %8799 = vmatprep.subr.bf16.mxu0 0
      %8800 = vmatpush1.bf16.msra.mxu0 0
      %8801 = vmatprep.subr.bf16.mxu0 0
      %8802 = vmatpush1.bf16.msra.mxu0 0
      %8803 = vmatprep.subr.bf16.mxu0 0
      %8804 = vmatpush1.bf16.msra.mxu0 0
      %8805 = vmatprep.subr.bf16.mxu0 0
      %8806 = vmatpush1.bf16.msra.mxu0 0
      %8807 = vmatprep.subr.bf16.mxu0 0
      %8808 = vmatpush1.bf16.msra.mxu0 0
      %8809 = vmatprep.subr.bf16.mxu0 0
      %8810 = vmatpush1.bf16.msra.mxu0 0
      %8811 = vmatprep.subr.bf16.mxu0 0
      %8812 = vmatpush1.bf16.msra.mxu0 0
      %8813 = vmatprep.subr.bf16.mxu0 0
      %8814 = vmatpush1.bf16.msra.mxu0 0
      %8815 = vmatprep.subr.bf16.mxu0 0
      %8816 = vmatpush1.bf16.msra.mxu0 0
      %8817 = vmatprep.mubr.bf16.mxu0 0
      %8818 = vmatmul.mubr.bf16.gmra.mrb[0].mxu0 %v8735
      %v8819 = vpop.f32.mrb[0].mxu0
      %v8820 = vadd.f32 0.0, %v8819
      %v8821 = vpop.f32.mrb[0].mxu0
      %v8822 = vpop.f32.mrb[0].mxu0
      %v8823 = vadd.f32 0.0, %v8822
      %v8824 = vpop.f32.mrb[0].mxu0
      %8825 = vmatprep.mubr.bf16.mxu0 0
      %8826 = vmatmul.mubr.bf16.gmra.mrb[0].mxu0 %v8738
      %v8827 = vpop.f32.mrb[0].mxu0
      %v8828 = vadd.f32 0.0, %v8827
      %v8829 = vpop.f32.mrb[0].mxu0
      %v8830 = vpop.f32.mrb[0].mxu0
      %v8831 = vadd.f32 0.0, %v8830
      %v8832 = vpop.f32.mrb[0].mxu0
      %8833 = vmatprep.mubr.bf16.mxu0 0
      %8834 = vmatmul.mubr.bf16.gmra.mrb[0].mxu0 %v8741
      %v8835 = vpop.f32.mrb[0].mxu0
      %v8836 = vadd.f32 0.0, %v8835
      %v8837 = vpop.f32.mrb[0].mxu0
      %v8838 = vpop.f32.mrb[0].mxu0
      %v8839 = vadd.f32 0.0, %v8838
      %v8840 = vpop.f32.mrb[0].mxu0
      %8841 = vmatprep.mubr.bf16.mxu0 0
      %8842 = vmatmul.mubr.bf16.gmra.mrb[0].mxu0 %v8744
      %v8843 = vpop.f32.mrb[0].mxu0
      %v8844 = vadd.f32 0.0, %v8843
      %v8845 = vpop.f32.mrb[0].mxu0
      %v8846 = vpop.f32.mrb[0].mxu0
      %v8847 = vadd.f32 0.0, %v8846
      %v8848 = vpop.f32.mrb[0].mxu0
      %8849 = vmatprep.mubr.bf16.mxu0 0
      %8850 = vmatmul.mubr.bf16.gmra.mrb[0].mxu0 %v8747
      %v8851 = vpop.f32.mrb[0].mxu0
      %v8852 = vadd.f32 0.0, %v8851
      %v8853 = vpop.f32.mrb[0].mxu0
      %v8854 = vpop.f32.mrb[0].mxu0
      %v8855 = vadd.f32 0.0, %v8854
      %v8856 = vpop.f32.mrb[0].mxu0
      %8857 = vmatprep.mubr.bf16.mxu0 0
      %8858 = vmatmul.mubr.bf16.gmra.mrb[0].mxu0 %v8750
      %v8859 = vpop.f32.mrb[0].mxu0
      %v8860 = vadd.f32 0.0, %v8859
      %v8861 = vpop.f32.mrb[0].mxu0
      %v8862 = vpop.f32.mrb[0].mxu0
      %v8863 = vadd.f32 0.0, %v8862
      %v8864 = vpop.f32.mrb[0].mxu0
      %8865 = vmatprep.mubr.bf16.mxu0 0
      %8866 = vmatmul.mubr.bf16.gmra.mrb[0].mxu0 %v8753
      %v8867 = vpop.f32.mrb[0].mxu0
      %v8868 = vadd.f32 0.0, %v8867
      %v8869 = vpop.f32.mrb[0].mxu0
      %v8870 = vpop.f32.mrb[0].mxu0
      %v8871 = vadd.f32 0.0, %v8870
      %v8872 = vpop.f32.mrb[0].mxu0
      %8873 = vmatprep.mubr.bf16.mxu0 0
      %8874 = vmatmul.mubr.bf16.gmra.mrb[0].mxu0 %v8756
      %v8875 = vpop.f32.mrb[0].mxu0
      %v8876 = vadd.f32 0.0, %v8875
      %v8877 = vpop.f32.mrb[0].mxu0
      %v8878 = vpop.f32.mrb[0].mxu0
      %v8879 = vadd.f32 0.0, %v8878
      %v8880 = vpop.f32.mrb[0].mxu0
      %8881 = vmatprep.mubr.bf16.mxu0 0
      %8882 = vmatmul.mubr.bf16.gmra.mrb[0].mxu0 %v8759
      %v8883 = vpop.f32.mrb[0].mxu0
      %v8884 = vadd.f32 0.0, %v8883
      %v8885 = vpop.f32.mrb[0].mxu0
      %v8886 = vpop.f32.mrb[0].mxu0
      %v8887 = vadd.f32 0.0, %v8886
      %v8888 = vpop.f32.mrb[0].mxu0
      %8889 = vmatprep.mubr.bf16.mxu0 0
      %8890 = vmatmul.mubr.bf16.gmra.mrb[0].mxu0 %v8762
      %v8891 = vpop.f32.mrb[0].mxu0
      %v8892 = vadd.f32 0.0, %v8891
      %v8893 = vpop.f32.mrb[0].mxu0
      %v8894 = vpop.f32.mrb[0].mxu0
      %v8895 = vadd.f32 0.0, %v8894
      %v8896 = vpop.f32.mrb[0].mxu0
      %8897 = vmatprep.mubr.bf16.mxu0 0
      %8898 = vmatmul.mubr.bf16.gmra.mrb[0].mxu0 %v8765
      %v8899 = vpop.f32.mrb[0].mxu0
      %v8900 = vadd.f32 0.0, %v8899
      %v8901 = vpop.f32.mrb[0].mxu0
      %v8902 = vpop.f32.mrb[0].mxu0
      %v8903 = vadd.f32 0.0, %v8902
      %v8904 = vpop.f32.mrb[0].mxu0
      %8905 = vmatprep.mubr.bf16.mxu0 0
      %8906 = vmatmul.mubr.bf16.gmra.mrb[0].mxu0 %v8768
      %v8907 = vpop.f32.mrb[0].mxu0
      %v8908 = vadd.f32 0.0, %v8907
      %v8909 = vpop.f32.mrb[0].mxu0
      %v8910 = vpop.f32.mrb[0].mxu0
      %v8911 = vadd.f32 0.0, %v8910
      %v8912 = vpop.f32.mrb[0].mxu0
      %8913 = vmatprep.mubr.bf16.mxu0 0
      %8914 = vmatmul.mubr.bf16.gmra.mrb[0].mxu0 %v8771
      %v8915 = vpop.f32.mrb[0].mxu0
      %v8916 = vadd.f32 0.0, %v8915
      %v8917 = vpop.f32.mrb[0].mxu0
      %v8918 = vpop.f32.mrb[0].mxu0
      %v8919 = vadd.f32 0.0, %v8918
      %v8920 = vpop.f32.mrb[0].mxu0
      %8921 = vmatprep.mubr.bf16.mxu0 0
      %8922 = vmatmul.mubr.bf16.gmra.mrb[0].mxu0 %v8774
      %v8923 = vpop.f32.mrb[0].mxu0
      %v8924 = vadd.f32 0.0, %v8923
      %v8925 = vpop.f32.mrb[0].mxu0
      %v8926 = vpop.f32.mrb[0].mxu0
      %v8927 = vadd.f32 0.0, %v8926
      %v8928 = vpop.f32.mrb[0].mxu0
      %8929 = vmatprep.mubr.bf16.mxu0 0
      %8930 = vmatmul.mubr.bf16.gmra.mrb[0].mxu0 %v8777
      %v8931 = vpop.f32.mrb[0].mxu0
      %v8932 = vadd.f32 0.0, %v8931
      %v8933 = vpop.f32.mrb[0].mxu0
      %v8934 = vpop.f32.mrb[0].mxu0
      %v8935 = vadd.f32 0.0, %v8934
      %v8936 = vpop.f32.mrb[0].mxu0
      %8937 = vmatprep.mubr.bf16.mxu0 0
      %8938 = vmatmul.mubr.bf16.gmra.mrb[0].mxu0 %v8780
      %v8939 = vpop.f32.mrb[0].mxu0
      %v8940 = vadd.f32 0.0, %v8939
      %v8941 = vpop.f32.mrb[0].mxu0
      %v8942 = vpop.f32.mrb[0].mxu0
      %v8943 = vadd.f32 0.0, %v8942
      %v8944 = vpop.f32.mrb[0].mxu0
      %8945 = vdwg.mxu0
      %v8946 = vadd.f32 %v8588, %v8820
      %v8947 = vadd.f32 %v8589, %v8823
      %v8948 = vadd.f32 %v8590, %v8828
      %v8949 = vadd.f32 %v8591, %v8831
      %v8950 = vadd.f32 %v8592, %v8836
      %v8951 = vadd.f32 %v8593, %v8839
      %v8952 = vadd.f32 %v8594, %v8844
      %v8953 = vadd.f32 %v8595, %v8847
      %v8954 = vadd.f32 %v8596, %v8852
      %v8955 = vadd.f32 %v8597, %v8855
      %v8956 = vadd.f32 %v8598, %v8860
      %v8957 = vadd.f32 %v8599, %v8863
      %v8958 = vadd.f32 %v8600, %v8868
      %v8959 = vadd.f32 %v8601, %v8871
      %v8960 = vadd.f32 %v8602, %v8876
      %v8961 = vadd.f32 %v8603, %v8879
      %v8962 = vadd.f32 %v8604, %v8884
      %v8963 = vadd.f32 %v8605, %v8887
      %v8964 = vadd.f32 %v8606, %v8892
      %v8965 = vadd.f32 %v8607, %v8895
      %v8966 = vadd.f32 %v8608, %v8900
      %v8967 = vadd.f32 %v8609, %v8903
      %v8968 = vadd.f32 %v8610, %v8908
      %v8969 = vadd.f32 %v8611, %v8911
      %v8970 = vadd.f32 %v8612, %v8916
      %v8971 = vadd.f32 %v8613, %v8919
      %v8972 = vadd.f32 %v8614, %v8924
      %v8973 = vadd.f32 %v8615, %v8927
      %v8974 = vadd.f32 %v8616, %v8932
      %v8975 = vadd.f32 %v8617, %v8935
      %v8976 = vadd.f32 %v8618, %v8940
      %v8977 = vadd.f32 %v8619, %v8943
      %v8978 = vld [vmem:[%s7062] sm:$0xf]
      %v8979 = vld [vmem:[%s7062 + $0x4] sm:$0xf]
      %v8980 = vld [vmem:[%s7062 + $0x8] sm:$0x1]
      %v8981 = vld [vmem:[%s7062 + $0xc] sm:$0xf]
      %v8982 = vld [vmem:[%s7062 + $0x10] sm:$0xf]
      %v8983 = vld [vmem:[%s7062 + $0x14] sm:$0x1]
      %v8984 = vld [vmem:[%s7062 + $0x18] sm:$0xf]
      %v8985 = vld [vmem:[%s7062 + $0x1c] sm:$0xf]
      %v8986 = vld [vmem:[%s7062 + $0x20] sm:$0x1]
      %v8987 = vld [vmem:[%s7062 + $0x24] sm:$0xf]
      %v8988 = vld [vmem:[%s7062 + $0x28] sm:$0xf]
      %v8989 = vld [vmem:[%s7062 + $0x2c] sm:$0x1]
      %v8990 = vld [vmem:[%s7062 + $0x30] sm:$0xf]
      %v8991 = vld [vmem:[%s7062 + $0x34] sm:$0xf]
      %v8992 = vld [vmem:[%s7062 + $0x38] sm:$0x1]
      %v8993 = vld [vmem:[%s7062 + $0x3c] sm:$0xf]
      %v8994 = vld [vmem:[%s7062 + $0x40] sm:$0xf]
      %v8995 = vld [vmem:[%s7062 + $0x44] sm:$0x1]
      %v8996 = vld [vmem:[%s7062 + $0x48] sm:$0xf]
      %v8997 = vld [vmem:[%s7062 + $0x4c] sm:$0xf]
      %v8998 = vld [vmem:[%s7062 + $0x50] sm:$0x1]
      %v8999 = vld [vmem:[%s7062 + $0x54] sm:$0xf]
      %v9000 = vld [vmem:[%s7062 + $0x58] sm:$0xf]
      %v9001 = vld [vmem:[%s7062 + $0x5c] sm:$0x1]
      %v9002 = vld [vmem:[%s7062 + $0x60] sm:$0xf]
      %v9003 = vld [vmem:[%s7062 + $0x64] sm:$0xf]
      %v9004 = vld [vmem:[%s7062 + $0x68] sm:$0x1]
      %v9005 = vld [vmem:[%s7062 + $0x6c] sm:$0xf]
      %v9006 = vld [vmem:[%s7062 + $0x70] sm:$0xf]
      %v9007 = vld [vmem:[%s7062 + $0x74] sm:$0x1]
      %v9008 = vld [vmem:[%s7062 + $0x78] sm:$0xf]
      %v9009 = vld [vmem:[%s7062 + $0x7c] sm:$0xf]
      %v9010 = vld [vmem:[%s7062 + $0x80] sm:$0x1]
      %v9011 = vld [vmem:[%s7062 + $0x84] sm:$0xf]
      %v9012 = vld [vmem:[%s7062 + $0x88] sm:$0xf]
      %v9013 = vld [vmem:[%s7062 + $0x8c] sm:$0x1]
      %v9014 = vld [vmem:[%s7062 + $0x90] sm:$0xf]
      %v9015 = vld [vmem:[%s7062 + $0x94] sm:$0xf]
      %v9016 = vld [vmem:[%s7062 + $0x98] sm:$0x1]
      %v9017 = vld [vmem:[%s7062 + $0x9c] sm:$0xf]
      %v9018 = vld [vmem:[%s7062 + $0xa0] sm:$0xf]
      %v9019 = vld [vmem:[%s7062 + $0xa4] sm:$0x1]
      %v9020 = vld [vmem:[%s7062 + $0xa8] sm:$0xf]
      %v9021 = vld [vmem:[%s7062 + $0xac] sm:$0xf]
      %v9022 = vld [vmem:[%s7062 + $0xb0] sm:$0x1]
      %v9023 = vld [vmem:[%s7062 + $0xb4] sm:$0xf]
      %v9024 = vld [vmem:[%s7062 + $0xb8] sm:$0xf]
      %v9025 = vld [vmem:[%s7062 + $0xbc] sm:$0x1]
      %v9027 = vshrl.u32 %v8978, 16
      %v9029 = vrot.slane %v9027, 4
      %v9030 = vshll.u32 %v8978, 16
      %v9032 = vrot.slane %v9030, 5
      %v9033 = vor.u32 %v9029, %v9032
      %v9034 = vrot.slane %v9033, 4
      %v9036 = vshll.u32 %v8979, 16
      %v9038 = vrot.slane %v9036, 5
      %v9039 = vsel %vm2071, %v9034, %v9038
      %v9040 = vshrl.u32 %v8979, 16
      %v9042 = vrot.slane %v9040, 4
      %v9043 = vor.u32 %v9042, %v9038
      %v9044 = vrot.slane %v9043, 4
      %v9046 = vshll.u32 %v8980, 16
      %v9048 = vrot.slane %v9046, 5
      %v9049 = vsel %vm2071, %v9044, %v9048
      %v9051 = vshrl.u32 %v8981, 16
      %v9053 = vrot.slane %v9051, 4
      %v9054 = vshll.u32 %v8981, 16
      %v9056 = vrot.slane %v9054, 5
      %v9057 = vor.u32 %v9053, %v9056
      %v9058 = vrot.slane %v9057, 4
      %v9060 = vshll.u32 %v8982, 16
      %v9062 = vrot.slane %v9060, 5
      %v9063 = vsel %vm2071, %v9058, %v9062
      %v9064 = vshrl.u32 %v8982, 16
      %v9066 = vrot.slane %v9064, 4
      %v9067 = vor.u32 %v9066, %v9062
      %v9068 = vrot.slane %v9067, 4
      %v9070 = vshll.u32 %v8983, 16
      %v9072 = vrot.slane %v9070, 5
      %v9073 = vsel %vm2071, %v9068, %v9072
      %v9075 = vshrl.u32 %v8984, 16
      %v9077 = vrot.slane %v9075, 4
      %v9078 = vshll.u32 %v8984, 16
      %v9080 = vrot.slane %v9078, 5
      %v9081 = vor.u32 %v9077, %v9080
      %v9082 = vrot.slane %v9081, 4
      %v9084 = vshll.u32 %v8985, 16
      %v9086 = vrot.slane %v9084, 5
      %v9087 = vsel %vm2071, %v9082, %v9086
      %v9088 = vshrl.u32 %v8985, 16
      %v9090 = vrot.slane %v9088, 4
      %v9091 = vor.u32 %v9090, %v9086
      %v9092 = vrot.slane %v9091, 4
      %v9094 = vshll.u32 %v8986, 16
      %v9096 = vrot.slane %v9094, 5
      %v9097 = vsel %vm2071, %v9092, %v9096
      %v9099 = vshrl.u32 %v8987, 16
      %v9101 = vrot.slane %v9099, 4
      %v9102 = vshll.u32 %v8987, 16
      %v9104 = vrot.slane %v9102, 5
      %v9105 = vor.u32 %v9101, %v9104
      %v9106 = vrot.slane %v9105, 4
      %v9108 = vshll.u32 %v8988, 16
      %v9110 = vrot.slane %v9108, 5
      %v9111 = vsel %vm2071, %v9106, %v9110
      %v9112 = vshrl.u32 %v8988, 16
      %v9114 = vrot.slane %v9112, 4
      %v9115 = vor.u32 %v9114, %v9110
      %v9116 = vrot.slane %v9115, 4
      %v9118 = vshll.u32 %v8989, 16
      %v9120 = vrot.slane %v9118, 5
      %v9121 = vsel %vm2071, %v9116, %v9120
      %v9123 = vshrl.u32 %v8990, 16
      %v9125 = vrot.slane %v9123, 4
      %v9126 = vshll.u32 %v8990, 16
      %v9128 = vrot.slane %v9126, 5
      %v9129 = vor.u32 %v9125, %v9128
      %v9130 = vrot.slane %v9129, 4
      %v9132 = vshll.u32 %v8991, 16
      %v9134 = vrot.slane %v9132, 5
      %v9135 = vsel %vm2071, %v9130, %v9134
      %v9136 = vshrl.u32 %v8991, 16
      %v9138 = vrot.slane %v9136, 4
      %v9139 = vor.u32 %v9138, %v9134
      %v9140 = vrot.slane %v9139, 4
      %v9142 = vshll.u32 %v8992, 16
      %v9144 = vrot.slane %v9142, 5
      %v9145 = vsel %vm2071, %v9140, %v9144
      %v9147 = vshrl.u32 %v8993, 16
      %v9149 = vrot.slane %v9147, 4
      %v9150 = vshll.u32 %v8993, 16
      %v9152 = vrot.slane %v9150, 5
      %v9153 = vor.u32 %v9149, %v9152
      %v9154 = vrot.slane %v9153, 4
      %v9156 = vshll.u32 %v8994, 16
      %v9158 = vrot.slane %v9156, 5
      %v9159 = vsel %vm2071, %v9154, %v9158
      %v9160 = vshrl.u32 %v8994, 16
      %v9162 = vrot.slane %v9160, 4
      %v9163 = vor.u32 %v9162, %v9158
      %v9164 = vrot.slane %v9163, 4
      %v9166 = vshll.u32 %v8995, 16
      %v9168 = vrot.slane %v9166, 5
      %v9169 = vsel %vm2071, %v9164, %v9168
      %v9171 = vshrl.u32 %v8996, 16
      %v9173 = vrot.slane %v9171, 4
      %v9174 = vshll.u32 %v8996, 16
      %v9176 = vrot.slane %v9174, 5
      %v9177 = vor.u32 %v9173, %v9176
      %v9178 = vrot.slane %v9177, 4
      %v9180 = vshll.u32 %v8997, 16
      %v9182 = vrot.slane %v9180, 5
      %v9183 = vsel %vm2071, %v9178, %v9182
      %v9184 = vshrl.u32 %v8997, 16
      %v9186 = vrot.slane %v9184, 4
      %v9187 = vor.u32 %v9186, %v9182
      %v9188 = vrot.slane %v9187, 4
      %v9190 = vshll.u32 %v8998, 16
      %v9192 = vrot.slane %v9190, 5
      %v9193 = vsel %vm2071, %v9188, %v9192
      %v9195 = vshrl.u32 %v8999, 16
      %v9197 = vrot.slane %v9195, 4
      %v9198 = vshll.u32 %v8999, 16
      %v9200 = vrot.slane %v9198, 5
      %v9201 = vor.u32 %v9197, %v9200
      %v9202 = vrot.slane %v9201, 4
      %v9204 = vshll.u32 %v9000, 16
      %v9206 = vrot.slane %v9204, 5
      %v9207 = vsel %vm2071, %v9202, %v9206
      %v9208 = vshrl.u32 %v9000, 16
      %v9210 = vrot.slane %v9208, 4
      %v9211 = vor.u32 %v9210, %v9206
      %v9212 = vrot.slane %v9211, 4
      %v9214 = vshll.u32 %v9001, 16
      %v9216 = vrot.slane %v9214, 5
      %v9217 = vsel %vm2071, %v9212, %v9216
      %v9219 = vshrl.u32 %v9002, 16
      %v9221 = vrot.slane %v9219, 4
      %v9222 = vshll.u32 %v9002, 16
      %v9224 = vrot.slane %v9222, 5
      %v9225 = vor.u32 %v9221, %v9224
      %v9226 = vrot.slane %v9225, 4
      %v9228 = vshll.u32 %v9003, 16
      %v9230 = vrot.slane %v9228, 5
      %v9231 = vsel %vm2071, %v9226, %v9230
      %v9232 = vshrl.u32 %v9003, 16
      %v9234 = vrot.slane %v9232, 4
      %v9235 = vor.u32 %v9234, %v9230
      %v9236 = vrot.slane %v9235, 4
      %v9238 = vshll.u32 %v9004, 16
      %v9240 = vrot.slane %v9238, 5
      %v9241 = vsel %vm2071, %v9236, %v9240
      %v9243 = vshrl.u32 %v9005, 16
      %v9245 = vrot.slane %v9243, 4
      %v9246 = vshll.u32 %v9005, 16
      %v9248 = vrot.slane %v9246, 5
      %v9249 = vor.u32 %v9245, %v9248
      %v9250 = vrot.slane %v9249, 4
      %v9252 = vshll.u32 %v9006, 16
      %v9254 = vrot.slane %v9252, 5
      %v9255 = vsel %vm2071, %v9250, %v9254
      %v9256 = vshrl.u32 %v9006, 16
      %v9258 = vrot.slane %v9256, 4
      %v9259 = vor.u32 %v9258, %v9254
      %v9260 = vrot.slane %v9259, 4
      %v9262 = vshll.u32 %v9007, 16
      %v9264 = vrot.slane %v9262, 5
      %v9265 = vsel %vm2071, %v9260, %v9264
      %v9267 = vshrl.u32 %v9008, 16
      %v9269 = vrot.slane %v9267, 4
      %v9270 = vshll.u32 %v9008, 16
      %v9272 = vrot.slane %v9270, 5
      %v9273 = vor.u32 %v9269, %v9272
      %v9274 = vrot.slane %v9273, 4
      %v9276 = vshll.u32 %v9009, 16
      %v9278 = vrot.slane %v9276, 5
      %v9279 = vsel %vm2071, %v9274, %v9278
      %v9280 = vshrl.u32 %v9009, 16
      %v9282 = vrot.slane %v9280, 4
      %v9283 = vor.u32 %v9282, %v9278
      %v9284 = vrot.slane %v9283, 4
      %v9286 = vshll.u32 %v9010, 16
      %v9288 = vrot.slane %v9286, 5
      %v9289 = vsel %vm2071, %v9284, %v9288
      %v9291 = vshrl.u32 %v9011, 16
      %v9293 = vrot.slane %v9291, 4
      %v9294 = vshll.u32 %v9011, 16
      %v9296 = vrot.slane %v9294, 5
      %v9297 = vor.u32 %v9293, %v9296
      %v9298 = vrot.slane %v9297, 4
      %v9300 = vshll.u32 %v9012, 16
      %v9302 = vrot.slane %v9300, 5
      %v9303 = vsel %vm2071, %v9298, %v9302
      %v9304 = vshrl.u32 %v9012, 16
      %v9306 = vrot.slane %v9304, 4
      %v9307 = vor.u32 %v9306, %v9302
      %v9308 = vrot.slane %v9307, 4
      %v9310 = vshll.u32 %v9013, 16
      %v9312 = vrot.slane %v9310, 5
      %v9313 = vsel %vm2071, %v9308, %v9312
      %v9315 = vshrl.u32 %v9014, 16
      %v9317 = vrot.slane %v9315, 4
      %v9318 = vshll.u32 %v9014, 16
      %v9320 = vrot.slane %v9318, 5
      %v9321 = vor.u32 %v9317, %v9320
      %v9322 = vrot.slane %v9321, 4
      %v9324 = vshll.u32 %v9015, 16
      %v9326 = vrot.slane %v9324, 5
      %v9327 = vsel %vm2071, %v9322, %v9326
      %v9328 = vshrl.u32 %v9015, 16
      %v9330 = vrot.slane %v9328, 4
      %v9331 = vor.u32 %v9330, %v9326
      %v9332 = vrot.slane %v9331, 4
      %v9334 = vshll.u32 %v9016, 16
      %v9336 = vrot.slane %v9334, 5
      %v9337 = vsel %vm2071, %v9332, %v9336
      %v9339 = vshrl.u32 %v9017, 16
      %v9341 = vrot.slane %v9339, 4
      %v9342 = vshll.u32 %v9017, 16
      %v9344 = vrot.slane %v9342, 5
      %v9345 = vor.u32 %v9341, %v9344
      %v9346 = vrot.slane %v9345, 4
      %v9348 = vshll.u32 %v9018, 16
      %v9350 = vrot.slane %v9348, 5
      %v9351 = vsel %vm2071, %v9346, %v9350
      %v9352 = vshrl.u32 %v9018, 16
      %v9354 = vrot.slane %v9352, 4
      %v9355 = vor.u32 %v9354, %v9350
      %v9356 = vrot.slane %v9355, 4
      %v9358 = vshll.u32 %v9019, 16
      %v9360 = vrot.slane %v9358, 5
      %v9361 = vsel %vm2071, %v9356, %v9360
      %v9363 = vshrl.u32 %v9020, 16
      %v9365 = vrot.slane %v9363, 4
      %v9366 = vshll.u32 %v9020, 16
      %v9368 = vrot.slane %v9366, 5
      %v9369 = vor.u32 %v9365, %v9368
      %v9370 = vrot.slane %v9369, 4
      %v9372 = vshll.u32 %v9021, 16
      %v9374 = vrot.slane %v9372, 5
      %v9375 = vsel %vm2071, %v9370, %v9374
      %v9376 = vshrl.u32 %v9021, 16
      %v9378 = vrot.slane %v9376, 4
      %v9379 = vor.u32 %v9378, %v9374
      %v9380 = vrot.slane %v9379, 4
      %v9382 = vshll.u32 %v9022, 16
      %v9384 = vrot.slane %v9382, 5
      %v9385 = vsel %vm2071, %v9380, %v9384
      %v9387 = vshrl.u32 %v9023, 16
      %v9389 = vrot.slane %v9387, 4
      %v9390 = vshll.u32 %v9023, 16
      %v9392 = vrot.slane %v9390, 5
      %v9393 = vor.u32 %v9389, %v9392
      %v9394 = vrot.slane %v9393, 4
      %v9396 = vshll.u32 %v9024, 16
      %v9398 = vrot.slane %v9396, 5
      %v9399 = vsel %vm2071, %v9394, %v9398
      %v9400 = vshrl.u32 %v9024, 16
      %v9402 = vrot.slane %v9400, 4
      %v9403 = vor.u32 %v9402, %v9398
      %v9404 = vrot.slane %v9403, 4
      %v9406 = vshll.u32 %v9025, 16
      %v9408 = vrot.slane %v9406, 5
      %v9409 = vsel %vm2071, %v9404, %v9408
      %s9410 = scalar_lea.vmem %s9, 8
      %v9411 = vld [vmem:[%s9410] sm:$0x3]
      %v9412 = vunpack.c.l.b16 %v9039
      %v9413 = vunpack.c.l.b16 %v9049
      %v9414 = vunpack.c.l.b16 %v9063
      %v9415 = vunpack.c.l.b16 %v9073
      %v9416 = vunpack.c.l.b16 %v9087
      %v9417 = vunpack.c.l.b16 %v9097
      %v9418 = vunpack.c.l.b16 %v9111
      %v9419 = vunpack.c.l.b16 %v9121
      %v9420 = vunpack.c.l.b16 %v9135
      %v9421 = vunpack.c.l.b16 %v9145
      %v9422 = vunpack.c.l.b16 %v9159
      %v9423 = vunpack.c.l.b16 %v9169
      %v9424 = vunpack.c.l.b16 %v9183
      %v9425 = vunpack.c.l.b16 %v9193
      %v9426 = vunpack.c.l.b16 %v9207
      %v9427 = vunpack.c.l.b16 %v9217
      %v9428 = vunpack.c.l.b16 %v9231
      %v9429 = vunpack.c.l.b16 %v9241
      %v9430 = vunpack.c.l.b16 %v9255
      %v9431 = vunpack.c.l.b16 %v9265
      %v9432 = vunpack.c.l.b16 %v9279
      %v9433 = vunpack.c.l.b16 %v9289
      %v9434 = vunpack.c.l.b16 %v9303
      %v9435 = vunpack.c.l.b16 %v9313
      %v9436 = vunpack.c.l.b16 %v9327
      %v9437 = vunpack.c.l.b16 %v9337
      %v9438 = vunpack.c.l.b16 %v9351
      %v9439 = vunpack.c.l.b16 %v9361
      %v9440 = vunpack.c.l.b16 %v9375
      %v9441 = vunpack.c.l.b16 %v9385
      %v9442 = vunpack.c.l.b16 %v9399
      %v9443 = vunpack.c.l.b16 %v9409
      %v9444 = vpack.c.b16 %v9413, %v9412
      %v9445 = vpack.c.b16 %v9415, %v9414
      %v9446 = vpack.c.b16 %v9417, %v9416
      %v9447 = vpack.c.b16 %v9419, %v9418
      %v9448 = vpack.c.b16 %v9421, %v9420
      %v9449 = vpack.c.b16 %v9423, %v9422
      %v9450 = vpack.c.b16 %v9425, %v9424
      %v9451 = vpack.c.b16 %v9427, %v9426
      %v9452 = vpack.c.b16 %v9429, %v9428
      %v9453 = vpack.c.b16 %v9431, %v9430
      %v9454 = vpack.c.b16 %v9433, %v9432
      %v9455 = vpack.c.b16 %v9435, %v9434
      %v9456 = vpack.c.b16 %v9437, %v9436
      %v9457 = vpack.c.b16 %v9439, %v9438
      %v9458 = vpack.c.b16 %v9441, %v9440
      %v9459 = vpack.c.b16 %v9443, %v9442
      %v9461 = vsel %vm690, %v9444, 0
      %v9464 = vsel %vm690, %v9445, 0
      %v9467 = vsel %vm690, %v9446, 0
      %v9470 = vsel %vm690, %v9447, 0
      %v9473 = vsel %vm690, %v9448, 0
      %v9476 = vsel %vm690, %v9449, 0
      %v9479 = vsel %vm690, %v9450, 0
      %v9482 = vsel %vm690, %v9451, 0
      %v9485 = vsel %vm690, %v9452, 0
      %v9488 = vsel %vm690, %v9453, 0
      %v9491 = vsel %vm690, %v9454, 0
      %v9494 = vsel %vm690, %v9455, 0
      %v9497 = vsel %vm690, %v9456, 0
      %v9500 = vsel %vm690, %v9457, 0
      %v9503 = vsel %vm690, %v9458, 0
      %v9506 = vsel %vm690, %v9459, 0
      %v9509 = vsel %vm7709, %v9411, 0
      %9511 = vmatprep.subr.bf16.mxu0 0
      %9512 = vmatpush1.bf16.msra.mxu0 %v9509
      %9513 = vmatprep.subr.bf16.mxu0 0
      %9514 = vmatpush1.bf16.msra.mxu0 0
      %9515 = vmatprep.subr.bf16.mxu0 0
      %9516 = vmatpush1.bf16.msra.mxu0 0
      %9517 = vmatprep.subr.bf16.mxu0 0
      %9518 = vmatpush1.bf16.msra.mxu0 0
      %9519 = vmatprep.subr.bf16.mxu0 0
      %9520 = vmatpush1.bf16.msra.mxu0 0
      %9521 = vmatprep.subr.bf16.mxu0 0
      %9522 = vmatpush1.bf16.msra.mxu0 0
      %9523 = vmatprep.subr.bf16.mxu0 0
      %9524 = vmatpush1.bf16.msra.mxu0 0
      %9525 = vmatprep.subr.bf16.mxu0 0
      %9526 = vmatpush1.bf16.msra.mxu0 0
      %9527 = vmatprep.subr.bf16.mxu0 0
      %9528 = vmatpush1.bf16.msra.mxu0 0
      %9529 = vmatprep.subr.bf16.mxu0 0
      %9530 = vmatpush1.bf16.msra.mxu0 0
      %9531 = vmatprep.subr.bf16.mxu0 0
      %9532 = vmatpush1.bf16.msra.mxu0 0
      %9533 = vmatprep.subr.bf16.mxu0 0
      %9534 = vmatpush1.bf16.msra.mxu0 0
      %9535 = vmatprep.subr.bf16.mxu0 0
      %9536 = vmatpush1.bf16.msra.mxu0 0
      %9537 = vmatprep.subr.bf16.mxu0 0
      %9538 = vmatpush1.bf16.msra.mxu0 0
      %9539 = vmatprep.subr.bf16.mxu0 0
      %9540 = vmatpush1.bf16.msra.mxu0 0
      %9541 = vmatprep.subr.bf16.mxu0 0
      %9542 = vmatpush1.bf16.msra.mxu0 0
      %9543 = vmatprep.mubr.bf16.mxu0 0
      %9544 = vmatmul.mubr.bf16.gmra.mrb[0].mxu0 %v9461
      %v9545 = vpop.f32.mrb[0].mxu0
      %v9546 = vadd.f32 0.0, %v9545
      %v9547 = vpop.f32.mrb[0].mxu0
      %v9548 = vpop.f32.mrb[0].mxu0
      %v9549 = vadd.f32 0.0, %v9548
      %v9550 = vpop.f32.mrb[0].mxu0
      %9551 = vmatprep.mubr.bf16.mxu0 0
      %9552 = vmatmul.mubr.bf16.gmra.mrb[0].mxu0 %v9464
      %v9553 = vpop.f32.mrb[0].mxu0
      %v9554 = vadd.f32 0.0, %v9553
      %v9555 = vpop.f32.mrb[0].mxu0
      %v9556 = vpop.f32.mrb[0].mxu0
      %v9557 = vadd.f32 0.0, %v9556
      %v9558 = vpop.f32.mrb[0].mxu0
      %9559 = vmatprep.mubr.bf16.mxu0 0
      %9560 = vmatmul.mubr.bf16.gmra.mrb[0].mxu0 %v9467
      %v9561 = vpop.f32.mrb[0].mxu0
      %v9562 = vadd.f32 0.0, %v9561
      %v9563 = vpop.f32.mrb[0].mxu0
      %v9564 = vpop.f32.mrb[0].mxu0
      %v9565 = vadd.f32 0.0, %v9564
      %v9566 = vpop.f32.mrb[0].mxu0
      %9567 = vmatprep.mubr.bf16.mxu0 0
      %9568 = vmatmul.mubr.bf16.gmra.mrb[0].mxu0 %v9470
      %v9569 = vpop.f32.mrb[0].mxu0
      %v9570 = vadd.f32 0.0, %v9569
      %v9571 = vpop.f32.mrb[0].mxu0
      %v9572 = vpop.f32.mrb[0].mxu0
      %v9573 = vadd.f32 0.0, %v9572
      %v9574 = vpop.f32.mrb[0].mxu0
      %9575 = vmatprep.mubr.bf16.mxu0 0
      %9576 = vmatmul.mubr.bf16.gmra.mrb[0].mxu0 %v9473
      %v9577 = vpop.f32.mrb[0].mxu0
      %v9578 = vadd.f32 0.0, %v9577
      %v9579 = vpop.f32.mrb[0].mxu0
      %v9580 = vpop.f32.mrb[0].mxu0
      %v9581 = vadd.f32 0.0, %v9580
      %v9582 = vpop.f32.mrb[0].mxu0
      %9583 = vmatprep.mubr.bf16.mxu0 0
      %9584 = vmatmul.mubr.bf16.gmra.mrb[0].mxu0 %v9476
      %v9585 = vpop.f32.mrb[0].mxu0
      %v9586 = vadd.f32 0.0, %v9585
      %v9587 = vpop.f32.mrb[0].mxu0
      %v9588 = vpop.f32.mrb[0].mxu0
      %v9589 = vadd.f32 0.0, %v9588
      %v9590 = vpop.f32.mrb[0].mxu0
      %9591 = vmatprep.mubr.bf16.mxu0 0
      %9592 = vmatmul.mubr.bf16.gmra.mrb[0].mxu0 %v9479
      %v9593 = vpop.f32.mrb[0].mxu0
      %v9594 = vadd.f32 0.0, %v9593
      %v9595 = vpop.f32.mrb[0].mxu0
      %v9596 = vpop.f32.mrb[0].mxu0
      %v9597 = vadd.f32 0.0, %v9596
      %v9598 = vpop.f32.mrb[0].mxu0
      %9599 = vmatprep.mubr.bf16.mxu0 0
      %9600 = vmatmul.mubr.bf16.gmra.mrb[0].mxu0 %v9482
      %v9601 = vpop.f32.mrb[0].mxu0
      %v9602 = vadd.f32 0.0, %v9601
      %v9603 = vpop.f32.mrb[0].mxu0
      %v9604 = vpop.f32.mrb[0].mxu0
      %v9605 = vadd.f32 0.0, %v9604
      %v9606 = vpop.f32.mrb[0].mxu0
      %9607 = vmatprep.mubr.bf16.mxu0 0
      %9608 = vmatmul.mubr.bf16.gmra.mrb[0].mxu0 %v9485
      %v9609 = vpop.f32.mrb[0].mxu0
      %v9610 = vadd.f32 0.0, %v9609
      %v9611 = vpop.f32.mrb[0].mxu0
      %v9612 = vpop.f32.mrb[0].mxu0
      %v9613 = vadd.f32 0.0, %v9612
      %v9614 = vpop.f32.mrb[0].mxu0
      %9615 = vmatprep.mubr.bf16.mxu0 0
      %9616 = vmatmul.mubr.bf16.gmra.mrb[0].mxu0 %v9488
      %v9617 = vpop.f32.mrb[0].mxu0
      %v9618 = vadd.f32 0.0, %v9617
      %v9619 = vpop.f32.mrb[0].mxu0
      %v9620 = vpop.f32.mrb[0].mxu0
      %v9621 = vadd.f32 0.0, %v9620
      %v9622 = vpop.f32.mrb[0].mxu0
      %9623 = vmatprep.mubr.bf16.mxu0 0
      %9624 = vmatmul.mubr.bf16.gmra.mrb[0].mxu0 %v9491
      %v9625 = vpop.f32.mrb[0].mxu0
      %v9626 = vadd.f32 0.0, %v9625
      %v9627 = vpop.f32.mrb[0].mxu0
      %v9628 = vpop.f32.mrb[0].mxu0
      %v9629 = vadd.f32 0.0, %v9628
      %v9630 = vpop.f32.mrb[0].mxu0
      %9631 = vmatprep.mubr.bf16.mxu0 0
      %9632 = vmatmul.mubr.bf16.gmra.mrb[0].mxu0 %v9494
      %v9633 = vpop.f32.mrb[0].mxu0
      %v9634 = vadd.f32 0.0, %v9633
      %v9635 = vpop.f32.mrb[0].mxu0
      %v9636 = vpop.f32.mrb[0].mxu0
      %v9637 = vadd.f32 0.0, %v9636
      %v9638 = vpop.f32.mrb[0].mxu0
      %9639 = vmatprep.mubr.bf16.mxu0 0
      %9640 = vmatmul.mubr.bf16.gmra.mrb[0].mxu0 %v9497
      %v9641 = vpop.f32.mrb[0].mxu0
      %v9642 = vadd.f32 0.0, %v9641
      %v9643 = vpop.f32.mrb[0].mxu0
      %v9644 = vpop.f32.mrb[0].mxu0
      %v9645 = vadd.f32 0.0, %v9644
      %v9646 = vpop.f32.mrb[0].mxu0
      %9647 = vmatprep.mubr.bf16.mxu0 0
      %9648 = vmatmul.mubr.bf16.gmra.mrb[0].mxu0 %v9500
      %v9649 = vpop.f32.mrb[0].mxu0
      %v9650 = vadd.f32 0.0, %v9649
      %v9651 = vpop.f32.mrb[0].mxu0
      %v9652 = vpop.f32.mrb[0].mxu0
      %v9653 = vadd.f32 0.0, %v9652
      %v9654 = vpop.f32.mrb[0].mxu0
      %9655 = vmatprep.mubr.bf16.mxu0 0
      %9656 = vmatmul.mubr.bf16.gmra.mrb[0].mxu0 %v9503
      %v9657 = vpop.f32.mrb[0].mxu0
      %v9658 = vadd.f32 0.0, %v9657
      %v9659 = vpop.f32.mrb[0].mxu0
      %v9660 = vpop.f32.mrb[0].mxu0
      %v9661 = vadd.f32 0.0, %v9660
      %v9662 = vpop.f32.mrb[0].mxu0
      %9663 = vmatprep.mubr.bf16.mxu0 0
      %9664 = vmatmul.mubr.bf16.gmra.mrb[0].mxu0 %v9506
      %v9665 = vpop.f32.mrb[0].mxu0
      %v9666 = vadd.f32 0.0, %v9665
      %v9667 = vpop.f32.mrb[0].mxu0
      %v9668 = vpop.f32.mrb[0].mxu0
      %v9669 = vadd.f32 0.0, %v9668
      %v9670 = vpop.f32.mrb[0].mxu0
      %9671 = vdwg.mxu0
      %v9672 = vadd.f32 %v8946, %v9546
      %v9673 = vadd.f32 %v8947, %v9549
      %v9674 = vadd.f32 %v8948, %v9554
      %v9675 = vadd.f32 %v8949, %v9557
      %v9676 = vadd.f32 %v8950, %v9562
      %v9677 = vadd.f32 %v8951, %v9565
      %v9678 = vadd.f32 %v8952, %v9570
      %v9679 = vadd.f32 %v8953, %v9573
      %v9680 = vadd.f32 %v8954, %v9578
      %v9681 = vadd.f32 %v8955, %v9581
      %v9682 = vadd.f32 %v8956, %v9586
      %v9683 = vadd.f32 %v8957, %v9589
      %v9684 = vadd.f32 %v8958, %v9594
      %v9685 = vadd.f32 %v8959, %v9597
      %v9686 = vadd.f32 %v8960, %v9602
      %v9687 = vadd.f32 %v8961, %v9605
      %v9688 = vadd.f32 %v8962, %v9610
      %v9689 = vadd.f32 %v8963, %v9613
      %v9690 = vadd.f32 %v8964, %v9618
      %v9691 = vadd.f32 %v8965, %v9621
      %v9692 = vadd.f32 %v8966, %v9626
      %v9693 = vadd.f32 %v8967, %v9629
      %v9694 = vadd.f32 %v8968, %v9634
      %v9695 = vadd.f32 %v8969, %v9637
      %v9696 = vadd.f32 %v8970, %v9642
      %v9697 = vadd.f32 %v8971, %v9645
      %v9698 = vadd.f32 %v8972, %v9650
      %v9699 = vadd.f32 %v8973, %v9653
      %v9700 = vadd.f32 %v8974, %v9658
      %v9701 = vadd.f32 %v8975, %v9661
      %v9702 = vadd.f32 %v8976, %v9666
      %v9703 = vadd.f32 %v8977, %v9669
      %v9704 = vld [vmem:[%s7062] sm:$0xe]
      %v9705 = vld [vmem:[%s7062 + $0xc] sm:$0xe]
      %v9706 = vld [vmem:[%s7062 + $0x18] sm:$0xe]
      %v9707 = vld [vmem:[%s7062 + $0x24] sm:$0xe]
      %v9708 = vld [vmem:[%s7062 + $0x30] sm:$0xe]
      %v9709 = vld [vmem:[%s7062 + $0x3c] sm:$0xe]
      %v9710 = vld [vmem:[%s7062 + $0x48] sm:$0xe]
      %v9711 = vld [vmem:[%s7062 + $0x54] sm:$0xe]
      %v9712 = vld [vmem:[%s7062 + $0x60] sm:$0xe]
      %v9713 = vld [vmem:[%s7062 + $0x6c] sm:$0xe]
      %v9714 = vld [vmem:[%s7062 + $0x78] sm:$0xe]
      %v9715 = vld [vmem:[%s7062 + $0x84] sm:$0xe]
      %v9716 = vld [vmem:[%s7062 + $0x90] sm:$0xe]
      %v9717 = vld [vmem:[%s7062 + $0x9c] sm:$0xe]
      %v9718 = vld [vmem:[%s7062 + $0xa8] sm:$0xe]
      %v9719 = vld [vmem:[%s7062 + $0xb4] sm:$0xe]
      %v9768 = vrot.slane %v9704, 5
      %v9769 = vrot.slane %v9768, 4
      %v9770 = vrot.slane %v8979, 5
      %v9771 = vsel %vm3060, %v9769, %v9770
      %v9772 = vrot.slane %v9770, 4
      %v9773 = vrot.slane %v8980, 5
      %v9774 = vsel %vm3060, %v9772, %v9773
      %v9775 = vrot.slane %v9705, 5
      %v9776 = vrot.slane %v9775, 4
      %v9777 = vrot.slane %v8982, 5
      %v9778 = vsel %vm3060, %v9776, %v9777
      %v9779 = vrot.slane %v9777, 4
      %v9780 = vrot.slane %v8983, 5
      %v9781 = vsel %vm3060, %v9779, %v9780
      %v9782 = vrot.slane %v9706, 5
      %v9783 = vrot.slane %v9782, 4
      %v9784 = vrot.slane %v8985, 5
      %v9785 = vsel %vm3060, %v9783, %v9784
      %v9786 = vrot.slane %v9784, 4
      %v9787 = vrot.slane %v8986, 5
      %v9788 = vsel %vm3060, %v9786, %v9787
      %v9789 = vrot.slane %v9707, 5
      %v9790 = vrot.slane %v9789, 4
      %v9791 = vrot.slane %v8988, 5
      %v9792 = vsel %vm3060, %v9790, %v9791
      %v9793 = vrot.slane %v9791, 4
      %v9794 = vrot.slane %v8989, 5
      %v9795 = vsel %vm3060, %v9793, %v9794
      %v9796 = vrot.slane %v9708, 5
      %v9797 = vrot.slane %v9796, 4
      %v9798 = vrot.slane %v8991, 5
      %v9799 = vsel %vm3060, %v9797, %v9798
      %v9800 = vrot.slane %v9798, 4
      %v9801 = vrot.slane %v8992, 5
      %v9802 = vsel %vm3060, %v9800, %v9801
      %v9803 = vrot.slane %v9709, 5
      %v9804 = vrot.slane %v9803, 4
      %v9805 = vrot.slane %v8994, 5
      %v9806 = vsel %vm3060, %v9804, %v9805
      %v9807 = vrot.slane %v9805, 4
      %v9808 = vrot.slane %v8995, 5
      %v9809 = vsel %vm3060, %v9807, %v9808
      %v9810 = vrot.slane %v9710, 5
      %v9811 = vrot.slane %v9810, 4
      %v9812 = vrot.slane %v8997, 5
      %v9813 = vsel %vm3060, %v9811, %v9812
      %v9814 = vrot.slane %v9812, 4
      %v9815 = vrot.slane %v8998, 5
      %v9816 = vsel %vm3060, %v9814, %v9815
      %v9817 = vrot.slane %v9711, 5
      %v9818 = vrot.slane %v9817, 4
      %v9819 = vrot.slane %v9000, 5
      %v9820 = vsel %vm3060, %v9818, %v9819
      %v9821 = vrot.slane %v9819, 4
      %v9822 = vrot.slane %v9001, 5
      %v9823 = vsel %vm3060, %v9821, %v9822
      %v9824 = vrot.slane %v9712, 5
      %v9825 = vrot.slane %v9824, 4
      %v9826 = vrot.slane %v9003, 5
      %v9827 = vsel %vm3060, %v9825, %v9826
      %v9828 = vrot.slane %v9826, 4
      %v9829 = vrot.slane %v9004, 5
      %v9830 = vsel %vm3060, %v9828, %v9829
      %v9831 = vrot.slane %v9713, 5
      %v9832 = vrot.slane %v9831, 4
      %v9833 = vrot.slane %v9006, 5
      %v9834 = vsel %vm3060, %v9832, %v9833
      %v9835 = vrot.slane %v9833, 4
      %v9836 = vrot.slane %v9007, 5
      %v9837 = vsel %vm3060, %v9835, %v9836
      %v9838 = vrot.slane %v9714, 5
      %v9839 = vrot.slane %v9838, 4
      %v9840 = vrot.slane %v9009, 5
      %v9841 = vsel %vm3060, %v9839, %v9840
      %v9842 = vrot.slane %v9840, 4
      %v9843 = vrot.slane %v9010, 5
      %v9844 = vsel %vm3060, %v9842, %v9843
      %v9845 = vrot.slane %v9715, 5
      %v9846 = vrot.slane %v9845, 4
      %v9847 = vrot.slane %v9012, 5
      %v9848 = vsel %vm3060, %v9846, %v9847
      %v9849 = vrot.slane %v9847, 4
      %v9850 = vrot.slane %v9013, 5
      %v9851 = vsel %vm3060, %v9849, %v9850
      %v9852 = vrot.slane %v9716, 5
      %v9853 = vrot.slane %v9852, 4
      %v9854 = vrot.slane %v9015, 5
      %v9855 = vsel %vm3060, %v9853, %v9854
      %v9856 = vrot.slane %v9854, 4
      %v9857 = vrot.slane %v9016, 5
      %v9858 = vsel %vm3060, %v9856, %v9857
      %v9859 = vrot.slane %v9717, 5
      %v9860 = vrot.slane %v9859, 4
      %v9861 = vrot.slane %v9018, 5
      %v9862 = vsel %vm3060, %v9860, %v9861
      %v9863 = vrot.slane %v9861, 4
      %v9864 = vrot.slane %v9019, 5
      %v9865 = vsel %vm3060, %v9863, %v9864
      %v9866 = vrot.slane %v9718, 5
      %v9867 = vrot.slane %v9866, 4
      %v9868 = vrot.slane %v9021, 5
      %v9869 = vsel %vm3060, %v9867, %v9868
      %v9870 = vrot.slane %v9868, 4
      %v9871 = vrot.slane %v9022, 5
      %v9872 = vsel %vm3060, %v9870, %v9871
      %v9873 = vrot.slane %v9719, 5
      %v9874 = vrot.slane %v9873, 4
      %v9875 = vrot.slane %v9024, 5
      %v9876 = vsel %vm3060, %v9874, %v9875
      %v9877 = vrot.slane %v9875, 4
      %v9878 = vrot.slane %v9025, 5
      %v9879 = vsel %vm3060, %v9877, %v9878
      %s9880 = scalar_lea.vmem %s9, 10
      %v9881 = vld [vmem:[%s9880] sm:$0x3]
      %v9882 = vunpack.c.l.b16 %v9771
      %v9883 = vunpack.c.l.b16 %v9774
      %v9884 = vunpack.c.l.b16 %v9778
      %v9885 = vunpack.c.l.b16 %v9781
      %v9886 = vunpack.c.l.b16 %v9785
      %v9887 = vunpack.c.l.b16 %v9788
      %v9888 = vunpack.c.l.b16 %v9792
      %v9889 = vunpack.c.l.b16 %v9795
      %v9890 = vunpack.c.l.b16 %v9799
      %v9891 = vunpack.c.l.b16 %v9802
      %v9892 = vunpack.c.l.b16 %v9806
      %v9893 = vunpack.c.l.b16 %v9809
      %v9894 = vunpack.c.l.b16 %v9813
      %v9895 = vunpack.c.l.b16 %v9816
      %v9896 = vunpack.c.l.b16 %v9820
      %v9897 = vunpack.c.l.b16 %v9823
      %v9898 = vunpack.c.l.b16 %v9827
      %v9899 = vunpack.c.l.b16 %v9830
      %v9900 = vunpack.c.l.b16 %v9834
      %v9901 = vunpack.c.l.b16 %v9837
      %v9902 = vunpack.c.l.b16 %v9841
      %v9903 = vunpack.c.l.b16 %v9844
      %v9904 = vunpack.c.l.b16 %v9848
      %v9905 = vunpack.c.l.b16 %v9851
      %v9906 = vunpack.c.l.b16 %v9855
      %v9907 = vunpack.c.l.b16 %v9858
      %v9908 = vunpack.c.l.b16 %v9862
      %v9909 = vunpack.c.l.b16 %v9865
      %v9910 = vunpack.c.l.b16 %v9869
      %v9911 = vunpack.c.l.b16 %v9872
      %v9912 = vunpack.c.l.b16 %v9876
      %v9913 = vunpack.c.l.b16 %v9879
      %v9914 = vpack.c.b16 %v9883, %v9882
      %v9915 = vpack.c.b16 %v9885, %v9884
      %v9916 = vpack.c.b16 %v9887, %v9886
      %v9917 = vpack.c.b16 %v9889, %v9888
      %v9918 = vpack.c.b16 %v9891, %v9890
      %v9919 = vpack.c.b16 %v9893, %v9892
      %v9920 = vpack.c.b16 %v9895, %v9894
      %v9921 = vpack.c.b16 %v9897, %v9896
      %v9922 = vpack.c.b16 %v9899, %v9898
      %v9923 = vpack.c.b16 %v9901, %v9900
      %v9924 = vpack.c.b16 %v9903, %v9902
      %v9925 = vpack.c.b16 %v9905, %v9904
      %v9926 = vpack.c.b16 %v9907, %v9906
      %v9927 = vpack.c.b16 %v9909, %v9908
      %v9928 = vpack.c.b16 %v9911, %v9910
      %v9929 = vpack.c.b16 %v9913, %v9912
      %v9931 = vsel %vm690, %v9914, 0
      %v9934 = vsel %vm690, %v9915, 0
      %v9937 = vsel %vm690, %v9916, 0
      %v9940 = vsel %vm690, %v9917, 0
      %v9943 = vsel %vm690, %v9918, 0
      %v9946 = vsel %vm690, %v9919, 0
      %v9949 = vsel %vm690, %v9920, 0
      %v9952 = vsel %vm690, %v9921, 0
      %v9955 = vsel %vm690, %v9922, 0
      %v9958 = vsel %vm690, %v9923, 0
      %v9961 = vsel %vm690, %v9924, 0
      %v9964 = vsel %vm690, %v9925, 0
      %v9967 = vsel %vm690, %v9926, 0
      %v9970 = vsel %vm690, %v9927, 0
      %v9973 = vsel %vm690, %v9928, 0
      %v9976 = vsel %vm690, %v9929, 0
      %v9979 = vsel %vm7709, %v9881, 0
      %9981 = vmatprep.subr.bf16.mxu0 0
      %9982 = vmatpush1.bf16.msra.mxu0 %v9979
      %9983 = vmatprep.subr.bf16.mxu0 0
      %9984 = vmatpush1.bf16.msra.mxu0 0
      %9985 = vmatprep.subr.bf16.mxu0 0
      %9986 = vmatpush1.bf16.msra.mxu0 0
      %9987 = vmatprep.subr.bf16.mxu0 0
      %9988 = vmatpush1.bf16.msra.mxu0 0
      %9989 = vmatprep.subr.bf16.mxu0 0
      %9990 = vmatpush1.bf16.msra.mxu0 0
      %9991 = vmatprep.subr.bf16.mxu0 0
      %9992 = vmatpush1.bf16.msra.mxu0 0
      %9993 = vmatprep.subr.bf16.mxu0 0
      %9994 = vmatpush1.bf16.msra.mxu0 0
      %9995 = vmatprep.subr.bf16.mxu0 0
      %9996 = vmatpush1.bf16.msra.mxu0 0
      %9997 = vmatprep.subr.bf16.mxu0 0
      %9998 = vmatpush1.bf16.msra.mxu0 0
      %9999 = vmatprep.subr.bf16.mxu0 0
      %10000 = vmatpush1.bf16.msra.mxu0 0
      %10001 = vmatprep.subr.bf16.mxu0 0
      %10002 = vmatpush1.bf16.msra.mxu0 0
      %10003 = vmatprep.subr.bf16.mxu0 0
      %10004 = vmatpush1.bf16.msra.mxu0 0
      %10005 = vmatprep.subr.bf16.mxu0 0
      %10006 = vmatpush1.bf16.msra.mxu0 0
      %10007 = vmatprep.subr.bf16.mxu0 0
      %10008 = vmatpush1.bf16.msra.mxu0 0
      %10009 = vmatprep.subr.bf16.mxu0 0
      %10010 = vmatpush1.bf16.msra.mxu0 0
      %10011 = vmatprep.subr.bf16.mxu0 0
      %10012 = vmatpush1.bf16.msra.mxu0 0
      %10013 = vmatprep.mubr.bf16.mxu0 0
      %10014 = vmatmul.mubr.bf16.gmra.mrb[0].mxu0 %v9931
      %v10015 = vpop.f32.mrb[0].mxu0
      %v10016 = vadd.f32 0.0, %v10015
      %v10017 = vpop.f32.mrb[0].mxu0
      %v10018 = vpop.f32.mrb[0].mxu0
      %v10019 = vadd.f32 0.0, %v10018
      %v10020 = vpop.f32.mrb[0].mxu0
      %10021 = vmatprep.mubr.bf16.mxu0 0
      %10022 = vmatmul.mubr.bf16.gmra.mrb[0].mxu0 %v9934
      %v10023 = vpop.f32.mrb[0].mxu0
      %v10024 = vadd.f32 0.0, %v10023
      %v10025 = vpop.f32.mrb[0].mxu0
      %v10026 = vpop.f32.mrb[0].mxu0
      %v10027 = vadd.f32 0.0, %v10026
      %v10028 = vpop.f32.mrb[0].mxu0
      %10029 = vmatprep.mubr.bf16.mxu0 0
      %10030 = vmatmul.mubr.bf16.gmra.mrb[0].mxu0 %v9937
      %v10031 = vpop.f32.mrb[0].mxu0
      %v10032 = vadd.f32 0.0, %v10031
      %v10033 = vpop.f32.mrb[0].mxu0
      %v10034 = vpop.f32.mrb[0].mxu0
      %v10035 = vadd.f32 0.0, %v10034
      %v10036 = vpop.f32.mrb[0].mxu0
      %10037 = vmatprep.mubr.bf16.mxu0 0
      %10038 = vmatmul.mubr.bf16.gmra.mrb[0].mxu0 %v9940
      %v10039 = vpop.f32.mrb[0].mxu0
      %v10040 = vadd.f32 0.0, %v10039
      %v10041 = vpop.f32.mrb[0].mxu0
      %v10042 = vpop.f32.mrb[0].mxu0
      %v10043 = vadd.f32 0.0, %v10042
      %v10044 = vpop.f32.mrb[0].mxu0
      %10045 = vmatprep.mubr.bf16.mxu0 0
      %10046 = vmatmul.mubr.bf16.gmra.mrb[0].mxu0 %v9943
      %v10047 = vpop.f32.mrb[0].mxu0
      %v10048 = vadd.f32 0.0, %v10047
      %v10049 = vpop.f32.mrb[0].mxu0
      %v10050 = vpop.f32.mrb[0].mxu0
      %v10051 = vadd.f32 0.0, %v10050
      %v10052 = vpop.f32.mrb[0].mxu0
      %10053 = vmatprep.mubr.bf16.mxu0 0
      %10054 = vmatmul.mubr.bf16.gmra.mrb[0].mxu0 %v9946
      %v10055 = vpop.f32.mrb[0].mxu0
      %v10056 = vadd.f32 0.0, %v10055
      %v10057 = vpop.f32.mrb[0].mxu0
      %v10058 = vpop.f32.mrb[0].mxu0
      %v10059 = vadd.f32 0.0, %v10058
      %v10060 = vpop.f32.mrb[0].mxu0
      %10061 = vmatprep.mubr.bf16.mxu0 0
      %10062 = vmatmul.mubr.bf16.gmra.mrb[0].mxu0 %v9949
      %v10063 = vpop.f32.mrb[0].mxu0
      %v10064 = vadd.f32 0.0, %v10063
      %v10065 = vpop.f32.mrb[0].mxu0
      %v10066 = vpop.f32.mrb[0].mxu0
      %v10067 = vadd.f32 0.0, %v10066
      %v10068 = vpop.f32.mrb[0].mxu0
      %10069 = vmatprep.mubr.bf16.mxu0 0
      %10070 = vmatmul.mubr.bf16.gmra.mrb[0].mxu0 %v9952
      %v10071 = vpop.f32.mrb[0].mxu0
      %v10072 = vadd.f32 0.0, %v10071
      %v10073 = vpop.f32.mrb[0].mxu0
      %v10074 = vpop.f32.mrb[0].mxu0
      %v10075 = vadd.f32 0.0, %v10074
      %v10076 = vpop.f32.mrb[0].mxu0
      %10077 = vmatprep.mubr.bf16.mxu0 0
      %10078 = vmatmul.mubr.bf16.gmra.mrb[0].mxu0 %v9955
      %v10079 = vpop.f32.mrb[0].mxu0
      %v10080 = vadd.f32 0.0, %v10079
      %v10081 = vpop.f32.mrb[0].mxu0
      %v10082 = vpop.f32.mrb[0].mxu0
      %v10083 = vadd.f32 0.0, %v10082
      %v10084 = vpop.f32.mrb[0].mxu0
      %10085 = vmatprep.mubr.bf16.mxu0 0
      %10086 = vmatmul.mubr.bf16.gmra.mrb[0].mxu0 %v9958
      %v10087 = vpop.f32.mrb[0].mxu0
      %v10088 = vadd.f32 0.0, %v10087
      %v10089 = vpop.f32.mrb[0].mxu0
      %v10090 = vpop.f32.mrb[0].mxu0
      %v10091 = vadd.f32 0.0, %v10090
      %v10092 = vpop.f32.mrb[0].mxu0
      %10093 = vmatprep.mubr.bf16.mxu0 0
      %10094 = vmatmul.mubr.bf16.gmra.mrb[0].mxu0 %v9961
      %v10095 = vpop.f32.mrb[0].mxu0
      %v10096 = vadd.f32 0.0, %v10095
      %v10097 = vpop.f32.mrb[0].mxu0
      %v10098 = vpop.f32.mrb[0].mxu0
      %v10099 = vadd.f32 0.0, %v10098
      %v10100 = vpop.f32.mrb[0].mxu0
      %10101 = vmatprep.mubr.bf16.mxu0 0
      %10102 = vmatmul.mubr.bf16.gmra.mrb[0].mxu0 %v9964
      %v10103 = vpop.f32.mrb[0].mxu0
      %v10104 = vadd.f32 0.0, %v10103
      %v10105 = vpop.f32.mrb[0].mxu0
      %v10106 = vpop.f32.mrb[0].mxu0
      %v10107 = vadd.f32 0.0, %v10106
      %v10108 = vpop.f32.mrb[0].mxu0
      %10109 = vmatprep.mubr.bf16.mxu0 0
      %10110 = vmatmul.mubr.bf16.gmra.mrb[0].mxu0 %v9967
      %v10111 = vpop.f32.mrb[0].mxu0
      %v10112 = vadd.f32 0.0, %v10111
      %v10113 = vpop.f32.mrb[0].mxu0
      %v10114 = vpop.f32.mrb[0].mxu0
      %v10115 = vadd.f32 0.0, %v10114
      %v10116 = vpop.f32.mrb[0].mxu0
      %10117 = vmatprep.mubr.bf16.mxu0 0
      %10118 = vmatmul.mubr.bf16.gmra.mrb[0].mxu0 %v9970
      %v10119 = vpop.f32.mrb[0].mxu0
      %v10120 = vadd.f32 0.0, %v10119
      %v10121 = vpop.f32.mrb[0].mxu0
      %v10122 = vpop.f32.mrb[0].mxu0
      %v10123 = vadd.f32 0.0, %v10122
      %v10124 = vpop.f32.mrb[0].mxu0
      %10125 = vmatprep.mubr.bf16.mxu0 0
      %10126 = vmatmul.mubr.bf16.gmra.mrb[0].mxu0 %v9973
      %v10127 = vpop.f32.mrb[0].mxu0
      %v10128 = vadd.f32 0.0, %v10127
      %v10129 = vpop.f32.mrb[0].mxu0
      %v10130 = vpop.f32.mrb[0].mxu0
      %v10131 = vadd.f32 0.0, %v10130
      %v10132 = vpop.f32.mrb[0].mxu0
      %10133 = vmatprep.mubr.bf16.mxu0 0
      %10134 = vmatmul.mubr.bf16.gmra.mrb[0].mxu0 %v9976
      %v10135 = vpop.f32.mrb[0].mxu0
      %v10136 = vadd.f32 0.0, %v10135
      %v10137 = vpop.f32.mrb[0].mxu0
      %v10138 = vpop.f32.mrb[0].mxu0
      %v10139 = vadd.f32 0.0, %v10138
      %v10140 = vpop.f32.mrb[0].mxu0
      %10141 = vdwg.mxu0
      %v10142 = vadd.f32 %v9672, %v10016
      %v10143 = vadd.f32 %v9673, %v10019
      %v10144 = vadd.f32 %v9674, %v10024
      %v10145 = vadd.f32 %v9675, %v10027
      %v10146 = vadd.f32 %v9676, %v10032
      %v10147 = vadd.f32 %v9677, %v10035
      %v10148 = vadd.f32 %v9678, %v10040
      %v10149 = vadd.f32 %v9679, %v10043
      %v10150 = vadd.f32 %v9680, %v10048
      %v10151 = vadd.f32 %v9681, %v10051
      %v10152 = vadd.f32 %v9682, %v10056
      %v10153 = vadd.f32 %v9683, %v10059
      %v10154 = vadd.f32 %v9684, %v10064
      %v10155 = vadd.f32 %v9685, %v10067
      %v10156 = vadd.f32 %v9686, %v10072
      %v10157 = vadd.f32 %v9687, %v10075
      %v10158 = vadd.f32 %v9688, %v10080
      %v10159 = vadd.f32 %v9689, %v10083
      %v10160 = vadd.f32 %v9690, %v10088
      %v10161 = vadd.f32 %v9691, %v10091
      %v10162 = vadd.f32 %v9692, %v10096
      %v10163 = vadd.f32 %v9693, %v10099
      %v10164 = vadd.f32 %v9694, %v10104
      %v10165 = vadd.f32 %v9695, %v10107
      %v10166 = vadd.f32 %v9696, %v10112
      %v10167 = vadd.f32 %v9697, %v10115
      %v10168 = vadd.f32 %v9698, %v10120
      %v10169 = vadd.f32 %v9699, %v10123
      %v10170 = vadd.f32 %v9700, %v10128
      %v10171 = vadd.f32 %v9701, %v10131
      %v10172 = vadd.f32 %v9702, %v10136
      %v10173 = vadd.f32 %v9703, %v10139
      %s10174 = scalar_lea.vmem [#allocation3], 24
      %v10175 = vld [vmem:[%s10174] sm:$0xf]
      %v10176 = vld [vmem:[%s10174 + $0x4] sm:$0xf]
      %v10177 = vld [vmem:[%s10174 + $0xc] sm:$0xf]
      %v10178 = vld [vmem:[%s10174 + $0x10] sm:$0xf]
      %v10179 = vld [vmem:[%s10174 + $0x18] sm:$0xf]
      %v10180 = vld [vmem:[%s10174 + $0x1c] sm:$0xf]
      %v10181 = vld [vmem:[%s10174 + $0x24] sm:$0xf]
      %v10182 = vld [vmem:[%s10174 + $0x28] sm:$0xf]
      %v10183 = vld [vmem:[%s10174 + $0x30] sm:$0xf]
      %v10184 = vld [vmem:[%s10174 + $0x34] sm:$0xf]
      %v10185 = vld [vmem:[%s10174 + $0x3c] sm:$0xf]
      %v10186 = vld [vmem:[%s10174 + $0x40] sm:$0xf]
      %v10187 = vld [vmem:[%s10174 + $0x48] sm:$0xf]
      %v10188 = vld [vmem:[%s10174 + $0x4c] sm:$0xf]
      %v10189 = vld [vmem:[%s10174 + $0x54] sm:$0xf]
      %v10190 = vld [vmem:[%s10174 + $0x58] sm:$0xf]
      %v10191 = vld [vmem:[%s10174 + $0x60] sm:$0xf]
      %v10192 = vld [vmem:[%s10174 + $0x64] sm:$0xf]
      %v10193 = vld [vmem:[%s10174 + $0x6c] sm:$0xf]
      %v10194 = vld [vmem:[%s10174 + $0x70] sm:$0xf]
      %v10195 = vld [vmem:[%s10174 + $0x78] sm:$0xf]
      %v10196 = vld [vmem:[%s10174 + $0x7c] sm:$0xf]
      %v10197 = vld [vmem:[%s10174 + $0x84] sm:$0xf]
      %v10198 = vld [vmem:[%s10174 + $0x88] sm:$0xf]
      %v10199 = vld [vmem:[%s10174 + $0x90] sm:$0xf]
      %v10200 = vld [vmem:[%s10174 + $0x94] sm:$0xf]
      %v10201 = vld [vmem:[%s10174 + $0x9c] sm:$0xf]
      %v10202 = vld [vmem:[%s10174 + $0xa0] sm:$0xf]
      %v10203 = vld [vmem:[%s10174 + $0xa8] sm:$0xf]
      %v10204 = vld [vmem:[%s10174 + $0xac] sm:$0xf]
      %v10205 = vld [vmem:[%s10174 + $0xb4] sm:$0xf]
      %v10206 = vld [vmem:[%s10174 + $0xb8] sm:$0xf]
      %s10207 = scalar_lea.vmem %s9, 12
      %v10208 = vld [vmem:[%s10207] sm:$0x3]
      %v10241 = vunpack.c.l.b16 %v10175
      %v10242 = vunpack.c.l.b16 %v10176
      %v10243 = vunpack.c.l.b16 %v10177
      %v10244 = vunpack.c.l.b16 %v10178
      %v10245 = vunpack.c.l.b16 %v10179
      %v10246 = vunpack.c.l.b16 %v10180
      %v10247 = vunpack.c.l.b16 %v10181
      %v10248 = vunpack.c.l.b16 %v10182
      %v10249 = vunpack.c.l.b16 %v10183
      %v10250 = vunpack.c.l.b16 %v10184
      %v10251 = vunpack.c.l.b16 %v10185
      %v10252 = vunpack.c.l.b16 %v10186
      %v10253 = vunpack.c.l.b16 %v10187
      %v10254 = vunpack.c.l.b16 %v10188
      %v10255 = vunpack.c.l.b16 %v10189
      %v10256 = vunpack.c.l.b16 %v10190
      %v10257 = vunpack.c.l.b16 %v10191
      %v10258 = vunpack.c.l.b16 %v10192
      %v10259 = vunpack.c.l.b16 %v10193
      %v10260 = vunpack.c.l.b16 %v10194
      %v10261 = vunpack.c.l.b16 %v10195
      %v10262 = vunpack.c.l.b16 %v10196
      %v10263 = vunpack.c.l.b16 %v10197
      %v10264 = vunpack.c.l.b16 %v10198
      %v10265 = vunpack.c.l.b16 %v10199
      %v10266 = vunpack.c.l.b16 %v10200
      %v10267 = vunpack.c.l.b16 %v10201
      %v10268 = vunpack.c.l.b16 %v10202
      %v10269 = vunpack.c.l.b16 %v10203
      %v10270 = vunpack.c.l.b16 %v10204
      %v10271 = vunpack.c.l.b16 %v10205
      %v10272 = vunpack.c.l.b16 %v10206
      %v10273 = vpack.c.b16 %v10242, %v10241
      %v10274 = vpack.c.b16 %v10244, %v10243
      %v10275 = vpack.c.b16 %v10246, %v10245
      %v10276 = vpack.c.b16 %v10248, %v10247
      %v10277 = vpack.c.b16 %v10250, %v10249
      %v10278 = vpack.c.b16 %v10252, %v10251
      %v10279 = vpack.c.b16 %v10254, %v10253
      %v10280 = vpack.c.b16 %v10256, %v10255
      %v10281 = vpack.c.b16 %v10258, %v10257
      %v10282 = vpack.c.b16 %v10260, %v10259
      %v10283 = vpack.c.b16 %v10262, %v10261
      %v10284 = vpack.c.b16 %v10264, %v10263
      %v10285 = vpack.c.b16 %v10266, %v10265
      %v10286 = vpack.c.b16 %v10268, %v10267
      %v10287 = vpack.c.b16 %v10270, %v10269
      %v10288 = vpack.c.b16 %v10272, %v10271
      %v10290 = vsel %vm690, %v10273, 0
      %v10293 = vsel %vm690, %v10274, 0
      %v10296 = vsel %vm690, %v10275, 0
      %v10299 = vsel %vm690, %v10276, 0
      %v10302 = vsel %vm690, %v10277, 0
      %v10305 = vsel %vm690, %v10278, 0
      %v10308 = vsel %vm690, %v10279, 0
      %v10311 = vsel %vm690, %v10280, 0
      %v10314 = vsel %vm690, %v10281, 0
      %v10317 = vsel %vm690, %v10282, 0
      %v10320 = vsel %vm690, %v10283, 0
      %v10323 = vsel %vm690, %v10284, 0
      %v10326 = vsel %vm690, %v10285, 0
      %v10329 = vsel %vm690, %v10286, 0
      %v10332 = vsel %vm690, %v10287, 0
      %v10335 = vsel %vm690, %v10288, 0
      %v10338 = vsel %vm7709, %v10208, 0
      %10340 = vmatprep.subr.bf16.mxu0 0
      %10341 = vmatpush1.bf16.msra.mxu0 %v10338
      %10342 = vmatprep.subr.bf16.mxu0 0
      %10343 = vmatpush1.bf16.msra.mxu0 0
      %10344 = vmatprep.subr.bf16.mxu0 0
      %10345 = vmatpush1.bf16.msra.mxu0 0
      %10346 = vmatprep.subr.bf16.mxu0 0
      %10347 = vmatpush1.bf16.msra.mxu0 0
      %10348 = vmatprep.subr.bf16.mxu0 0
      %10349 = vmatpush1.bf16.msra.mxu0 0
      %10350 = vmatprep.subr.bf16.mxu0 0
      %10351 = vmatpush1.bf16.msra.mxu0 0
      %10352 = vmatprep.subr.bf16.mxu0 0
      %10353 = vmatpush1.bf16.msra.mxu0 0
      %10354 = vmatprep.subr.bf16.mxu0 0
      %10355 = vmatpush1.bf16.msra.mxu0 0
      %10356 = vmatprep.subr.bf16.mxu0 0
      %10357 = vmatpush1.bf16.msra.mxu0 0
      %10358 = vmatprep.subr.bf16.mxu0 0
      %10359 = vmatpush1.bf16.msra.mxu0 0
      %10360 = vmatprep.subr.bf16.mxu0 0
      %10361 = vmatpush1.bf16.msra.mxu0 0
      %10362 = vmatprep.subr.bf16.mxu0 0
      %10363 = vmatpush1.bf16.msra.mxu0 0
      %10364 = vmatprep.subr.bf16.mxu0 0
      %10365 = vmatpush1.bf16.msra.mxu0 0
      %10366 = vmatprep.subr.bf16.mxu0 0
      %10367 = vmatpush1.bf16.msra.mxu0 0
      %10368 = vmatprep.subr.bf16.mxu0 0
      %10369 = vmatpush1.bf16.msra.mxu0 0
      %10370 = vmatprep.subr.bf16.mxu0 0
      %10371 = vmatpush1.bf16.msra.mxu0 0
      %10372 = vmatprep.mubr.bf16.mxu0 0
      %10373 = vmatmul.mubr.bf16.gmra.mrb[0].mxu0 %v10290
      %v10374 = vpop.f32.mrb[0].mxu0
      %v10375 = vadd.f32 0.0, %v10374
      %v10376 = vpop.f32.mrb[0].mxu0
      %v10377 = vpop.f32.mrb[0].mxu0
      %v10378 = vadd.f32 0.0, %v10377
      %v10379 = vpop.f32.mrb[0].mxu0
      %10380 = vmatprep.mubr.bf16.mxu0 0
      %10381 = vmatmul.mubr.bf16.gmra.mrb[0].mxu0 %v10293
      %v10382 = vpop.f32.mrb[0].mxu0
      %v10383 = vadd.f32 0.0, %v10382
      %v10384 = vpop.f32.mrb[0].mxu0
      %v10385 = vpop.f32.mrb[0].mxu0
      %v10386 = vadd.f32 0.0, %v10385
      %v10387 = vpop.f32.mrb[0].mxu0
      %10388 = vmatprep.mubr.bf16.mxu0 0
      %10389 = vmatmul.mubr.bf16.gmra.mrb[0].mxu0 %v10296
      %v10390 = vpop.f32.mrb[0].mxu0
      %v10391 = vadd.f32 0.0, %v10390
      %v10392 = vpop.f32.mrb[0].mxu0
      %v10393 = vpop.f32.mrb[0].mxu0
      %v10394 = vadd.f32 0.0, %v10393
      %v10395 = vpop.f32.mrb[0].mxu0
      %10396 = vmatprep.mubr.bf16.mxu0 0
      %10397 = vmatmul.mubr.bf16.gmra.mrb[0].mxu0 %v10299
      %v10398 = vpop.f32.mrb[0].mxu0
      %v10399 = vadd.f32 0.0, %v10398
      %v10400 = vpop.f32.mrb[0].mxu0
      %v10401 = vpop.f32.mrb[0].mxu0
      %v10402 = vadd.f32 0.0, %v10401
      %v10403 = vpop.f32.mrb[0].mxu0
      %10404 = vmatprep.mubr.bf16.mxu0 0
      %10405 = vmatmul.mubr.bf16.gmra.mrb[0].mxu0 %v10302
      %v10406 = vpop.f32.mrb[0].mxu0
      %v10407 = vadd.f32 0.0, %v10406
      %v10408 = vpop.f32.mrb[0].mxu0
      %v10409 = vpop.f32.mrb[0].mxu0
      %v10410 = vadd.f32 0.0, %v10409
      %v10411 = vpop.f32.mrb[0].mxu0
      %10412 = vmatprep.mubr.bf16.mxu0 0
      %10413 = vmatmul.mubr.bf16.gmra.mrb[0].mxu0 %v10305
      %v10414 = vpop.f32.mrb[0].mxu0
      %v10415 = vadd.f32 0.0, %v10414
      %v10416 = vpop.f32.mrb[0].mxu0
      %v10417 = vpop.f32.mrb[0].mxu0
      %v10418 = vadd.f32 0.0, %v10417
      %v10419 = vpop.f32.mrb[0].mxu0
      %10420 = vmatprep.mubr.bf16.mxu0 0
      %10421 = vmatmul.mubr.bf16.gmra.mrb[0].mxu0 %v10308
      %v10422 = vpop.f32.mrb[0].mxu0
      %v10423 = vadd.f32 0.0, %v10422
      %v10424 = vpop.f32.mrb[0].mxu0
      %v10425 = vpop.f32.mrb[0].mxu0
      %v10426 = vadd.f32 0.0, %v10425
      %v10427 = vpop.f32.mrb[0].mxu0
      %10428 = vmatprep.mubr.bf16.mxu0 0
      %10429 = vmatmul.mubr.bf16.gmra.mrb[0].mxu0 %v10311
      %v10430 = vpop.f32.mrb[0].mxu0
      %v10431 = vadd.f32 0.0, %v10430
      %v10432 = vpop.f32.mrb[0].mxu0
      %v10433 = vpop.f32.mrb[0].mxu0
      %v10434 = vadd.f32 0.0, %v10433
      %v10435 = vpop.f32.mrb[0].mxu0
      %10436 = vmatprep.mubr.bf16.mxu0 0
      %10437 = vmatmul.mubr.bf16.gmra.mrb[0].mxu0 %v10314
      %v10438 = vpop.f32.mrb[0].mxu0
      %v10439 = vadd.f32 0.0, %v10438
      %v10440 = vpop.f32.mrb[0].mxu0
      %v10441 = vpop.f32.mrb[0].mxu0
      %v10442 = vadd.f32 0.0, %v10441
      %v10443 = vpop.f32.mrb[0].mxu0
      %10444 = vmatprep.mubr.bf16.mxu0 0
      %10445 = vmatmul.mubr.bf16.gmra.mrb[0].mxu0 %v10317
      %v10446 = vpop.f32.mrb[0].mxu0
      %v10447 = vadd.f32 0.0, %v10446
      %v10448 = vpop.f32.mrb[0].mxu0
      %v10449 = vpop.f32.mrb[0].mxu0
      %v10450 = vadd.f32 0.0, %v10449
      %v10451 = vpop.f32.mrb[0].mxu0
      %10452 = vmatprep.mubr.bf16.mxu0 0
      %10453 = vmatmul.mubr.bf16.gmra.mrb[0].mxu0 %v10320
      %v10454 = vpop.f32.mrb[0].mxu0
      %v10455 = vadd.f32 0.0, %v10454
      %v10456 = vpop.f32.mrb[0].mxu0
      %v10457 = vpop.f32.mrb[0].mxu0
      %v10458 = vadd.f32 0.0, %v10457
      %v10459 = vpop.f32.mrb[0].mxu0
      %10460 = vmatprep.mubr.bf16.mxu0 0
      %10461 = vmatmul.mubr.bf16.gmra.mrb[0].mxu0 %v10323
      %v10462 = vpop.f32.mrb[0].mxu0
      %v10463 = vadd.f32 0.0, %v10462
      %v10464 = vpop.f32.mrb[0].mxu0
      %v10465 = vpop.f32.mrb[0].mxu0
      %v10466 = vadd.f32 0.0, %v10465
      %v10467 = vpop.f32.mrb[0].mxu0
      %10468 = vmatprep.mubr.bf16.mxu0 0
      %10469 = vmatmul.mubr.bf16.gmra.mrb[0].mxu0 %v10326
      %v10470 = vpop.f32.mrb[0].mxu0
      %v10471 = vadd.f32 0.0, %v10470
      %v10472 = vpop.f32.mrb[0].mxu0
      %v10473 = vpop.f32.mrb[0].mxu0
      %v10474 = vadd.f32 0.0, %v10473
      %v10475 = vpop.f32.mrb[0].mxu0
      %10476 = vmatprep.mubr.bf16.mxu0 0
      %10477 = vmatmul.mubr.bf16.gmra.mrb[0].mxu0 %v10329
      %v10478 = vpop.f32.mrb[0].mxu0
      %v10479 = vadd.f32 0.0, %v10478
      %v10480 = vpop.f32.mrb[0].mxu0
      %v10481 = vpop.f32.mrb[0].mxu0
      %v10482 = vadd.f32 0.0, %v10481
      %v10483 = vpop.f32.mrb[0].mxu0
      %10484 = vmatprep.mubr.bf16.mxu0 0
      %10485 = vmatmul.mubr.bf16.gmra.mrb[0].mxu0 %v10332
      %v10486 = vpop.f32.mrb[0].mxu0
      %v10487 = vadd.f32 0.0, %v10486
      %v10488 = vpop.f32.mrb[0].mxu0
      %v10489 = vpop.f32.mrb[0].mxu0
      %v10490 = vadd.f32 0.0, %v10489
      %v10491 = vpop.f32.mrb[0].mxu0
      %10492 = vmatprep.mubr.bf16.mxu0 0
      %10493 = vmatmul.mubr.bf16.gmra.mrb[0].mxu0 %v10335
      %v10494 = vpop.f32.mrb[0].mxu0
      %v10495 = vadd.f32 0.0, %v10494
      %v10496 = vpop.f32.mrb[0].mxu0
      %v10497 = vpop.f32.mrb[0].mxu0
      %v10498 = vadd.f32 0.0, %v10497
      %v10499 = vpop.f32.mrb[0].mxu0
      %10500 = vdwg.mxu0
      %v10501 = vadd.f32 %v10142, %v10375
      %v10502 = vadd.f32 %v10143, %v10378
      %v10503 = vadd.f32 %v10144, %v10383
      %v10504 = vadd.f32 %v10145, %v10386
      %v10505 = vadd.f32 %v10146, %v10391
      %v10506 = vadd.f32 %v10147, %v10394
      %v10507 = vadd.f32 %v10148, %v10399
      %v10508 = vadd.f32 %v10149, %v10402
      %v10509 = vadd.f32 %v10150, %v10407
      %v10510 = vadd.f32 %v10151, %v10410
      %v10511 = vadd.f32 %v10152, %v10415
      %v10512 = vadd.f32 %v10153, %v10418
      %v10513 = vadd.f32 %v10154, %v10423
      %v10514 = vadd.f32 %v10155, %v10426
      %v10515 = vadd.f32 %v10156, %v10431
      %v10516 = vadd.f32 %v10157, %v10434
      %v10517 = vadd.f32 %v10158, %v10439
      %v10518 = vadd.f32 %v10159, %v10442
      %v10519 = vadd.f32 %v10160, %v10447
      %v10520 = vadd.f32 %v10161, %v10450
      %v10521 = vadd.f32 %v10162, %v10455
      %v10522 = vadd.f32 %v10163, %v10458
      %v10523 = vadd.f32 %v10164, %v10463
      %v10524 = vadd.f32 %v10165, %v10466
      %v10525 = vadd.f32 %v10166, %v10471
      %v10526 = vadd.f32 %v10167, %v10474
      %v10527 = vadd.f32 %v10168, %v10479
      %v10528 = vadd.f32 %v10169, %v10482
      %v10529 = vadd.f32 %v10170, %v10487
      %v10530 = vadd.f32 %v10171, %v10490
      %v10531 = vadd.f32 %v10172, %v10495
      %v10532 = vadd.f32 %v10173, %v10498
      %v10533 = vld [vmem:[%s10174] sm:$0xf]
      %v10534 = vld [vmem:[%s10174 + $0x4] sm:$0xf]
      %v10535 = vld [vmem:[%s10174 + $0x8] sm:$0x1]
      %v10536 = vld [vmem:[%s10174 + $0xc] sm:$0xf]
      %v10537 = vld [vmem:[%s10174 + $0x10] sm:$0xf]
      %v10538 = vld [vmem:[%s10174 + $0x14] sm:$0x1]
      %v10539 = vld [vmem:[%s10174 + $0x18] sm:$0xf]
      %v10540 = vld [vmem:[%s10174 + $0x1c] sm:$0xf]
      %v10541 = vld [vmem:[%s10174 + $0x20] sm:$0x1]
      %v10542 = vld [vmem:[%s10174 + $0x24] sm:$0xf]
      %v10543 = vld [vmem:[%s10174 + $0x28] sm:$0xf]
      %v10544 = vld [vmem:[%s10174 + $0x2c] sm:$0x1]
      %v10545 = vld [vmem:[%s10174 + $0x30] sm:$0xf]
      %v10546 = vld [vmem:[%s10174 + $0x34] sm:$0xf]
      %v10547 = vld [vmem:[%s10174 + $0x38] sm:$0x1]
      %v10548 = vld [vmem:[%s10174 + $0x3c] sm:$0xf]
      %v10549 = vld [vmem:[%s10174 + $0x40] sm:$0xf]
      %v10550 = vld [vmem:[%s10174 + $0x44] sm:$0x1]
      %v10551 = vld [vmem:[%s10174 + $0x48] sm:$0xf]
      %v10552 = vld [vmem:[%s10174 + $0x4c] sm:$0xf]
      %v10553 = vld [vmem:[%s10174 + $0x50] sm:$0x1]
      %v10554 = vld [vmem:[%s10174 + $0x54] sm:$0xf]
      %v10555 = vld [vmem:[%s10174 + $0x58] sm:$0xf]
      %v10556 = vld [vmem:[%s10174 + $0x5c] sm:$0x1]
      %v10557 = vld [vmem:[%s10174 + $0x60] sm:$0xf]
      %v10558 = vld [vmem:[%s10174 + $0x64] sm:$0xf]
      %v10559 = vld [vmem:[%s10174 + $0x68] sm:$0x1]
      %v10560 = vld [vmem:[%s10174 + $0x6c] sm:$0xf]
      %v10561 = vld [vmem:[%s10174 + $0x70] sm:$0xf]
      %v10562 = vld [vmem:[%s10174 + $0x74] sm:$0x1]
      %v10563 = vld [vmem:[%s10174 + $0x78] sm:$0xf]
      %v10564 = vld [vmem:[%s10174 + $0x7c] sm:$0xf]
      %v10565 = vld [vmem:[%s10174 + $0x80] sm:$0x1]
      %v10566 = vld [vmem:[%s10174 + $0x84] sm:$0xf]
      %v10567 = vld [vmem:[%s10174 + $0x88] sm:$0xf]
      %v10568 = vld [vmem:[%s10174 + $0x8c] sm:$0x1]
      %v10569 = vld [vmem:[%s10174 + $0x90] sm:$0xf]
      %v10570 = vld [vmem:[%s10174 + $0x94] sm:$0xf]
      %v10571 = vld [vmem:[%s10174 + $0x98] sm:$0x1]
      %v10572 = vld [vmem:[%s10174 + $0x9c] sm:$0xf]
      %v10573 = vld [vmem:[%s10174 + $0xa0] sm:$0xf]
      %v10574 = vld [vmem:[%s10174 + $0xa4] sm:$0x1]
      %v10575 = vld [vmem:[%s10174 + $0xa8] sm:$0xf]
      %v10576 = vld [vmem:[%s10174 + $0xac] sm:$0xf]
      %v10577 = vld [vmem:[%s10174 + $0xb0] sm:$0x1]
      %v10578 = vld [vmem:[%s10174 + $0xb4] sm:$0xf]
      %v10579 = vld [vmem:[%s10174 + $0xb8] sm:$0xf]
      %v10580 = vld [vmem:[%s10174 + $0xbc] sm:$0x1]
      %v10582 = vshrl.u32 %v10533, 16
      %v10584 = vrot.slane %v10582, 4
      %v10585 = vshll.u32 %v10533, 16
      %v10587 = vrot.slane %v10585, 5
      %v10588 = vor.u32 %v10584, %v10587
      %v10589 = vrot.slane %v10588, 4
      %v10591 = vshll.u32 %v10534, 16
      %v10593 = vrot.slane %v10591, 5
      %v10594 = vsel %vm2071, %v10589, %v10593
      %v10595 = vshrl.u32 %v10534, 16
      %v10597 = vrot.slane %v10595, 4
      %v10598 = vor.u32 %v10597, %v10593
      %v10599 = vrot.slane %v10598, 4
      %v10601 = vshll.u32 %v10535, 16
      %v10603 = vrot.slane %v10601, 5
      %v10604 = vsel %vm2071, %v10599, %v10603
      %v10606 = vshrl.u32 %v10536, 16
      %v10608 = vrot.slane %v10606, 4
      %v10609 = vshll.u32 %v10536, 16
      %v10611 = vrot.slane %v10609, 5
      %v10612 = vor.u32 %v10608, %v10611
      %v10613 = vrot.slane %v10612, 4
      %v10615 = vshll.u32 %v10537, 16
      %v10617 = vrot.slane %v10615, 5
      %v10618 = vsel %vm2071, %v10613, %v10617
      %v10619 = vshrl.u32 %v10537, 16
      %v10621 = vrot.slane %v10619, 4
      %v10622 = vor.u32 %v10621, %v10617
      %v10623 = vrot.slane %v10622, 4
      %v10625 = vshll.u32 %v10538, 16
      %v10627 = vrot.slane %v10625, 5
      %v10628 = vsel %vm2071, %v10623, %v10627
      %v10630 = vshrl.u32 %v10539, 16
      %v10632 = vrot.slane %v10630, 4
      %v10633 = vshll.u32 %v10539, 16
      %v10635 = vrot.slane %v10633, 5
      %v10636 = vor.u32 %v10632, %v10635
      %v10637 = vrot.slane %v10636, 4
      %v10639 = vshll.u32 %v10540, 16
      %v10641 = vrot.slane %v10639, 5
      %v10642 = vsel %vm2071, %v10637, %v10641
      %v10643 = vshrl.u32 %v10540, 16
      %v10645 = vrot.slane %v10643, 4
      %v10646 = vor.u32 %v10645, %v10641
      %v10647 = vrot.slane %v10646, 4
      %v10649 = vshll.u32 %v10541, 16
      %v10651 = vrot.slane %v10649, 5
      %v10652 = vsel %vm2071, %v10647, %v10651
      %v10654 = vshrl.u32 %v10542, 16
      %v10656 = vrot.slane %v10654, 4
      %v10657 = vshll.u32 %v10542, 16
      %v10659 = vrot.slane %v10657, 5
      %v10660 = vor.u32 %v10656, %v10659
      %v10661 = vrot.slane %v10660, 4
      %v10663 = vshll.u32 %v10543, 16
      %v10665 = vrot.slane %v10663, 5
      %v10666 = vsel %vm2071, %v10661, %v10665
      %v10667 = vshrl.u32 %v10543, 16
      %v10669 = vrot.slane %v10667, 4
      %v10670 = vor.u32 %v10669, %v10665
      %v10671 = vrot.slane %v10670, 4
      %v10673 = vshll.u32 %v10544, 16
      %v10675 = vrot.slane %v10673, 5
      %v10676 = vsel %vm2071, %v10671, %v10675
      %v10678 = vshrl.u32 %v10545, 16
      %v10680 = vrot.slane %v10678, 4
      %v10681 = vshll.u32 %v10545, 16
      %v10683 = vrot.slane %v10681, 5
      %v10684 = vor.u32 %v10680, %v10683
      %v10685 = vrot.slane %v10684, 4
      %v10687 = vshll.u32 %v10546, 16
      %v10689 = vrot.slane %v10687, 5
      %v10690 = vsel %vm2071, %v10685, %v10689
      %v10691 = vshrl.u32 %v10546, 16
      %v10693 = vrot.slane %v10691, 4
      %v10694 = vor.u32 %v10693, %v10689
      %v10695 = vrot.slane %v10694, 4
      %v10697 = vshll.u32 %v10547, 16
      %v10699 = vrot.slane %v10697, 5
      %v10700 = vsel %vm2071, %v10695, %v10699
      %v10702 = vshrl.u32 %v10548, 16
      %v10704 = vrot.slane %v10702, 4
      %v10705 = vshll.u32 %v10548, 16
      %v10707 = vrot.slane %v10705, 5
      %v10708 = vor.u32 %v10704, %v10707
      %v10709 = vrot.slane %v10708, 4
      %v10711 = vshll.u32 %v10549, 16
      %v10713 = vrot.slane %v10711, 5
      %v10714 = vsel %vm2071, %v10709, %v10713
      %v10715 = vshrl.u32 %v10549, 16
      %v10717 = vrot.slane %v10715, 4
      %v10718 = vor.u32 %v10717, %v10713
      %v10719 = vrot.slane %v10718, 4
      %v10721 = vshll.u32 %v10550, 16
      %v10723 = vrot.slane %v10721, 5
      %v10724 = vsel %vm2071, %v10719, %v10723
      %v10726 = vshrl.u32 %v10551, 16
      %v10728 = vrot.slane %v10726, 4
      %v10729 = vshll.u32 %v10551, 16
      %v10731 = vrot.slane %v10729, 5
      %v10732 = vor.u32 %v10728, %v10731
      %v10733 = vrot.slane %v10732, 4
      %v10735 = vshll.u32 %v10552, 16
      %v10737 = vrot.slane %v10735, 5
      %v10738 = vsel %vm2071, %v10733, %v10737
      %v10739 = vshrl.u32 %v10552, 16
      %v10741 = vrot.slane %v10739, 4
      %v10742 = vor.u32 %v10741, %v10737
      %v10743 = vrot.slane %v10742, 4
      %v10745 = vshll.u32 %v10553, 16
      %v10747 = vrot.slane %v10745, 5
      %v10748 = vsel %vm2071, %v10743, %v10747
      %v10750 = vshrl.u32 %v10554, 16
      %v10752 = vrot.slane %v10750, 4
      %v10753 = vshll.u32 %v10554, 16
      %v10755 = vrot.slane %v10753, 5
      %v10756 = vor.u32 %v10752, %v10755
      %v10757 = vrot.slane %v10756, 4
      %v10759 = vshll.u32 %v10555, 16
      %v10761 = vrot.slane %v10759, 5
      %v10762 = vsel %vm2071, %v10757, %v10761
      %v10763 = vshrl.u32 %v10555, 16
      %v10765 = vrot.slane %v10763, 4
      %v10766 = vor.u32 %v10765, %v10761
      %v10767 = vrot.slane %v10766, 4
      %v10769 = vshll.u32 %v10556, 16
      %v10771 = vrot.slane %v10769, 5
      %v10772 = vsel %vm2071, %v10767, %v10771
      %v10774 = vshrl.u32 %v10557, 16
      %v10776 = vrot.slane %v10774, 4
      %v10777 = vshll.u32 %v10557, 16
      %v10779 = vrot.slane %v10777, 5
      %v10780 = vor.u32 %v10776, %v10779
      %v10781 = vrot.slane %v10780, 4
      %v10783 = vshll.u32 %v10558, 16
      %v10785 = vrot.slane %v10783, 5
      %v10786 = vsel %vm2071, %v10781, %v10785
      %v10787 = vshrl.u32 %v10558, 16
      %v10789 = vrot.slane %v10787, 4
      %v10790 = vor.u32 %v10789, %v10785
      %v10791 = vrot.slane %v10790, 4
      %v10793 = vshll.u32 %v10559, 16
      %v10795 = vrot.slane %v10793, 5
      %v10796 = vsel %vm2071, %v10791, %v10795
      %v10798 = vshrl.u32 %v10560, 16
      %v10800 = vrot.slane %v10798, 4
      %v10801 = vshll.u32 %v10560, 16
      %v10803 = vrot.slane %v10801, 5
      %v10804 = vor.u32 %v10800, %v10803
      %v10805 = vrot.slane %v10804, 4
      %v10807 = vshll.u32 %v10561, 16
      %v10809 = vrot.slane %v10807, 5
      %v10810 = vsel %vm2071, %v10805, %v10809
      %v10811 = vshrl.u32 %v10561, 16
      %v10813 = vrot.slane %v10811, 4
      %v10814 = vor.u32 %v10813, %v10809
      %v10815 = vrot.slane %v10814, 4
      %v10817 = vshll.u32 %v10562, 16
      %v10819 = vrot.slane %v10817, 5
      %v10820 = vsel %vm2071, %v10815, %v10819
      %v10822 = vshrl.u32 %v10563, 16
      %v10824 = vrot.slane %v10822, 4
      %v10825 = vshll.u32 %v10563, 16
      %v10827 = vrot.slane %v10825, 5
      %v10828 = vor.u32 %v10824, %v10827
      %v10829 = vrot.slane %v10828, 4
      %v10831 = vshll.u32 %v10564, 16
      %v10833 = vrot.slane %v10831, 5
      %v10834 = vsel %vm2071, %v10829, %v10833
      %v10835 = vshrl.u32 %v10564, 16
      %v10837 = vrot.slane %v10835, 4
      %v10838 = vor.u32 %v10837, %v10833
      %v10839 = vrot.slane %v10838, 4
      %v10841 = vshll.u32 %v10565, 16
      %v10843 = vrot.slane %v10841, 5
      %v10844 = vsel %vm2071, %v10839, %v10843
      %v10846 = vshrl.u32 %v10566, 16
      %v10848 = vrot.slane %v10846, 4
      %v10849 = vshll.u32 %v10566, 16
      %v10851 = vrot.slane %v10849, 5
      %v10852 = vor.u32 %v10848, %v10851
      %v10853 = vrot.slane %v10852, 4
      %v10855 = vshll.u32 %v10567, 16
      %v10857 = vrot.slane %v10855, 5
      %v10858 = vsel %vm2071, %v10853, %v10857
      %v10859 = vshrl.u32 %v10567, 16
      %v10861 = vrot.slane %v10859, 4
      %v10862 = vor.u32 %v10861, %v10857
      %v10863 = vrot.slane %v10862, 4
      %v10865 = vshll.u32 %v10568, 16
      %v10867 = vrot.slane %v10865, 5
      %v10868 = vsel %vm2071, %v10863, %v10867
      %v10870 = vshrl.u32 %v10569, 16
      %v10872 = vrot.slane %v10870, 4
      %v10873 = vshll.u32 %v10569, 16
      %v10875 = vrot.slane %v10873, 5
      %v10876 = vor.u32 %v10872, %v10875
      %v10877 = vrot.slane %v10876, 4
      %v10879 = vshll.u32 %v10570, 16
      %v10881 = vrot.slane %v10879, 5
      %v10882 = vsel %vm2071, %v10877, %v10881
      %v10883 = vshrl.u32 %v10570, 16
      %v10885 = vrot.slane %v10883, 4
      %v10886 = vor.u32 %v10885, %v10881
      %v10887 = vrot.slane %v10886, 4
      %v10889 = vshll.u32 %v10571, 16
      %v10891 = vrot.slane %v10889, 5
      %v10892 = vsel %vm2071, %v10887, %v10891
      %v10894 = vshrl.u32 %v10572, 16
      %v10896 = vrot.slane %v10894, 4
      %v10897 = vshll.u32 %v10572, 16
      %v10899 = vrot.slane %v10897, 5
      %v10900 = vor.u32 %v10896, %v10899
      %v10901 = vrot.slane %v10900, 4
      %v10903 = vshll.u32 %v10573, 16
      %v10905 = vrot.slane %v10903, 5
      %v10906 = vsel %vm2071, %v10901, %v10905
      %v10907 = vshrl.u32 %v10573, 16
      %v10909 = vrot.slane %v10907, 4
      %v10910 = vor.u32 %v10909, %v10905
      %v10911 = vrot.slane %v10910, 4
      %v10913 = vshll.u32 %v10574, 16
      %v10915 = vrot.slane %v10913, 5
      %v10916 = vsel %vm2071, %v10911, %v10915
      %v10918 = vshrl.u32 %v10575, 16
      %v10920 = vrot.slane %v10918, 4
      %v10921 = vshll.u32 %v10575, 16
      %v10923 = vrot.slane %v10921, 5
      %v10924 = vor.u32 %v10920, %v10923
      %v10925 = vrot.slane %v10924, 4
      %v10927 = vshll.u32 %v10576, 16
      %v10929 = vrot.slane %v10927, 5
      %v10930 = vsel %vm2071, %v10925, %v10929
      %v10931 = vshrl.u32 %v10576, 16
      %v10933 = vrot.slane %v10931, 4
      %v10934 = vor.u32 %v10933, %v10929
      %v10935 = vrot.slane %v10934, 4
      %v10937 = vshll.u32 %v10577, 16
      %v10939 = vrot.slane %v10937, 5
      %v10940 = vsel %vm2071, %v10935, %v10939
      %v10942 = vshrl.u32 %v10578, 16
      %v10944 = vrot.slane %v10942, 4
      %v10945 = vshll.u32 %v10578, 16
      %v10947 = vrot.slane %v10945, 5
      %v10948 = vor.u32 %v10944, %v10947
      %v10949 = vrot.slane %v10948, 4
      %v10951 = vshll.u32 %v10579, 16
      %v10953 = vrot.slane %v10951, 5
      %v10954 = vsel %vm2071, %v10949, %v10953
      %v10955 = vshrl.u32 %v10579, 16
      %v10957 = vrot.slane %v10955, 4
      %v10958 = vor.u32 %v10957, %v10953
      %v10959 = vrot.slane %v10958, 4
      %v10961 = vshll.u32 %v10580, 16
      %v10963 = vrot.slane %v10961, 5
      %v10964 = vsel %vm2071, %v10959, %v10963
      %s10965 = scalar_lea.vmem %s9, 14
      %v10966 = vld [vmem:[%s10965] sm:$0x3]
      %v10967 = vunpack.c.l.b16 %v10594
      %v10968 = vunpack.c.l.b16 %v10604
      %v10969 = vunpack.c.l.b16 %v10618
      %v10970 = vunpack.c.l.b16 %v10628
      %v10971 = vunpack.c.l.b16 %v10642
      %v10972 = vunpack.c.l.b16 %v10652
      %v10973 = vunpack.c.l.b16 %v10666
      %v10974 = vunpack.c.l.b16 %v10676
      %v10975 = vunpack.c.l.b16 %v10690
      %v10976 = vunpack.c.l.b16 %v10700
      %v10977 = vunpack.c.l.b16 %v10714
      %v10978 = vunpack.c.l.b16 %v10724
      %v10979 = vunpack.c.l.b16 %v10738
      %v10980 = vunpack.c.l.b16 %v10748
      %v10981 = vunpack.c.l.b16 %v10762
      %v10982 = vunpack.c.l.b16 %v10772
      %v10983 = vunpack.c.l.b16 %v10786
      %v10984 = vunpack.c.l.b16 %v10796
      %v10985 = vunpack.c.l.b16 %v10810
      %v10986 = vunpack.c.l.b16 %v10820
      %v10987 = vunpack.c.l.b16 %v10834
      %v10988 = vunpack.c.l.b16 %v10844
      %v10989 = vunpack.c.l.b16 %v10858
      %v10990 = vunpack.c.l.b16 %v10868
      %v10991 = vunpack.c.l.b16 %v10882
      %v10992 = vunpack.c.l.b16 %v10892
      %v10993 = vunpack.c.l.b16 %v10906
      %v10994 = vunpack.c.l.b16 %v10916
      %v10995 = vunpack.c.l.b16 %v10930
      %v10996 = vunpack.c.l.b16 %v10940
      %v10997 = vunpack.c.l.b16 %v10954
      %v10998 = vunpack.c.l.b16 %v10964
      %v10999 = vpack.c.b16 %v10968, %v10967
      %v11000 = vpack.c.b16 %v10970, %v10969
      %v11001 = vpack.c.b16 %v10972, %v10971
      %v11002 = vpack.c.b16 %v10974, %v10973
      %v11003 = vpack.c.b16 %v10976, %v10975
      %v11004 = vpack.c.b16 %v10978, %v10977
      %v11005 = vpack.c.b16 %v10980, %v10979
      %v11006 = vpack.c.b16 %v10982, %v10981
      %v11007 = vpack.c.b16 %v10984, %v10983
      %v11008 = vpack.c.b16 %v10986, %v10985
      %v11009 = vpack.c.b16 %v10988, %v10987
      %v11010 = vpack.c.b16 %v10990, %v10989
      %v11011 = vpack.c.b16 %v10992, %v10991
      %v11012 = vpack.c.b16 %v10994, %v10993
      %v11013 = vpack.c.b16 %v10996, %v10995
      %v11014 = vpack.c.b16 %v10998, %v10997
      %v11016 = vsel %vm690, %v10999, 0
      %v11019 = vsel %vm690, %v11000, 0
      %v11022 = vsel %vm690, %v11001, 0
      %v11025 = vsel %vm690, %v11002, 0
      %v11028 = vsel %vm690, %v11003, 0
      %v11031 = vsel %vm690, %v11004, 0
      %v11034 = vsel %vm690, %v11005, 0
      %v11037 = vsel %vm690, %v11006, 0
      %v11040 = vsel %vm690, %v11007, 0
      %v11043 = vsel %vm690, %v11008, 0
      %v11046 = vsel %vm690, %v11009, 0
      %v11049 = vsel %vm690, %v11010, 0
      %v11052 = vsel %vm690, %v11011, 0
      %v11055 = vsel %vm690, %v11012, 0
      %v11058 = vsel %vm690, %v11013, 0
      %v11061 = vsel %vm690, %v11014, 0
      %v11064 = vsel %vm7709, %v10966, 0
      %11066 = vmatprep.subr.bf16.mxu0 0
      %11067 = vmatpush1.bf16.msra.mxu0 %v11064
      %11068 = vmatprep.subr.bf16.mxu0 0
      %11069 = vmatpush1.bf16.msra.mxu0 0
      %11070 = vmatprep.subr.bf16.mxu0 0
      %11071 = vmatpush1.bf16.msra.mxu0 0
      %11072 = vmatprep.subr.bf16.mxu0 0
      %11073 = vmatpush1.bf16.msra.mxu0 0
      %11074 = vmatprep.subr.bf16.mxu0 0
      %11075 = vmatpush1.bf16.msra.mxu0 0
      %11076 = vmatprep.subr.bf16.mxu0 0
      %11077 = vmatpush1.bf16.msra.mxu0 0
      %11078 = vmatprep.subr.bf16.mxu0 0
      %11079 = vmatpush1.bf16.msra.mxu0 0
      %11080 = vmatprep.subr.bf16.mxu0 0
      %11081 = vmatpush1.bf16.msra.mxu0 0
      %11082 = vmatprep.subr.bf16.mxu0 0
      %11083 = vmatpush1.bf16.msra.mxu0 0
      %11084 = vmatprep.subr.bf16.mxu0 0
      %11085 = vmatpush1.bf16.msra.mxu0 0
      %11086 = vmatprep.subr.bf16.mxu0 0
      %11087 = vmatpush1.bf16.msra.mxu0 0
      %11088 = vmatprep.subr.bf16.mxu0 0
      %11089 = vmatpush1.bf16.msra.mxu0 0
      %11090 = vmatprep.subr.bf16.mxu0 0
      %11091 = vmatpush1.bf16.msra.mxu0 0
      %11092 = vmatprep.subr.bf16.mxu0 0
      %11093 = vmatpush1.bf16.msra.mxu0 0
      %11094 = vmatprep.subr.bf16.mxu0 0
      %11095 = vmatpush1.bf16.msra.mxu0 0
      %11096 = vmatprep.subr.bf16.mxu0 0
      %11097 = vmatpush1.bf16.msra.mxu0 0
      %11098 = vmatprep.mubr.bf16.mxu0 0
      %11099 = vmatmul.mubr.bf16.gmra.mrb[0].mxu0 %v11016
      %v11100 = vpop.f32.mrb[0].mxu0
      %v11101 = vadd.f32 0.0, %v11100
      %v11102 = vpop.f32.mrb[0].mxu0
      %v11103 = vpop.f32.mrb[0].mxu0
      %v11104 = vadd.f32 0.0, %v11103
      %v11105 = vpop.f32.mrb[0].mxu0
      %11106 = vmatprep.mubr.bf16.mxu0 0
      %11107 = vmatmul.mubr.bf16.gmra.mrb[0].mxu0 %v11019
      %v11108 = vpop.f32.mrb[0].mxu0
      %v11109 = vadd.f32 0.0, %v11108
      %v11110 = vpop.f32.mrb[0].mxu0
      %v11111 = vpop.f32.mrb[0].mxu0
      %v11112 = vadd.f32 0.0, %v11111
      %v11113 = vpop.f32.mrb[0].mxu0
      %11114 = vmatprep.mubr.bf16.mxu0 0
      %11115 = vmatmul.mubr.bf16.gmra.mrb[0].mxu0 %v11022
      %v11116 = vpop.f32.mrb[0].mxu0
      %v11117 = vadd.f32 0.0, %v11116
      %v11118 = vpop.f32.mrb[0].mxu0
      %v11119 = vpop.f32.mrb[0].mxu0
      %v11120 = vadd.f32 0.0, %v11119
      %v11121 = vpop.f32.mrb[0].mxu0
      %11122 = vmatprep.mubr.bf16.mxu0 0
      %11123 = vmatmul.mubr.bf16.gmra.mrb[0].mxu0 %v11025
      %v11124 = vpop.f32.mrb[0].mxu0
      %v11125 = vadd.f32 0.0, %v11124
      %v11126 = vpop.f32.mrb[0].mxu0
      %v11127 = vpop.f32.mrb[0].mxu0
      %v11128 = vadd.f32 0.0, %v11127
      %v11129 = vpop.f32.mrb[0].mxu0
      %11130 = vmatprep.mubr.bf16.mxu0 0
      %11131 = vmatmul.mubr.bf16.gmra.mrb[0].mxu0 %v11028
      %v11132 = vpop.f32.mrb[0].mxu0
      %v11133 = vadd.f32 0.0, %v11132
      %v11134 = vpop.f32.mrb[0].mxu0
      %v11135 = vpop.f32.mrb[0].mxu0
      %v11136 = vadd.f32 0.0, %v11135
      %v11137 = vpop.f32.mrb[0].mxu0
      %11138 = vmatprep.mubr.bf16.mxu0 0
      %11139 = vmatmul.mubr.bf16.gmra.mrb[0].mxu0 %v11031
      %v11140 = vpop.f32.mrb[0].mxu0
      %v11141 = vadd.f32 0.0, %v11140
      %v11142 = vpop.f32.mrb[0].mxu0
      %v11143 = vpop.f32.mrb[0].mxu0
      %v11144 = vadd.f32 0.0, %v11143
      %v11145 = vpop.f32.mrb[0].mxu0
      %11146 = vmatprep.mubr.bf16.mxu0 0
      %11147 = vmatmul.mubr.bf16.gmra.mrb[0].mxu0 %v11034
      %v11148 = vpop.f32.mrb[0].mxu0
      %v11149 = vadd.f32 0.0, %v11148
      %v11150 = vpop.f32.mrb[0].mxu0
      %v11151 = vpop.f32.mrb[0].mxu0
      %v11152 = vadd.f32 0.0, %v11151
      %v11153 = vpop.f32.mrb[0].mxu0
      %11154 = vmatprep.mubr.bf16.mxu0 0
      %11155 = vmatmul.mubr.bf16.gmra.mrb[0].mxu0 %v11037
      %v11156 = vpop.f32.mrb[0].mxu0
      %v11157 = vadd.f32 0.0, %v11156
      %v11158 = vpop.f32.mrb[0].mxu0
      %v11159 = vpop.f32.mrb[0].mxu0
      %v11160 = vadd.f32 0.0, %v11159
      %v11161 = vpop.f32.mrb[0].mxu0
      %11162 = vmatprep.mubr.bf16.mxu0 0
      %11163 = vmatmul.mubr.bf16.gmra.mrb[0].mxu0 %v11040
      %v11164 = vpop.f32.mrb[0].mxu0
      %v11165 = vadd.f32 0.0, %v11164
      %v11166 = vpop.f32.mrb[0].mxu0
      %v11167 = vpop.f32.mrb[0].mxu0
      %v11168 = vadd.f32 0.0, %v11167
      %v11169 = vpop.f32.mrb[0].mxu0
      %11170 = vmatprep.mubr.bf16.mxu0 0
      %11171 = vmatmul.mubr.bf16.gmra.mrb[0].mxu0 %v11043
      %v11172 = vpop.f32.mrb[0].mxu0
      %v11173 = vadd.f32 0.0, %v11172
      %v11174 = vpop.f32.mrb[0].mxu0
      %v11175 = vpop.f32.mrb[0].mxu0
      %v11176 = vadd.f32 0.0, %v11175
      %v11177 = vpop.f32.mrb[0].mxu0
      %11178 = vmatprep.mubr.bf16.mxu0 0
      %11179 = vmatmul.mubr.bf16.gmra.mrb[0].mxu0 %v11046
      %v11180 = vpop.f32.mrb[0].mxu0
      %v11181 = vadd.f32 0.0, %v11180
      %v11182 = vpop.f32.mrb[0].mxu0
      %v11183 = vpop.f32.mrb[0].mxu0
      %v11184 = vadd.f32 0.0, %v11183
      %v11185 = vpop.f32.mrb[0].mxu0
      %11186 = vmatprep.mubr.bf16.mxu0 0
      %11187 = vmatmul.mubr.bf16.gmra.mrb[0].mxu0 %v11049
      %v11188 = vpop.f32.mrb[0].mxu0
      %v11189 = vadd.f32 0.0, %v11188
      %v11190 = vpop.f32.mrb[0].mxu0
      %v11191 = vpop.f32.mrb[0].mxu0
      %v11192 = vadd.f32 0.0, %v11191
      %v11193 = vpop.f32.mrb[0].mxu0
      %11194 = vmatprep.mubr.bf16.mxu0 0
      %11195 = vmatmul.mubr.bf16.gmra.mrb[0].mxu0 %v11052
      %v11196 = vpop.f32.mrb[0].mxu0
      %v11197 = vadd.f32 0.0, %v11196
      %v11198 = vpop.f32.mrb[0].mxu0
      %v11199 = vpop.f32.mrb[0].mxu0
      %v11200 = vadd.f32 0.0, %v11199
      %v11201 = vpop.f32.mrb[0].mxu0
      %11202 = vmatprep.mubr.bf16.mxu0 0
      %11203 = vmatmul.mubr.bf16.gmra.mrb[0].mxu0 %v11055
      %v11204 = vpop.f32.mrb[0].mxu0
      %v11205 = vadd.f32 0.0, %v11204
      %v11206 = vpop.f32.mrb[0].mxu0
      %v11207 = vpop.f32.mrb[0].mxu0
      %v11208 = vadd.f32 0.0, %v11207
      %v11209 = vpop.f32.mrb[0].mxu0
      %11210 = vmatprep.mubr.bf16.mxu0 0
      %11211 = vmatmul.mubr.bf16.gmra.mrb[0].mxu0 %v11058
      %v11212 = vpop.f32.mrb[0].mxu0
      %v11213 = vadd.f32 0.0, %v11212
      %v11214 = vpop.f32.mrb[0].mxu0
      %v11215 = vpop.f32.mrb[0].mxu0
      %v11216 = vadd.f32 0.0, %v11215
      %v11217 = vpop.f32.mrb[0].mxu0
      %11218 = vmatprep.mubr.bf16.mxu0 0
      %11219 = vmatmul.mubr.bf16.gmra.mrb[0].mxu0 %v11061
      %v11220 = vpop.f32.mrb[0].mxu0
      %v11221 = vadd.f32 0.0, %v11220
      %v11222 = vpop.f32.mrb[0].mxu0
      %v11223 = vpop.f32.mrb[0].mxu0
      %v11224 = vadd.f32 0.0, %v11223
      %v11225 = vpop.f32.mrb[0].mxu0
      %11226 = vdwg.mxu0
      %v11227 = vadd.f32 %v10501, %v11101
      %v11228 = vadd.f32 %v10502, %v11104
      %v11229 = vadd.f32 %v10503, %v11109
      %v11230 = vadd.f32 %v10504, %v11112
      %v11231 = vadd.f32 %v10505, %v11117
      %v11232 = vadd.f32 %v10506, %v11120
      %v11233 = vadd.f32 %v10507, %v11125
      %v11234 = vadd.f32 %v10508, %v11128
      %v11235 = vadd.f32 %v10509, %v11133
      %v11236 = vadd.f32 %v10510, %v11136
      %v11237 = vadd.f32 %v10511, %v11141
      %v11238 = vadd.f32 %v10512, %v11144
      %v11239 = vadd.f32 %v10513, %v11149
      %v11240 = vadd.f32 %v10514, %v11152
      %v11241 = vadd.f32 %v10515, %v11157
      %v11242 = vadd.f32 %v10516, %v11160
      %v11243 = vadd.f32 %v10517, %v11165
      %v11244 = vadd.f32 %v10518, %v11168
      %v11245 = vadd.f32 %v10519, %v11173
      %v11246 = vadd.f32 %v10520, %v11176
      %v11247 = vadd.f32 %v10521, %v11181
      %v11248 = vadd.f32 %v10522, %v11184
      %v11249 = vadd.f32 %v10523, %v11189
      %v11250 = vadd.f32 %v10524, %v11192
      %v11251 = vadd.f32 %v10525, %v11197
      %v11252 = vadd.f32 %v10526, %v11200
      %v11253 = vadd.f32 %v10527, %v11205
      %v11254 = vadd.f32 %v10528, %v11208
      %v11255 = vadd.f32 %v10529, %v11213
      %v11256 = vadd.f32 %v10530, %v11216
      %v11257 = vadd.f32 %v10531, %v11221
      %v11258 = vadd.f32 %v10532, %v11224
      %v11259 = vld [vmem:[%s10174] sm:$0xe]
      %v11260 = vld [vmem:[%s10174 + $0xc] sm:$0xe]
      %v11261 = vld [vmem:[%s10174 + $0x18] sm:$0xe]
      %v11262 = vld [vmem:[%s10174 + $0x24] sm:$0xe]
      %v11263 = vld [vmem:[%s10174 + $0x30] sm:$0xe]
      %v11264 = vld [vmem:[%s10174 + $0x3c] sm:$0xe]
      %v11265 = vld [vmem:[%s10174 + $0x48] sm:$0xe]
      %v11266 = vld [vmem:[%s10174 + $0x54] sm:$0xe]
      %v11267 = vld [vmem:[%s10174 + $0x60] sm:$0xe]
      %v11268 = vld [vmem:[%s10174 + $0x6c] sm:$0xe]
      %v11269 = vld [vmem:[%s10174 + $0x78] sm:$0xe]
      %v11270 = vld [vmem:[%s10174 + $0x84] sm:$0xe]
      %v11271 = vld [vmem:[%s10174 + $0x90] sm:$0xe]
      %v11272 = vld [vmem:[%s10174 + $0x9c] sm:$0xe]
      %v11273 = vld [vmem:[%s10174 + $0xa8] sm:$0xe]
      %v11274 = vld [vmem:[%s10174 + $0xb4] sm:$0xe]
      %v11323 = vrot.slane %v11259, 5
      %v11324 = vrot.slane %v11323, 4
      %v11325 = vrot.slane %v10534, 5
      %v11326 = vsel %vm3060, %v11324, %v11325
      %v11327 = vrot.slane %v11325, 4
      %v11328 = vrot.slane %v10535, 5
      %v11329 = vsel %vm3060, %v11327, %v11328
      %v11330 = vrot.slane %v11260, 5
      %v11331 = vrot.slane %v11330, 4
      %v11332 = vrot.slane %v10537, 5
      %v11333 = vsel %vm3060, %v11331, %v11332
      %v11334 = vrot.slane %v11332, 4
      %v11335 = vrot.slane %v10538, 5
      %v11336 = vsel %vm3060, %v11334, %v11335
      %v11337 = vrot.slane %v11261, 5
      %v11338 = vrot.slane %v11337, 4
      %v11339 = vrot.slane %v10540, 5
      %v11340 = vsel %vm3060, %v11338, %v11339
      %v11341 = vrot.slane %v11339, 4
      %v11342 = vrot.slane %v10541, 5
      %v11343 = vsel %vm3060, %v11341, %v11342
      %v11344 = vrot.slane %v11262, 5
      %v11345 = vrot.slane %v11344, 4
      %v11346 = vrot.slane %v10543, 5
      %v11347 = vsel %vm3060, %v11345, %v11346
      %v11348 = vrot.slane %v11346, 4
      %v11349 = vrot.slane %v10544, 5
      %v11350 = vsel %vm3060, %v11348, %v11349
      %v11351 = vrot.slane %v11263, 5
      %v11352 = vrot.slane %v11351, 4
      %v11353 = vrot.slane %v10546, 5
      %v11354 = vsel %vm3060, %v11352, %v11353
      %v11355 = vrot.slane %v11353, 4
      %v11356 = vrot.slane %v10547, 5
      %v11357 = vsel %vm3060, %v11355, %v11356
      %v11358 = vrot.slane %v11264, 5
      %v11359 = vrot.slane %v11358, 4
      %v11360 = vrot.slane %v10549, 5
      %v11361 = vsel %vm3060, %v11359, %v11360
      %v11362 = vrot.slane %v11360, 4
      %v11363 = vrot.slane %v10550, 5
      %v11364 = vsel %vm3060, %v11362, %v11363
      %v11365 = vrot.slane %v11265, 5
      %v11366 = vrot.slane %v11365, 4
      %v11367 = vrot.slane %v10552, 5
      %v11368 = vsel %vm3060, %v11366, %v11367
      %v11369 = vrot.slane %v11367, 4
      %v11370 = vrot.slane %v10553, 5
      %v11371 = vsel %vm3060, %v11369, %v11370
      %v11372 = vrot.slane %v11266, 5
      %v11373 = vrot.slane %v11372, 4
      %v11374 = vrot.slane %v10555, 5
      %v11375 = vsel %vm3060, %v11373, %v11374
      %v11376 = vrot.slane %v11374, 4
      %v11377 = vrot.slane %v10556, 5
      %v11378 = vsel %vm3060, %v11376, %v11377
      %v11379 = vrot.slane %v11267, 5
      %v11380 = vrot.slane %v11379, 4
      %v11381 = vrot.slane %v10558, 5
      %v11382 = vsel %vm3060, %v11380, %v11381
      %v11383 = vrot.slane %v11381, 4
      %v11384 = vrot.slane %v10559, 5
      %v11385 = vsel %vm3060, %v11383, %v11384
      %v11386 = vrot.slane %v11268, 5
      %v11387 = vrot.slane %v11386, 4
      %v11388 = vrot.slane %v10561, 5
      %v11389 = vsel %vm3060, %v11387, %v11388
      %v11390 = vrot.slane %v11388, 4
      %v11391 = vrot.slane %v10562, 5
      %v11392 = vsel %vm3060, %v11390, %v11391
      %v11393 = vrot.slane %v11269, 5
      %v11394 = vrot.slane %v11393, 4
      %v11395 = vrot.slane %v10564, 5
      %v11396 = vsel %vm3060, %v11394, %v11395
      %v11397 = vrot.slane %v11395, 4
      %v11398 = vrot.slane %v10565, 5
      %v11399 = vsel %vm3060, %v11397, %v11398
      %v11400 = vrot.slane %v11270, 5
      %v11401 = vrot.slane %v11400, 4
      %v11402 = vrot.slane %v10567, 5
      %v11403 = vsel %vm3060, %v11401, %v11402
      %v11404 = vrot.slane %v11402, 4
      %v11405 = vrot.slane %v10568, 5
      %v11406 = vsel %vm3060, %v11404, %v11405
      %v11407 = vrot.slane %v11271, 5
      %v11408 = vrot.slane %v11407, 4
      %v11409 = vrot.slane %v10570, 5
      %v11410 = vsel %vm3060, %v11408, %v11409
      %v11411 = vrot.slane %v11409, 4
      %v11412 = vrot.slane %v10571, 5
      %v11413 = vsel %vm3060, %v11411, %v11412
      %v11414 = vrot.slane %v11272, 5
      %v11415 = vrot.slane %v11414, 4
      %v11416 = vrot.slane %v10573, 5
      %v11417 = vsel %vm3060, %v11415, %v11416
      %v11418 = vrot.slane %v11416, 4
      %v11419 = vrot.slane %v10574, 5
      %v11420 = vsel %vm3060, %v11418, %v11419
      %v11421 = vrot.slane %v11273, 5
      %v11422 = vrot.slane %v11421, 4
      %v11423 = vrot.slane %v10576, 5
      %v11424 = vsel %vm3060, %v11422, %v11423
      %v11425 = vrot.slane %v11423, 4
      %v11426 = vrot.slane %v10577, 5
      %v11427 = vsel %vm3060, %v11425, %v11426
      %v11428 = vrot.slane %v11274, 5
      %v11429 = vrot.slane %v11428, 4
      %v11430 = vrot.slane %v10579, 5
      %v11431 = vsel %vm3060, %v11429, %v11430
      %v11432 = vrot.slane %v11430, 4
      %v11433 = vrot.slane %v10580, 5
      %v11434 = vsel %vm3060, %v11432, %v11433
      %s11435 = scalar_lea.vmem %s9, 16
      %v11436 = vld [vmem:[%s11435] sm:$0x3]
      %v11437 = vunpack.c.l.b16 %v11326
      %v11438 = vunpack.c.l.b16 %v11329
      %v11439 = vunpack.c.l.b16 %v11333
      %v11440 = vunpack.c.l.b16 %v11336
      %v11441 = vunpack.c.l.b16 %v11340
      %v11442 = vunpack.c.l.b16 %v11343
      %v11443 = vunpack.c.l.b16 %v11347
      %v11444 = vunpack.c.l.b16 %v11350
      %v11445 = vunpack.c.l.b16 %v11354
      %v11446 = vunpack.c.l.b16 %v11357
      %v11447 = vunpack.c.l.b16 %v11361
      %v11448 = vunpack.c.l.b16 %v11364
      %v11449 = vunpack.c.l.b16 %v11368
      %v11450 = vunpack.c.l.b16 %v11371
      %v11451 = vunpack.c.l.b16 %v11375
      %v11452 = vunpack.c.l.b16 %v11378
      %v11453 = vunpack.c.l.b16 %v11382
      %v11454 = vunpack.c.l.b16 %v11385
      %v11455 = vunpack.c.l.b16 %v11389
      %v11456 = vunpack.c.l.b16 %v11392
      %v11457 = vunpack.c.l.b16 %v11396
      %v11458 = vunpack.c.l.b16 %v11399
      %v11459 = vunpack.c.l.b16 %v11403
      %v11460 = vunpack.c.l.b16 %v11406
      %v11461 = vunpack.c.l.b16 %v11410
      %v11462 = vunpack.c.l.b16 %v11413
      %v11463 = vunpack.c.l.b16 %v11417
      %v11464 = vunpack.c.l.b16 %v11420
      %v11465 = vunpack.c.l.b16 %v11424
      %v11466 = vunpack.c.l.b16 %v11427
      %v11467 = vunpack.c.l.b16 %v11431
      %v11468 = vunpack.c.l.b16 %v11434
      %v11469 = vpack.c.b16 %v11438, %v11437
      %v11470 = vpack.c.b16 %v11440, %v11439
      %v11471 = vpack.c.b16 %v11442, %v11441
      %v11472 = vpack.c.b16 %v11444, %v11443
      %v11473 = vpack.c.b16 %v11446, %v11445
      %v11474 = vpack.c.b16 %v11448, %v11447
      %v11475 = vpack.c.b16 %v11450, %v11449
      %v11476 = vpack.c.b16 %v11452, %v11451
      %v11477 = vpack.c.b16 %v11454, %v11453
      %v11478 = vpack.c.b16 %v11456, %v11455
      %v11479 = vpack.c.b16 %v11458, %v11457
      %v11480 = vpack.c.b16 %v11460, %v11459
      %v11481 = vpack.c.b16 %v11462, %v11461
      %v11482 = vpack.c.b16 %v11464, %v11463
      %v11483 = vpack.c.b16 %v11466, %v11465
      %v11484 = vpack.c.b16 %v11468, %v11467
      %v11486 = vsel %vm690, %v11469, 0
      %v11489 = vsel %vm690, %v11470, 0
      %v11492 = vsel %vm690, %v11471, 0
      %v11495 = vsel %vm690, %v11472, 0
      %v11498 = vsel %vm690, %v11473, 0
      %v11501 = vsel %vm690, %v11474, 0
      %v11504 = vsel %vm690, %v11475, 0
      %v11507 = vsel %vm690, %v11476, 0
      %v11510 = vsel %vm690, %v11477, 0
      %v11513 = vsel %vm690, %v11478, 0
      %v11516 = vsel %vm690, %v11479, 0
      %v11519 = vsel %vm690, %v11480, 0
      %v11522 = vsel %vm690, %v11481, 0
      %v11525 = vsel %vm690, %v11482, 0
      %v11528 = vsel %vm690, %v11483, 0
      %v11531 = vsel %vm690, %v11484, 0
      %v11534 = vsel %vm7709, %v11436, 0
      %11536 = vmatprep.subr.bf16.mxu0 0
      %11537 = vmatpush1.bf16.msra.mxu0 %v11534
      %11538 = vmatprep.subr.bf16.mxu0 0
      %11539 = vmatpush1.bf16.msra.mxu0 0
      %11540 = vmatprep.subr.bf16.mxu0 0
      %11541 = vmatpush1.bf16.msra.mxu0 0
      %11542 = vmatprep.subr.bf16.mxu0 0
      %11543 = vmatpush1.bf16.msra.mxu0 0
      %11544 = vmatprep.subr.bf16.mxu0 0
      %11545 = vmatpush1.bf16.msra.mxu0 0
      %11546 = vmatprep.subr.bf16.mxu0 0
      %11547 = vmatpush1.bf16.msra.mxu0 0
      %11548 = vmatprep.subr.bf16.mxu0 0
      %11549 = vmatpush1.bf16.msra.mxu0 0
      %11550 = vmatprep.subr.bf16.mxu0 0
      %11551 = vmatpush1.bf16.msra.mxu0 0
      %11552 = vmatprep.subr.bf16.mxu0 0
      %11553 = vmatpush1.bf16.msra.mxu0 0
      %11554 = vmatprep.subr.bf16.mxu0 0
      %11555 = vmatpush1.bf16.msra.mxu0 0
      %11556 = vmatprep.subr.bf16.mxu0 0
      %11557 = vmatpush1.bf16.msra.mxu0 0
      %11558 = vmatprep.subr.bf16.mxu0 0
      %11559 = vmatpush1.bf16.msra.mxu0 0
      %11560 = vmatprep.subr.bf16.mxu0 0
      %11561 = vmatpush1.bf16.msra.mxu0 0
      %11562 = vmatprep.subr.bf16.mxu0 0
      %11563 = vmatpush1.bf16.msra.mxu0 0
      %11564 = vmatprep.subr.bf16.mxu0 0
      %11565 = vmatpush1.bf16.msra.mxu0 0
      %11566 = vmatprep.subr.bf16.mxu0 0
      %11567 = vmatpush1.bf16.msra.mxu0 0
      %11568 = vmatprep.mubr.bf16.mxu0 0
      %11569 = vmatmul.mubr.bf16.gmra.mrb[0].mxu0 %v11486
      %v11570 = vpop.f32.mrb[0].mxu0
      %v11571 = vadd.f32 0.0, %v11570
      %v11572 = vpop.f32.mrb[0].mxu0
      %v11573 = vpop.f32.mrb[0].mxu0
      %v11574 = vadd.f32 0.0, %v11573
      %v11575 = vpop.f32.mrb[0].mxu0
      %11576 = vmatprep.mubr.bf16.mxu0 0
      %11577 = vmatmul.mubr.bf16.gmra.mrb[0].mxu0 %v11489
      %v11578 = vpop.f32.mrb[0].mxu0
      %v11579 = vadd.f32 0.0, %v11578
      %v11580 = vpop.f32.mrb[0].mxu0
      %v11581 = vpop.f32.mrb[0].mxu0
      %v11582 = vadd.f32 0.0, %v11581
      %v11583 = vpop.f32.mrb[0].mxu0
      %11584 = vmatprep.mubr.bf16.mxu0 0
      %11585 = vmatmul.mubr.bf16.gmra.mrb[0].mxu0 %v11492
      %v11586 = vpop.f32.mrb[0].mxu0
      %v11587 = vadd.f32 0.0, %v11586
      %v11588 = vpop.f32.mrb[0].mxu0
      %v11589 = vpop.f32.mrb[0].mxu0
      %v11590 = vadd.f32 0.0, %v11589
      %v11591 = vpop.f32.mrb[0].mxu0
      %11592 = vmatprep.mubr.bf16.mxu0 0
      %11593 = vmatmul.mubr.bf16.gmra.mrb[0].mxu0 %v11495
      %v11594 = vpop.f32.mrb[0].mxu0
      %v11595 = vadd.f32 0.0, %v11594
      %v11596 = vpop.f32.mrb[0].mxu0
      %v11597 = vpop.f32.mrb[0].mxu0
      %v11598 = vadd.f32 0.0, %v11597
      %v11599 = vpop.f32.mrb[0].mxu0
      %11600 = vmatprep.mubr.bf16.mxu0 0
      %11601 = vmatmul.mubr.bf16.gmra.mrb[0].mxu0 %v11498
      %v11602 = vpop.f32.mrb[0].mxu0
      %v11603 = vadd.f32 0.0, %v11602
      %v11604 = vpop.f32.mrb[0].mxu0
      %v11605 = vpop.f32.mrb[0].mxu0
      %v11606 = vadd.f32 0.0, %v11605
      %v11607 = vpop.f32.mrb[0].mxu0
      %11608 = vmatprep.mubr.bf16.mxu0 0
      %11609 = vmatmul.mubr.bf16.gmra.mrb[0].mxu0 %v11501
      %v11610 = vpop.f32.mrb[0].mxu0
      %v11611 = vadd.f32 0.0, %v11610
      %v11612 = vpop.f32.mrb[0].mxu0
      %v11613 = vpop.f32.mrb[0].mxu0
      %v11614 = vadd.f32 0.0, %v11613
      %v11615 = vpop.f32.mrb[0].mxu0
      %11616 = vmatprep.mubr.bf16.mxu0 0
      %11617 = vmatmul.mubr.bf16.gmra.mrb[0].mxu0 %v11504
      %v11618 = vpop.f32.mrb[0].mxu0
      %v11619 = vadd.f32 0.0, %v11618
      %v11620 = vpop.f32.mrb[0].mxu0
      %v11621 = vpop.f32.mrb[0].mxu0
      %v11622 = vadd.f32 0.0, %v11621
      %v11623 = vpop.f32.mrb[0].mxu0
      %11624 = vmatprep.mubr.bf16.mxu0 0
      %11625 = vmatmul.mubr.bf16.gmra.mrb[0].mxu0 %v11507
      %v11626 = vpop.f32.mrb[0].mxu0
      %v11627 = vadd.f32 0.0, %v11626
      %v11628 = vpop.f32.mrb[0].mxu0
      %v11629 = vpop.f32.mrb[0].mxu0
      %v11630 = vadd.f32 0.0, %v11629
      %v11631 = vpop.f32.mrb[0].mxu0
      %11632 = vmatprep.mubr.bf16.mxu0 0
      %11633 = vmatmul.mubr.bf16.gmra.mrb[0].mxu0 %v11510
      %v11634 = vpop.f32.mrb[0].mxu0
      %v11635 = vadd.f32 0.0, %v11634
      %v11636 = vpop.f32.mrb[0].mxu0
      %v11637 = vpop.f32.mrb[0].mxu0
      %v11638 = vadd.f32 0.0, %v11637
      %v11639 = vpop.f32.mrb[0].mxu0
      %11640 = vmatprep.mubr.bf16.mxu0 0
      %11641 = vmatmul.mubr.bf16.gmra.mrb[0].mxu0 %v11513
      %v11642 = vpop.f32.mrb[0].mxu0
      %v11643 = vadd.f32 0.0, %v11642
      %v11644 = vpop.f32.mrb[0].mxu0
      %v11645 = vpop.f32.mrb[0].mxu0
      %v11646 = vadd.f32 0.0, %v11645
      %v11647 = vpop.f32.mrb[0].mxu0
      %11648 = vmatprep.mubr.bf16.mxu0 0
      %11649 = vmatmul.mubr.bf16.gmra.mrb[0].mxu0 %v11516
      %v11650 = vpop.f32.mrb[0].mxu0
      %v11651 = vadd.f32 0.0, %v11650
      %v11652 = vpop.f32.mrb[0].mxu0
      %v11653 = vpop.f32.mrb[0].mxu0
      %v11654 = vadd.f32 0.0, %v11653
      %v11655 = vpop.f32.mrb[0].mxu0
      %11656 = vmatprep.mubr.bf16.mxu0 0
      %11657 = vmatmul.mubr.bf16.gmra.mrb[0].mxu0 %v11519
      %v11658 = vpop.f32.mrb[0].mxu0
      %v11659 = vadd.f32 0.0, %v11658
      %v11660 = vpop.f32.mrb[0].mxu0
      %v11661 = vpop.f32.mrb[0].mxu0
      %v11662 = vadd.f32 0.0, %v11661
      %v11663 = vpop.f32.mrb[0].mxu0
      %11664 = vmatprep.mubr.bf16.mxu0 0
      %11665 = vmatmul.mubr.bf16.gmra.mrb[0].mxu0 %v11522
      %v11666 = vpop.f32.mrb[0].mxu0
      %v11667 = vadd.f32 0.0, %v11666
      %v11668 = vpop.f32.mrb[0].mxu0
      %v11669 = vpop.f32.mrb[0].mxu0
      %v11670 = vadd.f32 0.0, %v11669
      %v11671 = vpop.f32.mrb[0].mxu0
      %11672 = vmatprep.mubr.bf16.mxu0 0
      %11673 = vmatmul.mubr.bf16.gmra.mrb[0].mxu0 %v11525
      %v11674 = vpop.f32.mrb[0].mxu0
      %v11675 = vadd.f32 0.0, %v11674
      %v11676 = vpop.f32.mrb[0].mxu0
      %v11677 = vpop.f32.mrb[0].mxu0
      %v11678 = vadd.f32 0.0, %v11677
      %v11679 = vpop.f32.mrb[0].mxu0
      %11680 = vmatprep.mubr.bf16.mxu0 0
      %11681 = vmatmul.mubr.bf16.gmra.mrb[0].mxu0 %v11528
      %v11682 = vpop.f32.mrb[0].mxu0
      %v11683 = vadd.f32 0.0, %v11682
      %v11684 = vpop.f32.mrb[0].mxu0
      %v11685 = vpop.f32.mrb[0].mxu0
      %v11686 = vadd.f32 0.0, %v11685
      %v11687 = vpop.f32.mrb[0].mxu0
      %11688 = vmatprep.mubr.bf16.mxu0 0
      %11689 = vmatmul.mubr.bf16.gmra.mrb[0].mxu0 %v11531
      %v11690 = vpop.f32.mrb[0].mxu0
      %v11691 = vadd.f32 0.0, %v11690
      %v11692 = vpop.f32.mrb[0].mxu0
      %v11693 = vpop.f32.mrb[0].mxu0
      %v11694 = vadd.f32 0.0, %v11693
      %v11695 = vpop.f32.mrb[0].mxu0
      %11696 = vdwg.mxu0
      %v11697 = vadd.f32 %v11227, %v11571
      %v11698 = vadd.f32 %v11228, %v11574
      %v11699 = vadd.f32 %v11229, %v11579
      %v11700 = vadd.f32 %v11230, %v11582
      %v11701 = vadd.f32 %v11231, %v11587
      %v11702 = vadd.f32 %v11232, %v11590
      %v11703 = vadd.f32 %v11233, %v11595
      %v11704 = vadd.f32 %v11234, %v11598
      %v11705 = vadd.f32 %v11235, %v11603
      %v11706 = vadd.f32 %v11236, %v11606
      %v11707 = vadd.f32 %v11237, %v11611
      %v11708 = vadd.f32 %v11238, %v11614
      %v11709 = vadd.f32 %v11239, %v11619
      %v11710 = vadd.f32 %v11240, %v11622
      %v11711 = vadd.f32 %v11241, %v11627
      %v11712 = vadd.f32 %v11242, %v11630
      %v11713 = vadd.f32 %v11243, %v11635
      %v11714 = vadd.f32 %v11244, %v11638
      %v11715 = vadd.f32 %v11245, %v11643
      %v11716 = vadd.f32 %v11246, %v11646
      %v11717 = vadd.f32 %v11247, %v11651
      %v11718 = vadd.f32 %v11248, %v11654
      %v11719 = vadd.f32 %v11249, %v11659
      %v11720 = vadd.f32 %v11250, %v11662
      %v11721 = vadd.f32 %v11251, %v11667
      %v11722 = vadd.f32 %v11252, %v11670
      %v11723 = vadd.f32 %v11253, %v11675
      %v11724 = vadd.f32 %v11254, %v11678
      %v11725 = vadd.f32 %v11255, %v11683
      %v11726 = vadd.f32 %v11256, %v11686
      %v11727 = vadd.f32 %v11257, %v11691
      %v11728 = vadd.f32 %v11258, %v11694
      %v11730 = vlaneseq
      %v11731 = vshrl.u32 %v11730, 7
      %v11732 = vsub.s32 0, %v11731
      %v11733 = vrot.slane %v7177, %v11732
      %v11735 = vadd.f32 %v11697, %v11733
      %v11736 = vadd.f32 %v11698, %v11733
      %v11737 = vadd.f32 %v11699, %v11733
      %v11738 = vadd.f32 %v11700, %v11733
      %v11739 = vadd.f32 %v11701, %v11733
      %v11740 = vadd.f32 %v11702, %v11733
      %v11741 = vadd.f32 %v11703, %v11733
      %v11742 = vadd.f32 %v11704, %v11733
      %v11743 = vadd.f32 %v11705, %v11733
      %v11744 = vadd.f32 %v11706, %v11733
      %v11745 = vadd.f32 %v11707, %v11733
      %v11746 = vadd.f32 %v11708, %v11733
      %v11747 = vadd.f32 %v11709, %v11733
      %v11748 = vadd.f32 %v11710, %v11733
      %v11749 = vadd.f32 %v11711, %v11733
      %v11750 = vadd.f32 %v11712, %v11733
      %v11751 = vadd.f32 %v11713, %v11733
      %v11752 = vadd.f32 %v11714, %v11733
      %v11753 = vadd.f32 %v11715, %v11733
      %v11754 = vadd.f32 %v11716, %v11733
      %v11755 = vadd.f32 %v11717, %v11733
      %v11756 = vadd.f32 %v11718, %v11733
      %v11757 = vadd.f32 %v11719, %v11733
      %v11758 = vadd.f32 %v11720, %v11733
      %v11759 = vadd.f32 %v11721, %v11733
      %v11760 = vadd.f32 %v11722, %v11733
      %v11761 = vadd.f32 %v11723, %v11733
      %v11762 = vadd.f32 %v11724, %v11733
      %v11763 = vadd.f32 %v11725, %v11733
      %v11764 = vadd.f32 %v11726, %v11733
      %v11765 = vadd.f32 %v11727, %v11733
      %v11766 = vadd.f32 %v11728, %v11733
      %v11767 = vmax.f32 %v11735, 0.0
      %v11768 = vmax.f32 %v11736, 0.0
      %v11769 = vmax.f32 %v11737, 0.0
      %v11770 = vmax.f32 %v11738, 0.0
      %v11771 = vmax.f32 %v11739, 0.0
      %v11772 = vmax.f32 %v11740, 0.0
      %v11773 = vmax.f32 %v11741, 0.0
      %v11774 = vmax.f32 %v11742, 0.0
      %v11775 = vmax.f32 %v11743, 0.0
      %v11776 = vmax.f32 %v11744, 0.0
      %v11777 = vmax.f32 %v11745, 0.0
      %v11778 = vmax.f32 %v11746, 0.0
      %v11779 = vmax.f32 %v11747, 0.0
      %v11780 = vmax.f32 %v11748, 0.0
      %v11781 = vmax.f32 %v11749, 0.0
      %v11782 = vmax.f32 %v11750, 0.0
      %v11783 = vmax.f32 %v11751, 0.0
      %v11784 = vmax.f32 %v11752, 0.0
      %v11785 = vmax.f32 %v11753, 0.0
      %v11786 = vmax.f32 %v11754, 0.0
      %v11787 = vmax.f32 %v11755, 0.0
      %v11788 = vmax.f32 %v11756, 0.0
      %v11789 = vmax.f32 %v11757, 0.0
      %v11790 = vmax.f32 %v11758, 0.0
      %v11791 = vmax.f32 %v11759, 0.0
      %v11792 = vmax.f32 %v11760, 0.0
      %v11793 = vmax.f32 %v11761, 0.0
      %v11794 = vmax.f32 %v11762, 0.0
      %v11795 = vmax.f32 %v11763, 0.0
      %v11796 = vmax.f32 %v11764, 0.0
      %v11797 = vmax.f32 %v11765, 0.0
      %v11798 = vmax.f32 %v11766, 0.0
      %11799 = vst.msk [vmem:[%s406] sm:$0xff] %vm690, %v11767
      %11800 = vst.msk [vmem:[%s406 + $0x8] sm:$0xff] %vm690, %v11768
      %11801 = vst.msk [vmem:[%s406 + $0x10] sm:$0xff] %vm690, %v11769
      %11802 = vst.msk [vmem:[%s406 + $0x18] sm:$0xff] %vm690, %v11770
      %11803 = vst.msk [vmem:[%s406 + $0x20] sm:$0xff] %vm690, %v11771
      %11804 = vst.msk [vmem:[%s406 + $0x28] sm:$0xff] %vm690, %v11772
      %11805 = vst.msk [vmem:[%s406 + $0x30] sm:$0xff] %vm690, %v11773
      %11806 = vst.msk [vmem:[%s406 + $0x38] sm:$0xff] %vm690, %v11774
      %11807 = vst.msk [vmem:[%s406 + $0x40] sm:$0xff] %vm690, %v11775
      %11808 = vst.msk [vmem:[%s406 + $0x48] sm:$0xff] %vm690, %v11776
      %11809 = vst.msk [vmem:[%s406 + $0x50] sm:$0xff] %vm690, %v11777
      %11810 = vst.msk [vmem:[%s406 + $0x58] sm:$0xff] %vm690, %v11778
      %11811 = vst.msk [vmem:[%s406 + $0x60] sm:$0xff] %vm690, %v11779
      %11812 = vst.msk [vmem:[%s406 + $0x68] sm:$0xff] %vm690, %v11780
      %11813 = vst.msk [vmem:[%s406 + $0x70] sm:$0xff] %vm690, %v11781
      %11814 = vst.msk [vmem:[%s406 + $0x78] sm:$0xff] %vm690, %v11782
      %11815 = vst.msk [vmem:[%s406 + $0x80] sm:$0xff] %vm690, %v11783
      %11816 = vst.msk [vmem:[%s406 + $0x88] sm:$0xff] %vm690, %v11784
      %11817 = vst.msk [vmem:[%s406 + $0x90] sm:$0xff] %vm690, %v11785
      %11818 = vst.msk [vmem:[%s406 + $0x98] sm:$0xff] %vm690, %v11786
      %11819 = vst.msk [vmem:[%s406 + $0xa0] sm:$0xff] %vm690, %v11787
      %11820 = vst.msk [vmem:[%s406 + $0xa8] sm:$0xff] %vm690, %v11788
      %11821 = vst.msk [vmem:[%s406 + $0xb0] sm:$0xff] %vm690, %v11789
      %11822 = vst.msk [vmem:[%s406 + $0xb8] sm:$0xff] %vm690, %v11790
      %11823 = vst.msk [vmem:[%s406 + $0xc0] sm:$0xff] %vm690, %v11791
      %11824 = vst.msk [vmem:[%s406 + $0xc8] sm:$0xff] %vm690, %v11792
      %11825 = vst.msk [vmem:[%s406 + $0xd0] sm:$0xff] %vm690, %v11793
      %11826 = vst.msk [vmem:[%s406 + $0xd8] sm:$0xff] %vm690, %v11794
      %11827 = vst.msk [vmem:[%s406 + $0xe0] sm:$0xff] %vm690, %v11795
      %11828 = vst.msk [vmem:[%s406 + $0xe8] sm:$0xff] %vm690, %v11796
      %11829 = vst.msk [vmem:[%s406 + $0xf0] sm:$0xff] %vm690, %v11797
      %11830 = vst.msk [vmem:[%s406 + $0xf8] sm:$0xff] %vm690, %v11798
      %p11831 = scmp.lt.s32.totalorder %s22, 1
      %s11832 = scalar_select %p11831, %s22, 1
      %s11833 = smul.addr %s11832, 32
      %s11834 = smul.addr %s11833, 8
      %s11835 = scalar_lea.vmem %s11, %s11834
      // Predicated region
      $region65: #{_up_block_attention_nchw_impl.1} parent=63 // pred_check
        %p11836 = pneg %p281
      $region66: #{_up_block_attention_nchw_impl.1} parent=63 // pred_check_branch
        %11838 = sbr.rel (%p11836) target = $region68
      $region67: #{_up_block_attention_nchw_impl.1} parent=63 // pred_region
        _
      $region68: #{_up_block_attention_nchw_impl.1} parent=63 // pred_fallthru
        _
    $region64: #{_up_block_attention_nchw_impl.1} parent=5 // pred_fallthru
      _
    %p11839 = scmp.le.s32.totalorder 2, %s17
    // Predicated region
    $region69: #{_up_block_attention_nchw_impl.1} parent=5 // pred_check
      %p11840 = pneg %p11839
    $region70: #{_up_block_attention_nchw_impl.1} parent=5 // pred_check_branch
      %11842 = sbr.rel (%p11840) target = $region72
    $region71: #{_up_block_attention_nchw_impl.1} parent=5 // pred_region
      %s11843 = ssub.s32 %s17, 2
      // Predicated region
      $region73: #{_up_block_attention_nchw_impl.1} parent=71 // pred_check
        %p11844 = pneg %p287
      $region74: #{_up_block_attention_nchw_impl.1} parent=71 // pred_check_branch
        %11846 = sbr.rel (%p11844) target = $region76
      $region75: #{_up_block_attention_nchw_impl.1} parent=71 // pred_region
        %p11847 = scmp.lt.s32.totalorder %s23, 1
        %s11848 = scalar_select %p11847, %s23, 1
        %s11849 = smul.addr %s11848, 32
        %s11850 = smul.addr %s11849, 8
        %s11851 = scalar_lea.vmem %s11, %s11850
      $region76: #{_up_block_attention_nchw_impl.1} parent=71 // pred_fallthru
        _
    $region72: #{_up_block_attention_nchw_impl.1} parent=5 // pred_fallthru
      _
  $region6: #{_up_block_attention_nchw_impl.1} parent=0 // loop_footer
    %s21 = sadd.s32 1, %s17
  $region7: #{_up_block_attention_nchw_impl.1} parent=0 // loop_footer_branch
    %16 = sbr.rel target = $region3
  $region8: #{_up_block_attention_nchw_impl.1} parent=0 // loop_exit
    _

</llo_original>
